<compile_context>
chip_gen: v7x
topology: tpu7x:2x2x1
jax: 0.10.0
libtpu: 0.0.40
codegen_flags: <defaults>
</compile_context>

<pallas_src>
import functools

import jax
import jax.numpy as jnp
from jax.experimental import pallas as pl
from jax.experimental.pallas import tpu as pltpu

CP = 128  # lane-padded channel width used throughout the network (assumes channels <= 128)


def _round_up(x, m):
    return ((x + m - 1) // m) * m


def _prod(t):
    r = 1
    for v in t:
        r *= v
    return r


# ----------------------------------------------------------------------------
# Pallas kernel 1: pointwise linear (1x1 conv-transpose as matmul), row-tiled.
# ----------------------------------------------------------------------------
def _pointwise_kernel(x_ref, w_ref, b_ref, o_ref):
    y = jnp.dot(x_ref[...], w_ref[...], preferred_element_type=jnp.float32)
    y = y + b_ref[...]                       # (bm, N) + (1, N)
    o_ref[...] = y.astype(o_ref.dtype)


def pointwise_linear(x, w, b, *, out_dtype=jnp.bfloat16, block_m=512):
    """y = x @ w + b.  x: (M, K) bf16, w: (K, N) bf16, b: (N,) f32.  N % 128 == 0."""
    M, K = x.shape
    N = w.shape[1]
    bm = min(block_m, _round_up(M, 8))
    Mp = _round_up(M, bm)
    if Mp != M:
        x = jnp.pad(x, ((0, Mp - M), (0, 0)))
    b2 = b.reshape(1, N).astype(jnp.float32)
    out = pl.pallas_call(
        _pointwise_kernel,
        out_shape=jax.ShapeDtypeStruct((Mp, N), out_dtype),
        grid=(Mp // bm,),
        in_specs=[
            pl.BlockSpec((bm, K), lambda i: (i, 0)),
            pl.BlockSpec((K, N), lambda i: (0, 0)),
            pl.BlockSpec((1, N), lambda i: (0, 0)),
        ],
        out_specs=pl.BlockSpec((bm, N), lambda i: (i, 0)),
        compiler_params=pltpu.CompilerParams(dimension_semantics=("parallel",)),
    )(x, w, b2)
    return out[:M] if Mp != M else out


# ----------------------------------------------------------------------------
# Pallas kernel 2: ConvLSTM over the full sequence, grid = (batch, time).
# Batch is independent ("parallel"); time is the sequential recurrence
# ("arbitrary") carrying H (bf16) / C (f32) in VMEM scratch, re-initialized at
# t == 0 for each batch element.  Optionally fuses the final 1x1 conv-transpose
# + sigmoid projection (Cout=1, computed on 128 padded lanes; lane 0 kept later).
# ----------------------------------------------------------------------------
def _convlstm_step_kernel(*refs, cp, activation, fuse_final):
    if fuse_final:
        (x_ref, wx_ref, wh_ref, b_ref, wci_ref, wcf_ref, wco_ref,
         wf_ref, bf_ref, out_ref, h_state, c_state) = refs
    else:
        (x_ref, wx_ref, wh_ref, b_ref, wci_ref, wcf_ref, wco_ref,
         out_ref, h_state, c_state) = refs

    t = pl.program_id(1)

    @pl.when(t == 0)
    def _init():
        h_state[...] = jnp.zeros_like(h_state)
        c_state[...] = jnp.zeros_like(c_state)

    x = x_ref[0, 0]                     # (HW, CP) bf16
    h_prev = h_state[...]               # (HW, CP) bf16
    c_prev = c_state[...]               # (HW, CP) f32

    # conv([X, H_prev]) with kernel_size=1 == x @ Wx + h @ Wh + b (two resident-
    # weight MXU dots; avoids materializing a per-step [x, h] concat).
    conv = jnp.dot(x, wx_ref[...], preferred_element_type=jnp.float32)
    conv = conv + jnp.dot(h_prev, wh_ref[...], preferred_element_type=jnp.float32)
    conv = conv + b_ref[...]                                         # (HW, 4*CP) f32

    if activation == "relu":
        act = lambda v: jnp.maximum(v, 0.0)
    else:  # "tanh"
        act = jnp.tanh

    # Gate blocks are CP(=128)-lane aligned -> free views.
    i_g = jax.nn.sigmoid(conv[:, 0 * cp:1 * cp] + wci_ref[...] * c_prev)
    f_g = jax.nn.sigmoid(conv[:, 1 * cp:2 * cp] + wcf_ref[...] * c_prev)
    c_new = f_g * c_prev + i_g * act(conv[:, 2 * cp:3 * cp])
    o_g = jax.nn.sigmoid(conv[:, 3 * cp:4 * cp] + wco_ref[...] * c_new)
    h_new = o_g * act(c_new)

    c_state[...] = c_new
    h_bf = h_new.astype(jnp.bfloat16)
    h_state[...] = h_bf

    if fuse_final:
        y = jnp.dot(h_bf, wf_ref[...], preferred_element_type=jnp.float32)
        y = jax.nn.sigmoid(y + bf_ref[...])
        out_ref[0, 0] = y.astype(out_ref.dtype)
    else:
        out_ref[0, 0] = h_bf


def convlstm_seq(x, p, *, activation, final=None):
    """x: (B, T, HW, CP) bf16 -> (B, T, HW, CP) bf16 (H sequence) or f32 (fused final)."""
    B, T, HW, C = x.shape
    assert C == CP
    fuse_final = final is not None
    out_dtype = jnp.float32 if fuse_final else jnp.bfloat16
    kernel = functools.partial(_convlstm_step_kernel, cp=C, activation=activation,
                               fuse_final=fuse_final)

    in_specs = [
        pl.BlockSpec((1, 1, HW, C), lambda b, t: (b, t, 0, 0)),   # x_t of batch b
        pl.BlockSpec((C, 4 * C), lambda b, t: (0, 0)),            # Wx (resident)
        pl.BlockSpec((C, 4 * C), lambda b, t: (0, 0)),            # Wh (resident)
        pl.BlockSpec((1, 4 * C), lambda b, t: (0, 0)),            # gate bias
        pl.BlockSpec((HW, C), lambda b, t: (0, 0)),               # W_ci
        pl.BlockSpec((HW, C), lambda b, t: (0, 0)),               # W_cf
        pl.BlockSpec((HW, C), lambda b, t: (0, 0)),               # W_co
    ]
    args = [x, p["wx"], p["wh"], p["b"], p["wci"], p["wcf"], p["wco"]]
    if fuse_final:
        in_specs += [
            pl.BlockSpec((C, C), lambda b, t: (0, 0)),            # final weight
            pl.BlockSpec((1, C), lambda b, t: (0, 0)),            # final bias
        ]
        args += [final["w"], final["b"]]

    # TODO(synk): tile HW into row blocks for large frames (bounds the (HW, CP)
    # state scratch and per-step matmul M); the small shapes here fit VMEM easily.
    return pl.pallas_call(
        kernel,
        out_shape=jax.ShapeDtypeStruct((B, T, HW, C), out_dtype),
        grid=(B, T),
        in_specs=in_specs,
        out_specs=pl.BlockSpec((1, 1, HW, C), lambda b, t: (b, t, 0, 0)),
        scratch_shapes=[
            pltpu.VMEM((HW, C), jnp.bfloat16),   # H state (bf16 matmul operand)
            pltpu.VMEM((HW, C), jnp.float32),    # C state (f32 accumulation)
        ],
        # Time must stay sequential ("arbitrary"); batch iterations are independent.
        compiler_params=pltpu.CompilerParams(
            dimension_semantics=("parallel", "arbitrary")),
    )(*args)


# ----------------------------------------------------------------------------
# JAX glue: layer wrappers (reshape / subsample / pixel-shuffle only)
# ----------------------------------------------------------------------------
def convlstm_layer(x, lstm_p, activation, final=None):
    """ConvLSTM over time.  x: (B,T,H,W,CP) bf16 -> (B,T,H,W,CP)."""
    B, T, H, W, C = x.shape
    y = convlstm_seq(x.reshape(B, T, H * W, C), lstm_p,
                     activation=activation, final=final)
    return y.reshape(B, T, H, W, C)


def convtranspose3d_up(x, w2, b2, s):
    """nn.ConvTranspose3d(kernel=(1,s,s), stride=(1,s,s), padding=0) as a lane-dense
    matmul + channel-last pixel shuffle.
    x: (B,T,H,W,CP) bf16, w2: (CP, s*s*CP) bf16 with (di,dj,c) lane order, b2: (s*s*CP,)."""
    B, T, H, W, C = x.shape
    y = pointwise_linear(x.reshape(-1, C), w2, b2, out_dtype=jnp.bfloat16)
    y = y.reshape(B, T, H, W, s, s, C)
    # Only swap W <-> di; the trailing (dj, C) block stays contiguous (cheap relayout).
    # TODO(synk): the pixel shuffle remains an XLA transpose; BlockSpec cannot
    # express the interleaved scatter directly.
    y = jnp.transpose(y, (0, 1, 2, 4, 3, 5, 6))          # (B,T,H,di,W,dj,C)
    return y.reshape(B, T, H * s, W * s, C)


# ----------------------------------------------------------------------------
# Parameter initialization (logical shapes, matching the PyTorch module) and
# one-time preparation (fusion / lane padding / bf16 casts).
# ----------------------------------------------------------------------------
def _normal(key, shape, scale=0.1):
    return scale * jax.random.normal(key, shape, dtype=jnp.float32)


def init_convlstm_params(key, cin, cout, h, w):
    k = jax.random.split(key, 6)
    return {
        "wx": _normal(k[0], (cin, 4 * cout)),    # input half of the 1x1 gate conv
        "wh": _normal(k[1], (cout, 4 * cout)),   # hidden half of the 1x1 gate conv
        "b": _normal(k[2], (4 * cout,)),
        "wci": _normal(k[3], (cout, h, w)),
        "wcf": _normal(k[4], (cout, h, w)),
        "wco": _normal(k[5], (cout, h, w)),
    }


def init_params(key, frame_size, input_channels, strides, enc_ch, fore_ch):
    layers = len(strides)
    params = {"encoder": [], "forecaster": []}

    channels = (input_channels, *enc_ch)
    for j in range(layers):
        key, k1, k2, k3 = jax.random.split(key, 4)
        fh = frame_size[0] // _prod(strides[:j + 1])
        fw = frame_size[1] // _prod(strides[:j + 1])
        params["encoder"].append({
            "conv_w": _normal(k1, (channels[j], channels[j + 1])),
            "conv_b": _normal(k2, (channels[j + 1],)),
            "lstm": init_convlstm_params(k3, channels[j + 1], channels[j + 1], fh, fw),
        })

    channels = (enc_ch[-1], *fore_ch)
    for k_ in range(layers):
        key, k1, k2, k3 = jax.random.split(key, 4)
        s = strides[-k_ - 1]
        fh = frame_size[0] // _prod(strides) * _prod(strides[-k_ - 1:])
        fw = frame_size[1] // _prod(strides) * _prod(strides[-k_ - 1:])
        params["forecaster"].append({
            # PyTorch ConvTranspose3d weight is (cin, cout, 1, s, s); kD=1 dropped here.
            "conv_w": _normal(k1, (channels[k_], channels[k_ + 1], s, s)),
            "conv_b": _normal(k2, (channels[k_ + 1],)),
            "lstm": init_convlstm_params(k3, channels[k_ + 1], channels[k_ + 1], fh, fw),
        })

    key, k1, k2 = jax.random.split(key, 3)
    params["final_w"] = _normal(k1, (fore_ch[-1], 1))
    params["final_b"] = _normal(k2, (1,))
    return params


def _pad_gate_cols(w, cout):
    """(rows, 4*cout) -> (rows, 4*CP): each gate block zero-padded to CP lanes."""
    rows = w.shape[0]
    w4 = w.reshape(rows, 4, cout)
    w4 = jnp.pad(w4, ((0, 0), (0, 0), (0, CP - cout)))
    return w4.reshape(rows, 4 * CP)


def _pad_rows(w, rows):
    return jnp.pad(w, ((0, rows - w.shape[0]), (0, 0)))


def _prep_lstm(lstm, wx_eff, b_eff):
    """Pad gates to CP lanes; keep Wx / Wh as separate bf16 matmul operands."""
    cout = lstm["wh"].shape[0]
    wx_p = _pad_rows(_pad_gate_cols(wx_eff, cout), CP).astype(jnp.bfloat16)     # (CP, 4*CP)
    wh_p = _pad_rows(_pad_gate_cols(lstm["wh"], cout), CP).astype(jnp.bfloat16)  # (CP, 4*CP)
    b_p = jnp.pad(b_eff.reshape(4, cout), ((0, 0), (0, CP - cout)))
    b_p = b_p.reshape(1, 4 * CP).astype(jnp.float32)

    def peephole(wc):  # (cout, H, W) -> (H*W, CP) f32, zero-padded lanes
        cout_, h, w = wc.shape
        wc2 = jnp.transpose(wc, (1, 2, 0)).reshape(h * w, cout_)
        return jnp.pad(wc2, ((0, 0), (0, CP - cout_))).astype(jnp.float32)

    return {"wx": wx_p, "wh": wh_p, "b": b_p,
            "wci": peephole(lstm["wci"]),
            "wcf": peephole(lstm["wcf"]),
            "wco": peephole(lstm["wco"])}


def prepare_params(params):
    """One-time padding / fusion / bf16 cast of the logical parameters."""
    prep = {"encoder": [], "forecaster": []}

    # Encoder: fold the 1x1 strided Conv3d into the ConvLSTM input matmul
    # (x@Wc@Wx == x@(Wc@Wx); biases fold the same way — exact, both are pointwise).
    for p in params["encoder"]:
        lstm = p["lstm"]
        wx_fused = p["conv_w"] @ lstm["wx"]                  # (cin, 4*cout)
        b_fused = p["conv_b"] @ lstm["wx"] + lstm["b"]       # (4*cout,)
        prep["encoder"].append(_prep_lstm(lstm, wx_fused, b_fused))

    # Forecaster: ConvTranspose3d as a lane-dense matmul with (di,dj,c) output
    # ordering (channel-last-friendly pixel shuffle); LSTM gate-padded.
    for p in params["forecaster"]:
        cin, cout, s, _ = p["conv_w"].shape
        w2 = jnp.transpose(p["conv_w"], (0, 2, 3, 1))        # (cin, s, s, cout)
        w2 = jnp.pad(w2, ((0, CP - cin), (0, 0), (0, 0), (0, CP - cout)))
        w2 = w2.reshape(CP, s * s * CP).astype(jnp.bfloat16)
        b2 = jnp.tile(jnp.pad(p["conv_b"], (0, CP - cout)), s * s).astype(jnp.float32)
        lstm = p["lstm"]
        prep["forecaster"].append({
            "w2": w2, "b2": b2,
            "lstm": _prep_lstm(lstm, lstm["wx"], lstm["b"]),
        })

    # Final 1x1 ConvTranspose3d (Cout=1) + sigmoid: fused into the last ConvLSTM
    # kernel; computed on 128 padded lanes, lane 0 kept in the wrapper.
    cf = params["final_w"].shape[0]
    prep["final"] = {
        "w": jnp.pad(params["final_w"],
                     ((0, CP - cf), (0, CP - 1))).astype(jnp.bfloat16),
        "b": jnp.pad(params["final_b"], (0, CP - 1)).reshape(1, CP).astype(jnp.float32),
    }
    return prep


# ----------------------------------------------------------------------------
# Full forward pass (matches Conv3DLSTM.forward, input/output in NCDHW)
# ----------------------------------------------------------------------------
def conv3dlstm_forward(prep, x, strides, activation="relu"):
    # x: (B, Cin, T, H, W) f32  ->  out: (B, 1, T, H, W) f32
    x = jnp.transpose(x, (0, 2, 3, 4, 1))                    # (B,T,H,W,Cin)
    cin = x.shape[-1]
    x = jnp.pad(x, ((0, 0),) * 4 + ((0, CP - cin),)).astype(jnp.bfloat16)

    # Encoder: strided subsample + (1x1 Conv3d fused into) ConvLSTM.
    # TODO(synk): the strided spatial subsample stays an XLA slice (BlockSpec
    # cannot express strided windows); it is small relative to the LSTM work.
    for j, s in enumerate(strides):
        x = x[:, :, ::s, ::s, :]
        x = convlstm_layer(x, prep["encoder"][j], activation)

    # Forecaster: ConvTranspose3d upsample + ConvLSTM.  The final 1x1 projection
    # + sigmoid is fused into the last ConvLSTM pallas_call.
    n_layers = len(strides)
    for k in range(n_layers):
        s = strides[-k - 1]
        p = prep["forecaster"][k]
        x = convtranspose3d_up(x, p["w2"], p["b2"], s)
        final = prep["final"] if k == n_layers - 1 else None
        x = convlstm_layer(x, p["lstm"], activation, final=final)

    # x: (B,T,H,W,CP) f32 sigmoid output; only lane 0 is meaningful.
    y = x[..., :1]
    return jnp.transpose(y, (0, 4, 1, 2, 3))                 # back to (B, 1, T, H, W)


# ----------------------------------------------------------------------------
if __name__ == "__main__":
    # Module hyperparameters (defaults of Conv3DLSTM, small frame/seq).
    frame_size = (12, 12)            # must be a multiple of prod(strides) = 12
    input_channels = 4
    strides = (2, 2, 3)
    encoder_channels = (32, 64, 128)
    forecaster_channels = (128, 32, 8)
    activation = "relu"

    B, T = 2, 4
    key = jax.random.PRNGKey(0)
    kx, kp = jax.random.split(key)

    # PyTorch NCDHW input: (B, C, T, H, W)
    x = jax.random.normal(kx, (B, input_channels, T, *frame_size), dtype=jnp.float32)
    params = init_params(kp, frame_size, input_channels, strides,
                         encoder_channels, forecaster_channels)
    prep = prepare_params(params)    # one-time fusion / padding / bf16 casts

    fwd = jax.jit(functools.partial(conv3dlstm_forward, strides=strides,
                                    activation=activation))
    out = fwd(prep, x)
    out = jax.block_until_ready(out)

    assert out.shape == (B, 1, T, *frame_size), out.shape
    assert bool(jnp.all(jnp.isfinite(out)))
    assert bool(jnp.all((out >= 0.0) & (out <= 1.0)))   # sigmoid range
    print("KERNEL_OK")
</pallas_src>

<mosaic_0001>
module attributes {stable_mosaic.version = 11 : i64} {
  func.func @_convlstm_step_kernel(%arg0: i32, %arg1: i32, %arg2: memref<1x1x36x128xbf16, #tpu.memory_space<vmem>>, %arg3: memref<128x512xbf16, #tpu.memory_space<vmem>>, %arg4: memref<128x512xbf16, #tpu.memory_space<vmem>>, %arg5: memref<1x512xf32, #tpu.memory_space<vmem>>, %arg6: memref<36x128xf32, #tpu.memory_space<vmem>>, %arg7: memref<36x128xf32, #tpu.memory_space<vmem>>, %arg8: memref<36x128xf32, #tpu.memory_space<vmem>>, %arg9: memref<1x1x36x128xbf16, #tpu.memory_space<vmem>>, %arg10: memref<36x128xbf16, #tpu.memory_space<vmem>>, %arg11: memref<36x128xf32, #tpu.memory_space<vmem>>) attributes {dimension_semantics = [#tpu.dimension_semantics<parallel>, #tpu.dimension_semantics<arbitrary>], iteration_bounds = array<i64: 2, 4>, scalar_prefetch = 0 : i64, scratch_operands = 2 : i64, tpu.core_type = #tpu.core_type<tc>, window_params = [{transform_indices = @transform_0, window_bounds = array<i64: 1, 1, 36, 128>}, {pipeline_mode = #tpu.pipeline_mode<synchronous>, transform_indices = @transform_1, window_bounds = array<i64: 128, 512>}, {pipeline_mode = #tpu.pipeline_mode<synchronous>, transform_indices = @transform_2, window_bounds = array<i64: 128, 512>}, {pipeline_mode = #tpu.pipeline_mode<synchronous>, transform_indices = @transform_3, window_bounds = array<i64: 1, 512>}, {pipeline_mode = #tpu.pipeline_mode<synchronous>, transform_indices = @transform_4, window_bounds = array<i64: 36, 128>}, {pipeline_mode = #tpu.pipeline_mode<synchronous>, transform_indices = @transform_5, window_bounds = array<i64: 36, 128>}, {pipeline_mode = #tpu.pipeline_mode<synchronous>, transform_indices = @transform_6, window_bounds = array<i64: 36, 128>}, {transform_indices = @transform_7, window_bounds = array<i64: 1, 1, 36, 128>}]} {
    %c0_i32 = arith.constant 0 : i32
    %0 = arith.cmpi eq, %arg1, %c0_i32 : i32
    %1 = arith.extui %0 : i1 to i32
    %c0_i32_0 = arith.constant 0 : i32
    %2 = arith.cmpi ne, %1, %c0_i32_0 : i32
    scf.if %2 {
      %cst_34 = arith.constant 0.000000e+00 : bf16
      %57 = vector.broadcast %cst_34 : bf16 to vector<36x128xbf16>
      %c0_35 = arith.constant 0 : index
      %c0_36 = arith.constant 0 : index
      %58 = vector.load %arg10[%c0_35, %c0_36] : memref<36x128xbf16, #tpu.memory_space<vmem>>, vector<36x128xbf16>
      tpu.vector_store %arg10[%c0_35, %c0_36], %57 {strides = array<i32>} : memref<36x128xbf16, #tpu.memory_space<vmem>>, vector<36x128xbf16>,
      %cst_37 = arith.constant 0.000000e+00 : f32
      %59 = vector.broadcast %cst_37 : f32 to vector<36x128xf32>
      %c0_38 = arith.constant 0 : index
      %c0_39 = arith.constant 0 : index
      %60 = vector.load %arg11[%c0_38, %c0_39] : memref<36x128xf32, #tpu.memory_space<vmem>>, vector<36x128xf32>
      tpu.vector_store %arg11[%c0_38, %c0_39], %59 {strides = array<i32>} : memref<36x128xf32, #tpu.memory_space<vmem>>, vector<36x128xf32>,
    } else {
    }
    %c0 = arith.constant 0 : index
    %c0_1 = arith.constant 0 : index
    %c0_2 = arith.constant 0 : index
    %c0_3 = arith.constant 0 : index
    %3 = vector.load %arg2[%c0, %c0_1, %c0_2, %c0_3] : memref<1x1x36x128xbf16, #tpu.memory_space<vmem>>, vector<1x1x36x128xbf16>
    %4 = vector.shape_cast %3 : vector<1x1x36x128xbf16> to vector<36x128xbf16>
    %c0_4 = arith.constant 0 : index
    %c0_5 = arith.constant 0 : index
    %5 = vector.load %arg10[%c0_4, %c0_5] : memref<36x128xbf16, #tpu.memory_space<vmem>>, vector<36x128xbf16>
    %c0_6 = arith.constant 0 : index
    %c0_7 = arith.constant 0 : index
    %6 = vector.load %arg11[%c0_6, %c0_7] : memref<36x128xf32, #tpu.memory_space<vmem>>, vector<36x128xf32>
    %c0_8 = arith.constant 0 : index
    %c0_9 = arith.constant 0 : index
    %7 = vector.load %arg3[%c0_8, %c0_9] : memref<128x512xbf16, #tpu.memory_space<vmem>>, vector<128x512xbf16>
    %cst = arith.constant dense<0.000000e+00> : vector<36x512xf32>
    %8 = tpu.matmul %4, %7, %cst {dimension_numbers = #tpu.dot_dimension_numbers<[1], [0], [0], [1], [0, 0, 1, 1], [], []>} : vector<36x128xbf16>, vector<128x512xbf16>, vector<36x512xf32> -> vector<36x512xf32>
    %c0_10 = arith.constant 0 : index
    %c0_11 = arith.constant 0 : index
    %9 = vector.load %arg4[%c0_10, %c0_11] : memref<128x512xbf16, #tpu.memory_space<vmem>>, vector<128x512xbf16>
    %cst_12 = arith.constant dense<0.000000e+00> : vector<36x512xf32>
    %10 = tpu.matmul %5, %9, %cst_12 {dimension_numbers = #tpu.dot_dimension_numbers<[1], [0], [0], [1], [0, 0, 1, 1], [], []>} : vector<36x128xbf16>, vector<128x512xbf16>, vector<36x512xf32> -> vector<36x512xf32>
    %11 = arith.addf %8, %10 : vector<36x512xf32>
    %c0_13 = arith.constant 0 : index
    %c0_14 = arith.constant 0 : index
    %12 = vector.load %arg5[%c0_13, %c0_14] : memref<1x512xf32, #tpu.memory_space<vmem>>, vector<1x512xf32>
    %13 = vector.broadcast %12 : vector<1x512xf32> to vector<36x512xf32>
    %14 = arith.addf %11, %13 : vector<36x512xf32>
    %15 = vector.extract_strided_slice %14 {offsets = [0, 0], sizes = [36, 128], strides = [1, 1]} : vector<36x512xf32> to vector<36x128xf32>
    %c0_15 = arith.constant 0 : index
    %c0_16 = arith.constant 0 : index
    %16 = vector.load %arg6[%c0_15, %c0_16] : memref<36x128xf32, #tpu.memory_space<vmem>>, vector<36x128xf32>
    %17 = arith.mulf %16, %6 : vector<36x128xf32>
    %18 = arith.addf %15, %17 : vector<36x128xf32>
    %19 = arith.negf %18 : vector<36x128xf32>
    %20 = math.exp %19 : vector<36x128xf32>
    %cst_17 = arith.constant 1.000000e+00 : f32
    %21 = vector.broadcast %cst_17 : f32 to vector<36x128xf32>
    %22 = arith.addf %21, %20 : vector<36x128xf32>
    %23 = arith.divf %21, %22 : vector<36x128xf32>
    %24 = vector.extract_strided_slice %14 {offsets = [0, 128], sizes = [36, 128], strides = [1, 1]} : vector<36x512xf32> to vector<36x128xf32>
    %c0_18 = arith.constant 0 : index
    %c0_19 = arith.constant 0 : index
    %25 = vector.load %arg7[%c0_18, %c0_19] : memref<36x128xf32, #tpu.memory_space<vmem>>, vector<36x128xf32>
    %26 = arith.mulf %25, %6 : vector<36x128xf32>
    %27 = arith.addf %24, %26 : vector<36x128xf32>
    %28 = arith.negf %27 : vector<36x128xf32>
    %29 = math.exp %28 : vector<36x128xf32>
    %cst_20 = arith.constant 1.000000e+00 : f32
    %30 = vector.broadcast %cst_20 : f32 to vector<36x128xf32>
    %31 = arith.addf %30, %29 : vector<36x128xf32>
    %32 = arith.divf %30, %31 : vector<36x128xf32>
    %33 = arith.mulf %32, %6 : vector<36x128xf32>
    %34 = vector.extract_strided_slice %14 {offsets = [0, 256], sizes = [36, 128], strides = [1, 1]} : vector<36x512xf32> to vector<36x128xf32>
    %cst_21 = arith.constant 0.000000e+00 : f32
    %35 = vector.broadcast %cst_21 : f32 to vector<36x128xf32>
    %36 = arith.maximumf %34, %35 : vector<36x128xf32>
    %37 = arith.mulf %23, %36 : vector<36x128xf32>
    %38 = arith.addf %33, %37 : vector<36x128xf32>
    %39 = vector.extract_strided_slice %14 {offsets = [0, 384], sizes = [36, 128], strides = [1, 1]} : vector<36x512xf32> to vector<36x128xf32>
    %c0_22 = arith.constant 0 : index
    %c0_23 = arith.constant 0 : index
    %40 = vector.load %arg8[%c0_22, %c0_23] : memref<36x128xf32, #tpu.memory_space<vmem>>, vector<36x128xf32>
    %41 = arith.mulf %40, %38 : vector<36x128xf32>
    %42 = arith.addf %39, %41 : vector<36x128xf32>
    %43 = arith.negf %42 : vector<36x128xf32>
    %44 = math.exp %43 : vector<36x128xf32>
    %cst_24 = arith.constant 1.000000e+00 : f32
    %45 = vector.broadcast %cst_24 : f32 to vector<36x128xf32>
    %46 = arith.addf %45, %44 : vector<36x128xf32>
    %47 = arith.divf %45, %46 : vector<36x128xf32>
    %cst_25 = arith.constant 0.000000e+00 : f32
    %48 = vector.broadcast %cst_25 : f32 to vector<36x128xf32>
    %49 = arith.maximumf %38, %48 : vector<36x128xf32>
    %50 = arith.mulf %47, %49 : vector<36x128xf32>
    %c0_26 = arith.constant 0 : index
    %c0_27 = arith.constant 0 : index
    %51 = vector.load %arg11[%c0_26, %c0_27] : memref<36x128xf32, #tpu.memory_space<vmem>>, vector<36x128xf32>
    tpu.vector_store %arg11[%c0_26, %c0_27], %38 {strides = array<i32>} : memref<36x128xf32, #tpu.memory_space<vmem>>, vector<36x128xf32>,
    %52 = arith.truncf %50 : vector<36x128xf32> to vector<36x128xbf16>
    %c0_28 = arith.constant 0 : index
    %c0_29 = arith.constant 0 : index
    %53 = vector.load %arg10[%c0_28, %c0_29] : memref<36x128xbf16, #tpu.memory_space<vmem>>, vector<36x128xbf16>
    tpu.vector_store %arg10[%c0_28, %c0_29], %52 {strides = array<i32>} : memref<36x128xbf16, #tpu.memory_space<vmem>>, vector<36x128xbf16>,
    %c0_30 = arith.constant 0 : index
    %c0_31 = arith.constant 0 : index
    %c0_32 = arith.constant 0 : index
    %c0_33 = arith.constant 0 : index
    %54 = vector.load %arg9[%c0_30, %c0_31, %c0_32, %c0_33] : memref<1x1x36x128xbf16, #tpu.memory_space<vmem>>, vector<1x1x36x128xbf16>
    %55 = vector.shape_cast %54 : vector<1x1x36x128xbf16> to vector<36x128xbf16>
    %56 = vector.shape_cast %52 : vector<36x128xbf16> to vector<1x1x36x128xbf16>
    tpu.vector_store %arg9[%c0_30, %c0_31, %c0_32, %c0_33], %56 {strides = array<i32>} : memref<1x1x36x128xbf16, #tpu.memory_space<vmem>>, vector<1x1x36x128xbf16>,
    return
  }
  func.func @transform_0(%arg0: i32, %arg1: i32) -> (i32, i32, i32, i32) {
    %c0_i32 = arith.constant 0 : i32
    %c0_i32_0 = arith.constant 0 : i32
    %c0_i32_1 = arith.constant 0 : i32
    return %arg0, %arg1, %c0_i32, %c0_i32_0 : i32, i32, i32, i32
  }
  func.func @transform_1(%arg0: i32, %arg1: i32) -> (i32, i32) {
    %c0_i32 = arith.constant 0 : i32
    %c0_i32_0 = arith.constant 0 : i32
    %c0_i32_1 = arith.constant 0 : i32
    return %c0_i32, %c0_i32_0 : i32, i32
  }
  func.func @transform_2(%arg0: i32, %arg1: i32) -> (i32, i32) {
    %c0_i32 = arith.constant 0 : i32
    %c0_i32_0 = arith.constant 0 : i32
    %c0_i32_1 = arith.constant 0 : i32
    return %c0_i32, %c0_i32_0 : i32, i32
  }
  func.func @transform_3(%arg0: i32, %arg1: i32) -> (i32, i32) {
    %c0_i32 = arith.constant 0 : i32
    %c0_i32_0 = arith.constant 0 : i32
    %c0_i32_1 = arith.constant 0 : i32
    return %c0_i32, %c0_i32_0 : i32, i32
  }
  func.func @transform_4(%arg0: i32, %arg1: i32) -> (i32, i32) {
    %c0_i32 = arith.constant 0 : i32
    %c0_i32_0 = arith.constant 0 : i32
    %c0_i32_1 = arith.constant 0 : i32
    return %c0_i32, %c0_i32_0 : i32, i32
  }
  func.func @transform_5(%arg0: i32, %arg1: i32) -> (i32, i32) {
    %c0_i32 = arith.constant 0 : i32
    %c0_i32_0 = arith.constant 0 : i32
    %c0_i32_1 = arith.constant 0 : i32
    return %c0_i32, %c0_i32_0 : i32, i32
  }
  func.func @transform_6(%arg0: i32, %arg1: i32) -> (i32, i32) {
    %c0_i32 = arith.constant 0 : i32
    %c0_i32_0 = arith.constant 0 : i32
    %c0_i32_1 = arith.constant 0 : i32
    return %c0_i32, %c0_i32_0 : i32, i32
  }
  func.func @transform_7(%arg0: i32, %arg1: i32) -> (i32, i32, i32, i32) {
    %c0_i32 = arith.constant 0 : i32
    %c0_i32_0 = arith.constant 0 : i32
    %c0_i32_1 = arith.constant 0 : i32
    return %arg0, %arg1, %c0_i32, %c0_i32_0 : i32, i32, i32, i32
  }
}

module attributes {stable_mosaic.version = 11 : i64} {
  func.func @_convlstm_step_kernel(%arg0: i32, %arg1: i32, %arg2: memref<1x1x9x128xbf16, #tpu.memory_space<vmem>>, %arg3: memref<128x512xbf16, #tpu.memory_space<vmem>>, %arg4: memref<128x512xbf16, #tpu.memory_space<vmem>>, %arg5: memref<1x512xf32, #tpu.memory_space<vmem>>, %arg6: memref<9x128xf32, #tpu.memory_space<vmem>>, %arg7: memref<9x128xf32, #tpu.memory_space<vmem>>, %arg8: memref<9x128xf32, #tpu.memory_space<vmem>>, %arg9: memref<1x1x9x128xbf16, #tpu.memory_space<vmem>>, %arg10: memref<9x128xbf16, #tpu.memory_space<vmem>>, %arg11: memref<9x128xf32, #tpu.memory_space<vmem>>) attributes {dimension_semantics = [#tpu.dimension_semantics<parallel>, #tpu.dimension_semantics<arbitrary>], iteration_bounds = array<i64: 2, 4>, scalar_prefetch = 0 : i64, scratch_operands = 2 : i64, tpu.core_type = #tpu.core_type<tc>, window_params = [{transform_indices = @transform_0, window_bounds = array<i64: 1, 1, 9, 128>}, {pipeline_mode = #tpu.pipeline_mode<synchronous>, transform_indices = @transform_1, window_bounds = array<i64: 128, 512>}, {pipeline_mode = #tpu.pipeline_mode<synchronous>, transform_indices = @transform_2, window_bounds = array<i64: 128, 512>}, {pipeline_mode = #tpu.pipeline_mode<synchronous>, transform_indices = @transform_3, window_bounds = array<i64: 1, 512>}, {pipeline_mode = #tpu.pipeline_mode<synchronous>, transform_indices = @transform_4, window_bounds = array<i64: 9, 128>}, {pipeline_mode = #tpu.pipeline_mode<synchronous>, transform_indices = @transform_5, window_bounds = array<i64: 9, 128>}, {pipeline_mode = #tpu.pipeline_mode<synchronous>, transform_indices = @transform_6, window_bounds = array<i64: 9, 128>}, {transform_indices = @transform_7, window_bounds = array<i64: 1, 1, 9, 128>}]} {
    %c0_i32 = arith.constant 0 : i32
    %0 = arith.cmpi eq, %arg1, %c0_i32 : i32
    %1 = arith.extui %0 : i1 to i32
    %c0_i32_0 = arith.constant 0 : i32
    %2 = arith.cmpi ne, %1, %c0_i32_0 : i32
    scf.if %2 {
      %cst_34 = arith.constant 0.000000e+00 : bf16
      %57 = vector.broadcast %cst_34 : bf16 to vector<9x128xbf16>
      %c0_35 = arith.constant 0 : index
      %c0_36 = arith.constant 0 : index
      %58 = vector.load %arg10[%c0_35, %c0_36] : memref<9x128xbf16, #tpu.memory_space<vmem>>, vector<9x128xbf16>
      tpu.vector_store %arg10[%c0_35, %c0_36], %57 {strides = array<i32>} : memref<9x128xbf16, #tpu.memory_space<vmem>>, vector<9x128xbf16>,
      %cst_37 = arith.constant 0.000000e+00 : f32
      %59 = vector.broadcast %cst_37 : f32 to vector<9x128xf32>
      %c0_38 = arith.constant 0 : index
      %c0_39 = arith.constant 0 : index
      %60 = vector.load %arg11[%c0_38, %c0_39] : memref<9x128xf32, #tpu.memory_space<vmem>>, vector<9x128xf32>
      tpu.vector_store %arg11[%c0_38, %c0_39], %59 {strides = array<i32>} : memref<9x128xf32, #tpu.memory_space<vmem>>, vector<9x128xf32>,
    } else {
    }
    %c0 = arith.constant 0 : index
    %c0_1 = arith.constant 0 : index
    %c0_2 = arith.constant 0 : index
    %c0_3 = arith.constant 0 : index
    %3 = vector.load %arg2[%c0, %c0_1, %c0_2, %c0_3] : memref<1x1x9x128xbf16, #tpu.memory_space<vmem>>, vector<1x1x9x128xbf16>
    %4 = vector.shape_cast %3 : vector<1x1x9x128xbf16> to vector<9x128xbf16>
    %c0_4 = arith.constant 0 : index
    %c0_5 = arith.constant 0 : index
    %5 = vector.load %arg10[%c0_4, %c0_5] : memref<9x128xbf16, #tpu.memory_space<vmem>>, vector<9x128xbf16>
    %c0_6 = arith.constant 0 : index
    %c0_7 = arith.constant 0 : index
    %6 = vector.load %arg11[%c0_6, %c0_7] : memref<9x128xf32, #tpu.memory_space<vmem>>, vector<9x128xf32>
    %c0_8 = arith.constant 0 : index
    %c0_9 = arith.constant 0 : index
    %7 = vector.load %arg3[%c0_8, %c0_9] : memref<128x512xbf16, #tpu.memory_space<vmem>>, vector<128x512xbf16>
    %cst = arith.constant dense<0.000000e+00> : vector<9x512xf32>
    %8 = tpu.matmul %4, %7, %cst {dimension_numbers = #tpu.dot_dimension_numbers<[1], [0], [0], [1], [0, 0, 1, 1], [], []>} : vector<9x128xbf16>, vector<128x512xbf16>, vector<9x512xf32> -> vector<9x512xf32>
    %c0_10 = arith.constant 0 : index
    %c0_11 = arith.constant 0 : index
    %9 = vector.load %arg4[%c0_10, %c0_11] : memref<128x512xbf16, #tpu.memory_space<vmem>>, vector<128x512xbf16>
    %cst_12 = arith.constant dense<0.000000e+00> : vector<9x512xf32>
    %10 = tpu.matmul %5, %9, %cst_12 {dimension_numbers = #tpu.dot_dimension_numbers<[1], [0], [0], [1], [0, 0, 1, 1], [], []>} : vector<9x128xbf16>, vector<128x512xbf16>, vector<9x512xf32> -> vector<9x512xf32>
    %11 = arith.addf %8, %10 : vector<9x512xf32>
    %c0_13 = arith.constant 0 : index
    %c0_14 = arith.constant 0 : index
    %12 = vector.load %arg5[%c0_13, %c0_14] : memref<1x512xf32, #tpu.memory_space<vmem>>, vector<1x512xf32>
    %13 = vector.broadcast %12 : vector<1x512xf32> to vector<9x512xf32>
    %14 = arith.addf %11, %13 : vector<9x512xf32>
    %15 = vector.extract_strided_slice %14 {offsets = [0, 0], sizes = [9, 128], strides = [1, 1]} : vector<9x512xf32> to vector<9x128xf32>
    %c0_15 = arith.constant 0 : index
    %c0_16 = arith.constant 0 : index
    %16 = vector.load %arg6[%c0_15, %c0_16] : memref<9x128xf32, #tpu.memory_space<vmem>>, vector<9x128xf32>
    %17 = arith.mulf %16, %6 : vector<9x128xf32>
    %18 = arith.addf %15, %17 : vector<9x128xf32>
    %19 = arith.negf %18 : vector<9x128xf32>
    %20 = math.exp %19 : vector<9x128xf32>
    %cst_17 = arith.constant 1.000000e+00 : f32
    %21 = vector.broadcast %cst_17 : f32 to vector<9x128xf32>
    %22 = arith.addf %21, %20 : vector<9x128xf32>
    %23 = arith.divf %21, %22 : vector<9x128xf32>
    %24 = vector.extract_strided_slice %14 {offsets = [0, 128], sizes = [9, 128], strides = [1, 1]} : vector<9x512xf32> to vector<9x128xf32>
    %c0_18 = arith.constant 0 : index
    %c0_19 = arith.constant 0 : index
    %25 = vector.load %arg7[%c0_18, %c0_19] : memref<9x128xf32, #tpu.memory_space<vmem>>, vector<9x128xf32>
    %26 = arith.mulf %25, %6 : vector<9x128xf32>
    %27 = arith.addf %24, %26 : vector<9x128xf32>
    %28 = arith.negf %27 : vector<9x128xf32>
    %29 = math.exp %28 : vector<9x128xf32>
    %cst_20 = arith.constant 1.000000e+00 : f32
    %30 = vector.broadcast %cst_20 : f32 to vector<9x128xf32>
    %31 = arith.addf %30, %29 : vector<9x128xf32>
    %32 = arith.divf %30, %31 : vector<9x128xf32>
    %33 = arith.mulf %32, %6 : vector<9x128xf32>
    %34 = vector.extract_strided_slice %14 {offsets = [0, 256], sizes = [9, 128], strides = [1, 1]} : vector<9x512xf32> to vector<9x128xf32>
    %cst_21 = arith.constant 0.000000e+00 : f32
    %35 = vector.broadcast %cst_21 : f32 to vector<9x128xf32>
    %36 = arith.maximumf %34, %35 : vector<9x128xf32>
    %37 = arith.mulf %23, %36 : vector<9x128xf32>
    %38 = arith.addf %33, %37 : vector<9x128xf32>
    %39 = vector.extract_strided_slice %14 {offsets = [0, 384], sizes = [9, 128], strides = [1, 1]} : vector<9x512xf32> to vector<9x128xf32>
    %c0_22 = arith.constant 0 : index
    %c0_23 = arith.constant 0 : index
    %40 = vector.load %arg8[%c0_22, %c0_23] : memref<9x128xf32, #tpu.memory_space<vmem>>, vector<9x128xf32>
    %41 = arith.mulf %40, %38 : vector<9x128xf32>
    %42 = arith.addf %39, %41 : vector<9x128xf32>
    %43 = arith.negf %42 : vector<9x128xf32>
    %44 = math.exp %43 : vector<9x128xf32>
    %cst_24 = arith.constant 1.000000e+00 : f32
    %45 = vector.broadcast %cst_24 : f32 to vector<9x128xf32>
    %46 = arith.addf %45, %44 : vector<9x128xf32>
    %47 = arith.divf %45, %46 : vector<9x128xf32>
    %cst_25 = arith.constant 0.000000e+00 : f32
    %48 = vector.broadcast %cst_25 : f32 to vector<9x128xf32>
    %49 = arith.maximumf %38, %48 : vector<9x128xf32>
    %50 = arith.mulf %47, %49 : vector<9x128xf32>
    %c0_26 = arith.constant 0 : index
    %c0_27 = arith.constant 0 : index
    %51 = vector.load %arg11[%c0_26, %c0_27] : memref<9x128xf32, #tpu.memory_space<vmem>>, vector<9x128xf32>
    tpu.vector_store %arg11[%c0_26, %c0_27], %38 {strides = array<i32>} : memref<9x128xf32, #tpu.memory_space<vmem>>, vector<9x128xf32>,
    %52 = arith.truncf %50 : vector<9x128xf32> to vector<9x128xbf16>
    %c0_28 = arith.constant 0 : index
    %c0_29 = arith.constant 0 : index
    %53 = vector.load %arg10[%c0_28, %c0_29] : memref<9x128xbf16, #tpu.memory_space<vmem>>, vector<9x128xbf16>
    tpu.vector_store %arg10[%c0_28, %c0_29], %52 {strides = array<i32>} : memref<9x128xbf16, #tpu.memory_space<vmem>>, vector<9x128xbf16>,
    %c0_30 = arith.constant 0 : index
    %c0_31 = arith.constant 0 : index
    %c0_32 = arith.constant 0 : index
    %c0_33 = arith.constant 0 : index
    %54 = vector.load %arg9[%c0_30, %c0_31, %c0_32, %c0_33] : memref<1x1x9x128xbf16, #tpu.memory_space<vmem>>, vector<1x1x9x128xbf16>
    %55 = vector.shape_cast %54 : vector<1x1x9x128xbf16> to vector<9x128xbf16>
    %56 = vector.shape_cast %52 : vector<9x128xbf16> to vector<1x1x9x128xbf16>
    tpu.vector_store %arg9[%c0_30, %c0_31, %c0_32, %c0_33], %56 {strides = array<i32>} : memref<1x1x9x128xbf16, #tpu.memory_space<vmem>>, vector<1x1x9x128xbf16>,
    return
  }
  func.func @transform_0(%arg0: i32, %arg1: i32) -> (i32, i32, i32, i32) {
    %c0_i32 = arith.constant 0 : i32
    %c0_i32_0 = arith.constant 0 : i32
    %c0_i32_1 = arith.constant 0 : i32
    return %arg0, %arg1, %c0_i32, %c0_i32_0 : i32, i32, i32, i32
  }
  func.func @transform_1(%arg0: i32, %arg1: i32) -> (i32, i32) {
    %c0_i32 = arith.constant 0 : i32
    %c0_i32_0 = arith.constant 0 : i32
    %c0_i32_1 = arith.constant 0 : i32
    return %c0_i32, %c0_i32_0 : i32, i32
  }
  func.func @transform_2(%arg0: i32, %arg1: i32) -> (i32, i32) {
    %c0_i32 = arith.constant 0 : i32
    %c0_i32_0 = arith.constant 0 : i32
    %c0_i32_1 = arith.constant 0 : i32
    return %c0_i32, %c0_i32_0 : i32, i32
  }
  func.func @transform_3(%arg0: i32, %arg1: i32) -> (i32, i32) {
    %c0_i32 = arith.constant 0 : i32
    %c0_i32_0 = arith.constant 0 : i32
    %c0_i32_1 = arith.constant 0 : i32
    return %c0_i32, %c0_i32_0 : i32, i32
  }
  func.func @transform_4(%arg0: i32, %arg1: i32) -> (i32, i32) {
    %c0_i32 = arith.constant 0 : i32
    %c0_i32_0 = arith.constant 0 : i32
    %c0_i32_1 = arith.constant 0 : i32
    return %c0_i32, %c0_i32_0 : i32, i32
  }
  func.func @transform_5(%arg0: i32, %arg1: i32) -> (i32, i32) {
    %c0_i32 = arith.constant 0 : i32
    %c0_i32_0 = arith.constant 0 : i32
    %c0_i32_1 = arith.constant 0 : i32
    return %c0_i32, %c0_i32_0 : i32, i32
  }
  func.func @transform_6(%arg0: i32, %arg1: i32) -> (i32, i32) {
    %c0_i32 = arith.constant 0 : i32
    %c0_i32_0 = arith.constant 0 : i32
    %c0_i32_1 = arith.constant 0 : i32
    return %c0_i32, %c0_i32_0 : i32, i32
  }
  func.func @transform_7(%arg0: i32, %arg1: i32) -> (i32, i32, i32, i32) {
    %c0_i32 = arith.constant 0 : i32
    %c0_i32_0 = arith.constant 0 : i32
    %c0_i32_1 = arith.constant 0 : i32
    return %arg0, %arg1, %c0_i32, %c0_i32_0 : i32, i32, i32, i32
  }
}

module attributes {stable_mosaic.version = 11 : i64} {
  func.func @_convlstm_step_kernel(%arg0: i32, %arg1: i32, %arg2: memref<1x1x1x128xbf16, #tpu.memory_space<vmem>>, %arg3: memref<128x512xbf16, #tpu.memory_space<vmem>>, %arg4: memref<128x512xbf16, #tpu.memory_space<vmem>>, %arg5: memref<1x512xf32, #tpu.memory_space<vmem>>, %arg6: memref<1x128xf32, #tpu.memory_space<vmem>>, %arg7: memref<1x128xf32, #tpu.memory_space<vmem>>, %arg8: memref<1x128xf32, #tpu.memory_space<vmem>>, %arg9: memref<1x1x1x128xbf16, #tpu.memory_space<vmem>>, %arg10: memref<1x128xbf16, #tpu.memory_space<vmem>>, %arg11: memref<1x128xf32, #tpu.memory_space<vmem>>) attributes {dimension_semantics = [#tpu.dimension_semantics<parallel>, #tpu.dimension_semantics<arbitrary>], iteration_bounds = array<i64: 2, 4>, scalar_prefetch = 0 : i64, scratch_operands = 2 : i64, tpu.core_type = #tpu.core_type<tc>, window_params = [{transform_indices = @transform_0, window_bounds = array<i64: 1, 1, 1, 128>}, {pipeline_mode = #tpu.pipeline_mode<synchronous>, transform_indices = @transform_1, window_bounds = array<i64: 128, 512>}, {pipeline_mode = #tpu.pipeline_mode<synchronous>, transform_indices = @transform_2, window_bounds = array<i64: 128, 512>}, {pipeline_mode = #tpu.pipeline_mode<synchronous>, transform_indices = @transform_3, window_bounds = array<i64: 1, 512>}, {pipeline_mode = #tpu.pipeline_mode<synchronous>, transform_indices = @transform_4, window_bounds = array<i64: 1, 128>}, {pipeline_mode = #tpu.pipeline_mode<synchronous>, transform_indices = @transform_5, window_bounds = array<i64: 1, 128>}, {pipeline_mode = #tpu.pipeline_mode<synchronous>, transform_indices = @transform_6, window_bounds = array<i64: 1, 128>}, {transform_indices = @transform_7, window_bounds = array<i64: 1, 1, 1, 128>}]} {
    %c0_i32 = arith.constant 0 : i32
    %0 = arith.cmpi eq, %arg1, %c0_i32 : i32
    %1 = arith.extui %0 : i1 to i32
    %c0_i32_0 = arith.constant 0 : i32
    %2 = arith.cmpi ne, %1, %c0_i32_0 : i32
    scf.if %2 {
      %cst_34 = arith.constant 0.000000e+00 : bf16
      %56 = vector.broadcast %cst_34 : bf16 to vector<1x128xbf16>
      %c0_35 = arith.constant 0 : index
      %c0_36 = arith.constant 0 : index
      %57 = vector.load %arg10[%c0_35, %c0_36] : memref<1x128xbf16, #tpu.memory_space<vmem>>, vector<1x128xbf16>
      tpu.vector_store %arg10[%c0_35, %c0_36], %56 {strides = array<i32>} : memref<1x128xbf16, #tpu.memory_space<vmem>>, vector<1x128xbf16>,
      %cst_37 = arith.constant 0.000000e+00 : f32
      %58 = vector.broadcast %cst_37 : f32 to vector<1x128xf32>
      %c0_38 = arith.constant 0 : index
      %c0_39 = arith.constant 0 : index
      %59 = vector.load %arg11[%c0_38, %c0_39] : memref<1x128xf32, #tpu.memory_space<vmem>>, vector<1x128xf32>
      tpu.vector_store %arg11[%c0_38, %c0_39], %58 {strides = array<i32>} : memref<1x128xf32, #tpu.memory_space<vmem>>, vector<1x128xf32>,
    } else {
    }
    %c0 = arith.constant 0 : index
    %c0_1 = arith.constant 0 : index
    %c0_2 = arith.constant 0 : index
    %c0_3 = arith.constant 0 : index
    %3 = vector.load %arg2[%c0, %c0_1, %c0_2, %c0_3] : memref<1x1x1x128xbf16, #tpu.memory_space<vmem>>, vector<1x1x1x128xbf16>
    %4 = vector.shape_cast %3 : vector<1x1x1x128xbf16> to vector<1x128xbf16>
    %c0_4 = arith.constant 0 : index
    %c0_5 = arith.constant 0 : index
    %5 = vector.load %arg10[%c0_4, %c0_5] : memref<1x128xbf16, #tpu.memory_space<vmem>>, vector<1x128xbf16>
    %c0_6 = arith.constant 0 : index
    %c0_7 = arith.constant 0 : index
    %6 = vector.load %arg11[%c0_6, %c0_7] : memref<1x128xf32, #tpu.memory_space<vmem>>, vector<1x128xf32>
    %c0_8 = arith.constant 0 : index
    %c0_9 = arith.constant 0 : index
    %7 = vector.load %arg3[%c0_8, %c0_9] : memref<128x512xbf16, #tpu.memory_space<vmem>>, vector<128x512xbf16>
    %cst = arith.constant dense<0.000000e+00> : vector<1x512xf32>
    %8 = tpu.matmul %4, %7, %cst {dimension_numbers = #tpu.dot_dimension_numbers<[1], [0], [0], [1], [0, 0, 1, 1], [], []>} : vector<1x128xbf16>, vector<128x512xbf16>, vector<1x512xf32> -> vector<1x512xf32>
    %c0_10 = arith.constant 0 : index
    %c0_11 = arith.constant 0 : index
    %9 = vector.load %arg4[%c0_10, %c0_11] : memref<128x512xbf16, #tpu.memory_space<vmem>>, vector<128x512xbf16>
    %cst_12 = arith.constant dense<0.000000e+00> : vector<1x512xf32>
    %10 = tpu.matmul %5, %9, %cst_12 {dimension_numbers = #tpu.dot_dimension_numbers<[1], [0], [0], [1], [0, 0, 1, 1], [], []>} : vector<1x128xbf16>, vector<128x512xbf16>, vector<1x512xf32> -> vector<1x512xf32>
    %11 = arith.addf %8, %10 : vector<1x512xf32>
    %c0_13 = arith.constant 0 : index
    %c0_14 = arith.constant 0 : index
    %12 = vector.load %arg5[%c0_13, %c0_14] : memref<1x512xf32, #tpu.memory_space<vmem>>, vector<1x512xf32>
    %13 = arith.addf %11, %12 : vector<1x512xf32>
    %14 = vector.extract_strided_slice %13 {offsets = [0, 0], sizes = [1, 128], strides = [1, 1]} : vector<1x512xf32> to vector<1x128xf32>
    %c0_15 = arith.constant 0 : index
    %c0_16 = arith.constant 0 : index
    %15 = vector.load %arg6[%c0_15, %c0_16] : memref<1x128xf32, #tpu.memory_space<vmem>>, vector<1x128xf32>
    %16 = arith.mulf %15, %6 : vector<1x128xf32>
    %17 = arith.addf %14, %16 : vector<1x128xf32>
    %18 = arith.negf %17 : vector<1x128xf32>
    %19 = math.exp %18 : vector<1x128xf32>
    %cst_17 = arith.constant 1.000000e+00 : f32
    %20 = vector.broadcast %cst_17 : f32 to vector<1x128xf32>
    %21 = arith.addf %20, %19 : vector<1x128xf32>
    %22 = arith.divf %20, %21 : vector<1x128xf32>
    %23 = vector.extract_strided_slice %13 {offsets = [0, 128], sizes = [1, 128], strides = [1, 1]} : vector<1x512xf32> to vector<1x128xf32>
    %c0_18 = arith.constant 0 : index
    %c0_19 = arith.constant 0 : index
    %24 = vector.load %arg7[%c0_18, %c0_19] : memref<1x128xf32, #tpu.memory_space<vmem>>, vector<1x128xf32>
    %25 = arith.mulf %24, %6 : vector<1x128xf32>
    %26 = arith.addf %23, %25 : vector<1x128xf32>
    %27 = arith.negf %26 : vector<1x128xf32>
    %28 = math.exp %27 : vector<1x128xf32>
    %cst_20 = arith.constant 1.000000e+00 : f32
    %29 = vector.broadcast %cst_20 : f32 to vector<1x128xf32>
    %30 = arith.addf %29, %28 : vector<1x128xf32>
    %31 = arith.divf %29, %30 : vector<1x128xf32>
    %32 = arith.mulf %31, %6 : vector<1x128xf32>
    %33 = vector.extract_strided_slice %13 {offsets = [0, 256], sizes = [1, 128], strides = [1, 1]} : vector<1x512xf32> to vector<1x128xf32>
    %cst_21 = arith.constant 0.000000e+00 : f32
    %34 = vector.broadcast %cst_21 : f32 to vector<1x128xf32>
    %35 = arith.maximumf %33, %34 : vector<1x128xf32>
    %36 = arith.mulf %22, %35 : vector<1x128xf32>
    %37 = arith.addf %32, %36 : vector<1x128xf32>
    %38 = vector.extract_strided_slice %13 {offsets = [0, 384], sizes = [1, 128], strides = [1, 1]} : vector<1x512xf32> to vector<1x128xf32>
    %c0_22 = arith.constant 0 : index
    %c0_23 = arith.constant 0 : index
    %39 = vector.load %arg8[%c0_22, %c0_23] : memref<1x128xf32, #tpu.memory_space<vmem>>, vector<1x128xf32>
    %40 = arith.mulf %39, %37 : vector<1x128xf32>
    %41 = arith.addf %38, %40 : vector<1x128xf32>
    %42 = arith.negf %41 : vector<1x128xf32>
    %43 = math.exp %42 : vector<1x128xf32>
    %cst_24 = arith.constant 1.000000e+00 : f32
    %44 = vector.broadcast %cst_24 : f32 to vector<1x128xf32>
    %45 = arith.addf %44, %43 : vector<1x128xf32>
    %46 = arith.divf %44, %45 : vector<1x128xf32>
    %cst_25 = arith.constant 0.000000e+00 : f32
    %47 = vector.broadcast %cst_25 : f32 to vector<1x128xf32>
    %48 = arith.maximumf %37, %47 : vector<1x128xf32>
    %49 = arith.mulf %46, %48 : vector<1x128xf32>
    %c0_26 = arith.constant 0 : index
    %c0_27 = arith.constant 0 : index
    %50 = vector.load %arg11[%c0_26, %c0_27] : memref<1x128xf32, #tpu.memory_space<vmem>>, vector<1x128xf32>
    tpu.vector_store %arg11[%c0_26, %c0_27], %37 {strides = array<i32>} : memref<1x128xf32, #tpu.memory_space<vmem>>, vector<1x128xf32>,
    %51 = arith.truncf %49 : vector<1x128xf32> to vector<1x128xbf16>
    %c0_28 = arith.constant 0 : index
    %c0_29 = arith.constant 0 : index
    %52 = vector.load %arg10[%c0_28, %c0_29] : memref<1x128xbf16, #tpu.memory_space<vmem>>, vector<1x128xbf16>
    tpu.vector_store %arg10[%c0_28, %c0_29], %51 {strides = array<i32>} : memref<1x128xbf16, #tpu.memory_space<vmem>>, vector<1x128xbf16>,
    %c0_30 = arith.constant 0 : index
    %c0_31 = arith.constant 0 : index
    %c0_32 = arith.constant 0 : index
    %c0_33 = arith.constant 0 : index
    %53 = vector.load %arg9[%c0_30, %c0_31, %c0_32, %c0_33] : memref<1x1x1x128xbf16, #tpu.memory_space<vmem>>, vector<1x1x1x128xbf16>
    %54 = vector.shape_cast %53 : vector<1x1x1x128xbf16> to vector<1x128xbf16>
    %55 = vector.shape_cast %51 : vector<1x128xbf16> to vector<1x1x1x128xbf16>
    tpu.vector_store %arg9[%c0_30, %c0_31, %c0_32, %c0_33], %55 {strides = array<i32>} : memref<1x1x1x128xbf16, #tpu.memory_space<vmem>>, vector<1x1x1x128xbf16>,
    return
  }
  func.func @transform_0(%arg0: i32, %arg1: i32) -> (i32, i32, i32, i32) {
    %c0_i32 = arith.constant 0 : i32
    %c0_i32_0 = arith.constant 0 : i32
    %c0_i32_1 = arith.constant 0 : i32
    return %arg0, %arg1, %c0_i32, %c0_i32_0 : i32, i32, i32, i32
  }
  func.func @transform_1(%arg0: i32, %arg1: i32) -> (i32, i32) {
    %c0_i32 = arith.constant 0 : i32
    %c0_i32_0 = arith.constant 0 : i32
    %c0_i32_1 = arith.constant 0 : i32
    return %c0_i32, %c0_i32_0 : i32, i32
  }
  func.func @transform_2(%arg0: i32, %arg1: i32) -> (i32, i32) {
    %c0_i32 = arith.constant 0 : i32
    %c0_i32_0 = arith.constant 0 : i32
    %c0_i32_1 = arith.constant 0 : i32
    return %c0_i32, %c0_i32_0 : i32, i32
  }
  func.func @transform_3(%arg0: i32, %arg1: i32) -> (i32, i32) {
    %c0_i32 = arith.constant 0 : i32
    %c0_i32_0 = arith.constant 0 : i32
    %c0_i32_1 = arith.constant 0 : i32
    return %c0_i32, %c0_i32_0 : i32, i32
  }
  func.func @transform_4(%arg0: i32, %arg1: i32) -> (i32, i32) {
    %c0_i32 = arith.constant 0 : i32
    %c0_i32_0 = arith.constant 0 : i32
    %c0_i32_1 = arith.constant 0 : i32
    return %c0_i32, %c0_i32_0 : i32, i32
  }
  func.func @transform_5(%arg0: i32, %arg1: i32) -> (i32, i32) {
    %c0_i32 = arith.constant 0 : i32
    %c0_i32_0 = arith.constant 0 : i32
    %c0_i32_1 = arith.constant 0 : i32
    return %c0_i32, %c0_i32_0 : i32, i32
  }
  func.func @transform_6(%arg0: i32, %arg1: i32) -> (i32, i32) {
    %c0_i32 = arith.constant 0 : i32
    %c0_i32_0 = arith.constant 0 : i32
    %c0_i32_1 = arith.constant 0 : i32
    return %c0_i32, %c0_i32_0 : i32, i32
  }
  func.func @transform_7(%arg0: i32, %arg1: i32) -> (i32, i32, i32, i32) {
    %c0_i32 = arith.constant 0 : i32
    %c0_i32_0 = arith.constant 0 : i32
    %c0_i32_1 = arith.constant 0 : i32
    return %arg0, %arg1, %c0_i32, %c0_i32_0 : i32, i32, i32, i32
  }
}

module attributes {stable_mosaic.version = 11 : i64} {
  func.func @_pointwise_kernel(%arg0: i32, %arg1: memref<8x128xbf16, #tpu.memory_space<vmem>>, %arg2: memref<128x1152xbf16, #tpu.memory_space<vmem>>, %arg3: memref<1x1152xf32, #tpu.memory_space<vmem>>, %arg4: memref<8x1152xbf16, #tpu.memory_space<vmem>>) attributes {dimension_semantics = [#tpu.dimension_semantics<parallel>], iteration_bounds = array<i64: 1>, scalar_prefetch = 0 : i64, scratch_operands = 0 : i64, tpu.core_type = #tpu.core_type<tc>, window_params = [{transform_indices = @transform_0, window_bounds = array<i64: 8, 128>}, {pipeline_mode = #tpu.pipeline_mode<synchronous>, transform_indices = @transform_1, window_bounds = array<i64: 128, 1152>}, {pipeline_mode = #tpu.pipeline_mode<synchronous>, transform_indices = @transform_2, window_bounds = array<i64: 1, 1152>}, {transform_indices = @transform_3, window_bounds = array<i64: 8, 1152>}]} {
    %c0 = arith.constant 0 : index
    %c0_0 = arith.constant 0 : index
    %0 = vector.load %arg1[%c0, %c0_0] : memref<8x128xbf16, #tpu.memory_space<vmem>>, vector<8x128xbf16>
    %c0_1 = arith.constant 0 : index
    %c0_2 = arith.constant 0 : index
    %1 = vector.load %arg2[%c0_1, %c0_2] : memref<128x1152xbf16, #tpu.memory_space<vmem>>, vector<128x1152xbf16>
    %cst = arith.constant dense<0.000000e+00> : vector<8x1152xf32>
    %2 = tpu.matmul %0, %1, %cst {dimension_numbers = #tpu.dot_dimension_numbers<[1], [0], [0], [1], [0, 0, 1, 1], [], []>} : vector<8x128xbf16>, vector<128x1152xbf16>, vector<8x1152xf32> -> vector<8x1152xf32>
    %c0_3 = arith.constant 0 : index
    %c0_4 = arith.constant 0 : index
    %3 = vector.load %arg3[%c0_3, %c0_4] : memref<1x1152xf32, #tpu.memory_space<vmem>>, vector<1x1152xf32>
    %4 = vector.broadcast %3 : vector<1x1152xf32> to vector<8x1152xf32>
    %5 = arith.addf %2, %4 : vector<8x1152xf32>
    %6 = arith.truncf %5 : vector<8x1152xf32> to vector<8x1152xbf16>
    %c0_5 = arith.constant 0 : index
    %c0_6 = arith.constant 0 : index
    %7 = vector.load %arg4[%c0_5, %c0_6] : memref<8x1152xbf16, #tpu.memory_space<vmem>>, vector<8x1152xbf16>
    tpu.vector_store %arg4[%c0_5, %c0_6], %6 {strides = array<i32>} : memref<8x1152xbf16, #tpu.memory_space<vmem>>, vector<8x1152xbf16>,
    return
  }
  func.func @transform_0(%arg0: i32) -> (i32, i32) {
    %c0_i32 = arith.constant 0 : i32
    %c0_i32_0 = arith.constant 0 : i32
    return %arg0, %c0_i32 : i32, i32
  }
  func.func @transform_1(%arg0: i32) -> (i32, i32) {
    %c0_i32 = arith.constant 0 : i32
    %c0_i32_0 = arith.constant 0 : i32
    %c0_i32_1 = arith.constant 0 : i32
    return %c0_i32, %c0_i32_0 : i32, i32
  }
  func.func @transform_2(%arg0: i32) -> (i32, i32) {
    %c0_i32 = arith.constant 0 : i32
    %c0_i32_0 = arith.constant 0 : i32
    %c0_i32_1 = arith.constant 0 : i32
    return %c0_i32, %c0_i32_0 : i32, i32
  }
  func.func @transform_3(%arg0: i32) -> (i32, i32) {
    %c0_i32 = arith.constant 0 : i32
    %c0_i32_0 = arith.constant 0 : i32
    return %arg0, %c0_i32 : i32, i32
  }
}

module attributes {stable_mosaic.version = 11 : i64} {
  func.func @_pointwise_kernel(%arg0: i32, %arg1: memref<72x128xbf16, #tpu.memory_space<vmem>>, %arg2: memref<128x512xbf16, #tpu.memory_space<vmem>>, %arg3: memref<1x512xf32, #tpu.memory_space<vmem>>, %arg4: memref<72x512xbf16, #tpu.memory_space<vmem>>) attributes {dimension_semantics = [#tpu.dimension_semantics<parallel>], iteration_bounds = array<i64: 1>, scalar_prefetch = 0 : i64, scratch_operands = 0 : i64, tpu.core_type = #tpu.core_type<tc>, window_params = [{transform_indices = @transform_0, window_bounds = array<i64: 72, 128>}, {pipeline_mode = #tpu.pipeline_mode<synchronous>, transform_indices = @transform_1, window_bounds = array<i64: 128, 512>}, {pipeline_mode = #tpu.pipeline_mode<synchronous>, transform_indices = @transform_2, window_bounds = array<i64: 1, 512>}, {transform_indices = @transform_3, window_bounds = array<i64: 72, 512>}]} {
    %c0 = arith.constant 0 : index
    %c0_0 = arith.constant 0 : index
    %0 = vector.load %arg1[%c0, %c0_0] : memref<72x128xbf16, #tpu.memory_space<vmem>>, vector<72x128xbf16>
    %c0_1 = arith.constant 0 : index
    %c0_2 = arith.constant 0 : index
    %1 = vector.load %arg2[%c0_1, %c0_2] : memref<128x512xbf16, #tpu.memory_space<vmem>>, vector<128x512xbf16>
    %cst = arith.constant dense<0.000000e+00> : vector<72x512xf32>
    %2 = tpu.matmul %0, %1, %cst {dimension_numbers = #tpu.dot_dimension_numbers<[1], [0], [0], [1], [0, 0, 1, 1], [], []>} : vector<72x128xbf16>, vector<128x512xbf16>, vector<72x512xf32> -> vector<72x512xf32>
    %c0_3 = arith.constant 0 : index
    %c0_4 = arith.constant 0 : index
    %3 = vector.load %arg3[%c0_3, %c0_4] : memref<1x512xf32, #tpu.memory_space<vmem>>, vector<1x512xf32>
    %4 = vector.broadcast %3 : vector<1x512xf32> to vector<72x512xf32>
    %5 = arith.addf %2, %4 : vector<72x512xf32>
    %6 = arith.truncf %5 : vector<72x512xf32> to vector<72x512xbf16>
    %c0_5 = arith.constant 0 : index
    %c0_6 = arith.constant 0 : index
    %7 = vector.load %arg4[%c0_5, %c0_6] : memref<72x512xbf16, #tpu.memory_space<vmem>>, vector<72x512xbf16>
    tpu.vector_store %arg4[%c0_5, %c0_6], %6 {strides = array<i32>} : memref<72x512xbf16, #tpu.memory_space<vmem>>, vector<72x512xbf16>,
    return
  }
  func.func @transform_0(%arg0: i32) -> (i32, i32) {
    %c0_i32 = arith.constant 0 : i32
    %c0_i32_0 = arith.constant 0 : i32
    return %arg0, %c0_i32 : i32, i32
  }
  func.func @transform_1(%arg0: i32) -> (i32, i32) {
    %c0_i32 = arith.constant 0 : i32
    %c0_i32_0 = arith.constant 0 : i32
    %c0_i32_1 = arith.constant 0 : i32
    return %c0_i32, %c0_i32_0 : i32, i32
  }
  func.func @transform_2(%arg0: i32) -> (i32, i32) {
    %c0_i32 = arith.constant 0 : i32
    %c0_i32_0 = arith.constant 0 : i32
    %c0_i32_1 = arith.constant 0 : i32
    return %c0_i32, %c0_i32_0 : i32, i32
  }
  func.func @transform_3(%arg0: i32) -> (i32, i32) {
    %c0_i32 = arith.constant 0 : i32
    %c0_i32_0 = arith.constant 0 : i32
    return %arg0, %c0_i32 : i32, i32
  }
}

module attributes {stable_mosaic.version = 11 : i64} {
  func.func @_pointwise_kernel(%arg0: i32, %arg1: memref<288x128xbf16, #tpu.memory_space<vmem>>, %arg2: memref<128x512xbf16, #tpu.memory_space<vmem>>, %arg3: memref<1x512xf32, #tpu.memory_space<vmem>>, %arg4: memref<288x512xbf16, #tpu.memory_space<vmem>>) attributes {dimension_semantics = [#tpu.dimension_semantics<parallel>], iteration_bounds = array<i64: 1>, scalar_prefetch = 0 : i64, scratch_operands = 0 : i64, tpu.core_type = #tpu.core_type<tc>, window_params = [{transform_indices = @transform_0, window_bounds = array<i64: 288, 128>}, {pipeline_mode = #tpu.pipeline_mode<synchronous>, transform_indices = @transform_1, window_bounds = array<i64: 128, 512>}, {pipeline_mode = #tpu.pipeline_mode<synchronous>, transform_indices = @transform_2, window_bounds = array<i64: 1, 512>}, {transform_indices = @transform_3, window_bounds = array<i64: 288, 512>}]} {
    %c0 = arith.constant 0 : index
    %c0_0 = arith.constant 0 : index
    %0 = vector.load %arg1[%c0, %c0_0] : memref<288x128xbf16, #tpu.memory_space<vmem>>, vector<288x128xbf16>
    %c0_1 = arith.constant 0 : index
    %c0_2 = arith.constant 0 : index
    %1 = vector.load %arg2[%c0_1, %c0_2] : memref<128x512xbf16, #tpu.memory_space<vmem>>, vector<128x512xbf16>
    %cst = arith.constant dense<0.000000e+00> : vector<288x512xf32>
    %2 = tpu.matmul %0, %1, %cst {dimension_numbers = #tpu.dot_dimension_numbers<[1], [0], [0], [1], [0, 0, 1, 1], [], []>} : vector<288x128xbf16>, vector<128x512xbf16>, vector<288x512xf32> -> vector<288x512xf32>
    %c0_3 = arith.constant 0 : index
    %c0_4 = arith.constant 0 : index
    %3 = vector.load %arg3[%c0_3, %c0_4] : memref<1x512xf32, #tpu.memory_space<vmem>>, vector<1x512xf32>
    %4 = vector.broadcast %3 : vector<1x512xf32> to vector<288x512xf32>
    %5 = arith.addf %2, %4 : vector<288x512xf32>
    %6 = arith.truncf %5 : vector<288x512xf32> to vector<288x512xbf16>
    %c0_5 = arith.constant 0 : index
    %c0_6 = arith.constant 0 : index
    %7 = vector.load %arg4[%c0_5, %c0_6] : memref<288x512xbf16, #tpu.memory_space<vmem>>, vector<288x512xbf16>
    tpu.vector_store %arg4[%c0_5, %c0_6], %6 {strides = array<i32>} : memref<288x512xbf16, #tpu.memory_space<vmem>>, vector<288x512xbf16>,
    return
  }
  func.func @transform_0(%arg0: i32) -> (i32, i32) {
    %c0_i32 = arith.constant 0 : i32
    %c0_i32_0 = arith.constant 0 : i32
    return %arg0, %c0_i32 : i32, i32
  }
  func.func @transform_1(%arg0: i32) -> (i32, i32) {
    %c0_i32 = arith.constant 0 : i32
    %c0_i32_0 = arith.constant 0 : i32
    %c0_i32_1 = arith.constant 0 : i32
    return %c0_i32, %c0_i32_0 : i32, i32
  }
  func.func @transform_2(%arg0: i32) -> (i32, i32) {
    %c0_i32 = arith.constant 0 : i32
    %c0_i32_0 = arith.constant 0 : i32
    %c0_i32_1 = arith.constant 0 : i32
    return %c0_i32, %c0_i32_0 : i32, i32
  }
  func.func @transform_3(%arg0: i32) -> (i32, i32) {
    %c0_i32 = arith.constant 0 : i32
    %c0_i32_0 = arith.constant 0 : i32
    return %arg0, %c0_i32 : i32, i32
  }
}

module attributes {stable_mosaic.version = 11 : i64} {
  func.func @_convlstm_step_kernel(%arg0: i32, %arg1: i32, %arg2: memref<1x1x144x128xbf16, #tpu.memory_space<vmem>>, %arg3: memref<128x512xbf16, #tpu.memory_space<vmem>>, %arg4: memref<128x512xbf16, #tpu.memory_space<vmem>>, %arg5: memref<1x512xf32, #tpu.memory_space<vmem>>, %arg6: memref<144x128xf32, #tpu.memory_space<vmem>>, %arg7: memref<144x128xf32, #tpu.memory_space<vmem>>, %arg8: memref<144x128xf32, #tpu.memory_space<vmem>>, %arg9: memref<128x128xbf16, #tpu.memory_space<vmem>>, %arg10: memref<1x128xf32, #tpu.memory_space<vmem>>, %arg11: memref<1x1x144x128xf32, #tpu.memory_space<vmem>>, %arg12: memref<144x128xbf16, #tpu.memory_space<vmem>>, %arg13: memref<144x128xf32, #tpu.memory_space<vmem>>) attributes {dimension_semantics = [#tpu.dimension_semantics<parallel>, #tpu.dimension_semantics<arbitrary>], iteration_bounds = array<i64: 2, 4>, scalar_prefetch = 0 : i64, scratch_operands = 2 : i64, tpu.core_type = #tpu.core_type<tc>, window_params = [{transform_indices = @transform_0, window_bounds = array<i64: 1, 1, 144, 128>}, {pipeline_mode = #tpu.pipeline_mode<synchronous>, transform_indices = @transform_1, window_bounds = array<i64: 128, 512>}, {pipeline_mode = #tpu.pipeline_mode<synchronous>, transform_indices = @transform_2, window_bounds = array<i64: 128, 512>}, {pipeline_mode = #tpu.pipeline_mode<synchronous>, transform_indices = @transform_3, window_bounds = array<i64: 1, 512>}, {pipeline_mode = #tpu.pipeline_mode<synchronous>, transform_indices = @transform_4, window_bounds = array<i64: 144, 128>}, {pipeline_mode = #tpu.pipeline_mode<synchronous>, transform_indices = @transform_5, window_bounds = array<i64: 144, 128>}, {pipeline_mode = #tpu.pipeline_mode<synchronous>, transform_indices = @transform_6, window_bounds = array<i64: 144, 128>}, {pipeline_mode = #tpu.pipeline_mode<synchronous>, transform_indices = @transform_7, window_bounds = array<i64: 128, 128>}, {pipeline_mode = #tpu.pipeline_mode<synchronous>, transform_indices = @transform_8, window_bounds = array<i64: 1, 128>}, {transform_indices = @transform_9, window_bounds = array<i64: 1, 1, 144, 128>}]} {
    %c0_i32 = arith.constant 0 : i32
    %0 = arith.cmpi eq, %arg1, %c0_i32 : i32
    %1 = arith.extui %0 : i1 to i32
    %c0_i32_0 = arith.constant 0 : i32
    %2 = arith.cmpi ne, %1, %c0_i32_0 : i32
    scf.if %2 {
      %cst_40 = arith.constant 0.000000e+00 : bf16
      %67 = vector.broadcast %cst_40 : bf16 to vector<144x128xbf16>
      %c0_41 = arith.constant 0 : index
      %c0_42 = arith.constant 0 : index
      %68 = vector.load %arg12[%c0_41, %c0_42] : memref<144x128xbf16, #tpu.memory_space<vmem>>, vector<144x128xbf16>
      tpu.vector_store %arg12[%c0_41, %c0_42], %67 {strides = array<i32>} : memref<144x128xbf16, #tpu.memory_space<vmem>>, vector<144x128xbf16>,
      %cst_43 = arith.constant 0.000000e+00 : f32
      %69 = vector.broadcast %cst_43 : f32 to vector<144x128xf32>
      %c0_44 = arith.constant 0 : index
      %c0_45 = arith.constant 0 : index
      %70 = vector.load %arg13[%c0_44, %c0_45] : memref<144x128xf32, #tpu.memory_space<vmem>>, vector<144x128xf32>
      tpu.vector_store %arg13[%c0_44, %c0_45], %69 {strides = array<i32>} : memref<144x128xf32, #tpu.memory_space<vmem>>, vector<144x128xf32>,
    } else {
    }
    %c0 = arith.constant 0 : index
    %c0_1 = arith.constant 0 : index
    %c0_2 = arith.constant 0 : index
    %c0_3 = arith.constant 0 : index
    %3 = vector.load %arg2[%c0, %c0_1, %c0_2, %c0_3] : memref<1x1x144x128xbf16, #tpu.memory_space<vmem>>, vector<1x1x144x128xbf16>
    %4 = vector.shape_cast %3 : vector<1x1x144x128xbf16> to vector<144x128xbf16>
    %c0_4 = arith.constant 0 : index
    %c0_5 = arith.constant 0 : index
    %5 = vector.load %arg12[%c0_4, %c0_5] : memref<144x128xbf16, #tpu.memory_space<vmem>>, vector<144x128xbf16>
    %c0_6 = arith.constant 0 : index
    %c0_7 = arith.constant 0 : index
    %6 = vector.load %arg13[%c0_6, %c0_7] : memref<144x128xf32, #tpu.memory_space<vmem>>, vector<144x128xf32>
    %c0_8 = arith.constant 0 : index
    %c0_9 = arith.constant 0 : index
    %7 = vector.load %arg3[%c0_8, %c0_9] : memref<128x512xbf16, #tpu.memory_space<vmem>>, vector<128x512xbf16>
    %cst = arith.constant dense<0.000000e+00> : vector<144x512xf32>
    %8 = tpu.matmul %4, %7, %cst {dimension_numbers = #tpu.dot_dimension_numbers<[1], [0], [0], [1], [0, 0, 1, 1], [], []>} : vector<144x128xbf16>, vector<128x512xbf16>, vector<144x512xf32> -> vector<144x512xf32>
    %c0_10 = arith.constant 0 : index
    %c0_11 = arith.constant 0 : index
    %9 = vector.load %arg4[%c0_10, %c0_11] : memref<128x512xbf16, #tpu.memory_space<vmem>>, vector<128x512xbf16>
    %cst_12 = arith.constant dense<0.000000e+00> : vector<144x512xf32>
    %10 = tpu.matmul %5, %9, %cst_12 {dimension_numbers = #tpu.dot_dimension_numbers<[1], [0], [0], [1], [0, 0, 1, 1], [], []>} : vector<144x128xbf16>, vector<128x512xbf16>, vector<144x512xf32> -> vector<144x512xf32>
    %11 = arith.addf %8, %10 : vector<144x512xf32>
    %c0_13 = arith.constant 0 : index
    %c0_14 = arith.constant 0 : index
    %12 = vector.load %arg5[%c0_13, %c0_14] : memref<1x512xf32, #tpu.memory_space<vmem>>, vector<1x512xf32>
    %13 = vector.broadcast %12 : vector<1x512xf32> to vector<144x512xf32>
    %14 = arith.addf %11, %13 : vector<144x512xf32>
    %15 = vector.extract_strided_slice %14 {offsets = [0, 0], sizes = [144, 128], strides = [1, 1]} : vector<144x512xf32> to vector<144x128xf32>
    %c0_15 = arith.constant 0 : index
    %c0_16 = arith.constant 0 : index
    %16 = vector.load %arg6[%c0_15, %c0_16] : memref<144x128xf32, #tpu.memory_space<vmem>>, vector<144x128xf32>
    %17 = arith.mulf %16, %6 : vector<144x128xf32>
    %18 = arith.addf %15, %17 : vector<144x128xf32>
    %19 = arith.negf %18 : vector<144x128xf32>
    %20 = math.exp %19 : vector<144x128xf32>
    %cst_17 = arith.constant 1.000000e+00 : f32
    %21 = vector.broadcast %cst_17 : f32 to vector<144x128xf32>
    %22 = arith.addf %21, %20 : vector<144x128xf32>
    %23 = arith.divf %21, %22 : vector<144x128xf32>
    %24 = vector.extract_strided_slice %14 {offsets = [0, 128], sizes = [144, 128], strides = [1, 1]} : vector<144x512xf32> to vector<144x128xf32>
    %c0_18 = arith.constant 0 : index
    %c0_19 = arith.constant 0 : index
    %25 = vector.load %arg7[%c0_18, %c0_19] : memref<144x128xf32, #tpu.memory_space<vmem>>, vector<144x128xf32>
    %26 = arith.mulf %25, %6 : vector<144x128xf32>
    %27 = arith.addf %24, %26 : vector<144x128xf32>
    %28 = arith.negf %27 : vector<144x128xf32>
    %29 = math.exp %28 : vector<144x128xf32>
    %cst_20 = arith.constant 1.000000e+00 : f32
    %30 = vector.broadcast %cst_20 : f32 to vector<144x128xf32>
    %31 = arith.addf %30, %29 : vector<144x128xf32>
    %32 = arith.divf %30, %31 : vector<144x128xf32>
    %33 = arith.mulf %32, %6 : vector<144x128xf32>
    %34 = vector.extract_strided_slice %14 {offsets = [0, 256], sizes = [144, 128], strides = [1, 1]} : vector<144x512xf32> to vector<144x128xf32>
    %cst_21 = arith.constant 0.000000e+00 : f32
    %35 = vector.broadcast %cst_21 : f32 to vector<144x128xf32>
    %36 = arith.maximumf %34, %35 : vector<144x128xf32>
    %37 = arith.mulf %23, %36 : vector<144x128xf32>
    %38 = arith.addf %33, %37 : vector<144x128xf32>
    %39 = vector.extract_strided_slice %14 {offsets = [0, 384], sizes = [144, 128], strides = [1, 1]} : vector<144x512xf32> to vector<144x128xf32>
    %c0_22 = arith.constant 0 : index
    %c0_23 = arith.constant 0 : index
    %40 = vector.load %arg8[%c0_22, %c0_23] : memref<144x128xf32, #tpu.memory_space<vmem>>, vector<144x128xf32>
    %41 = arith.mulf %40, %38 : vector<144x128xf32>
    %42 = arith.addf %39, %41 : vector<144x128xf32>
    %43 = arith.negf %42 : vector<144x128xf32>
    %44 = math.exp %43 : vector<144x128xf32>
    %cst_24 = arith.constant 1.000000e+00 : f32
    %45 = vector.broadcast %cst_24 : f32 to vector<144x128xf32>
    %46 = arith.addf %45, %44 : vector<144x128xf32>
    %47 = arith.divf %45, %46 : vector<144x128xf32>
    %cst_25 = arith.constant 0.000000e+00 : f32
    %48 = vector.broadcast %cst_25 : f32 to vector<144x128xf32>
    %49 = arith.maximumf %38, %48 : vector<144x128xf32>
    %50 = arith.mulf %47, %49 : vector<144x128xf32>
    %c0_26 = arith.constant 0 : index
    %c0_27 = arith.constant 0 : index
    %51 = vector.load %arg13[%c0_26, %c0_27] : memref<144x128xf32, #tpu.memory_space<vmem>>, vector<144x128xf32>
    tpu.vector_store %arg13[%c0_26, %c0_27], %38 {strides = array<i32>} : memref<144x128xf32, #tpu.memory_space<vmem>>, vector<144x128xf32>,
    %52 = arith.truncf %50 : vector<144x128xf32> to vector<144x128xbf16>
    %c0_28 = arith.constant 0 : index
    %c0_29 = arith.constant 0 : index
    %53 = vector.load %arg12[%c0_28, %c0_29] : memref<144x128xbf16, #tpu.memory_space<vmem>>, vector<144x128xbf16>
    tpu.vector_store %arg12[%c0_28, %c0_29], %52 {strides = array<i32>} : memref<144x128xbf16, #tpu.memory_space<vmem>>, vector<144x128xbf16>,
    %c0_30 = arith.constant 0 : index
    %c0_31 = arith.constant 0 : index
    %54 = vector.load %arg9[%c0_30, %c0_31] : memref<128x128xbf16, #tpu.memory_space<vmem>>, vector<128x128xbf16>
    %cst_32 = arith.constant dense<0.000000e+00> : vector<144x128xf32>
    %55 = tpu.matmul %52, %54, %cst_32 {dimension_numbers = #tpu.dot_dimension_numbers<[1], [0], [0], [1], [0, 0, 1, 1], [], []>} : vector<144x128xbf16>, vector<128x128xbf16>, vector<144x128xf32> -> vector<144x128xf32>
    %c0_33 = arith.constant 0 : index
    %c0_34 = arith.constant 0 : index
    %56 = vector.load %arg10[%c0_33, %c0_34] : memref<1x128xf32, #tpu.memory_space<vmem>>, vector<1x128xf32>
    %57 = vector.broadcast %56 : vector<1x128xf32> to vector<144x128xf32>
    %58 = arith.addf %55, %57 : vector<144x128xf32>
    %59 = arith.negf %58 : vector<144x128xf32>
    %60 = math.exp %59 : vector<144x128xf32>
    %cst_35 = arith.constant 1.000000e+00 : f32
    %61 = vector.broadcast %cst_35 : f32 to vector<144x128xf32>
    %62 = arith.addf %61, %60 : vector<144x128xf32>
    %63 = arith.divf %61, %62 : vector<144x128xf32>
    %c0_36 = arith.constant 0 : index
    %c0_37 = arith.constant 0 : index
    %c0_38 = arith.constant 0 : index
    %c0_39 = arith.constant 0 : index
    %64 = vector.load %arg11[%c0_36, %c0_37, %c0_38, %c0_39] : memref<1x1x144x128xf32, #tpu.memory_space<vmem>>, vector<1x1x144x128xf32>
    %65 = vector.shape_cast %64 : vector<1x1x144x128xf32> to vector<144x128xf32>
    %66 = vector.shape_cast %63 : vector<144x128xf32> to vector<1x1x144x128xf32>
    tpu.vector_store %arg11[%c0_36, %c0_37, %c0_38, %c0_39], %66 {strides = array<i32>} : memref<1x1x144x128xf32, #tpu.memory_space<vmem>>, vector<1x1x144x128xf32>,
    return
  }
  func.func @transform_0(%arg0: i32, %arg1: i32) -> (i32, i32, i32, i32) {
    %c0_i32 = arith.constant 0 : i32
    %c0_i32_0 = arith.constant 0 : i32
    %c0_i32_1 = arith.constant 0 : i32
    return %arg0, %arg1, %c0_i32, %c0_i32_0 : i32, i32, i32, i32
  }
  func.func @transform_1(%arg0: i32, %arg1: i32) -> (i32, i32) {
    %c0_i32 = arith.constant 0 : i32
    %c0_i32_0 = arith.constant 0 : i32
    %c0_i32_1 = arith.constant 0 : i32
    return %c0_i32, %c0_i32_0 : i32, i32
  }
  func.func @transform_2(%arg0: i32, %arg1: i32) -> (i32, i32) {
    %c0_i32 = arith.constant 0 : i32
    %c0_i32_0 = arith.constant 0 : i32
    %c0_i32_1 = arith.constant 0 : i32
    return %c0_i32, %c0_i32_0 : i32, i32
  }
  func.func @transform_3(%arg0: i32, %arg1: i32) -> (i32, i32) {
    %c0_i32 = arith.constant 0 : i32
    %c0_i32_0 = arith.constant 0 : i32
    %c0_i32_1 = arith.constant 0 : i32
    return %c0_i32, %c0_i32_0 : i32, i32
  }
  func.func @transform_4(%arg0: i32, %arg1: i32) -> (i32, i32) {
    %c0_i32 = arith.constant 0 : i32
    %c0_i32_0 = arith.constant 0 : i32
    %c0_i32_1 = arith.constant 0 : i32
    return %c0_i32, %c0_i32_0 : i32, i32
  }
  func.func @transform_5(%arg0: i32, %arg1: i32) -> (i32, i32) {
    %c0_i32 = arith.constant 0 : i32
    %c0_i32_0 = arith.constant 0 : i32
    %c0_i32_1 = arith.constant 0 : i32
    return %c0_i32, %c0_i32_0 : i32, i32
  }
  func.func @transform_6(%arg0: i32, %arg1: i32) -> (i32, i32) {
    %c0_i32 = arith.constant 0 : i32
    %c0_i32_0 = arith.constant 0 : i32
    %c0_i32_1 = arith.constant 0 : i32
    return %c0_i32, %c0_i32_0 : i32, i32
  }
  func.func @transform_7(%arg0: i32, %arg1: i32) -> (i32, i32) {
    %c0_i32 = arith.constant 0 : i32
    %c0_i32_0 = arith.constant 0 : i32
    %c0_i32_1 = arith.constant 0 : i32
    return %c0_i32, %c0_i32_0 : i32, i32
  }
  func.func @transform_8(%arg0: i32, %arg1: i32) -> (i32, i32) {
    %c0_i32 = arith.constant 0 : i32
    %c0_i32_0 = arith.constant 0 : i32
    %c0_i32_1 = arith.constant 0 : i32
    return %c0_i32, %c0_i32_0 : i32, i32
  }
  func.func @transform_9(%arg0: i32, %arg1: i32) -> (i32, i32, i32, i32) {
    %c0_i32 = arith.constant 0 : i32
    %c0_i32_0 = arith.constant 0 : i32
    %c0_i32_1 = arith.constant 0 : i32
    return %arg0, %arg1, %c0_i32, %c0_i32_0 : i32, i32, i32, i32
  }
}

</mosaic_0001>

<llo_original>
// kernel: conv3dlstm_forward.10
$region0: #{conv3dlstm_forward.10}
  #allocation0 [shape = 'u32[]', space=smem, size = 0x4, offset = 0x4, fixed_abs, tag = 'smem constant byte address 0x4 - core index']
  #allocation1 [shape = 'u32[144,128]{1,0:T(1,128)}', space=vmem, size = 0x12000, scoped, tag = 'internal scratch']
  #allocation2 [shape = 'bf16[9,128]{1,0:T(8,128)(2,1)}', space=vmem, size = 0x1000, scoped, tag = 'scratch operand']
  #allocation3 [shape = 'f32[9,128]{1,0:T(8,128)}', space=vmem, size = 0x2000, scoped, tag = 'scratch operand']
  %s0 = inlined_call_operand.vmem [shape: bf16[2,4,9,128], index: 0, kind: input, shape index: {}]
  %s1 = inlined_call_operand.vmem [shape: bf16[128,512], index: 1, kind: input, shape index: {}]
  %s2 = inlined_call_operand.vmem [shape: bf16[128,512], index: 2, kind: input, shape index: {}]
  %s3 = inlined_call_operand.vmem [shape: f32[1,512], index: 3, kind: input, shape index: {}]
  %s4 = inlined_call_operand.vmem [shape: f32[9,128], index: 4, kind: input, shape index: {}]
  %s5 = inlined_call_operand.vmem [shape: f32[9,128], index: 5, kind: input, shape index: {}]
  %s6 = inlined_call_operand.vmem [shape: f32[9,128], index: 6, kind: input, shape index: {}]
  %s7 = inlined_call_operand.vmem [shape: bf16[2,4,9,128], index: 7, kind: output, shape index: {}]
  %s8 = sld [smem:[#allocation0]]
  $region65: #{conv3dlstm_forward.10} parent=0
    _
  %s10 = ssub.s32 1, %s8
  %s11 = scalar_select 0, %s10, %s8
  loop: start=0, step=1, limit=10
  $region2: #{conv3dlstm_forward.10} parent=0 // loop_pre_header
    _
  $region3: #{conv3dlstm_forward.10} parent=0 // loop_header
    %s13 = sphi 0, %s17
    %p14 = scmp.ge.s32.totalorder %s13, 10
    %s20 = sphi 0, %s32
    %s21 = sphi 0, %s28
    %s22 = sphi 0, %s20
    %s23 = sphi 0, %s21
    %s24 = sphi 0, %s22
    %s25 = sphi 0, %s23
    %s37 = sphi 0, %s39
    %s40 = sphi 0, %s37
    %s41 = sphi 0, %s40
    %s57 = sphi 0, %s41
    %s61 = sphi 0, %s61
    %s63 = sphi 0, %s61
    %s64 = sphi 0, %s63
    %s78 = sphi 0, %s64
    %s82 = sphi 0, %s82
    %s84 = sphi 0, %s82
    %s85 = sphi 0, %s84
    %s99 = sphi 0, %s85
    %s103 = sphi 0, %s103
    %s105 = sphi 0, %s103
    %s106 = sphi 0, %s105
    %s120 = sphi 0, %s106
    %s124 = sphi 0, %s124
    %s126 = sphi 0, %s124
    %s127 = sphi 0, %s126
    %s141 = sphi 0, %s127
    %s145 = sphi 0, %s145
    %s147 = sphi 0, %s145
    %s148 = sphi 0, %s147
    %s162 = sphi 0, %s148
    %s166 = sphi 0, %s166
    %s168 = sphi 0, %s166
    %s169 = sphi 0, %s168
    %s183 = sphi 0, %s169
    %s191 = sphi 0, %s193
    %s194 = sphi 0, %s191
    %s195 = sphi 0, %s194
    %s211 = sphi 0, %s195
  $region4: #{conv3dlstm_forward.10} parent=0 // loop_header_branch
    %16 = sbr.rel (%p14) target = $region8
  $region5: #{conv3dlstm_forward.10} parent=0 // loop_body
    %s18 = ssub.s32 %s13, 1
    %s19 = ssub.s32 %s13, 2
    %s26 = sadd.s32 1, %s21
    %p27 = scmp.ge.s32.totalorder %s26, 4
    %s28 = scalar_select %p27, 0, %s26
    %s29 = sadd.s32 1, %s20
    %s30 = scalar_select %p27, %s29, %s20
    %p31 = scmp.ge.s32.totalorder %s30, 2
    %s32 = scalar_select %p31, 0, %s30
    %s33 = ssub.s32 %s20, %s32
    %s34 = ssub.s32 %s21, %s28
    %s35 = sor.u32 %s33, %s34
    %p36 = scmp.eq.s32.totalorder %s35, 0
    %s38 = sadd.s32 %s37, 1
    %s39 = scalar_select %p36, %s37, %s38
    %p42 = pneg %p36
    %p43 = scmp.eq.s32.totalorder %s13, 7
    %p44 = por %p42, %p43
    %p45 = scmp.ne.s32.totalorder %s37, %s40
    %p46 = scmp.eq.s32.totalorder %s13, 0
    %p47 = por %p45, %p46
    %p48 = scmp.ne.s32.totalorder %s37, %s40
    %p49 = scmp.eq.s32.totalorder %s18, 7
    %p50 = por %p48, %p49
    %p51 = scmp.ne.s32.totalorder %s40, %s41
    %p52 = scmp.eq.s32.totalorder %s18, 0
    %p53 = por %p51, %p52
    %p54 = scmp.ne.s32.totalorder %s40, %s41
    %p55 = scmp.eq.s32.totalorder %s19, 7
    %p56 = por %p54, %p55
    %p58 = scmp.ne.s32.totalorder %s41, %s57
    %p59 = scmp.eq.s32.totalorder %s19, 0
    %p60 = por %p58, %p59
    %s62 = sadd.s32 %s61, 1
    %p65 = scmp.eq.s32.totalorder %s13, 7
    %p66 = scmp.ne.s32.totalorder %s61, %s63
    %p67 = scmp.eq.s32.totalorder %s13, 0
    %p68 = por %p66, %p67
    %p69 = scmp.ne.s32.totalorder %s61, %s63
    %p70 = scmp.eq.s32.totalorder %s18, 7
    %p71 = por %p69, %p70
    %p72 = scmp.ne.s32.totalorder %s63, %s64
    %p73 = scmp.eq.s32.totalorder %s18, 0
    %p74 = por %p72, %p73
    %p75 = scmp.ne.s32.totalorder %s63, %s64
    %p76 = scmp.eq.s32.totalorder %s19, 7
    %p77 = por %p75, %p76
    %p79 = scmp.ne.s32.totalorder %s64, %s78
    %p80 = scmp.eq.s32.totalorder %s19, 0
    %p81 = por %p79, %p80
    %s83 = sadd.s32 %s82, 1
    %p86 = scmp.eq.s32.totalorder %s13, 7
    %p87 = scmp.ne.s32.totalorder %s82, %s84
    %p88 = scmp.eq.s32.totalorder %s13, 0
    %p89 = por %p87, %p88
    %p90 = scmp.ne.s32.totalorder %s82, %s84
    %p91 = scmp.eq.s32.totalorder %s18, 7
    %p92 = por %p90, %p91
    %p93 = scmp.ne.s32.totalorder %s84, %s85
    %p94 = scmp.eq.s32.totalorder %s18, 0
    %p95 = por %p93, %p94
    %p96 = scmp.ne.s32.totalorder %s84, %s85
    %p97 = scmp.eq.s32.totalorder %s19, 7
    %p98 = por %p96, %p97
    %p100 = scmp.ne.s32.totalorder %s85, %s99
    %p101 = scmp.eq.s32.totalorder %s19, 0
    %p102 = por %p100, %p101
    %s104 = sadd.s32 %s103, 1
    %p107 = scmp.eq.s32.totalorder %s13, 7
    %p108 = scmp.ne.s32.totalorder %s103, %s105
    %p109 = scmp.eq.s32.totalorder %s13, 0
    %p110 = por %p108, %p109
    %p111 = scmp.ne.s32.totalorder %s103, %s105
    %p112 = scmp.eq.s32.totalorder %s18, 7
    %p113 = por %p111, %p112
    %p114 = scmp.ne.s32.totalorder %s105, %s106
    %p115 = scmp.eq.s32.totalorder %s18, 0
    %p116 = por %p114, %p115
    %p117 = scmp.ne.s32.totalorder %s105, %s106
    %p118 = scmp.eq.s32.totalorder %s19, 7
    %p119 = por %p117, %p118
    %p121 = scmp.ne.s32.totalorder %s106, %s120
    %p122 = scmp.eq.s32.totalorder %s19, 0
    %p123 = por %p121, %p122
    %s125 = sadd.s32 %s124, 1
    %p128 = scmp.eq.s32.totalorder %s13, 7
    %p129 = scmp.ne.s32.totalorder %s124, %s126
    %p130 = scmp.eq.s32.totalorder %s13, 0
    %p131 = por %p129, %p130
    %p132 = scmp.ne.s32.totalorder %s124, %s126
    %p133 = scmp.eq.s32.totalorder %s18, 7
    %p134 = por %p132, %p133
    %p135 = scmp.ne.s32.totalorder %s126, %s127
    %p136 = scmp.eq.s32.totalorder %s18, 0
    %p137 = por %p135, %p136
    %p138 = scmp.ne.s32.totalorder %s126, %s127
    %p139 = scmp.eq.s32.totalorder %s19, 7
    %p140 = por %p138, %p139
    %p142 = scmp.ne.s32.totalorder %s127, %s141
    %p143 = scmp.eq.s32.totalorder %s19, 0
    %p144 = por %p142, %p143
    %s146 = sadd.s32 %s145, 1
    %p149 = scmp.eq.s32.totalorder %s13, 7
    %p150 = scmp.ne.s32.totalorder %s145, %s147
    %p151 = scmp.eq.s32.totalorder %s13, 0
    %p152 = por %p150, %p151
    %p153 = scmp.ne.s32.totalorder %s145, %s147
    %p154 = scmp.eq.s32.totalorder %s18, 7
    %p155 = por %p153, %p154
    %p156 = scmp.ne.s32.totalorder %s147, %s148
    %p157 = scmp.eq.s32.totalorder %s18, 0
    %p158 = por %p156, %p157
    %p159 = scmp.ne.s32.totalorder %s147, %s148
    %p160 = scmp.eq.s32.totalorder %s19, 7
    %p161 = por %p159, %p160
    %p163 = scmp.ne.s32.totalorder %s148, %s162
    %p164 = scmp.eq.s32.totalorder %s19, 0
    %p165 = por %p163, %p164
    %s167 = sadd.s32 %s166, 1
    %p170 = scmp.eq.s32.totalorder %s13, 7
    %p171 = scmp.ne.s32.totalorder %s166, %s168
    %p172 = scmp.eq.s32.totalorder %s13, 0
    %p173 = por %p171, %p172
    %p174 = scmp.ne.s32.totalorder %s166, %s168
    %p175 = scmp.eq.s32.totalorder %s18, 7
    %p176 = por %p174, %p175
    %p177 = scmp.ne.s32.totalorder %s168, %s169
    %p178 = scmp.eq.s32.totalorder %s18, 0
    %p179 = por %p177, %p178
    %p180 = scmp.ne.s32.totalorder %s168, %s169
    %p181 = scmp.eq.s32.totalorder %s19, 7
    %p182 = por %p180, %p181
    %p184 = scmp.ne.s32.totalorder %s169, %s183
    %p185 = scmp.eq.s32.totalorder %s19, 0
    %p186 = por %p184, %p185
    %s187 = ssub.s32 %s20, %s32
    %s188 = ssub.s32 %s21, %s28
    %s189 = sor.u32 %s187, %s188
    %p190 = scmp.eq.s32.totalorder %s189, 0
    %s192 = sadd.s32 %s191, 1
    %s193 = scalar_select %p190, %s191, %s192
    %p196 = pneg %p190
    %p197 = scmp.eq.s32.totalorder %s13, 7
    %p198 = por %p196, %p197
    %p199 = scmp.ne.s32.totalorder %s191, %s194
    %p200 = scmp.eq.s32.totalorder %s13, 0
    %p201 = por %p199, %p200
    %p202 = scmp.ne.s32.totalorder %s191, %s194
    %p203 = scmp.eq.s32.totalorder %s18, 7
    %p204 = por %p202, %p203
    %p205 = scmp.ne.s32.totalorder %s194, %s195
    %p206 = scmp.eq.s32.totalorder %s18, 0
    %p207 = por %p205, %p206
    %p208 = scmp.ne.s32.totalorder %s194, %s195
    %p209 = scmp.eq.s32.totalorder %s19, 7
    %p210 = por %p208, %p209
    %p212 = scmp.ne.s32.totalorder %s195, %s211
    %p213 = scmp.eq.s32.totalorder %s19, 0
    %p214 = por %p212, %p213
    %p215 = scmp.le.s32.totalorder 1, %s13
    %p216 = scmp.lt.s32.totalorder %s13, 9
    %p217 = pnand %p215, %p216
    %p218 = pneg %p217
    // Predicated region
    $region9: #{conv3dlstm_forward.10} parent=5 // pred_check
      _
    $region10: #{conv3dlstm_forward.10} parent=5 // pred_check_branch
      %220 = sbr.rel (%p217) target = $region12
    $region11: #{conv3dlstm_forward.10} parent=5 // pred_region
      %s221 = ssub.s32 %s13, 1
      // Predicated region
      $region13: #{conv3dlstm_forward.10} parent=11 // pred_check
        %p222 = pneg %p74
      $region14: #{conv3dlstm_forward.10} parent=11 // pred_check_branch
        %224 = sbr.rel (%p222) target = $region16
      $region15: #{conv3dlstm_forward.10} parent=11 // pred_region
        _
      $region16: #{conv3dlstm_forward.10} parent=11 // pred_fallthru
        _
      // Predicated region
      $region17: #{conv3dlstm_forward.10} parent=11 // pred_check
        %p225 = pneg %p95
      $region18: #{conv3dlstm_forward.10} parent=11 // pred_check_branch
        %227 = sbr.rel (%p225) target = $region20
      $region19: #{conv3dlstm_forward.10} parent=11 // pred_region
        _
      $region20: #{conv3dlstm_forward.10} parent=11 // pred_fallthru
        _
      // Predicated region
      $region21: #{conv3dlstm_forward.10} parent=11 // pred_check
        %p228 = pneg %p116
      $region22: #{conv3dlstm_forward.10} parent=11 // pred_check_branch
        %230 = sbr.rel (%p228) target = $region24
      $region23: #{conv3dlstm_forward.10} parent=11 // pred_region
        _
      $region24: #{conv3dlstm_forward.10} parent=11 // pred_fallthru
        _
      // Predicated region
      $region25: #{conv3dlstm_forward.10} parent=11 // pred_check
        %p231 = pneg %p137
      $region26: #{conv3dlstm_forward.10} parent=11 // pred_check_branch
        %233 = sbr.rel (%p231) target = $region28
      $region27: #{conv3dlstm_forward.10} parent=11 // pred_region
        _
      $region28: #{conv3dlstm_forward.10} parent=11 // pred_fallthru
        _
      // Predicated region
      $region29: #{conv3dlstm_forward.10} parent=11 // pred_check
        %p234 = pneg %p158
      $region30: #{conv3dlstm_forward.10} parent=11 // pred_check_branch
        %236 = sbr.rel (%p234) target = $region32
      $region31: #{conv3dlstm_forward.10} parent=11 // pred_region
        _
      $region32: #{conv3dlstm_forward.10} parent=11 // pred_fallthru
        _
      // Predicated region
      $region33: #{conv3dlstm_forward.10} parent=11 // pred_check
        %p237 = pneg %p179
      $region34: #{conv3dlstm_forward.10} parent=11 // pred_check_branch
        %239 = sbr.rel (%p237) target = $region36
      $region35: #{conv3dlstm_forward.10} parent=11 // pred_region
        _
      $region36: #{conv3dlstm_forward.10} parent=11 // pred_fallthru
        _
    $region12: #{conv3dlstm_forward.10} parent=5 // pred_fallthru
      _
    %p240 = scmp.lt.s32.totalorder %s13, 8
    // Predicated region
    $region37: #{conv3dlstm_forward.10} parent=5 // pred_check
      %p241 = pneg %p240
    $region38: #{conv3dlstm_forward.10} parent=5 // pred_check_branch
      %243 = sbr.rel (%p241) target = $region40
    $region39: #{conv3dlstm_forward.10} parent=5 // pred_region
      // Predicated region
      $region41: #{conv3dlstm_forward.10} parent=39 // pred_check
        %p244 = pneg %p47
      $region42: #{conv3dlstm_forward.10} parent=39 // pred_check_branch
        %246 = sbr.rel (%p244) target = $region44
      $region43: #{conv3dlstm_forward.10} parent=39 // pred_region
        %p247 = scmp.lt.s32.totalorder %s20, 1
        %s248 = scalar_select %p247, %s20, 1
        %p249 = scmp.lt.s32.totalorder %s21, 3
        %s250 = scalar_select %p249, %s21, 3
        %s251 = smul.addr %s250, 2
        %s252 = smul.addr %s248, 8
        %s253 = sadd.s32 %s251, %s252
        %s254 = smul.addr %s253, 4
        %s255 = scalar_lea.vmem %s0, %s254
      $region44: #{conv3dlstm_forward.10} parent=39 // pred_fallthru
        _
    $region40: #{conv3dlstm_forward.10} parent=5 // pred_fallthru
      _
    %p256 = scmp.le.s32.totalorder 1, %s13
    %p257 = scmp.lt.s32.totalorder %s13, 9
    %p258 = pnand %p256, %p257
    %p259 = pneg %p258
    // Predicated region
    $region45: #{conv3dlstm_forward.10} parent=5 // pred_check
      _
    $region46: #{conv3dlstm_forward.10} parent=5 // pred_check_branch
      %261 = sbr.rel (%p258) target = $region48
    $region47: #{conv3dlstm_forward.10} parent=5 // pred_region
      %s262 = ssub.s32 %s13, 1
      %p263 = scmp.lt.s32.totalorder %s22, 1
      %s264 = scalar_select %p263, %s22, 1
      %p265 = scmp.lt.s32.totalorder %s23, 3
      %s266 = scalar_select %p265, %s23, 3
      %s267 = smul.addr %s266, 2
      %s268 = smul.addr %s264, 8
      %s269 = sadd.s32 %s267, %s268
      %s270 = smul.addr %s269, 4
      %s271 = scalar_lea.vmem %s0, %s270
      %p272 = pneg %p53
      %p273 = pneg %p50
      %p274 = pneg %p74
      %p275 = pneg %p71
      %p276 = pneg %p95
      %p277 = pneg %p92
      %p278 = pneg %p116
      %p279 = pneg %p113
      %p280 = pneg %p137
      %p281 = pneg %p134
      %p282 = pneg %p158
      %p283 = pneg %p155
      %p284 = pneg %p179
      %p285 = pneg %p176
      %p286 = pneg %p207
      %p287 = pneg %p204
      %p288 = scmp.lt.s32.totalorder %s22, 1
      %s289 = scalar_select %p288, %s22, 1
      %p290 = scmp.lt.s32.totalorder %s23, 3
      %s291 = scalar_select %p290, %s23, 3
      %s292 = smul.addr %s291, 2
      %s293 = smul.addr %s289, 8
      %s294 = sadd.s32 %s292, %s293
      %s295 = smul.addr %s294, 4
      %s296 = scalar_lea.vmem %s7, %s295
      %p297 = scmp.lt.s32.totalorder %s22, 1
      %s298 = scalar_select %p297, %s22, 1
      %p299 = scmp.lt.s32.totalorder %s23, 3
      %s300 = scalar_select %p299, %s23, 3
      %s301 = smul.addr %s300, 2
      %s302 = smul.addr %s298, 8
      %s303 = sadd.s32 %s301, %s302
      %s304 = smul.addr %s303, 4
      %s305 = scalar_lea.vmem %s0, %s304
      %p306 = scmp.lt.s32.totalorder %s22, 1
      %s307 = scalar_select %p306, %s22, 1
      %p308 = scmp.lt.s32.totalorder %s23, 3
      %s309 = scalar_select %p308, %s23, 3
      %s310 = smul.addr %s309, 2
      %s311 = smul.addr %s307, 8
      %s312 = sadd.s32 %s310, %s311
      %s313 = smul.addr %s312, 4
      %s314 = scalar_lea.vmem %s7, %s313
      %p316 = scmp.eq.s32.totalorder %s23, 0
      // Predicated region
      $region49: #{conv3dlstm_forward.10} parent=47 // pred_check
        %p317 = pneg %p316
      $region50: #{conv3dlstm_forward.10} parent=47 // pred_check_branch
        %319 = sbr.rel (%p317) target = $region52
      $region51: #{conv3dlstm_forward.10} parent=47 // pred_region
        %320 = vst [vmem:[#allocation2] sm:$0xf] 0
        %vm321 = vcmask 1040384
        %vm322 = vsmask.f32 256
        %vm323 = vmand %vm321, %vm322
        %v324 = vld [vmem:[#allocation2 + $0x4] sm:$0x1]
        %v325 = vsel %vm323, 0, %v324
        %326 = vst [vmem:[#allocation2 + $0x4] sm:$0x1] %v325
        %327 = vst [vmem:[#allocation3] sm:$0xff] 0.0
        %328 = vst [vmem:[#allocation3 + $0x8] sm:$0x1] 0.0
      $region52: #{conv3dlstm_forward.10} parent=47 // pred_fallthru
        _
      %v329 = vld [vmem:[%s305] sm:$0xf]
      %v330 = vld [vmem:[%s305 + $0x4] sm:$0x1]
      %v331 = vld [vmem:[#allocation2] sm:$0xf]
      %v332 = vld [vmem:[#allocation2 + $0x4] sm:$0x1]
      %v333 = vld [vmem:[#allocation3] sm:$0xff]
      %v334 = vld [vmem:[#allocation3 + $0x8] sm:$0x1]
      %v335 = vld [vmem:[%s1] sm:$0xff]
      %v336 = vld [vmem:[%s1 + $0x8] sm:$0xff]
      %v337 = vld [vmem:[%s1 + $0x10] sm:$0xff]
      %v338 = vld [vmem:[%s1 + $0x18] sm:$0xff]
      %v339 = vld [vmem:[%s1 + $0x20] sm:$0xff]
      %v340 = vld [vmem:[%s1 + $0x28] sm:$0xff]
      %v341 = vld [vmem:[%s1 + $0x30] sm:$0xff]
      %v342 = vld [vmem:[%s1 + $0x38] sm:$0xff]
      %v343 = vld [vmem:[%s1 + $0x40] sm:$0xff]
      %v344 = vld [vmem:[%s1 + $0x48] sm:$0xff]
      %v345 = vld [vmem:[%s1 + $0x50] sm:$0xff]
      %v346 = vld [vmem:[%s1 + $0x58] sm:$0xff]
      %v347 = vld [vmem:[%s1 + $0x60] sm:$0xff]
      %v348 = vld [vmem:[%s1 + $0x68] sm:$0xff]
      %v349 = vld [vmem:[%s1 + $0x70] sm:$0xff]
      %v350 = vld [vmem:[%s1 + $0x78] sm:$0xff]
      %v351 = vld [vmem:[%s1 + $0x80] sm:$0xff]
      %v352 = vld [vmem:[%s1 + $0x88] sm:$0xff]
      %v353 = vld [vmem:[%s1 + $0x90] sm:$0xff]
      %v354 = vld [vmem:[%s1 + $0x98] sm:$0xff]
      %v355 = vld [vmem:[%s1 + $0xa0] sm:$0xff]
      %v356 = vld [vmem:[%s1 + $0xa8] sm:$0xff]
      %v357 = vld [vmem:[%s1 + $0xb0] sm:$0xff]
      %v358 = vld [vmem:[%s1 + $0xb8] sm:$0xff]
      %v359 = vld [vmem:[%s1 + $0xc0] sm:$0xff]
      %v360 = vld [vmem:[%s1 + $0xc8] sm:$0xff]
      %v361 = vld [vmem:[%s1 + $0xd0] sm:$0xff]
      %v362 = vld [vmem:[%s1 + $0xd8] sm:$0xff]
      %v363 = vld [vmem:[%s1 + $0xe0] sm:$0xff]
      %v364 = vld [vmem:[%s1 + $0xe8] sm:$0xff]
      %v365 = vld [vmem:[%s1 + $0xf0] sm:$0xff]
      %v366 = vld [vmem:[%s1 + $0xf8] sm:$0xff]
      %v367 = vld [vmem:[%s2] sm:$0xff]
      %v368 = vld [vmem:[%s2 + $0x8] sm:$0xff]
      %v369 = vld [vmem:[%s2 + $0x10] sm:$0xff]
      %v370 = vld [vmem:[%s2 + $0x18] sm:$0xff]
      %v371 = vld [vmem:[%s2 + $0x20] sm:$0xff]
      %v372 = vld [vmem:[%s2 + $0x28] sm:$0xff]
      %v373 = vld [vmem:[%s2 + $0x30] sm:$0xff]
      %v374 = vld [vmem:[%s2 + $0x38] sm:$0xff]
      %v375 = vld [vmem:[%s2 + $0x40] sm:$0xff]
      %v376 = vld [vmem:[%s2 + $0x48] sm:$0xff]
      %v377 = vld [vmem:[%s2 + $0x50] sm:$0xff]
      %v378 = vld [vmem:[%s2 + $0x58] sm:$0xff]
      %v379 = vld [vmem:[%s2 + $0x60] sm:$0xff]
      %v380 = vld [vmem:[%s2 + $0x68] sm:$0xff]
      %v381 = vld [vmem:[%s2 + $0x70] sm:$0xff]
      %v382 = vld [vmem:[%s2 + $0x78] sm:$0xff]
      %v383 = vld [vmem:[%s2 + $0x80] sm:$0xff]
      %v384 = vld [vmem:[%s2 + $0x88] sm:$0xff]
      %v385 = vld [vmem:[%s2 + $0x90] sm:$0xff]
      %v386 = vld [vmem:[%s2 + $0x98] sm:$0xff]
      %v387 = vld [vmem:[%s2 + $0xa0] sm:$0xff]
      %v388 = vld [vmem:[%s2 + $0xa8] sm:$0xff]
      %v389 = vld [vmem:[%s2 + $0xb0] sm:$0xff]
      %v390 = vld [vmem:[%s2 + $0xb8] sm:$0xff]
      %v391 = vld [vmem:[%s2 + $0xc0] sm:$0xff]
      %v392 = vld [vmem:[%s2 + $0xc8] sm:$0xff]
      %v393 = vld [vmem:[%s2 + $0xd0] sm:$0xff]
      %v394 = vld [vmem:[%s2 + $0xd8] sm:$0xff]
      %v395 = vld [vmem:[%s2 + $0xe0] sm:$0xff]
      %v396 = vld [vmem:[%s2 + $0xe8] sm:$0xff]
      %v397 = vld [vmem:[%s2 + $0xf0] sm:$0xff]
      %v398 = vld [vmem:[%s2 + $0xf8] sm:$0xff]
      %v401 = vunpack.c.l.b16 %v331
      %v402 = vunpack.c.l.b16 %v332
      %v403 = vpack.c.b16 %v402, %v401
      %v437 = vunpack.c.l.b16 %v367
      %v438 = vunpack.c.h.b16 %v367
      %v439 = vunpack.c.l.b16 %v368
      %v440 = vunpack.c.h.b16 %v368
      %v441 = vunpack.c.l.b16 %v369
      %v442 = vunpack.c.h.b16 %v369
      %v443 = vunpack.c.l.b16 %v370
      %v444 = vunpack.c.h.b16 %v370
      %v445 = vunpack.c.l.b16 %v371
      %v446 = vunpack.c.h.b16 %v371
      %v447 = vunpack.c.l.b16 %v372
      %v448 = vunpack.c.h.b16 %v372
      %v449 = vunpack.c.l.b16 %v373
      %v450 = vunpack.c.h.b16 %v373
      %v451 = vunpack.c.l.b16 %v374
      %v452 = vunpack.c.h.b16 %v374
      %v453 = vunpack.c.l.b16 %v375
      %v454 = vunpack.c.h.b16 %v375
      %v455 = vunpack.c.l.b16 %v376
      %v456 = vunpack.c.h.b16 %v376
      %v457 = vunpack.c.l.b16 %v377
      %v458 = vunpack.c.h.b16 %v377
      %v459 = vunpack.c.l.b16 %v378
      %v460 = vunpack.c.h.b16 %v378
      %v461 = vunpack.c.l.b16 %v379
      %v462 = vunpack.c.h.b16 %v379
      %v463 = vunpack.c.l.b16 %v380
      %v464 = vunpack.c.h.b16 %v380
      %v465 = vunpack.c.l.b16 %v381
      %v466 = vunpack.c.h.b16 %v381
      %v467 = vunpack.c.l.b16 %v382
      %v468 = vunpack.c.h.b16 %v382
      %v469 = vunpack.c.l.b16 %v383
      %v470 = vunpack.c.h.b16 %v383
      %v471 = vunpack.c.l.b16 %v384
      %v472 = vunpack.c.h.b16 %v384
      %v473 = vunpack.c.l.b16 %v385
      %v474 = vunpack.c.h.b16 %v385
      %v475 = vunpack.c.l.b16 %v386
      %v476 = vunpack.c.h.b16 %v386
      %v477 = vunpack.c.l.b16 %v387
      %v478 = vunpack.c.h.b16 %v387
      %v479 = vunpack.c.l.b16 %v388
      %v480 = vunpack.c.h.b16 %v388
      %v481 = vunpack.c.l.b16 %v389
      %v482 = vunpack.c.h.b16 %v389
      %v483 = vunpack.c.l.b16 %v390
      %v484 = vunpack.c.h.b16 %v390
      %v485 = vunpack.c.l.b16 %v391
      %v486 = vunpack.c.h.b16 %v391
      %v487 = vunpack.c.l.b16 %v392
      %v488 = vunpack.c.h.b16 %v392
      %v489 = vunpack.c.l.b16 %v393
      %v490 = vunpack.c.h.b16 %v393
      %v491 = vunpack.c.l.b16 %v394
      %v492 = vunpack.c.h.b16 %v394
      %v493 = vunpack.c.l.b16 %v395
      %v494 = vunpack.c.h.b16 %v395
      %v495 = vunpack.c.l.b16 %v396
      %v496 = vunpack.c.h.b16 %v396
      %v497 = vunpack.c.l.b16 %v397
      %v498 = vunpack.c.h.b16 %v397
      %v499 = vunpack.c.l.b16 %v398
      %v500 = vunpack.c.h.b16 %v398
      %v501 = vpack.c.b16 %v441, %v437
      %v502 = vpack.c.b16 %v442, %v438
      %v503 = vpack.c.b16 %v443, %v439
      %v504 = vpack.c.b16 %v444, %v440
      %v505 = vpack.c.b16 %v449, %v445
      %v506 = vpack.c.b16 %v450, %v446
      %v507 = vpack.c.b16 %v451, %v447
      %v508 = vpack.c.b16 %v452, %v448
      %v509 = vpack.c.b16 %v457, %v453
      %v510 = vpack.c.b16 %v458, %v454
      %v511 = vpack.c.b16 %v459, %v455
      %v512 = vpack.c.b16 %v460, %v456
      %v513 = vpack.c.b16 %v465, %v461
      %v514 = vpack.c.b16 %v466, %v462
      %v515 = vpack.c.b16 %v467, %v463
      %v516 = vpack.c.b16 %v468, %v464
      %v517 = vpack.c.b16 %v473, %v469
      %v518 = vpack.c.b16 %v474, %v470
      %v519 = vpack.c.b16 %v475, %v471
      %v520 = vpack.c.b16 %v476, %v472
      %v521 = vpack.c.b16 %v481, %v477
      %v522 = vpack.c.b16 %v482, %v478
      %v523 = vpack.c.b16 %v483, %v479
      %v524 = vpack.c.b16 %v484, %v480
      %v525 = vpack.c.b16 %v489, %v485
      %v526 = vpack.c.b16 %v490, %v486
      %v527 = vpack.c.b16 %v491, %v487
      %v528 = vpack.c.b16 %v492, %v488
      %v529 = vpack.c.b16 %v497, %v493
      %v530 = vpack.c.b16 %v498, %v494
      %v531 = vpack.c.b16 %v499, %v495
      %v532 = vpack.c.b16 %v500, %v496
      %565 = vmatprep.subr.bf16.mxu0 %v502
      %566 = vmatpush1.bf16.msra.mxu0 %v501
      %567 = vmatprep.subr.bf16.mxu0 %v506
      %568 = vmatpush1.bf16.msra.mxu0 %v505
      %569 = vmatprep.subr.bf16.mxu0 %v510
      %570 = vmatpush1.bf16.msra.mxu0 %v509
      %571 = vmatprep.subr.bf16.mxu0 %v514
      %572 = vmatpush1.bf16.msra.mxu0 %v513
      %573 = vmatprep.subr.bf16.mxu0 %v518
      %574 = vmatpush1.bf16.msra.mxu0 %v517
      %575 = vmatprep.subr.bf16.mxu0 %v522
      %576 = vmatpush1.bf16.msra.mxu0 %v521
      %577 = vmatprep.subr.bf16.mxu0 %v526
      %578 = vmatpush1.bf16.msra.mxu0 %v525
      %579 = vmatprep.subr.bf16.mxu0 %v530
      %580 = vmatpush1.bf16.msra.mxu0 %v529
      %581 = vmatprep.subr.bf16.mxu0 0
      %582 = vmatpush1.bf16.msra.mxu0 0
      %583 = vmatprep.subr.bf16.mxu0 0
      %584 = vmatpush1.bf16.msra.mxu0 0
      %585 = vmatprep.subr.bf16.mxu0 0
      %586 = vmatpush1.bf16.msra.mxu0 0
      %587 = vmatprep.subr.bf16.mxu0 0
      %588 = vmatpush1.bf16.msra.mxu0 0
      %589 = vmatprep.subr.bf16.mxu0 0
      %590 = vmatpush1.bf16.msra.mxu0 0
      %591 = vmatprep.subr.bf16.mxu0 0
      %592 = vmatpush1.bf16.msra.mxu0 0
      %593 = vmatprep.subr.bf16.mxu0 0
      %594 = vmatpush1.bf16.msra.mxu0 0
      %595 = vmatprep.subr.bf16.mxu0 0
      %596 = vmatpush1.bf16.msra.mxu0 0
      %597 = vmatprep.mubr.bf16.mxu0 0
      %598 = vmatmul.mubr.bf16.gmra.mrb[0].mxu0 %v403
      %v599 = vpop.f32.mrb[0].mxu0
      %v600 = vadd.f32 0.0, %v599
      %v601 = vpop.f32.mrb[0].mxu0
      %v602 = vadd.f32 0.0, %v601
      %v603 = vpop.f32.mrb[0].mxu0
      %v604 = vadd.f32 0.0, %v603
      %v605 = vpop.f32.mrb[0].mxu0
      %v606 = vadd.f32 0.0, %v605
      %607 = vdwg.mxu0
      %608 = vmatprep.subr.bf16.mxu0 %v504
      %609 = vmatpush1.bf16.msra.mxu0 %v503
      %610 = vmatprep.subr.bf16.mxu0 %v508
      %611 = vmatpush1.bf16.msra.mxu0 %v507
      %612 = vmatprep.subr.bf16.mxu0 %v512
      %613 = vmatpush1.bf16.msra.mxu0 %v511
      %614 = vmatprep.subr.bf16.mxu0 %v516
      %615 = vmatpush1.bf16.msra.mxu0 %v515
      %616 = vmatprep.subr.bf16.mxu0 %v520
      %617 = vmatpush1.bf16.msra.mxu0 %v519
      %618 = vmatprep.subr.bf16.mxu0 %v524
      %619 = vmatpush1.bf16.msra.mxu0 %v523
      %620 = vmatprep.subr.bf16.mxu0 %v528
      %621 = vmatpush1.bf16.msra.mxu0 %v527
      %622 = vmatprep.subr.bf16.mxu0 %v532
      %623 = vmatpush1.bf16.msra.mxu0 %v531
      %624 = vmatprep.subr.bf16.mxu0 0
      %625 = vmatpush1.bf16.msra.mxu0 0
      %626 = vmatprep.subr.bf16.mxu0 0
      %627 = vmatpush1.bf16.msra.mxu0 0
      %628 = vmatprep.subr.bf16.mxu0 0
      %629 = vmatpush1.bf16.msra.mxu0 0
      %630 = vmatprep.subr.bf16.mxu0 0
      %631 = vmatpush1.bf16.msra.mxu0 0
      %632 = vmatprep.subr.bf16.mxu0 0
      %633 = vmatpush1.bf16.msra.mxu0 0
      %634 = vmatprep.subr.bf16.mxu0 0
      %635 = vmatpush1.bf16.msra.mxu0 0
      %636 = vmatprep.subr.bf16.mxu0 0
      %637 = vmatpush1.bf16.msra.mxu0 0
      %638 = vmatprep.subr.bf16.mxu0 0
      %639 = vmatpush1.bf16.msra.mxu0 0
      %640 = vmatprep.mubr.bf16.mxu0 0
      %641 = vmatmul.mubr.bf16.gmra.mrb[0].mxu0 %v403
      %v642 = vpop.f32.mrb[0].mxu0
      %v643 = vadd.f32 0.0, %v642
      %v644 = vpop.f32.mrb[0].mxu0
      %v645 = vadd.f32 0.0, %v644
      %v646 = vpop.f32.mrb[0].mxu0
      %v647 = vadd.f32 0.0, %v646
      %v648 = vpop.f32.mrb[0].mxu0
      %v649 = vadd.f32 0.0, %v648
      %650 = vdwg.mxu0
      %v653 = vunpack.c.l.b16 %v329
      %v654 = vunpack.c.l.b16 %v330
      %v655 = vpack.c.b16 %v654, %v653
      %v689 = vunpack.c.l.b16 %v335
      %v690 = vunpack.c.h.b16 %v335
      %v691 = vunpack.c.l.b16 %v336
      %v692 = vunpack.c.h.b16 %v336
      %v693 = vunpack.c.l.b16 %v337
      %v694 = vunpack.c.h.b16 %v337
      %v695 = vunpack.c.l.b16 %v338
      %v696 = vunpack.c.h.b16 %v338
      %v697 = vunpack.c.l.b16 %v339
      %v698 = vunpack.c.h.b16 %v339
      %v699 = vunpack.c.l.b16 %v340
      %v700 = vunpack.c.h.b16 %v340
      %v701 = vunpack.c.l.b16 %v341
      %v702 = vunpack.c.h.b16 %v341
      %v703 = vunpack.c.l.b16 %v342
      %v704 = vunpack.c.h.b16 %v342
      %v705 = vunpack.c.l.b16 %v343
      %v706 = vunpack.c.h.b16 %v343
      %v707 = vunpack.c.l.b16 %v344
      %v708 = vunpack.c.h.b16 %v344
      %v709 = vunpack.c.l.b16 %v345
      %v710 = vunpack.c.h.b16 %v345
      %v711 = vunpack.c.l.b16 %v346
      %v712 = vunpack.c.h.b16 %v346
      %v713 = vunpack.c.l.b16 %v347
      %v714 = vunpack.c.h.b16 %v347
      %v715 = vunpack.c.l.b16 %v348
      %v716 = vunpack.c.h.b16 %v348
      %v717 = vunpack.c.l.b16 %v349
      %v718 = vunpack.c.h.b16 %v349
      %v719 = vunpack.c.l.b16 %v350
      %v720 = vunpack.c.h.b16 %v350
      %v721 = vunpack.c.l.b16 %v351
      %v722 = vunpack.c.h.b16 %v351
      %v723 = vunpack.c.l.b16 %v352
      %v724 = vunpack.c.h.b16 %v352
      %v725 = vunpack.c.l.b16 %v353
      %v726 = vunpack.c.h.b16 %v353
      %v727 = vunpack.c.l.b16 %v354
      %v728 = vunpack.c.h.b16 %v354
      %v729 = vunpack.c.l.b16 %v355
      %v730 = vunpack.c.h.b16 %v355
      %v731 = vunpack.c.l.b16 %v356
      %v732 = vunpack.c.h.b16 %v356
      %v733 = vunpack.c.l.b16 %v357
      %v734 = vunpack.c.h.b16 %v357
      %v735 = vunpack.c.l.b16 %v358
      %v736 = vunpack.c.h.b16 %v358
      %v737 = vunpack.c.l.b16 %v359
      %v738 = vunpack.c.h.b16 %v359
      %v739 = vunpack.c.l.b16 %v360
      %v740 = vunpack.c.h.b16 %v360
      %v741 = vunpack.c.l.b16 %v361
      %v742 = vunpack.c.h.b16 %v361
      %v743 = vunpack.c.l.b16 %v362
      %v744 = vunpack.c.h.b16 %v362
      %v745 = vunpack.c.l.b16 %v363
      %v746 = vunpack.c.h.b16 %v363
      %v747 = vunpack.c.l.b16 %v364
      %v748 = vunpack.c.h.b16 %v364
      %v749 = vunpack.c.l.b16 %v365
      %v750 = vunpack.c.h.b16 %v365
      %v751 = vunpack.c.l.b16 %v366
      %v752 = vunpack.c.h.b16 %v366
      %v753 = vpack.c.b16 %v693, %v689
      %v754 = vpack.c.b16 %v694, %v690
      %v755 = vpack.c.b16 %v695, %v691
      %v756 = vpack.c.b16 %v696, %v692
      %v757 = vpack.c.b16 %v701, %v697
      %v758 = vpack.c.b16 %v702, %v698
      %v759 = vpack.c.b16 %v703, %v699
      %v760 = vpack.c.b16 %v704, %v700
      %v761 = vpack.c.b16 %v709, %v705
      %v762 = vpack.c.b16 %v710, %v706
      %v763 = vpack.c.b16 %v711, %v707
      %v764 = vpack.c.b16 %v712, %v708
      %v765 = vpack.c.b16 %v717, %v713
      %v766 = vpack.c.b16 %v718, %v714
      %v767 = vpack.c.b16 %v719, %v715
      %v768 = vpack.c.b16 %v720, %v716
      %v769 = vpack.c.b16 %v725, %v721
      %v770 = vpack.c.b16 %v726, %v722
      %v771 = vpack.c.b16 %v727, %v723
      %v772 = vpack.c.b16 %v728, %v724
      %v773 = vpack.c.b16 %v733, %v729
      %v774 = vpack.c.b16 %v734, %v730
      %v775 = vpack.c.b16 %v735, %v731
      %v776 = vpack.c.b16 %v736, %v732
      %v777 = vpack.c.b16 %v741, %v737
      %v778 = vpack.c.b16 %v742, %v738
      %v779 = vpack.c.b16 %v743, %v739
      %v780 = vpack.c.b16 %v744, %v740
      %v781 = vpack.c.b16 %v749, %v745
      %v782 = vpack.c.b16 %v750, %v746
      %v783 = vpack.c.b16 %v751, %v747
      %v784 = vpack.c.b16 %v752, %v748
      %817 = vmatprep.subr.bf16.mxu0 %v754
      %818 = vmatpush1.bf16.msra.mxu0 %v753
      %819 = vmatprep.subr.bf16.mxu0 %v758
      %820 = vmatpush1.bf16.msra.mxu0 %v757
      %821 = vmatprep.subr.bf16.mxu0 %v762
      %822 = vmatpush1.bf16.msra.mxu0 %v761
      %823 = vmatprep.subr.bf16.mxu0 %v766
      %824 = vmatpush1.bf16.msra.mxu0 %v765
      %825 = vmatprep.subr.bf16.mxu0 %v770
      %826 = vmatpush1.bf16.msra.mxu0 %v769
      %827 = vmatprep.subr.bf16.mxu0 %v774
      %828 = vmatpush1.bf16.msra.mxu0 %v773
      %829 = vmatprep.subr.bf16.mxu0 %v778
      %830 = vmatpush1.bf16.msra.mxu0 %v777
      %831 = vmatprep.subr.bf16.mxu0 %v782
      %832 = vmatpush1.bf16.msra.mxu0 %v781
      %833 = vmatprep.subr.bf16.mxu0 0
      %834 = vmatpush1.bf16.msra.mxu0 0
      %835 = vmatprep.subr.bf16.mxu0 0
      %836 = vmatpush1.bf16.msra.mxu0 0
      %837 = vmatprep.subr.bf16.mxu0 0
      %838 = vmatpush1.bf16.msra.mxu0 0
      %839 = vmatprep.subr.bf16.mxu0 0
      %840 = vmatpush1.bf16.msra.mxu0 0
      %841 = vmatprep.subr.bf16.mxu0 0
      %842 = vmatpush1.bf16.msra.mxu0 0
      %843 = vmatprep.subr.bf16.mxu0 0
      %844 = vmatpush1.bf16.msra.mxu0 0
      %845 = vmatprep.subr.bf16.mxu0 0
      %846 = vmatpush1.bf16.msra.mxu0 0
      %847 = vmatprep.subr.bf16.mxu0 0
      %848 = vmatpush1.bf16.msra.mxu0 0
      %849 = vmatprep.mubr.bf16.mxu0 0
      %850 = vmatmul.mubr.bf16.gmra.mrb[0].mxu0 %v655
      %v851 = vpop.f32.mrb[0].mxu0
      %v852 = vadd.f32 %v600, %v851
      %v853 = vpop.f32.mrb[0].mxu0
      %v854 = vadd.f32 %v602, %v853
      %v855 = vpop.f32.mrb[0].mxu0
      %v856 = vadd.f32 %v604, %v855
      %v857 = vpop.f32.mrb[0].mxu0
      %v858 = vadd.f32 %v606, %v857
      %859 = vdwg.mxu0
      %860 = vmatprep.subr.bf16.mxu0 %v756
      %861 = vmatpush1.bf16.msra.mxu0 %v755
      %862 = vmatprep.subr.bf16.mxu0 %v760
      %863 = vmatpush1.bf16.msra.mxu0 %v759
      %864 = vmatprep.subr.bf16.mxu0 %v764
      %865 = vmatpush1.bf16.msra.mxu0 %v763
      %866 = vmatprep.subr.bf16.mxu0 %v768
      %867 = vmatpush1.bf16.msra.mxu0 %v767
      %868 = vmatprep.subr.bf16.mxu0 %v772
      %869 = vmatpush1.bf16.msra.mxu0 %v771
      %870 = vmatprep.subr.bf16.mxu0 %v776
      %871 = vmatpush1.bf16.msra.mxu0 %v775
      %872 = vmatprep.subr.bf16.mxu0 %v780
      %873 = vmatpush1.bf16.msra.mxu0 %v779
      %874 = vmatprep.subr.bf16.mxu0 %v784
      %875 = vmatpush1.bf16.msra.mxu0 %v783
      %876 = vmatprep.subr.bf16.mxu0 0
      %877 = vmatpush1.bf16.msra.mxu0 0
      %878 = vmatprep.subr.bf16.mxu0 0
      %879 = vmatpush1.bf16.msra.mxu0 0
      %880 = vmatprep.subr.bf16.mxu0 0
      %881 = vmatpush1.bf16.msra.mxu0 0
      %882 = vmatprep.subr.bf16.mxu0 0
      %883 = vmatpush1.bf16.msra.mxu0 0
      %884 = vmatprep.subr.bf16.mxu0 0
      %885 = vmatpush1.bf16.msra.mxu0 0
      %886 = vmatprep.subr.bf16.mxu0 0
      %887 = vmatpush1.bf16.msra.mxu0 0
      %888 = vmatprep.subr.bf16.mxu0 0
      %889 = vmatpush1.bf16.msra.mxu0 0
      %890 = vmatprep.subr.bf16.mxu0 0
      %891 = vmatpush1.bf16.msra.mxu0 0
      %892 = vmatprep.mubr.bf16.mxu0 0
      %893 = vmatmul.mubr.bf16.gmra.mrb[0].mxu0 %v655
      %v894 = vpop.f32.mrb[0].mxu0
      %v895 = vadd.f32 %v643, %v894
      %v896 = vpop.f32.mrb[0].mxu0
      %v897 = vadd.f32 %v645, %v896
      %v898 = vpop.f32.mrb[0].mxu0
      %v899 = vadd.f32 %v647, %v898
      %v900 = vpop.f32.mrb[0].mxu0
      %v901 = vadd.f32 %v649, %v900
      %902 = vdwg.mxu0
      %v903 = vld [vmem:[%s3] sm:$0xf]
      %v905 = vlaneseq
      %v906 = vshrl.u32 %v905, 7
      %v907 = vsub.s32 0, %v906
      %v908 = vrot.slane %v903, %v907
      %v909 = vlaneseq
      %v910 = vshrl.u32 %v909, 7
      %v911 = vsub.s32 1, %v910
      %v912 = vrot.slane %v903, %v911
      %v913 = vlaneseq
      %v914 = vshrl.u32 %v913, 7
      %v915 = vsub.s32 2, %v914
      %v916 = vrot.slane %v903, %v915
      %v917 = vlaneseq
      %v918 = vshrl.u32 %v917, 7
      %v919 = vsub.s32 3, %v918
      %v920 = vrot.slane %v903, %v919
      %v925 = vadd.f32 %v852, %v908
      %v926 = vadd.f32 %v854, %v912
      %v927 = vadd.f32 %v895, %v916
      %v928 = vadd.f32 %v897, %v920
      %v929 = vadd.f32 %v856, %v908
      %v930 = vadd.f32 %v858, %v912
      %v931 = vadd.f32 %v899, %v916
      %v932 = vadd.f32 %v901, %v920
      %v933 = vld [vmem:[%s4] sm:$0xff]
      %v934 = vld [vmem:[%s4 + $0x8] sm:$0x1]
      %v935 = vmul.f32 %v933, %v333
      %v936 = vmul.f32 %v934, %v334
      %v937 = vadd.f32 %v925, %v935
      %v938 = vadd.f32 %v929, %v936
      %v939 = vxor.u32 %v937, 2147483648
      %v940 = vxor.u32 %v938, 2147483648
      %v941 = vmul.f32 %v939, 1.442695
      %v942 = vpow.pop %v941
      %v943 = vmul.f32 %v940, 1.442695
      %v944 = vpow.pop %v943
      %v945 = vadd.f32 %v942, 1.0
      %v946 = vadd.f32 %v944, 1.0
      %v947 = vrcp.pop %v945
      %v948 = vmul.f32 1.0, %v947
      %v949 = vrcp.pop %v946
      %v950 = vmul.f32 1.0, %v949
      %v951 = vld [vmem:[%s5] sm:$0xff]
      %v952 = vld [vmem:[%s5 + $0x8] sm:$0x1]
      %v953 = vmul.f32 %v951, %v333
      %v954 = vmul.f32 %v952, %v334
      %v955 = vadd.f32 %v926, %v953
      %v956 = vadd.f32 %v930, %v954
      %v957 = vxor.u32 %v955, 2147483648
      %v958 = vxor.u32 %v956, 2147483648
      %v959 = vmul.f32 %v957, 1.442695
      %v960 = vpow.pop %v959
      %v961 = vmul.f32 %v958, 1.442695
      %v962 = vpow.pop %v961
      %v963 = vadd.f32 %v960, 1.0
      %v964 = vadd.f32 %v962, 1.0
      %v965 = vrcp.pop %v963
      %v966 = vmul.f32 1.0, %v965
      %v967 = vrcp.pop %v964
      %v968 = vmul.f32 1.0, %v967
      %v969 = vmul.f32 %v966, %v333
      %v970 = vmul.f32 %v968, %v334
      %v971 = vmax.f32 %v927, 0.0
      %v972 = vmax.f32 %v931, 0.0
      %v973 = vmul.f32 %v948, %v971
      %v974 = vmul.f32 %v950, %v972
      %v975 = vadd.f32 %v969, %v973
      %v976 = vadd.f32 %v970, %v974
      %v977 = vld [vmem:[%s6] sm:$0xff]
      %v978 = vld [vmem:[%s6 + $0x8] sm:$0x1]
      %v979 = vmul.f32 %v977, %v975
      %v980 = vmul.f32 %v978, %v976
      %v981 = vadd.f32 %v928, %v979
      %v982 = vadd.f32 %v932, %v980
      %v983 = vxor.u32 %v981, 2147483648
      %v984 = vxor.u32 %v982, 2147483648
      %v985 = vmul.f32 %v983, 1.442695
      %v986 = vpow.pop %v985
      %v987 = vmul.f32 %v984, 1.442695
      %v988 = vpow.pop %v987
      %v989 = vadd.f32 %v986, 1.0
      %v990 = vadd.f32 %v988, 1.0
      %v991 = vrcp.pop %v989
      %v992 = vmul.f32 1.0, %v991
      %v993 = vrcp.pop %v990
      %v994 = vmul.f32 1.0, %v993
      %v995 = vmax.f32 %v975, 0.0
      %v996 = vmax.f32 %v976, 0.0
      %v997 = vmul.f32 %v992, %v995
      %v998 = vmul.f32 %v994, %v996
      %999 = vst [vmem:[#allocation3] sm:$0xff] %v975
      %1000 = vst [vmem:[#allocation3 + $0x8] sm:$0x1] %v976
      %v1001 = vpack.c.bf16 %v998, %v997
      %v1003 = vunpack.c.l.b16 %v1001
      %v1004 = vunpack.c.h.b16 %v1001
      %v1005 = vpack.c.b16 %v1003, %v1003
      %v1006 = vpack.c.b16 %v1004, %v1004
      %1009 = vst [vmem:[#allocation2] sm:$0xf] %v1005
      %vm1010 = vcmask 1040384
      %vm1011 = vsmask.f32 256
      %vm1012 = vmand %vm1010, %vm1011
      %v1013 = vld [vmem:[#allocation2 + $0x4] sm:$0x1]
      %v1014 = vsel %vm1012, %v1006, %v1013
      %1015 = vst [vmem:[#allocation2 + $0x4] sm:$0x1] %v1014
      %1016 = vst [vmem:[%s314] sm:$0xf] %v1005
      %v1017 = vld [vmem:[%s314 + $0x4] sm:$0x1]
      %v1018 = vsel %vm1012, %v1006, %v1017
      %1019 = vst [vmem:[%s314 + $0x4] sm:$0x1] %v1018
      %p1020 = scmp.lt.s32.totalorder %s22, 1
      %s1021 = scalar_select %p1020, %s22, 1
      %p1022 = scmp.lt.s32.totalorder %s23, 3
      %s1023 = scalar_select %p1022, %s23, 3
      %s1024 = smul.addr %s1023, 2
      %s1025 = smul.addr %s1021, 8
      %s1026 = sadd.s32 %s1024, %s1025
      %s1027 = smul.addr %s1026, 4
      %s1028 = scalar_lea.vmem %s7, %s1027
      // Predicated region
      $region53: #{conv3dlstm_forward.10} parent=47 // pred_check
        %p1029 = pneg %p204
      $region54: #{conv3dlstm_forward.10} parent=47 // pred_check_branch
        %1031 = sbr.rel (%p1029) target = $region56
      $region55: #{conv3dlstm_forward.10} parent=47 // pred_region
        _
      $region56: #{conv3dlstm_forward.10} parent=47 // pred_fallthru
        _
    $region48: #{conv3dlstm_forward.10} parent=5 // pred_fallthru
      _
    %p1032 = scmp.le.s32.totalorder 2, %s13
    // Predicated region
    $region57: #{conv3dlstm_forward.10} parent=5 // pred_check
      %p1033 = pneg %p1032
    $region58: #{conv3dlstm_forward.10} parent=5 // pred_check_branch
      %1035 = sbr.rel (%p1033) target = $region60
    $region59: #{conv3dlstm_forward.10} parent=5 // pred_region
      %s1036 = ssub.s32 %s13, 2
      // Predicated region
      $region61: #{conv3dlstm_forward.10} parent=59 // pred_check
        %p1037 = pneg %p210
      $region62: #{conv3dlstm_forward.10} parent=59 // pred_check_branch
        %1039 = sbr.rel (%p1037) target = $region64
      $region63: #{conv3dlstm_forward.10} parent=59 // pred_region
        %p1040 = scmp.lt.s32.totalorder %s24, 1
        %s1041 = scalar_select %p1040, %s24, 1
        %p1042 = scmp.lt.s32.totalorder %s25, 3
        %s1043 = scalar_select %p1042, %s25, 3
        %s1044 = smul.addr %s1043, 2
        %s1045 = smul.addr %s1041, 8
        %s1046 = sadd.s32 %s1044, %s1045
        %s1047 = smul.addr %s1046, 4
        %s1048 = scalar_lea.vmem %s7, %s1047
      $region64: #{conv3dlstm_forward.10} parent=59 // pred_fallthru
        _
    $region60: #{conv3dlstm_forward.10} parent=5 // pred_fallthru
      _
  $region6: #{conv3dlstm_forward.10} parent=0 // loop_footer
    %s17 = sadd.s32 1, %s13
  $region7: #{conv3dlstm_forward.10} parent=0 // loop_footer_branch
    %12 = sbr.rel target = $region3
  $region8: #{conv3dlstm_forward.10} parent=0 // loop_exit
    _

// kernel: conv3dlstm_forward.11
$region0: #{conv3dlstm_forward.11}
  #allocation0 [shape = 'u32[]', space=smem, size = 0x4, offset = 0x4, fixed_abs, tag = 'smem constant byte address 0x4 - core index']
  #allocation1 [shape = 'u32[144,128]{1,0:T(1,128)}', space=vmem, size = 0x12000, scoped, tag = 'internal scratch']
  #allocation2 [shape = 'bf16[1,128]{1,0:T(2,128)(2,1)}', space=vmem, size = 0x200, scoped, tag = 'scratch operand']
  #allocation3 [shape = 'f32[1,128]{1,0:T(1,128)}', space=vmem, size = 0x200, scoped, tag = 'scratch operand']
  %s0 = inlined_call_operand.vmem [shape: bf16[2,4,1,128], index: 0, kind: input, shape index: {}]
  %s1 = inlined_call_operand.vmem [shape: bf16[128,512], index: 1, kind: input, shape index: {}]
  %s2 = inlined_call_operand.vmem [shape: bf16[128,512], index: 2, kind: input, shape index: {}]
  %s3 = inlined_call_operand.vmem [shape: f32[1,512], index: 3, kind: input, shape index: {}]
  %s4 = inlined_call_operand.hbm [shape: f32[1,128], index: 4, kind: input, shape index: {}]
  %s5 = inlined_call_operand.hbm [shape: f32[1,128], index: 5, kind: input, shape index: {}]
  %s6 = inlined_call_operand.hbm [shape: f32[1,128], index: 6, kind: input, shape index: {}]
  %s7 = inlined_call_operand.vmem [shape: bf16[2,4,1,128], index: 7, kind: output, shape index: {}]
  %s8 = sld [smem:[#allocation0]]
  $region77: #{conv3dlstm_forward.11} parent=0
    _
  %s10 = ssub.s32 1, %s8
  %s11 = scalar_select 0, %s10, %s8
  $region1: #{conv3dlstm_forward.11} parent=0
    #allocation4 [shape = 'u8[512]{0}', space=vmem, size = 0x400, scoped, tag = 'input window, operand 4, single buffered']
    #allocation5 [shape = 's32[2]{0}', space=sflag, size = 0x8, scoped, tag = 'scoped memory for conv3dlstm_forward.11']
    #allocation6 [shape = 'u8[512]{0}', space=vmem, size = 0x400, scoped, tag = 'input window, operand 5, single buffered']
    #allocation7 [shape = 's32[1]{0}', space=sflag, size = 0x4, scoped, tag = 'scoped memory for conv3dlstm_forward.11']
    #allocation8 [shape = 'u8[512]{0}', space=vmem, size = 0x400, scoped, tag = 'input window, operand 6, single buffered']
    %12 = vsyncpa [#allocation5], 0
    %13 = vsyncpa [#allocation7], 0
    loop: start=0, step=1, limit=10
    $region2: #{conv3dlstm_forward.11} parent=1 // loop_pre_header
      _
    $region3: #{conv3dlstm_forward.11} parent=1 // loop_header
      %s15 = sphi 0, %s19
      %p16 = scmp.ge.s32.totalorder %s15, 10
      %s22 = sphi 0, %s34
      %s23 = sphi 0, %s30
      %s24 = sphi 0, %s22
      %s25 = sphi 0, %s23
      %s26 = sphi 0, %s24
      %s27 = sphi 0, %s25
      %s39 = sphi 0, %s41
      %s42 = sphi 0, %s39
      %s43 = sphi 0, %s42
      %s59 = sphi 0, %s43
      %s63 = sphi 0, %s63
      %s65 = sphi 0, %s63
      %s66 = sphi 0, %s65
      %s80 = sphi 0, %s66
      %s84 = sphi 0, %s84
      %s86 = sphi 0, %s84
      %s87 = sphi 0, %s86
      %s101 = sphi 0, %s87
      %s105 = sphi 0, %s105
      %s107 = sphi 0, %s105
      %s108 = sphi 0, %s107
      %s122 = sphi 0, %s108
      %s126 = sphi 0, %s126
      %s128 = sphi 0, %s126
      %s129 = sphi 0, %s128
      %s143 = sphi 0, %s129
      %s147 = sphi 0, %s147
      %s149 = sphi 0, %s147
      %s150 = sphi 0, %s149
      %s164 = sphi 0, %s150
      %s168 = sphi 0, %s168
      %s170 = sphi 0, %s168
      %s171 = sphi 0, %s170
      %s185 = sphi 0, %s171
      %s193 = sphi 0, %s195
      %s196 = sphi 0, %s193
      %s197 = sphi 0, %s196
      %s213 = sphi 0, %s197
    $region4: #{conv3dlstm_forward.11} parent=1 // loop_header_branch
      %18 = sbr.rel (%p16) target = $region8
    $region5: #{conv3dlstm_forward.11} parent=1 // loop_body
      %s20 = ssub.s32 %s15, 1
      %s21 = ssub.s32 %s15, 2
      %s28 = sadd.s32 1, %s23
      %p29 = scmp.ge.s32.totalorder %s28, 4
      %s30 = scalar_select %p29, 0, %s28
      %s31 = sadd.s32 1, %s22
      %s32 = scalar_select %p29, %s31, %s22
      %p33 = scmp.ge.s32.totalorder %s32, 2
      %s34 = scalar_select %p33, 0, %s32
      %s35 = ssub.s32 %s22, %s34
      %s36 = ssub.s32 %s23, %s30
      %s37 = sor.u32 %s35, %s36
      %p38 = scmp.eq.s32.totalorder %s37, 0
      %s40 = sadd.s32 %s39, 1
      %s41 = scalar_select %p38, %s39, %s40
      %p44 = pneg %p38
      %p45 = scmp.eq.s32.totalorder %s15, 7
      %p46 = por %p44, %p45
      %p47 = scmp.ne.s32.totalorder %s39, %s42
      %p48 = scmp.eq.s32.totalorder %s15, 0
      %p49 = por %p47, %p48
      %p50 = scmp.ne.s32.totalorder %s39, %s42
      %p51 = scmp.eq.s32.totalorder %s20, 7
      %p52 = por %p50, %p51
      %p53 = scmp.ne.s32.totalorder %s42, %s43
      %p54 = scmp.eq.s32.totalorder %s20, 0
      %p55 = por %p53, %p54
      %p56 = scmp.ne.s32.totalorder %s42, %s43
      %p57 = scmp.eq.s32.totalorder %s21, 7
      %p58 = por %p56, %p57
      %p60 = scmp.ne.s32.totalorder %s43, %s59
      %p61 = scmp.eq.s32.totalorder %s21, 0
      %p62 = por %p60, %p61
      %s64 = sadd.s32 %s63, 1
      %p67 = scmp.eq.s32.totalorder %s15, 7
      %p68 = scmp.ne.s32.totalorder %s63, %s65
      %p69 = scmp.eq.s32.totalorder %s15, 0
      %p70 = por %p68, %p69
      %p71 = scmp.ne.s32.totalorder %s63, %s65
      %p72 = scmp.eq.s32.totalorder %s20, 7
      %p73 = por %p71, %p72
      %p74 = scmp.ne.s32.totalorder %s65, %s66
      %p75 = scmp.eq.s32.totalorder %s20, 0
      %p76 = por %p74, %p75
      %p77 = scmp.ne.s32.totalorder %s65, %s66
      %p78 = scmp.eq.s32.totalorder %s21, 7
      %p79 = por %p77, %p78
      %p81 = scmp.ne.s32.totalorder %s66, %s80
      %p82 = scmp.eq.s32.totalorder %s21, 0
      %p83 = por %p81, %p82
      %s85 = sadd.s32 %s84, 1
      %p88 = scmp.eq.s32.totalorder %s15, 7
      %p89 = scmp.ne.s32.totalorder %s84, %s86
      %p90 = scmp.eq.s32.totalorder %s15, 0
      %p91 = por %p89, %p90
      %p92 = scmp.ne.s32.totalorder %s84, %s86
      %p93 = scmp.eq.s32.totalorder %s20, 7
      %p94 = por %p92, %p93
      %p95 = scmp.ne.s32.totalorder %s86, %s87
      %p96 = scmp.eq.s32.totalorder %s20, 0
      %p97 = por %p95, %p96
      %p98 = scmp.ne.s32.totalorder %s86, %s87
      %p99 = scmp.eq.s32.totalorder %s21, 7
      %p100 = por %p98, %p99
      %p102 = scmp.ne.s32.totalorder %s87, %s101
      %p103 = scmp.eq.s32.totalorder %s21, 0
      %p104 = por %p102, %p103
      %s106 = sadd.s32 %s105, 1
      %p109 = scmp.eq.s32.totalorder %s15, 7
      %p110 = scmp.ne.s32.totalorder %s105, %s107
      %p111 = scmp.eq.s32.totalorder %s15, 0
      %p112 = por %p110, %p111
      %p113 = scmp.ne.s32.totalorder %s105, %s107
      %p114 = scmp.eq.s32.totalorder %s20, 7
      %p115 = por %p113, %p114
      %p116 = scmp.ne.s32.totalorder %s107, %s108
      %p117 = scmp.eq.s32.totalorder %s20, 0
      %p118 = por %p116, %p117
      %p119 = scmp.ne.s32.totalorder %s107, %s108
      %p120 = scmp.eq.s32.totalorder %s21, 7
      %p121 = por %p119, %p120
      %p123 = scmp.ne.s32.totalorder %s108, %s122
      %p124 = scmp.eq.s32.totalorder %s21, 0
      %p125 = por %p123, %p124
      %s127 = sadd.s32 %s126, 1
      %p130 = scmp.eq.s32.totalorder %s15, 7
      %p131 = scmp.ne.s32.totalorder %s126, %s128
      %p132 = scmp.eq.s32.totalorder %s15, 0
      %p133 = por %p131, %p132
      %p134 = scmp.ne.s32.totalorder %s126, %s128
      %p135 = scmp.eq.s32.totalorder %s20, 7
      %p136 = por %p134, %p135
      %p137 = scmp.ne.s32.totalorder %s128, %s129
      %p138 = scmp.eq.s32.totalorder %s20, 0
      %p139 = por %p137, %p138
      %p140 = scmp.ne.s32.totalorder %s128, %s129
      %p141 = scmp.eq.s32.totalorder %s21, 7
      %p142 = por %p140, %p141
      %p144 = scmp.ne.s32.totalorder %s129, %s143
      %p145 = scmp.eq.s32.totalorder %s21, 0
      %p146 = por %p144, %p145
      %s148 = sadd.s32 %s147, 1
      %p151 = scmp.eq.s32.totalorder %s15, 7
      %p152 = scmp.ne.s32.totalorder %s147, %s149
      %p153 = scmp.eq.s32.totalorder %s15, 0
      %p154 = por %p152, %p153
      %p155 = scmp.ne.s32.totalorder %s147, %s149
      %p156 = scmp.eq.s32.totalorder %s20, 7
      %p157 = por %p155, %p156
      %p158 = scmp.ne.s32.totalorder %s149, %s150
      %p159 = scmp.eq.s32.totalorder %s20, 0
      %p160 = por %p158, %p159
      %p161 = scmp.ne.s32.totalorder %s149, %s150
      %p162 = scmp.eq.s32.totalorder %s21, 7
      %p163 = por %p161, %p162
      %p165 = scmp.ne.s32.totalorder %s150, %s164
      %p166 = scmp.eq.s32.totalorder %s21, 0
      %p167 = por %p165, %p166
      %s169 = sadd.s32 %s168, 1
      %p172 = scmp.eq.s32.totalorder %s15, 7
      %p173 = scmp.ne.s32.totalorder %s168, %s170
      %p174 = scmp.eq.s32.totalorder %s15, 0
      %p175 = por %p173, %p174
      %p176 = scmp.ne.s32.totalorder %s168, %s170
      %p177 = scmp.eq.s32.totalorder %s20, 7
      %p178 = por %p176, %p177
      %p179 = scmp.ne.s32.totalorder %s170, %s171
      %p180 = scmp.eq.s32.totalorder %s20, 0
      %p181 = por %p179, %p180
      %p182 = scmp.ne.s32.totalorder %s170, %s171
      %p183 = scmp.eq.s32.totalorder %s21, 7
      %p184 = por %p182, %p183
      %p186 = scmp.ne.s32.totalorder %s171, %s185
      %p187 = scmp.eq.s32.totalorder %s21, 0
      %p188 = por %p186, %p187
      %s189 = ssub.s32 %s22, %s34
      %s190 = ssub.s32 %s23, %s30
      %s191 = sor.u32 %s189, %s190
      %p192 = scmp.eq.s32.totalorder %s191, 0
      %s194 = sadd.s32 %s193, 1
      %s195 = scalar_select %p192, %s193, %s194
      %p198 = pneg %p192
      %p199 = scmp.eq.s32.totalorder %s15, 7
      %p200 = por %p198, %p199
      %p201 = scmp.ne.s32.totalorder %s193, %s196
      %p202 = scmp.eq.s32.totalorder %s15, 0
      %p203 = por %p201, %p202
      %p204 = scmp.ne.s32.totalorder %s193, %s196
      %p205 = scmp.eq.s32.totalorder %s20, 7
      %p206 = por %p204, %p205
      %p207 = scmp.ne.s32.totalorder %s196, %s197
      %p208 = scmp.eq.s32.totalorder %s20, 0
      %p209 = por %p207, %p208
      %p210 = scmp.ne.s32.totalorder %s196, %s197
      %p211 = scmp.eq.s32.totalorder %s21, 7
      %p212 = por %p210, %p211
      %p214 = scmp.ne.s32.totalorder %s197, %s213
      %p215 = scmp.eq.s32.totalorder %s21, 0
      %p216 = por %p214, %p215
      %p217 = scmp.le.s32.totalorder 1, %s15
      %p218 = scmp.lt.s32.totalorder %s15, 9
      %p219 = pnand %p217, %p218
      %p220 = pneg %p219
      // Predicated region
      $region9: #{conv3dlstm_forward.11} parent=5 // pred_check
        _
      $region10: #{conv3dlstm_forward.11} parent=5 // pred_check_branch
        %222 = sbr.rel (%p219) target = $region12
      $region11: #{conv3dlstm_forward.11} parent=5 // pred_region
        %s223 = ssub.s32 %s15, 1
        // Predicated region
        $region13: #{conv3dlstm_forward.11} parent=11 // pred_check
          %p224 = pneg %p76
        $region14: #{conv3dlstm_forward.11} parent=11 // pred_check_branch
          %226 = sbr.rel (%p224) target = $region16
        $region15: #{conv3dlstm_forward.11} parent=11 // pred_region
          _
        $region16: #{conv3dlstm_forward.11} parent=11 // pred_fallthru
          _
        // Predicated region
        $region17: #{conv3dlstm_forward.11} parent=11 // pred_check
          %p227 = pneg %p97
        $region18: #{conv3dlstm_forward.11} parent=11 // pred_check_branch
          %229 = sbr.rel (%p227) target = $region20
        $region19: #{conv3dlstm_forward.11} parent=11 // pred_region
          _
        $region20: #{conv3dlstm_forward.11} parent=11 // pred_fallthru
          _
        // Predicated region
        $region21: #{conv3dlstm_forward.11} parent=11 // pred_check
          %p230 = pneg %p118
        $region22: #{conv3dlstm_forward.11} parent=11 // pred_check_branch
          %232 = sbr.rel (%p230) target = $region24
        $region23: #{conv3dlstm_forward.11} parent=11 // pred_region
          _
        $region24: #{conv3dlstm_forward.11} parent=11 // pred_fallthru
          _
        // Predicated region
        $region25: #{conv3dlstm_forward.11} parent=11 // pred_check
          %p233 = pneg %p139
        $region26: #{conv3dlstm_forward.11} parent=11 // pred_check_branch
          %235 = sbr.rel (%p233) target = $region28
        $region27: #{conv3dlstm_forward.11} parent=11 // pred_region
          %s237 = ssub.s32 16, 16
          %238 = vsyncadd [#allocation5], %s237
          %s240 = sshll.u32 [#allocation4], 4
          %s241 = int_to_ptr.vmem [resolvable:$true] %s240
          %243 = dma.hbm_to_vmem [thread:$0]  %s4, 16, %s241, [#allocation5]
        $region28: #{conv3dlstm_forward.11} parent=11 // pred_fallthru
          _
        // Predicated region
        $region29: #{conv3dlstm_forward.11} parent=11 // pred_check
          %p244 = pneg %p160
        $region30: #{conv3dlstm_forward.11} parent=11 // pred_check_branch
          %246 = sbr.rel (%p244) target = $region32
        $region31: #{conv3dlstm_forward.11} parent=11 // pred_region
          %s248 = ssub.s32 16, 16
          %249 = vsyncadd [#allocation7], %s248
          %s251 = sshll.u32 [#allocation6], 4
          %s252 = int_to_ptr.vmem [resolvable:$true] %s251
          %254 = dma.hbm_to_vmem [thread:$0]  %s5, 16, %s252, [#allocation7]
        $region32: #{conv3dlstm_forward.11} parent=11 // pred_fallthru
          _
        // Predicated region
        $region33: #{conv3dlstm_forward.11} parent=11 // pred_check
          %p255 = pneg %p181
        $region34: #{conv3dlstm_forward.11} parent=11 // pred_check_branch
          %257 = sbr.rel (%p255) target = $region36
        $region35: #{conv3dlstm_forward.11} parent=11 // pred_region
          %s259 = ssub.s32 16, 16
          %260 = vsyncadd [#allocation7], %s259
          %s262 = sshll.u32 [#allocation8], 4
          %s263 = int_to_ptr.vmem [resolvable:$true] %s262
          %265 = dma.hbm_to_vmem [thread:$0]  %s6, 16, %s263, [#allocation7]
        $region36: #{conv3dlstm_forward.11} parent=11 // pred_fallthru
          _
      $region12: #{conv3dlstm_forward.11} parent=5 // pred_fallthru
        _
      %p266 = scmp.lt.s32.totalorder %s15, 8
      // Predicated region
      $region37: #{conv3dlstm_forward.11} parent=5 // pred_check
        %p267 = pneg %p266
      $region38: #{conv3dlstm_forward.11} parent=5 // pred_check_branch
        %269 = sbr.rel (%p267) target = $region40
      $region39: #{conv3dlstm_forward.11} parent=5 // pred_region
        // Predicated region
        $region41: #{conv3dlstm_forward.11} parent=39 // pred_check
          %p270 = pneg %p49
        $region42: #{conv3dlstm_forward.11} parent=39 // pred_check_branch
          %272 = sbr.rel (%p270) target = $region44
        $region43: #{conv3dlstm_forward.11} parent=39 // pred_region
          %p273 = scmp.lt.s32.totalorder %s22, 1
          %s274 = scalar_select %p273, %s22, 1
          %p275 = scmp.lt.s32.totalorder %s23, 3
          %s276 = scalar_select %p275, %s23, 3
          %s277 = smul.addr %s274, 4
          %s278 = sadd.s32 %s276, %s277
          %s279 = scalar_lea.vmem %s0, %s278
        $region44: #{conv3dlstm_forward.11} parent=39 // pred_fallthru
          _
      $region40: #{conv3dlstm_forward.11} parent=5 // pred_fallthru
        _
      %p280 = scmp.le.s32.totalorder 1, %s15
      %p281 = scmp.lt.s32.totalorder %s15, 9
      %p282 = pnand %p280, %p281
      %p283 = pneg %p282
      // Predicated region
      $region45: #{conv3dlstm_forward.11} parent=5 // pred_check
        _
      $region46: #{conv3dlstm_forward.11} parent=5 // pred_check_branch
        %285 = sbr.rel (%p282) target = $region48
      $region47: #{conv3dlstm_forward.11} parent=5 // pred_region
        %s286 = ssub.s32 %s15, 1
        // Predicated region
        $region49: #{conv3dlstm_forward.11} parent=47 // pred_check
          %p287 = pneg %p139
        $region50: #{conv3dlstm_forward.11} parent=47 // pred_check_branch
          %289 = sbr.rel (%p287) target = $region52
        $region51: #{conv3dlstm_forward.11} parent=47 // pred_region
          %290 = dma.done [#allocation5], 16
        $region52: #{conv3dlstm_forward.11} parent=47 // pred_fallthru
          _
        // Predicated region
        $region53: #{conv3dlstm_forward.11} parent=47 // pred_check
          %p291 = pneg %p160
        $region54: #{conv3dlstm_forward.11} parent=47 // pred_check_branch
          %293 = sbr.rel (%p291) target = $region56
        $region55: #{conv3dlstm_forward.11} parent=47 // pred_region
          %294 = dma.done [#allocation7], 16
        $region56: #{conv3dlstm_forward.11} parent=47 // pred_fallthru
          _
        // Predicated region
        $region57: #{conv3dlstm_forward.11} parent=47 // pred_check
          %p295 = pneg %p181
        $region58: #{conv3dlstm_forward.11} parent=47 // pred_check_branch
          %297 = sbr.rel (%p295) target = $region60
        $region59: #{conv3dlstm_forward.11} parent=47 // pred_region
          %298 = dma.done [#allocation7], 16
        $region60: #{conv3dlstm_forward.11} parent=47 // pred_fallthru
          _
        %p299 = scmp.lt.s32.totalorder %s24, 1
        %s300 = scalar_select %p299, %s24, 1
        %p301 = scmp.lt.s32.totalorder %s25, 3
        %s302 = scalar_select %p301, %s25, 3
        %s303 = smul.addr %s300, 4
        %s304 = sadd.s32 %s302, %s303
        %s305 = scalar_lea.vmem %s0, %s304
        %p306 = pneg %p55
        %p307 = pneg %p52
        %p308 = pneg %p76
        %p309 = pneg %p73
        %p310 = pneg %p97
        %p311 = pneg %p94
        %p312 = pneg %p118
        %p313 = pneg %p115
        %p314 = pneg %p139
        %p315 = pneg %p136
        %p316 = pneg %p160
        %p317 = pneg %p157
        %p318 = pneg %p181
        %p319 = pneg %p178
        %p320 = pneg %p209
        %p321 = pneg %p206
        %p322 = scmp.lt.s32.totalorder %s24, 1
        %s323 = scalar_select %p322, %s24, 1
        %p324 = scmp.lt.s32.totalorder %s25, 3
        %s325 = scalar_select %p324, %s25, 3
        %s326 = smul.addr %s323, 4
        %s327 = sadd.s32 %s325, %s326
        %s328 = scalar_lea.vmem %s7, %s327
        %p329 = scmp.lt.s32.totalorder %s24, 1
        %s330 = scalar_select %p329, %s24, 1
        %p331 = scmp.lt.s32.totalorder %s25, 3
        %s332 = scalar_select %p331, %s25, 3
        %s333 = smul.addr %s330, 4
        %s334 = sadd.s32 %s332, %s333
        %s335 = scalar_lea.vmem %s0, %s334
        %p336 = scmp.lt.s32.totalorder %s24, 1
        %s337 = scalar_select %p336, %s24, 1
        %p338 = scmp.lt.s32.totalorder %s25, 3
        %s339 = scalar_select %p338, %s25, 3
        %s340 = smul.addr %s337, 4
        %s341 = sadd.s32 %s339, %s340
        %s342 = scalar_lea.vmem %s7, %s341
        %p344 = scmp.eq.s32.totalorder %s25, 0
        // Predicated region
        $region61: #{conv3dlstm_forward.11} parent=47 // pred_check
          %p345 = pneg %p344
        $region62: #{conv3dlstm_forward.11} parent=47 // pred_check_branch
          %347 = sbr.rel (%p345) target = $region64
        $region63: #{conv3dlstm_forward.11} parent=47 // pred_region
          %vm348 = vcmask 1040384
          %vm349 = vsmask.f32 256
          %vm350 = vmand %vm348, %vm349
          %v351 = vld [vmem:[#allocation2] sm:$0x1]
          %v352 = vsel %vm350, 0, %v351
          %353 = vst [vmem:[#allocation2] sm:$0x1] %v352
          %354 = vst [vmem:[#allocation3] sm:$0x1] 0.0
        $region64: #{conv3dlstm_forward.11} parent=47 // pred_fallthru
          _
        %v355 = vld [vmem:[%s335] sm:$0x1]
        %v356 = vld [vmem:[#allocation2] sm:$0x1]
        %v357 = vld [vmem:[#allocation3] sm:$0x1]
        %v358 = vld [vmem:[%s1] sm:$0xff]
        %v359 = vld [vmem:[%s1 + $0x8] sm:$0xff]
        %v360 = vld [vmem:[%s1 + $0x10] sm:$0xff]
        %v361 = vld [vmem:[%s1 + $0x18] sm:$0xff]
        %v362 = vld [vmem:[%s1 + $0x20] sm:$0xff]
        %v363 = vld [vmem:[%s1 + $0x28] sm:$0xff]
        %v364 = vld [vmem:[%s1 + $0x30] sm:$0xff]
        %v365 = vld [vmem:[%s1 + $0x38] sm:$0xff]
        %v366 = vld [vmem:[%s1 + $0x40] sm:$0xff]
        %v367 = vld [vmem:[%s1 + $0x48] sm:$0xff]
        %v368 = vld [vmem:[%s1 + $0x50] sm:$0xff]
        %v369 = vld [vmem:[%s1 + $0x58] sm:$0xff]
        %v370 = vld [vmem:[%s1 + $0x60] sm:$0xff]
        %v371 = vld [vmem:[%s1 + $0x68] sm:$0xff]
        %v372 = vld [vmem:[%s1 + $0x70] sm:$0xff]
        %v373 = vld [vmem:[%s1 + $0x78] sm:$0xff]
        %v374 = vld [vmem:[%s1 + $0x80] sm:$0xff]
        %v375 = vld [vmem:[%s1 + $0x88] sm:$0xff]
        %v376 = vld [vmem:[%s1 + $0x90] sm:$0xff]
        %v377 = vld [vmem:[%s1 + $0x98] sm:$0xff]
        %v378 = vld [vmem:[%s1 + $0xa0] sm:$0xff]
        %v379 = vld [vmem:[%s1 + $0xa8] sm:$0xff]
        %v380 = vld [vmem:[%s1 + $0xb0] sm:$0xff]
        %v381 = vld [vmem:[%s1 + $0xb8] sm:$0xff]
        %v382 = vld [vmem:[%s1 + $0xc0] sm:$0xff]
        %v383 = vld [vmem:[%s1 + $0xc8] sm:$0xff]
        %v384 = vld [vmem:[%s1 + $0xd0] sm:$0xff]
        %v385 = vld [vmem:[%s1 + $0xd8] sm:$0xff]
        %v386 = vld [vmem:[%s1 + $0xe0] sm:$0xff]
        %v387 = vld [vmem:[%s1 + $0xe8] sm:$0xff]
        %v388 = vld [vmem:[%s1 + $0xf0] sm:$0xff]
        %v389 = vld [vmem:[%s1 + $0xf8] sm:$0xff]
        %v390 = vld [vmem:[%s2] sm:$0xff]
        %v391 = vld [vmem:[%s2 + $0x8] sm:$0xff]
        %v392 = vld [vmem:[%s2 + $0x10] sm:$0xff]
        %v393 = vld [vmem:[%s2 + $0x18] sm:$0xff]
        %v394 = vld [vmem:[%s2 + $0x20] sm:$0xff]
        %v395 = vld [vmem:[%s2 + $0x28] sm:$0xff]
        %v396 = vld [vmem:[%s2 + $0x30] sm:$0xff]
        %v397 = vld [vmem:[%s2 + $0x38] sm:$0xff]
        %v398 = vld [vmem:[%s2 + $0x40] sm:$0xff]
        %v399 = vld [vmem:[%s2 + $0x48] sm:$0xff]
        %v400 = vld [vmem:[%s2 + $0x50] sm:$0xff]
        %v401 = vld [vmem:[%s2 + $0x58] sm:$0xff]
        %v402 = vld [vmem:[%s2 + $0x60] sm:$0xff]
        %v403 = vld [vmem:[%s2 + $0x68] sm:$0xff]
        %v404 = vld [vmem:[%s2 + $0x70] sm:$0xff]
        %v405 = vld [vmem:[%s2 + $0x78] sm:$0xff]
        %v406 = vld [vmem:[%s2 + $0x80] sm:$0xff]
        %v407 = vld [vmem:[%s2 + $0x88] sm:$0xff]
        %v408 = vld [vmem:[%s2 + $0x90] sm:$0xff]
        %v409 = vld [vmem:[%s2 + $0x98] sm:$0xff]
        %v410 = vld [vmem:[%s2 + $0xa0] sm:$0xff]
        %v411 = vld [vmem:[%s2 + $0xa8] sm:$0xff]
        %v412 = vld [vmem:[%s2 + $0xb0] sm:$0xff]
        %v413 = vld [vmem:[%s2 + $0xb8] sm:$0xff]
        %v414 = vld [vmem:[%s2 + $0xc0] sm:$0xff]
        %v415 = vld [vmem:[%s2 + $0xc8] sm:$0xff]
        %v416 = vld [vmem:[%s2 + $0xd0] sm:$0xff]
        %v417 = vld [vmem:[%s2 + $0xd8] sm:$0xff]
        %v418 = vld [vmem:[%s2 + $0xe0] sm:$0xff]
        %v419 = vld [vmem:[%s2 + $0xe8] sm:$0xff]
        %v420 = vld [vmem:[%s2 + $0xf0] sm:$0xff]
        %v421 = vld [vmem:[%s2 + $0xf8] sm:$0xff]
        %v454 = vunpack.c.l.b16 %v390
        %v455 = vunpack.c.h.b16 %v390
        %v456 = vunpack.c.l.b16 %v391
        %v457 = vunpack.c.h.b16 %v391
        %v458 = vunpack.c.l.b16 %v392
        %v459 = vunpack.c.h.b16 %v392
        %v460 = vunpack.c.l.b16 %v393
        %v461 = vunpack.c.h.b16 %v393
        %v462 = vunpack.c.l.b16 %v394
        %v463 = vunpack.c.h.b16 %v394
        %v464 = vunpack.c.l.b16 %v395
        %v465 = vunpack.c.h.b16 %v395
        %v466 = vunpack.c.l.b16 %v396
        %v467 = vunpack.c.h.b16 %v396
        %v468 = vunpack.c.l.b16 %v397
        %v469 = vunpack.c.h.b16 %v397
        %v470 = vunpack.c.l.b16 %v398
        %v471 = vunpack.c.h.b16 %v398
        %v472 = vunpack.c.l.b16 %v399
        %v473 = vunpack.c.h.b16 %v399
        %v474 = vunpack.c.l.b16 %v400
        %v475 = vunpack.c.h.b16 %v400
        %v476 = vunpack.c.l.b16 %v401
        %v477 = vunpack.c.h.b16 %v401
        %v478 = vunpack.c.l.b16 %v402
        %v479 = vunpack.c.h.b16 %v402
        %v480 = vunpack.c.l.b16 %v403
        %v481 = vunpack.c.h.b16 %v403
        %v482 = vunpack.c.l.b16 %v404
        %v483 = vunpack.c.h.b16 %v404
        %v484 = vunpack.c.l.b16 %v405
        %v485 = vunpack.c.h.b16 %v405
        %v486 = vunpack.c.l.b16 %v406
        %v487 = vunpack.c.h.b16 %v406
        %v488 = vunpack.c.l.b16 %v407
        %v489 = vunpack.c.h.b16 %v407
        %v490 = vunpack.c.l.b16 %v408
        %v491 = vunpack.c.h.b16 %v408
        %v492 = vunpack.c.l.b16 %v409
        %v493 = vunpack.c.h.b16 %v409
        %v494 = vunpack.c.l.b16 %v410
        %v495 = vunpack.c.h.b16 %v410
        %v496 = vunpack.c.l.b16 %v411
        %v497 = vunpack.c.h.b16 %v411
        %v498 = vunpack.c.l.b16 %v412
        %v499 = vunpack.c.h.b16 %v412
        %v500 = vunpack.c.l.b16 %v413
        %v501 = vunpack.c.h.b16 %v413
        %v502 = vunpack.c.l.b16 %v414
        %v503 = vunpack.c.h.b16 %v414
        %v504 = vunpack.c.l.b16 %v415
        %v505 = vunpack.c.h.b16 %v415
        %v506 = vunpack.c.l.b16 %v416
        %v507 = vunpack.c.h.b16 %v416
        %v508 = vunpack.c.l.b16 %v417
        %v509 = vunpack.c.h.b16 %v417
        %v510 = vunpack.c.l.b16 %v418
        %v511 = vunpack.c.h.b16 %v418
        %v512 = vunpack.c.l.b16 %v419
        %v513 = vunpack.c.h.b16 %v419
        %v514 = vunpack.c.l.b16 %v420
        %v515 = vunpack.c.h.b16 %v420
        %v516 = vunpack.c.l.b16 %v421
        %v517 = vunpack.c.h.b16 %v421
        %v518 = vpack.c.b16 %v458, %v454
        %v519 = vpack.c.b16 %v459, %v455
        %v520 = vpack.c.b16 %v460, %v456
        %v521 = vpack.c.b16 %v461, %v457
        %v522 = vpack.c.b16 %v466, %v462
        %v523 = vpack.c.b16 %v467, %v463
        %v524 = vpack.c.b16 %v468, %v464
        %v525 = vpack.c.b16 %v469, %v465
        %v526 = vpack.c.b16 %v474, %v470
        %v527 = vpack.c.b16 %v475, %v471
        %v528 = vpack.c.b16 %v476, %v472
        %v529 = vpack.c.b16 %v477, %v473
        %v530 = vpack.c.b16 %v482, %v478
        %v531 = vpack.c.b16 %v483, %v479
        %v532 = vpack.c.b16 %v484, %v480
        %v533 = vpack.c.b16 %v485, %v481
        %v534 = vpack.c.b16 %v490, %v486
        %v535 = vpack.c.b16 %v491, %v487
        %v536 = vpack.c.b16 %v492, %v488
        %v537 = vpack.c.b16 %v493, %v489
        %v538 = vpack.c.b16 %v498, %v494
        %v539 = vpack.c.b16 %v499, %v495
        %v540 = vpack.c.b16 %v500, %v496
        %v541 = vpack.c.b16 %v501, %v497
        %v542 = vpack.c.b16 %v506, %v502
        %v543 = vpack.c.b16 %v507, %v503
        %v544 = vpack.c.b16 %v508, %v504
        %v545 = vpack.c.b16 %v509, %v505
        %v546 = vpack.c.b16 %v514, %v510
        %v547 = vpack.c.b16 %v515, %v511
        %v548 = vpack.c.b16 %v516, %v512
        %v549 = vpack.c.b16 %v517, %v513
        %582 = vmatprep.subr.bf16.mxu0 %v519
        %583 = vmatpush1.bf16.msra.mxu0 %v518
        %584 = vmatprep.subr.bf16.mxu0 %v523
        %585 = vmatpush1.bf16.msra.mxu0 %v522
        %586 = vmatprep.subr.bf16.mxu0 %v527
        %587 = vmatpush1.bf16.msra.mxu0 %v526
        %588 = vmatprep.subr.bf16.mxu0 %v531
        %589 = vmatpush1.bf16.msra.mxu0 %v530
        %590 = vmatprep.subr.bf16.mxu0 %v535
        %591 = vmatpush1.bf16.msra.mxu0 %v534
        %592 = vmatprep.subr.bf16.mxu0 %v539
        %593 = vmatpush1.bf16.msra.mxu0 %v538
        %594 = vmatprep.subr.bf16.mxu0 %v543
        %595 = vmatpush1.bf16.msra.mxu0 %v542
        %596 = vmatprep.subr.bf16.mxu0 %v547
        %597 = vmatpush1.bf16.msra.mxu0 %v546
        %598 = vmatprep.subr.bf16.mxu0 0
        %599 = vmatpush1.bf16.msra.mxu0 0
        %600 = vmatprep.subr.bf16.mxu0 0
        %601 = vmatpush1.bf16.msra.mxu0 0
        %602 = vmatprep.subr.bf16.mxu0 0
        %603 = vmatpush1.bf16.msra.mxu0 0
        %604 = vmatprep.subr.bf16.mxu0 0
        %605 = vmatpush1.bf16.msra.mxu0 0
        %606 = vmatprep.subr.bf16.mxu0 0
        %607 = vmatpush1.bf16.msra.mxu0 0
        %608 = vmatprep.subr.bf16.mxu0 0
        %609 = vmatpush1.bf16.msra.mxu0 0
        %610 = vmatprep.subr.bf16.mxu0 0
        %611 = vmatpush1.bf16.msra.mxu0 0
        %612 = vmatprep.subr.bf16.mxu0 0
        %613 = vmatpush1.bf16.msra.mxu0 0
        %614 = vmatprep.mubr.bf16.mxu0 0
        %615 = vmatmul.mubr.bf16.gmra.mrb[0].mxu0 %v356
        %v616 = vpop.f32.mrb[0].mxu0
        %v617 = vadd.f32 0.0, %v616
        %v618 = vpop.f32.mrb[0].mxu0
        %v619 = vadd.f32 0.0, %v618
        %v620 = vpop.f32.mrb[0].mxu0
        %v621 = vpop.f32.mrb[0].mxu0
        %622 = vdwg.mxu0
        %623 = vmatprep.subr.bf16.mxu0 %v521
        %624 = vmatpush1.bf16.msra.mxu0 %v520
        %625 = vmatprep.subr.bf16.mxu0 %v525
        %626 = vmatpush1.bf16.msra.mxu0 %v524
        %627 = vmatprep.subr.bf16.mxu0 %v529
        %628 = vmatpush1.bf16.msra.mxu0 %v528
        %629 = vmatprep.subr.bf16.mxu0 %v533
        %630 = vmatpush1.bf16.msra.mxu0 %v532
        %631 = vmatprep.subr.bf16.mxu0 %v537
        %632 = vmatpush1.bf16.msra.mxu0 %v536
        %633 = vmatprep.subr.bf16.mxu0 %v541
        %634 = vmatpush1.bf16.msra.mxu0 %v540
        %635 = vmatprep.subr.bf16.mxu0 %v545
        %636 = vmatpush1.bf16.msra.mxu0 %v544
        %637 = vmatprep.subr.bf16.mxu0 %v549
        %638 = vmatpush1.bf16.msra.mxu0 %v548
        %639 = vmatprep.subr.bf16.mxu0 0
        %640 = vmatpush1.bf16.msra.mxu0 0
        %641 = vmatprep.subr.bf16.mxu0 0
        %642 = vmatpush1.bf16.msra.mxu0 0
        %643 = vmatprep.subr.bf16.mxu0 0
        %644 = vmatpush1.bf16.msra.mxu0 0
        %645 = vmatprep.subr.bf16.mxu0 0
        %646 = vmatpush1.bf16.msra.mxu0 0
        %647 = vmatprep.subr.bf16.mxu0 0
        %648 = vmatpush1.bf16.msra.mxu0 0
        %649 = vmatprep.subr.bf16.mxu0 0
        %650 = vmatpush1.bf16.msra.mxu0 0
        %651 = vmatprep.subr.bf16.mxu0 0
        %652 = vmatpush1.bf16.msra.mxu0 0
        %653 = vmatprep.subr.bf16.mxu0 0
        %654 = vmatpush1.bf16.msra.mxu0 0
        %655 = vmatprep.mubr.bf16.mxu0 0
        %656 = vmatmul.mubr.bf16.gmra.mrb[0].mxu0 %v356
        %v657 = vpop.f32.mrb[0].mxu0
        %v658 = vadd.f32 0.0, %v657
        %v659 = vpop.f32.mrb[0].mxu0
        %v660 = vadd.f32 0.0, %v659
        %v661 = vpop.f32.mrb[0].mxu0
        %v662 = vpop.f32.mrb[0].mxu0
        %663 = vdwg.mxu0
        %v696 = vunpack.c.l.b16 %v358
        %v697 = vunpack.c.h.b16 %v358
        %v698 = vunpack.c.l.b16 %v359
        %v699 = vunpack.c.h.b16 %v359
        %v700 = vunpack.c.l.b16 %v360
        %v701 = vunpack.c.h.b16 %v360
        %v702 = vunpack.c.l.b16 %v361
        %v703 = vunpack.c.h.b16 %v361
        %v704 = vunpack.c.l.b16 %v362
        %v705 = vunpack.c.h.b16 %v362
        %v706 = vunpack.c.l.b16 %v363
        %v707 = vunpack.c.h.b16 %v363
        %v708 = vunpack.c.l.b16 %v364
        %v709 = vunpack.c.h.b16 %v364
        %v710 = vunpack.c.l.b16 %v365
        %v711 = vunpack.c.h.b16 %v365
        %v712 = vunpack.c.l.b16 %v366
        %v713 = vunpack.c.h.b16 %v366
        %v714 = vunpack.c.l.b16 %v367
        %v715 = vunpack.c.h.b16 %v367
        %v716 = vunpack.c.l.b16 %v368
        %v717 = vunpack.c.h.b16 %v368
        %v718 = vunpack.c.l.b16 %v369
        %v719 = vunpack.c.h.b16 %v369
        %v720 = vunpack.c.l.b16 %v370
        %v721 = vunpack.c.h.b16 %v370
        %v722 = vunpack.c.l.b16 %v371
        %v723 = vunpack.c.h.b16 %v371
        %v724 = vunpack.c.l.b16 %v372
        %v725 = vunpack.c.h.b16 %v372
        %v726 = vunpack.c.l.b16 %v373
        %v727 = vunpack.c.h.b16 %v373
        %v728 = vunpack.c.l.b16 %v374
        %v729 = vunpack.c.h.b16 %v374
        %v730 = vunpack.c.l.b16 %v375
        %v731 = vunpack.c.h.b16 %v375
        %v732 = vunpack.c.l.b16 %v376
        %v733 = vunpack.c.h.b16 %v376
        %v734 = vunpack.c.l.b16 %v377
        %v735 = vunpack.c.h.b16 %v377
        %v736 = vunpack.c.l.b16 %v378
        %v737 = vunpack.c.h.b16 %v378
        %v738 = vunpack.c.l.b16 %v379
        %v739 = vunpack.c.h.b16 %v379
        %v740 = vunpack.c.l.b16 %v380
        %v741 = vunpack.c.h.b16 %v380
        %v742 = vunpack.c.l.b16 %v381
        %v743 = vunpack.c.h.b16 %v381
        %v744 = vunpack.c.l.b16 %v382
        %v745 = vunpack.c.h.b16 %v382
        %v746 = vunpack.c.l.b16 %v383
        %v747 = vunpack.c.h.b16 %v383
        %v748 = vunpack.c.l.b16 %v384
        %v749 = vunpack.c.h.b16 %v384
        %v750 = vunpack.c.l.b16 %v385
        %v751 = vunpack.c.h.b16 %v385
        %v752 = vunpack.c.l.b16 %v386
        %v753 = vunpack.c.h.b16 %v386
        %v754 = vunpack.c.l.b16 %v387
        %v755 = vunpack.c.h.b16 %v387
        %v756 = vunpack.c.l.b16 %v388
        %v757 = vunpack.c.h.b16 %v388
        %v758 = vunpack.c.l.b16 %v389
        %v759 = vunpack.c.h.b16 %v389
        %v760 = vpack.c.b16 %v700, %v696
        %v761 = vpack.c.b16 %v701, %v697
        %v762 = vpack.c.b16 %v702, %v698
        %v763 = vpack.c.b16 %v703, %v699
        %v764 = vpack.c.b16 %v708, %v704
        %v765 = vpack.c.b16 %v709, %v705
        %v766 = vpack.c.b16 %v710, %v706
        %v767 = vpack.c.b16 %v711, %v707
        %v768 = vpack.c.b16 %v716, %v712
        %v769 = vpack.c.b16 %v717, %v713
        %v770 = vpack.c.b16 %v718, %v714
        %v771 = vpack.c.b16 %v719, %v715
        %v772 = vpack.c.b16 %v724, %v720
        %v773 = vpack.c.b16 %v725, %v721
        %v774 = vpack.c.b16 %v726, %v722
        %v775 = vpack.c.b16 %v727, %v723
        %v776 = vpack.c.b16 %v732, %v728
        %v777 = vpack.c.b16 %v733, %v729
        %v778 = vpack.c.b16 %v734, %v730
        %v779 = vpack.c.b16 %v735, %v731
        %v780 = vpack.c.b16 %v740, %v736
        %v781 = vpack.c.b16 %v741, %v737
        %v782 = vpack.c.b16 %v742, %v738
        %v783 = vpack.c.b16 %v743, %v739
        %v784 = vpack.c.b16 %v748, %v744
        %v785 = vpack.c.b16 %v749, %v745
        %v786 = vpack.c.b16 %v750, %v746
        %v787 = vpack.c.b16 %v751, %v747
        %v788 = vpack.c.b16 %v756, %v752
        %v789 = vpack.c.b16 %v757, %v753
        %v790 = vpack.c.b16 %v758, %v754
        %v791 = vpack.c.b16 %v759, %v755
        %824 = vmatprep.subr.bf16.mxu0 %v761
        %825 = vmatpush1.bf16.msra.mxu0 %v760
        %826 = vmatprep.subr.bf16.mxu0 %v765
        %827 = vmatpush1.bf16.msra.mxu0 %v764
        %828 = vmatprep.subr.bf16.mxu0 %v769
        %829 = vmatpush1.bf16.msra.mxu0 %v768
        %830 = vmatprep.subr.bf16.mxu0 %v773
        %831 = vmatpush1.bf16.msra.mxu0 %v772
        %832 = vmatprep.subr.bf16.mxu0 %v777
        %833 = vmatpush1.bf16.msra.mxu0 %v776
        %834 = vmatprep.subr.bf16.mxu0 %v781
        %835 = vmatpush1.bf16.msra.mxu0 %v780
        %836 = vmatprep.subr.bf16.mxu0 %v785
        %837 = vmatpush1.bf16.msra.mxu0 %v784
        %838 = vmatprep.subr.bf16.mxu0 %v789
        %839 = vmatpush1.bf16.msra.mxu0 %v788
        %840 = vmatprep.subr.bf16.mxu0 0
        %841 = vmatpush1.bf16.msra.mxu0 0
        %842 = vmatprep.subr.bf16.mxu0 0
        %843 = vmatpush1.bf16.msra.mxu0 0
        %844 = vmatprep.subr.bf16.mxu0 0
        %845 = vmatpush1.bf16.msra.mxu0 0
        %846 = vmatprep.subr.bf16.mxu0 0
        %847 = vmatpush1.bf16.msra.mxu0 0
        %848 = vmatprep.subr.bf16.mxu0 0
        %849 = vmatpush1.bf16.msra.mxu0 0
        %850 = vmatprep.subr.bf16.mxu0 0
        %851 = vmatpush1.bf16.msra.mxu0 0
        %852 = vmatprep.subr.bf16.mxu0 0
        %853 = vmatpush1.bf16.msra.mxu0 0
        %854 = vmatprep.subr.bf16.mxu0 0
        %855 = vmatpush1.bf16.msra.mxu0 0
        %856 = vmatprep.mubr.bf16.mxu0 0
        %857 = vmatmul.mubr.bf16.gmra.mrb[0].mxu0 %v355
        %v858 = vpop.f32.mrb[0].mxu0
        %v859 = vadd.f32 %v617, %v858
        %v860 = vpop.f32.mrb[0].mxu0
        %v861 = vadd.f32 %v619, %v860
        %v862 = vpop.f32.mrb[0].mxu0
        %v863 = vpop.f32.mrb[0].mxu0
        %864 = vdwg.mxu0
        %865 = vmatprep.subr.bf16.mxu0 %v763
        %866 = vmatpush1.bf16.msra.mxu0 %v762
        %867 = vmatprep.subr.bf16.mxu0 %v767
        %868 = vmatpush1.bf16.msra.mxu0 %v766
        %869 = vmatprep.subr.bf16.mxu0 %v771
        %870 = vmatpush1.bf16.msra.mxu0 %v770
        %871 = vmatprep.subr.bf16.mxu0 %v775
        %872 = vmatpush1.bf16.msra.mxu0 %v774
        %873 = vmatprep.subr.bf16.mxu0 %v779
        %874 = vmatpush1.bf16.msra.mxu0 %v778
        %875 = vmatprep.subr.bf16.mxu0 %v783
        %876 = vmatpush1.bf16.msra.mxu0 %v782
        %877 = vmatprep.subr.bf16.mxu0 %v787
        %878 = vmatpush1.bf16.msra.mxu0 %v786
        %879 = vmatprep.subr.bf16.mxu0 %v791
        %880 = vmatpush1.bf16.msra.mxu0 %v790
        %881 = vmatprep.subr.bf16.mxu0 0
        %882 = vmatpush1.bf16.msra.mxu0 0
        %883 = vmatprep.subr.bf16.mxu0 0
        %884 = vmatpush1.bf16.msra.mxu0 0
        %885 = vmatprep.subr.bf16.mxu0 0
        %886 = vmatpush1.bf16.msra.mxu0 0
        %887 = vmatprep.subr.bf16.mxu0 0
        %888 = vmatpush1.bf16.msra.mxu0 0
        %889 = vmatprep.subr.bf16.mxu0 0
        %890 = vmatpush1.bf16.msra.mxu0 0
        %891 = vmatprep.subr.bf16.mxu0 0
        %892 = vmatpush1.bf16.msra.mxu0 0
        %893 = vmatprep.subr.bf16.mxu0 0
        %894 = vmatpush1.bf16.msra.mxu0 0
        %895 = vmatprep.subr.bf16.mxu0 0
        %896 = vmatpush1.bf16.msra.mxu0 0
        %897 = vmatprep.mubr.bf16.mxu0 0
        %898 = vmatmul.mubr.bf16.gmra.mrb[0].mxu0 %v355
        %v899 = vpop.f32.mrb[0].mxu0
        %v900 = vadd.f32 %v658, %v899
        %v901 = vpop.f32.mrb[0].mxu0
        %v902 = vadd.f32 %v660, %v901
        %v903 = vpop.f32.mrb[0].mxu0
        %v904 = vpop.f32.mrb[0].mxu0
        %905 = vdwg.mxu0
        %v906 = vld [vmem:[%s3] sm:$0xf]
        %v908 = vlaneseq
        %v909 = vshrl.u32 %v908, 7
        %v910 = vsub.s32 0, %v909
        %v911 = vrot.slane %v906, %v910
        %v912 = vlaneseq
        %v913 = vshrl.u32 %v912, 7
        %v914 = vsub.s32 1, %v913
        %v915 = vrot.slane %v906, %v914
        %v916 = vlaneseq
        %v917 = vshrl.u32 %v916, 7
        %v918 = vsub.s32 2, %v917
        %v919 = vrot.slane %v906, %v918
        %v920 = vlaneseq
        %v921 = vshrl.u32 %v920, 7
        %v922 = vsub.s32 3, %v921
        %v923 = vrot.slane %v906, %v922
        %v928 = vadd.f32 %v859, %v911
        %v929 = vadd.f32 %v861, %v915
        %v930 = vadd.f32 %v900, %v919
        %v931 = vadd.f32 %v902, %v923
        %v932 = vld [vmem:[#allocation4] sm:$0x1]
        %v933 = vmul.f32 %v932, %v357
        %v934 = vadd.f32 %v928, %v933
        %v935 = vxor.u32 %v934, 2147483648
        %v936 = vmul.f32 %v935, 1.442695
        %v937 = vpow.pop %v936
        %v938 = vadd.f32 %v937, 1.0
        %v939 = vrcp.pop %v938
        %v940 = vmul.f32 1.0, %v939
        %v941 = vld [vmem:[#allocation6] sm:$0x1]
        %v942 = vmul.f32 %v941, %v357
        %v943 = vadd.f32 %v929, %v942
        %v944 = vxor.u32 %v943, 2147483648
        %v945 = vmul.f32 %v944, 1.442695
        %v946 = vpow.pop %v945
        %v947 = vadd.f32 %v946, 1.0
        %v948 = vrcp.pop %v947
        %v949 = vmul.f32 1.0, %v948
        %v950 = vmul.f32 %v949, %v357
        %v951 = vmax.f32 %v930, 0.0
        %v952 = vmul.f32 %v940, %v951
        %v953 = vadd.f32 %v950, %v952
        %v954 = vld [vmem:[#allocation8] sm:$0x1]
        %v955 = vmul.f32 %v954, %v953
        %v956 = vadd.f32 %v931, %v955
        %v957 = vxor.u32 %v956, 2147483648
        %v958 = vmul.f32 %v957, 1.442695
        %v959 = vpow.pop %v958
        %v960 = vadd.f32 %v959, 1.0
        %v961 = vrcp.pop %v960
        %v962 = vmul.f32 1.0, %v961
        %v963 = vmax.f32 %v953, 0.0
        %v964 = vmul.f32 %v962, %v963
        %965 = vst [vmem:[#allocation3] sm:$0x1] %v953
        %v966 = vpack.c.bf16 %v964, %v964
        %vm967 = vcmask 1040384
        %vm968 = vsmask.f32 256
        %vm969 = vmand %vm967, %vm968
        %v970 = vld [vmem:[#allocation2] sm:$0x1]
        %v971 = vsel %vm969, %v966, %v970
        %972 = vst [vmem:[#allocation2] sm:$0x1] %v971
        %v973 = vld [vmem:[%s342] sm:$0x1]
        %v974 = vsel %vm969, %v966, %v973
        %975 = vst [vmem:[%s342] sm:$0x1] %v974
        %p976 = scmp.lt.s32.totalorder %s24, 1
        %s977 = scalar_select %p976, %s24, 1
        %p978 = scmp.lt.s32.totalorder %s25, 3
        %s979 = scalar_select %p978, %s25, 3
        %s980 = smul.addr %s977, 4
        %s981 = sadd.s32 %s979, %s980
        %s982 = scalar_lea.vmem %s7, %s981
        // Predicated region
        $region65: #{conv3dlstm_forward.11} parent=47 // pred_check
          %p983 = pneg %p206
        $region66: #{conv3dlstm_forward.11} parent=47 // pred_check_branch
          %985 = sbr.rel (%p983) target = $region68
        $region67: #{conv3dlstm_forward.11} parent=47 // pred_region
          _
        $region68: #{conv3dlstm_forward.11} parent=47 // pred_fallthru
          _
      $region48: #{conv3dlstm_forward.11} parent=5 // pred_fallthru
        _
      %p986 = scmp.le.s32.totalorder 2, %s15
      // Predicated region
      $region69: #{conv3dlstm_forward.11} parent=5 // pred_check
        %p987 = pneg %p986
      $region70: #{conv3dlstm_forward.11} parent=5 // pred_check_branch
        %989 = sbr.rel (%p987) target = $region72
      $region71: #{conv3dlstm_forward.11} parent=5 // pred_region
        %s990 = ssub.s32 %s15, 2
        // Predicated region
        $region73: #{conv3dlstm_forward.11} parent=71 // pred_check
          %p991 = pneg %p212
        $region74: #{conv3dlstm_forward.11} parent=71 // pred_check_branch
          %993 = sbr.rel (%p991) target = $region76
        $region75: #{conv3dlstm_forward.11} parent=71 // pred_region
          %p994 = scmp.lt.s32.totalorder %s26, 1
          %s995 = scalar_select %p994, %s26, 1
          %p996 = scmp.lt.s32.totalorder %s27, 3
          %s997 = scalar_select %p996, %s27, 3
          %s998 = smul.addr %s995, 4
          %s999 = sadd.s32 %s997, %s998
          %s1000 = scalar_lea.vmem %s7, %s999
        $region76: #{conv3dlstm_forward.11} parent=71 // pred_fallthru
          _
      $region72: #{conv3dlstm_forward.11} parent=5 // pred_fallthru
        _
    $region6: #{conv3dlstm_forward.11} parent=1 // loop_footer
      %s19 = sadd.s32 1, %s15
    $region7: #{conv3dlstm_forward.11} parent=1 // loop_footer_branch
      %14 = sbr.rel target = $region3
    $region8: #{conv3dlstm_forward.11} parent=1 // loop_exit
      _
    %1001 = vsyncpa [#allocation5], 1
    %s1002 = scalar_lea.sflag [#allocation5], 1
    %1003 = vsyncpa %s1002, 1
    %1004 = vsyncpa [#allocation7], 1

// kernel: conv3dlstm_forward.9
$region0: #{conv3dlstm_forward.9}
  #allocation0 [shape = 'u32[]', space=smem, size = 0x4, offset = 0x4, fixed_abs, tag = 'smem constant byte address 0x4 - core index']
  #allocation1 [shape = 'u32[144,128]{1,0:T(1,128)}', space=vmem, size = 0x12000, scoped, tag = 'internal scratch']
  #allocation2 [shape = 'bf16[36,128]{1,0:T(8,128)(2,1)}', space=vmem, size = 0x2800, scoped, tag = 'scratch operand']
  #allocation3 [shape = 'f32[36,128]{1,0:T(8,128)}', space=vmem, size = 0x5000, scoped, tag = 'scratch operand']
  %s0 = inlined_call_operand.vmem [shape: bf16[2,4,36,128], index: 0, kind: input, shape index: {}]
  %s1 = inlined_call_operand.vmem [shape: bf16[128,512], index: 1, kind: input, shape index: {}]
  %s2 = inlined_call_operand.vmem [shape: bf16[128,512], index: 2, kind: input, shape index: {}]
  %s3 = inlined_call_operand.vmem [shape: f32[1,512], index: 3, kind: input, shape index: {}]
  %s4 = inlined_call_operand.vmem [shape: f32[36,128], index: 4, kind: input, shape index: {}]
  %s5 = inlined_call_operand.vmem [shape: f32[36,128], index: 5, kind: input, shape index: {}]
  %s6 = inlined_call_operand.vmem [shape: f32[36,128], index: 6, kind: input, shape index: {}]
  %s7 = inlined_call_operand.vmem [shape: bf16[2,4,36,128], index: 7, kind: output, shape index: {}]
  %s8 = sld [smem:[#allocation0]]
  $region65: #{conv3dlstm_forward.9} parent=0
    _
  %s10 = ssub.s32 1, %s8
  %s11 = scalar_select 0, %s10, %s8
  loop: start=0, step=1, limit=10
  $region2: #{conv3dlstm_forward.9} parent=0 // loop_pre_header
    _
  $region3: #{conv3dlstm_forward.9} parent=0 // loop_header
    %s13 = sphi 0, %s17
    %p14 = scmp.ge.s32.totalorder %s13, 10
    %s20 = sphi 0, %s32
    %s21 = sphi 0, %s28
    %s22 = sphi 0, %s20
    %s23 = sphi 0, %s21
    %s24 = sphi 0, %s22
    %s25 = sphi 0, %s23
    %s37 = sphi 0, %s39
    %s40 = sphi 0, %s37
    %s41 = sphi 0, %s40
    %s57 = sphi 0, %s41
    %s61 = sphi 0, %s61
    %s63 = sphi 0, %s61
    %s64 = sphi 0, %s63
    %s78 = sphi 0, %s64
    %s82 = sphi 0, %s82
    %s84 = sphi 0, %s82
    %s85 = sphi 0, %s84
    %s99 = sphi 0, %s85
    %s103 = sphi 0, %s103
    %s105 = sphi 0, %s103
    %s106 = sphi 0, %s105
    %s120 = sphi 0, %s106
    %s124 = sphi 0, %s124
    %s126 = sphi 0, %s124
    %s127 = sphi 0, %s126
    %s141 = sphi 0, %s127
    %s145 = sphi 0, %s145
    %s147 = sphi 0, %s145
    %s148 = sphi 0, %s147
    %s162 = sphi 0, %s148
    %s166 = sphi 0, %s166
    %s168 = sphi 0, %s166
    %s169 = sphi 0, %s168
    %s183 = sphi 0, %s169
    %s191 = sphi 0, %s193
    %s194 = sphi 0, %s191
    %s195 = sphi 0, %s194
    %s211 = sphi 0, %s195
  $region4: #{conv3dlstm_forward.9} parent=0 // loop_header_branch
    %16 = sbr.rel (%p14) target = $region8
  $region5: #{conv3dlstm_forward.9} parent=0 // loop_body
    %s18 = ssub.s32 %s13, 1
    %s19 = ssub.s32 %s13, 2
    %s26 = sadd.s32 1, %s21
    %p27 = scmp.ge.s32.totalorder %s26, 4
    %s28 = scalar_select %p27, 0, %s26
    %s29 = sadd.s32 1, %s20
    %s30 = scalar_select %p27, %s29, %s20
    %p31 = scmp.ge.s32.totalorder %s30, 2
    %s32 = scalar_select %p31, 0, %s30
    %s33 = ssub.s32 %s20, %s32
    %s34 = ssub.s32 %s21, %s28
    %s35 = sor.u32 %s33, %s34
    %p36 = scmp.eq.s32.totalorder %s35, 0
    %s38 = sadd.s32 %s37, 1
    %s39 = scalar_select %p36, %s37, %s38
    %p42 = pneg %p36
    %p43 = scmp.eq.s32.totalorder %s13, 7
    %p44 = por %p42, %p43
    %p45 = scmp.ne.s32.totalorder %s37, %s40
    %p46 = scmp.eq.s32.totalorder %s13, 0
    %p47 = por %p45, %p46
    %p48 = scmp.ne.s32.totalorder %s37, %s40
    %p49 = scmp.eq.s32.totalorder %s18, 7
    %p50 = por %p48, %p49
    %p51 = scmp.ne.s32.totalorder %s40, %s41
    %p52 = scmp.eq.s32.totalorder %s18, 0
    %p53 = por %p51, %p52
    %p54 = scmp.ne.s32.totalorder %s40, %s41
    %p55 = scmp.eq.s32.totalorder %s19, 7
    %p56 = por %p54, %p55
    %p58 = scmp.ne.s32.totalorder %s41, %s57
    %p59 = scmp.eq.s32.totalorder %s19, 0
    %p60 = por %p58, %p59
    %s62 = sadd.s32 %s61, 1
    %p65 = scmp.eq.s32.totalorder %s13, 7
    %p66 = scmp.ne.s32.totalorder %s61, %s63
    %p67 = scmp.eq.s32.totalorder %s13, 0
    %p68 = por %p66, %p67
    %p69 = scmp.ne.s32.totalorder %s61, %s63
    %p70 = scmp.eq.s32.totalorder %s18, 7
    %p71 = por %p69, %p70
    %p72 = scmp.ne.s32.totalorder %s63, %s64
    %p73 = scmp.eq.s32.totalorder %s18, 0
    %p74 = por %p72, %p73
    %p75 = scmp.ne.s32.totalorder %s63, %s64
    %p76 = scmp.eq.s32.totalorder %s19, 7
    %p77 = por %p75, %p76
    %p79 = scmp.ne.s32.totalorder %s64, %s78
    %p80 = scmp.eq.s32.totalorder %s19, 0
    %p81 = por %p79, %p80
    %s83 = sadd.s32 %s82, 1
    %p86 = scmp.eq.s32.totalorder %s13, 7
    %p87 = scmp.ne.s32.totalorder %s82, %s84
    %p88 = scmp.eq.s32.totalorder %s13, 0
    %p89 = por %p87, %p88
    %p90 = scmp.ne.s32.totalorder %s82, %s84
    %p91 = scmp.eq.s32.totalorder %s18, 7
    %p92 = por %p90, %p91
    %p93 = scmp.ne.s32.totalorder %s84, %s85
    %p94 = scmp.eq.s32.totalorder %s18, 0
    %p95 = por %p93, %p94
    %p96 = scmp.ne.s32.totalorder %s84, %s85
    %p97 = scmp.eq.s32.totalorder %s19, 7
    %p98 = por %p96, %p97
    %p100 = scmp.ne.s32.totalorder %s85, %s99
    %p101 = scmp.eq.s32.totalorder %s19, 0
    %p102 = por %p100, %p101
    %s104 = sadd.s32 %s103, 1
    %p107 = scmp.eq.s32.totalorder %s13, 7
    %p108 = scmp.ne.s32.totalorder %s103, %s105
    %p109 = scmp.eq.s32.totalorder %s13, 0
    %p110 = por %p108, %p109
    %p111 = scmp.ne.s32.totalorder %s103, %s105
    %p112 = scmp.eq.s32.totalorder %s18, 7
    %p113 = por %p111, %p112
    %p114 = scmp.ne.s32.totalorder %s105, %s106
    %p115 = scmp.eq.s32.totalorder %s18, 0
    %p116 = por %p114, %p115
    %p117 = scmp.ne.s32.totalorder %s105, %s106
    %p118 = scmp.eq.s32.totalorder %s19, 7
    %p119 = por %p117, %p118
    %p121 = scmp.ne.s32.totalorder %s106, %s120
    %p122 = scmp.eq.s32.totalorder %s19, 0
    %p123 = por %p121, %p122
    %s125 = sadd.s32 %s124, 1
    %p128 = scmp.eq.s32.totalorder %s13, 7
    %p129 = scmp.ne.s32.totalorder %s124, %s126
    %p130 = scmp.eq.s32.totalorder %s13, 0
    %p131 = por %p129, %p130
    %p132 = scmp.ne.s32.totalorder %s124, %s126
    %p133 = scmp.eq.s32.totalorder %s18, 7
    %p134 = por %p132, %p133
    %p135 = scmp.ne.s32.totalorder %s126, %s127
    %p136 = scmp.eq.s32.totalorder %s18, 0
    %p137 = por %p135, %p136
    %p138 = scmp.ne.s32.totalorder %s126, %s127
    %p139 = scmp.eq.s32.totalorder %s19, 7
    %p140 = por %p138, %p139
    %p142 = scmp.ne.s32.totalorder %s127, %s141
    %p143 = scmp.eq.s32.totalorder %s19, 0
    %p144 = por %p142, %p143
    %s146 = sadd.s32 %s145, 1
    %p149 = scmp.eq.s32.totalorder %s13, 7
    %p150 = scmp.ne.s32.totalorder %s145, %s147
    %p151 = scmp.eq.s32.totalorder %s13, 0
    %p152 = por %p150, %p151
    %p153 = scmp.ne.s32.totalorder %s145, %s147
    %p154 = scmp.eq.s32.totalorder %s18, 7
    %p155 = por %p153, %p154
    %p156 = scmp.ne.s32.totalorder %s147, %s148
    %p157 = scmp.eq.s32.totalorder %s18, 0
    %p158 = por %p156, %p157
    %p159 = scmp.ne.s32.totalorder %s147, %s148
    %p160 = scmp.eq.s32.totalorder %s19, 7
    %p161 = por %p159, %p160
    %p163 = scmp.ne.s32.totalorder %s148, %s162
    %p164 = scmp.eq.s32.totalorder %s19, 0
    %p165 = por %p163, %p164
    %s167 = sadd.s32 %s166, 1
    %p170 = scmp.eq.s32.totalorder %s13, 7
    %p171 = scmp.ne.s32.totalorder %s166, %s168
    %p172 = scmp.eq.s32.totalorder %s13, 0
    %p173 = por %p171, %p172
    %p174 = scmp.ne.s32.totalorder %s166, %s168
    %p175 = scmp.eq.s32.totalorder %s18, 7
    %p176 = por %p174, %p175
    %p177 = scmp.ne.s32.totalorder %s168, %s169
    %p178 = scmp.eq.s32.totalorder %s18, 0
    %p179 = por %p177, %p178
    %p180 = scmp.ne.s32.totalorder %s168, %s169
    %p181 = scmp.eq.s32.totalorder %s19, 7
    %p182 = por %p180, %p181
    %p184 = scmp.ne.s32.totalorder %s169, %s183
    %p185 = scmp.eq.s32.totalorder %s19, 0
    %p186 = por %p184, %p185
    %s187 = ssub.s32 %s20, %s32
    %s188 = ssub.s32 %s21, %s28
    %s189 = sor.u32 %s187, %s188
    %p190 = scmp.eq.s32.totalorder %s189, 0
    %s192 = sadd.s32 %s191, 1
    %s193 = scalar_select %p190, %s191, %s192
    %p196 = pneg %p190
    %p197 = scmp.eq.s32.totalorder %s13, 7
    %p198 = por %p196, %p197
    %p199 = scmp.ne.s32.totalorder %s191, %s194
    %p200 = scmp.eq.s32.totalorder %s13, 0
    %p201 = por %p199, %p200
    %p202 = scmp.ne.s32.totalorder %s191, %s194
    %p203 = scmp.eq.s32.totalorder %s18, 7
    %p204 = por %p202, %p203
    %p205 = scmp.ne.s32.totalorder %s194, %s195
    %p206 = scmp.eq.s32.totalorder %s18, 0
    %p207 = por %p205, %p206
    %p208 = scmp.ne.s32.totalorder %s194, %s195
    %p209 = scmp.eq.s32.totalorder %s19, 7
    %p210 = por %p208, %p209
    %p212 = scmp.ne.s32.totalorder %s195, %s211
    %p213 = scmp.eq.s32.totalorder %s19, 0
    %p214 = por %p212, %p213
    %p215 = scmp.le.s32.totalorder 1, %s13
    %p216 = scmp.lt.s32.totalorder %s13, 9
    %p217 = pnand %p215, %p216
    %p218 = pneg %p217
    // Predicated region
    $region9: #{conv3dlstm_forward.9} parent=5 // pred_check
      _
    $region10: #{conv3dlstm_forward.9} parent=5 // pred_check_branch
      %220 = sbr.rel (%p217) target = $region12
    $region11: #{conv3dlstm_forward.9} parent=5 // pred_region
      %s221 = ssub.s32 %s13, 1
      // Predicated region
      $region13: #{conv3dlstm_forward.9} parent=11 // pred_check
        %p222 = pneg %p74
      $region14: #{conv3dlstm_forward.9} parent=11 // pred_check_branch
        %224 = sbr.rel (%p222) target = $region16
      $region15: #{conv3dlstm_forward.9} parent=11 // pred_region
        _
      $region16: #{conv3dlstm_forward.9} parent=11 // pred_fallthru
        _
      // Predicated region
      $region17: #{conv3dlstm_forward.9} parent=11 // pred_check
        %p225 = pneg %p95
      $region18: #{conv3dlstm_forward.9} parent=11 // pred_check_branch
        %227 = sbr.rel (%p225) target = $region20
      $region19: #{conv3dlstm_forward.9} parent=11 // pred_region
        _
      $region20: #{conv3dlstm_forward.9} parent=11 // pred_fallthru
        _
      // Predicated region
      $region21: #{conv3dlstm_forward.9} parent=11 // pred_check
        %p228 = pneg %p116
      $region22: #{conv3dlstm_forward.9} parent=11 // pred_check_branch
        %230 = sbr.rel (%p228) target = $region24
      $region23: #{conv3dlstm_forward.9} parent=11 // pred_region
        _
      $region24: #{conv3dlstm_forward.9} parent=11 // pred_fallthru
        _
      // Predicated region
      $region25: #{conv3dlstm_forward.9} parent=11 // pred_check
        %p231 = pneg %p137
      $region26: #{conv3dlstm_forward.9} parent=11 // pred_check_branch
        %233 = sbr.rel (%p231) target = $region28
      $region27: #{conv3dlstm_forward.9} parent=11 // pred_region
        _
      $region28: #{conv3dlstm_forward.9} parent=11 // pred_fallthru
        _
      // Predicated region
      $region29: #{conv3dlstm_forward.9} parent=11 // pred_check
        %p234 = pneg %p158
      $region30: #{conv3dlstm_forward.9} parent=11 // pred_check_branch
        %236 = sbr.rel (%p234) target = $region32
      $region31: #{conv3dlstm_forward.9} parent=11 // pred_region
        _
      $region32: #{conv3dlstm_forward.9} parent=11 // pred_fallthru
        _
      // Predicated region
      $region33: #{conv3dlstm_forward.9} parent=11 // pred_check
        %p237 = pneg %p179
      $region34: #{conv3dlstm_forward.9} parent=11 // pred_check_branch
        %239 = sbr.rel (%p237) target = $region36
      $region35: #{conv3dlstm_forward.9} parent=11 // pred_region
        _
      $region36: #{conv3dlstm_forward.9} parent=11 // pred_fallthru
        _
    $region12: #{conv3dlstm_forward.9} parent=5 // pred_fallthru
      _
    %p240 = scmp.lt.s32.totalorder %s13, 8
    // Predicated region
    $region37: #{conv3dlstm_forward.9} parent=5 // pred_check
      %p241 = pneg %p240
    $region38: #{conv3dlstm_forward.9} parent=5 // pred_check_branch
      %243 = sbr.rel (%p241) target = $region40
    $region39: #{conv3dlstm_forward.9} parent=5 // pred_region
      // Predicated region
      $region41: #{conv3dlstm_forward.9} parent=39 // pred_check
        %p244 = pneg %p47
      $region42: #{conv3dlstm_forward.9} parent=39 // pred_check_branch
        %246 = sbr.rel (%p244) target = $region44
      $region43: #{conv3dlstm_forward.9} parent=39 // pred_region
        %p247 = scmp.lt.s32.totalorder %s20, 1
        %s248 = scalar_select %p247, %s20, 1
        %p249 = scmp.lt.s32.totalorder %s21, 3
        %s250 = scalar_select %p249, %s21, 3
        %s251 = smul.addr %s250, 5
        %s252 = smul.addr %s248, 20
        %s253 = sadd.s32 %s251, %s252
        %s254 = smul.addr %s253, 4
        %s255 = scalar_lea.vmem %s0, %s254
      $region44: #{conv3dlstm_forward.9} parent=39 // pred_fallthru
        _
    $region40: #{conv3dlstm_forward.9} parent=5 // pred_fallthru
      _
    %p256 = scmp.le.s32.totalorder 1, %s13
    %p257 = scmp.lt.s32.totalorder %s13, 9
    %p258 = pnand %p256, %p257
    %p259 = pneg %p258
    // Predicated region
    $region45: #{conv3dlstm_forward.9} parent=5 // pred_check
      _
    $region46: #{conv3dlstm_forward.9} parent=5 // pred_check_branch
      %261 = sbr.rel (%p258) target = $region48
    $region47: #{conv3dlstm_forward.9} parent=5 // pred_region
      %s262 = ssub.s32 %s13, 1
      %p263 = scmp.lt.s32.totalorder %s22, 1
      %s264 = scalar_select %p263, %s22, 1
      %p265 = scmp.lt.s32.totalorder %s23, 3
      %s266 = scalar_select %p265, %s23, 3
      %s267 = smul.addr %s266, 5
      %s268 = smul.addr %s264, 20
      %s269 = sadd.s32 %s267, %s268
      %s270 = smul.addr %s269, 4
      %s271 = scalar_lea.vmem %s0, %s270
      %p272 = pneg %p53
      %p273 = pneg %p50
      %p274 = pneg %p74
      %p275 = pneg %p71
      %p276 = pneg %p95
      %p277 = pneg %p92
      %p278 = pneg %p116
      %p279 = pneg %p113
      %p280 = pneg %p137
      %p281 = pneg %p134
      %p282 = pneg %p158
      %p283 = pneg %p155
      %p284 = pneg %p179
      %p285 = pneg %p176
      %p286 = pneg %p207
      %p287 = pneg %p204
      %p288 = scmp.lt.s32.totalorder %s22, 1
      %s289 = scalar_select %p288, %s22, 1
      %p290 = scmp.lt.s32.totalorder %s23, 3
      %s291 = scalar_select %p290, %s23, 3
      %s292 = smul.addr %s291, 5
      %s293 = smul.addr %s289, 20
      %s294 = sadd.s32 %s292, %s293
      %s295 = smul.addr %s294, 4
      %s296 = scalar_lea.vmem %s7, %s295
      %p297 = scmp.lt.s32.totalorder %s22, 1
      %s298 = scalar_select %p297, %s22, 1
      %p299 = scmp.lt.s32.totalorder %s23, 3
      %s300 = scalar_select %p299, %s23, 3
      %s301 = smul.addr %s300, 5
      %s302 = smul.addr %s298, 20
      %s303 = sadd.s32 %s301, %s302
      %s304 = smul.addr %s303, 4
      %s305 = scalar_lea.vmem %s0, %s304
      %p306 = scmp.lt.s32.totalorder %s22, 1
      %s307 = scalar_select %p306, %s22, 1
      %p308 = scmp.lt.s32.totalorder %s23, 3
      %s309 = scalar_select %p308, %s23, 3
      %s310 = smul.addr %s309, 5
      %s311 = smul.addr %s307, 20
      %s312 = sadd.s32 %s310, %s311
      %s313 = smul.addr %s312, 4
      %s314 = scalar_lea.vmem %s7, %s313
      %p316 = scmp.eq.s32.totalorder %s23, 0
      // Predicated region
      $region49: #{conv3dlstm_forward.9} parent=47 // pred_check
        %p317 = pneg %p316
      $region50: #{conv3dlstm_forward.9} parent=47 // pred_check_branch
        %319 = sbr.rel (%p317) target = $region52
      $region51: #{conv3dlstm_forward.9} parent=47 // pred_region
        %320 = vst [vmem:[#allocation2] sm:$0xf] 0
        %321 = vst [vmem:[#allocation2 + $0x4] sm:$0xf] 0
        %322 = vst [vmem:[#allocation2 + $0x8] sm:$0xf] 0
        %323 = vst [vmem:[#allocation2 + $0xc] sm:$0xf] 0
        %324 = vst [vmem:[#allocation2 + $0x10] sm:$0x3] 0
        %325 = vst [vmem:[#allocation3] sm:$0xff] 0.0
        %326 = vst [vmem:[#allocation3 + $0x8] sm:$0xff] 0.0
        %327 = vst [vmem:[#allocation3 + $0x10] sm:$0xff] 0.0
        %328 = vst [vmem:[#allocation3 + $0x18] sm:$0xff] 0.0
        %329 = vst [vmem:[#allocation3 + $0x20] sm:$0xf] 0.0
      $region52: #{conv3dlstm_forward.9} parent=47 // pred_fallthru
        _
      %v330 = vld [vmem:[%s305] sm:$0xf]
      %v331 = vld [vmem:[%s305 + $0x4] sm:$0xf]
      %v332 = vld [vmem:[%s305 + $0x8] sm:$0xf]
      %v333 = vld [vmem:[%s305 + $0xc] sm:$0xf]
      %v334 = vld [vmem:[%s305 + $0x10] sm:$0x3]
      %v335 = vld [vmem:[#allocation2] sm:$0xf]
      %v336 = vld [vmem:[#allocation2 + $0x4] sm:$0xf]
      %v337 = vld [vmem:[#allocation2 + $0x8] sm:$0xf]
      %v338 = vld [vmem:[#allocation2 + $0xc] sm:$0xf]
      %v339 = vld [vmem:[#allocation2 + $0x10] sm:$0x3]
      %v340 = vld [vmem:[#allocation3] sm:$0xff]
      %v341 = vld [vmem:[#allocation3 + $0x8] sm:$0xff]
      %v342 = vld [vmem:[#allocation3 + $0x10] sm:$0xff]
      %v343 = vld [vmem:[#allocation3 + $0x18] sm:$0xff]
      %v344 = vld [vmem:[#allocation3 + $0x20] sm:$0xf]
      %v345 = vld [vmem:[%s1] sm:$0xff]
      %v346 = vld [vmem:[%s1 + $0x8] sm:$0xff]
      %v347 = vld [vmem:[%s1 + $0x10] sm:$0xff]
      %v348 = vld [vmem:[%s1 + $0x18] sm:$0xff]
      %v349 = vld [vmem:[%s1 + $0x20] sm:$0xff]
      %v350 = vld [vmem:[%s1 + $0x28] sm:$0xff]
      %v351 = vld [vmem:[%s1 + $0x30] sm:$0xff]
      %v352 = vld [vmem:[%s1 + $0x38] sm:$0xff]
      %v353 = vld [vmem:[%s1 + $0x40] sm:$0xff]
      %v354 = vld [vmem:[%s1 + $0x48] sm:$0xff]
      %v355 = vld [vmem:[%s1 + $0x50] sm:$0xff]
      %v356 = vld [vmem:[%s1 + $0x58] sm:$0xff]
      %v357 = vld [vmem:[%s1 + $0x60] sm:$0xff]
      %v358 = vld [vmem:[%s1 + $0x68] sm:$0xff]
      %v359 = vld [vmem:[%s1 + $0x70] sm:$0xff]
      %v360 = vld [vmem:[%s1 + $0x78] sm:$0xff]
      %v361 = vld [vmem:[%s1 + $0x80] sm:$0xff]
      %v362 = vld [vmem:[%s1 + $0x88] sm:$0xff]
      %v363 = vld [vmem:[%s1 + $0x90] sm:$0xff]
      %v364 = vld [vmem:[%s1 + $0x98] sm:$0xff]
      %v365 = vld [vmem:[%s1 + $0xa0] sm:$0xff]
      %v366 = vld [vmem:[%s1 + $0xa8] sm:$0xff]
      %v367 = vld [vmem:[%s1 + $0xb0] sm:$0xff]
      %v368 = vld [vmem:[%s1 + $0xb8] sm:$0xff]
      %v369 = vld [vmem:[%s1 + $0xc0] sm:$0xff]
      %v370 = vld [vmem:[%s1 + $0xc8] sm:$0xff]
      %v371 = vld [vmem:[%s1 + $0xd0] sm:$0xff]
      %v372 = vld [vmem:[%s1 + $0xd8] sm:$0xff]
      %v373 = vld [vmem:[%s1 + $0xe0] sm:$0xff]
      %v374 = vld [vmem:[%s1 + $0xe8] sm:$0xff]
      %v375 = vld [vmem:[%s1 + $0xf0] sm:$0xff]
      %v376 = vld [vmem:[%s1 + $0xf8] sm:$0xff]
      %v377 = vld [vmem:[%s2] sm:$0xff]
      %v378 = vld [vmem:[%s2 + $0x8] sm:$0xff]
      %v379 = vld [vmem:[%s2 + $0x10] sm:$0xff]
      %v380 = vld [vmem:[%s2 + $0x18] sm:$0xff]
      %v381 = vld [vmem:[%s2 + $0x20] sm:$0xff]
      %v382 = vld [vmem:[%s2 + $0x28] sm:$0xff]
      %v383 = vld [vmem:[%s2 + $0x30] sm:$0xff]
      %v384 = vld [vmem:[%s2 + $0x38] sm:$0xff]
      %v385 = vld [vmem:[%s2 + $0x40] sm:$0xff]
      %v386 = vld [vmem:[%s2 + $0x48] sm:$0xff]
      %v387 = vld [vmem:[%s2 + $0x50] sm:$0xff]
      %v388 = vld [vmem:[%s2 + $0x58] sm:$0xff]
      %v389 = vld [vmem:[%s2 + $0x60] sm:$0xff]
      %v390 = vld [vmem:[%s2 + $0x68] sm:$0xff]
      %v391 = vld [vmem:[%s2 + $0x70] sm:$0xff]
      %v392 = vld [vmem:[%s2 + $0x78] sm:$0xff]
      %v393 = vld [vmem:[%s2 + $0x80] sm:$0xff]
      %v394 = vld [vmem:[%s2 + $0x88] sm:$0xff]
      %v395 = vld [vmem:[%s2 + $0x90] sm:$0xff]
      %v396 = vld [vmem:[%s2 + $0x98] sm:$0xff]
      %v397 = vld [vmem:[%s2 + $0xa0] sm:$0xff]
      %v398 = vld [vmem:[%s2 + $0xa8] sm:$0xff]
      %v399 = vld [vmem:[%s2 + $0xb0] sm:$0xff]
      %v400 = vld [vmem:[%s2 + $0xb8] sm:$0xff]
      %v401 = vld [vmem:[%s2 + $0xc0] sm:$0xff]
      %v402 = vld [vmem:[%s2 + $0xc8] sm:$0xff]
      %v403 = vld [vmem:[%s2 + $0xd0] sm:$0xff]
      %v404 = vld [vmem:[%s2 + $0xd8] sm:$0xff]
      %v405 = vld [vmem:[%s2 + $0xe0] sm:$0xff]
      %v406 = vld [vmem:[%s2 + $0xe8] sm:$0xff]
      %v407 = vld [vmem:[%s2 + $0xf0] sm:$0xff]
      %v408 = vld [vmem:[%s2 + $0xf8] sm:$0xff]
      %v414 = vunpack.c.l.b16 %v335
      %v415 = vunpack.c.l.b16 %v336
      %v416 = vunpack.c.l.b16 %v337
      %v417 = vunpack.c.l.b16 %v338
      %v418 = vunpack.c.l.b16 %v339
      %v419 = vpack.c.b16 %v415, %v414
      %v420 = vpack.c.b16 %v417, %v416
      %v421 = vpack.c.b16 %v418, %v418
      %v457 = vunpack.c.l.b16 %v377
      %v458 = vunpack.c.h.b16 %v377
      %v459 = vunpack.c.l.b16 %v378
      %v460 = vunpack.c.h.b16 %v378
      %v461 = vunpack.c.l.b16 %v379
      %v462 = vunpack.c.h.b16 %v379
      %v463 = vunpack.c.l.b16 %v380
      %v464 = vunpack.c.h.b16 %v380
      %v465 = vunpack.c.l.b16 %v381
      %v466 = vunpack.c.h.b16 %v381
      %v467 = vunpack.c.l.b16 %v382
      %v468 = vunpack.c.h.b16 %v382
      %v469 = vunpack.c.l.b16 %v383
      %v470 = vunpack.c.h.b16 %v383
      %v471 = vunpack.c.l.b16 %v384
      %v472 = vunpack.c.h.b16 %v384
      %v473 = vunpack.c.l.b16 %v385
      %v474 = vunpack.c.h.b16 %v385
      %v475 = vunpack.c.l.b16 %v386
      %v476 = vunpack.c.h.b16 %v386
      %v477 = vunpack.c.l.b16 %v387
      %v478 = vunpack.c.h.b16 %v387
      %v479 = vunpack.c.l.b16 %v388
      %v480 = vunpack.c.h.b16 %v388
      %v481 = vunpack.c.l.b16 %v389
      %v482 = vunpack.c.h.b16 %v389
      %v483 = vunpack.c.l.b16 %v390
      %v484 = vunpack.c.h.b16 %v390
      %v485 = vunpack.c.l.b16 %v391
      %v486 = vunpack.c.h.b16 %v391
      %v487 = vunpack.c.l.b16 %v392
      %v488 = vunpack.c.h.b16 %v392
      %v489 = vunpack.c.l.b16 %v393
      %v490 = vunpack.c.h.b16 %v393
      %v491 = vunpack.c.l.b16 %v394
      %v492 = vunpack.c.h.b16 %v394
      %v493 = vunpack.c.l.b16 %v395
      %v494 = vunpack.c.h.b16 %v395
      %v495 = vunpack.c.l.b16 %v396
      %v496 = vunpack.c.h.b16 %v396
      %v497 = vunpack.c.l.b16 %v397
      %v498 = vunpack.c.h.b16 %v397
      %v499 = vunpack.c.l.b16 %v398
      %v500 = vunpack.c.h.b16 %v398
      %v501 = vunpack.c.l.b16 %v399
      %v502 = vunpack.c.h.b16 %v399
      %v503 = vunpack.c.l.b16 %v400
      %v504 = vunpack.c.h.b16 %v400
      %v505 = vunpack.c.l.b16 %v401
      %v506 = vunpack.c.h.b16 %v401
      %v507 = vunpack.c.l.b16 %v402
      %v508 = vunpack.c.h.b16 %v402
      %v509 = vunpack.c.l.b16 %v403
      %v510 = vunpack.c.h.b16 %v403
      %v511 = vunpack.c.l.b16 %v404
      %v512 = vunpack.c.h.b16 %v404
      %v513 = vunpack.c.l.b16 %v405
      %v514 = vunpack.c.h.b16 %v405
      %v515 = vunpack.c.l.b16 %v406
      %v516 = vunpack.c.h.b16 %v406
      %v517 = vunpack.c.l.b16 %v407
      %v518 = vunpack.c.h.b16 %v407
      %v519 = vunpack.c.l.b16 %v408
      %v520 = vunpack.c.h.b16 %v408
      %v521 = vpack.c.b16 %v461, %v457
      %v522 = vpack.c.b16 %v462, %v458
      %v523 = vpack.c.b16 %v463, %v459
      %v524 = vpack.c.b16 %v464, %v460
      %v525 = vpack.c.b16 %v469, %v465
      %v526 = vpack.c.b16 %v470, %v466
      %v527 = vpack.c.b16 %v471, %v467
      %v528 = vpack.c.b16 %v472, %v468
      %v529 = vpack.c.b16 %v477, %v473
      %v530 = vpack.c.b16 %v478, %v474
      %v531 = vpack.c.b16 %v479, %v475
      %v532 = vpack.c.b16 %v480, %v476
      %v533 = vpack.c.b16 %v485, %v481
      %v534 = vpack.c.b16 %v486, %v482
      %v535 = vpack.c.b16 %v487, %v483
      %v536 = vpack.c.b16 %v488, %v484
      %v537 = vpack.c.b16 %v493, %v489
      %v538 = vpack.c.b16 %v494, %v490
      %v539 = vpack.c.b16 %v495, %v491
      %v540 = vpack.c.b16 %v496, %v492
      %v541 = vpack.c.b16 %v501, %v497
      %v542 = vpack.c.b16 %v502, %v498
      %v543 = vpack.c.b16 %v503, %v499
      %v544 = vpack.c.b16 %v504, %v500
      %v545 = vpack.c.b16 %v509, %v505
      %v546 = vpack.c.b16 %v510, %v506
      %v547 = vpack.c.b16 %v511, %v507
      %v548 = vpack.c.b16 %v512, %v508
      %v549 = vpack.c.b16 %v517, %v513
      %v550 = vpack.c.b16 %v518, %v514
      %v551 = vpack.c.b16 %v519, %v515
      %v552 = vpack.c.b16 %v520, %v516
      %585 = vmatprep.subr.bf16.mxu0 %v522
      %586 = vmatpush1.bf16.msra.mxu0 %v521
      %587 = vmatprep.subr.bf16.mxu0 %v526
      %588 = vmatpush1.bf16.msra.mxu0 %v525
      %589 = vmatprep.subr.bf16.mxu0 %v530
      %590 = vmatpush1.bf16.msra.mxu0 %v529
      %591 = vmatprep.subr.bf16.mxu0 %v534
      %592 = vmatpush1.bf16.msra.mxu0 %v533
      %593 = vmatprep.subr.bf16.mxu0 %v538
      %594 = vmatpush1.bf16.msra.mxu0 %v537
      %595 = vmatprep.subr.bf16.mxu0 %v542
      %596 = vmatpush1.bf16.msra.mxu0 %v541
      %597 = vmatprep.subr.bf16.mxu0 %v546
      %598 = vmatpush1.bf16.msra.mxu0 %v545
      %599 = vmatprep.subr.bf16.mxu0 %v550
      %600 = vmatpush1.bf16.msra.mxu0 %v549
      %601 = vmatprep.subr.bf16.mxu0 0
      %602 = vmatpush1.bf16.msra.mxu0 0
      %603 = vmatprep.subr.bf16.mxu0 0
      %604 = vmatpush1.bf16.msra.mxu0 0
      %605 = vmatprep.subr.bf16.mxu0 0
      %606 = vmatpush1.bf16.msra.mxu0 0
      %607 = vmatprep.subr.bf16.mxu0 0
      %608 = vmatpush1.bf16.msra.mxu0 0
      %609 = vmatprep.subr.bf16.mxu0 0
      %610 = vmatpush1.bf16.msra.mxu0 0
      %611 = vmatprep.subr.bf16.mxu0 0
      %612 = vmatpush1.bf16.msra.mxu0 0
      %613 = vmatprep.subr.bf16.mxu0 0
      %614 = vmatpush1.bf16.msra.mxu0 0
      %615 = vmatprep.subr.bf16.mxu0 0
      %616 = vmatpush1.bf16.msra.mxu0 0
      %617 = vmatprep.mubr.bf16.mxu0 0
      %618 = vmatmul.mubr.bf16.gmra.mrb[0].mxu0 %v419
      %v619 = vpop.f32.mrb[0].mxu0
      %v620 = vadd.f32 0.0, %v619
      %v621 = vpop.f32.mrb[0].mxu0
      %v622 = vadd.f32 0.0, %v621
      %v623 = vpop.f32.mrb[0].mxu0
      %v624 = vadd.f32 0.0, %v623
      %v625 = vpop.f32.mrb[0].mxu0
      %v626 = vadd.f32 0.0, %v625
      %627 = vmatprep.mubr.bf16.mxu0 0
      %628 = vmatmul.mubr.bf16.gmra.mrb[0].mxu0 %v420
      %v629 = vpop.f32.mrb[0].mxu0
      %v630 = vadd.f32 0.0, %v629
      %v631 = vpop.f32.mrb[0].mxu0
      %v632 = vadd.f32 0.0, %v631
      %v633 = vpop.f32.mrb[0].mxu0
      %v634 = vadd.f32 0.0, %v633
      %v635 = vpop.f32.mrb[0].mxu0
      %v636 = vadd.f32 0.0, %v635
      %637 = vmatprep.mubr.bf16.mxu0 0
      %638 = vmatmul.mubr.bf16.gmra.mrb[0].mxu0 %v421
      %v639 = vpop.f32.mrb[0].mxu0
      %v640 = vadd.f32 0.0, %v639
      %v641 = vpop.f32.mrb[0].mxu0
      %v642 = vadd.f32 0.0, %v641
      %v643 = vpop.f32.mrb[0].mxu0
      %v644 = vpop.f32.mrb[0].mxu0
      %645 = vdwg.mxu0
      %646 = vmatprep.subr.bf16.mxu0 %v524
      %647 = vmatpush1.bf16.msra.mxu0 %v523
      %648 = vmatprep.subr.bf16.mxu0 %v528
      %649 = vmatpush1.bf16.msra.mxu0 %v527
      %650 = vmatprep.subr.bf16.mxu0 %v532
      %651 = vmatpush1.bf16.msra.mxu0 %v531
      %652 = vmatprep.subr.bf16.mxu0 %v536
      %653 = vmatpush1.bf16.msra.mxu0 %v535
      %654 = vmatprep.subr.bf16.mxu0 %v540
      %655 = vmatpush1.bf16.msra.mxu0 %v539
      %656 = vmatprep.subr.bf16.mxu0 %v544
      %657 = vmatpush1.bf16.msra.mxu0 %v543
      %658 = vmatprep.subr.bf16.mxu0 %v548
      %659 = vmatpush1.bf16.msra.mxu0 %v547
      %660 = vmatprep.subr.bf16.mxu0 %v552
      %661 = vmatpush1.bf16.msra.mxu0 %v551
      %662 = vmatprep.subr.bf16.mxu0 0
      %663 = vmatpush1.bf16.msra.mxu0 0
      %664 = vmatprep.subr.bf16.mxu0 0
      %665 = vmatpush1.bf16.msra.mxu0 0
      %666 = vmatprep.subr.bf16.mxu0 0
      %667 = vmatpush1.bf16.msra.mxu0 0
      %668 = vmatprep.subr.bf16.mxu0 0
      %669 = vmatpush1.bf16.msra.mxu0 0
      %670 = vmatprep.subr.bf16.mxu0 0
      %671 = vmatpush1.bf16.msra.mxu0 0
      %672 = vmatprep.subr.bf16.mxu0 0
      %673 = vmatpush1.bf16.msra.mxu0 0
      %674 = vmatprep.subr.bf16.mxu0 0
      %675 = vmatpush1.bf16.msra.mxu0 0
      %676 = vmatprep.subr.bf16.mxu0 0
      %677 = vmatpush1.bf16.msra.mxu0 0
      %678 = vmatprep.mubr.bf16.mxu0 0
      %679 = vmatmul.mubr.bf16.gmra.mrb[0].mxu0 %v419
      %v680 = vpop.f32.mrb[0].mxu0
      %v681 = vadd.f32 0.0, %v680
      %v682 = vpop.f32.mrb[0].mxu0
      %v683 = vadd.f32 0.0, %v682
      %v684 = vpop.f32.mrb[0].mxu0
      %v685 = vadd.f32 0.0, %v684
      %v686 = vpop.f32.mrb[0].mxu0
      %v687 = vadd.f32 0.0, %v686
      %688 = vmatprep.mubr.bf16.mxu0 0
      %689 = vmatmul.mubr.bf16.gmra.mrb[0].mxu0 %v420
      %v690 = vpop.f32.mrb[0].mxu0
      %v691 = vadd.f32 0.0, %v690
      %v692 = vpop.f32.mrb[0].mxu0
      %v693 = vadd.f32 0.0, %v692
      %v694 = vpop.f32.mrb[0].mxu0
      %v695 = vadd.f32 0.0, %v694
      %v696 = vpop.f32.mrb[0].mxu0
      %v697 = vadd.f32 0.0, %v696
      %698 = vmatprep.mubr.bf16.mxu0 0
      %699 = vmatmul.mubr.bf16.gmra.mrb[0].mxu0 %v421
      %v700 = vpop.f32.mrb[0].mxu0
      %v701 = vadd.f32 0.0, %v700
      %v702 = vpop.f32.mrb[0].mxu0
      %v703 = vadd.f32 0.0, %v702
      %v704 = vpop.f32.mrb[0].mxu0
      %v705 = vpop.f32.mrb[0].mxu0
      %706 = vdwg.mxu0
      %v712 = vunpack.c.l.b16 %v330
      %v713 = vunpack.c.l.b16 %v331
      %v714 = vunpack.c.l.b16 %v332
      %v715 = vunpack.c.l.b16 %v333
      %v716 = vunpack.c.l.b16 %v334
      %v717 = vpack.c.b16 %v713, %v712
      %v718 = vpack.c.b16 %v715, %v714
      %v719 = vpack.c.b16 %v716, %v716
      %v755 = vunpack.c.l.b16 %v345
      %v756 = vunpack.c.h.b16 %v345
      %v757 = vunpack.c.l.b16 %v346
      %v758 = vunpack.c.h.b16 %v346
      %v759 = vunpack.c.l.b16 %v347
      %v760 = vunpack.c.h.b16 %v347
      %v761 = vunpack.c.l.b16 %v348
      %v762 = vunpack.c.h.b16 %v348
      %v763 = vunpack.c.l.b16 %v349
      %v764 = vunpack.c.h.b16 %v349
      %v765 = vunpack.c.l.b16 %v350
      %v766 = vunpack.c.h.b16 %v350
      %v767 = vunpack.c.l.b16 %v351
      %v768 = vunpack.c.h.b16 %v351
      %v769 = vunpack.c.l.b16 %v352
      %v770 = vunpack.c.h.b16 %v352
      %v771 = vunpack.c.l.b16 %v353
      %v772 = vunpack.c.h.b16 %v353
      %v773 = vunpack.c.l.b16 %v354
      %v774 = vunpack.c.h.b16 %v354
      %v775 = vunpack.c.l.b16 %v355
      %v776 = vunpack.c.h.b16 %v355
      %v777 = vunpack.c.l.b16 %v356
      %v778 = vunpack.c.h.b16 %v356
      %v779 = vunpack.c.l.b16 %v357
      %v780 = vunpack.c.h.b16 %v357
      %v781 = vunpack.c.l.b16 %v358
      %v782 = vunpack.c.h.b16 %v358
      %v783 = vunpack.c.l.b16 %v359
      %v784 = vunpack.c.h.b16 %v359
      %v785 = vunpack.c.l.b16 %v360
      %v786 = vunpack.c.h.b16 %v360
      %v787 = vunpack.c.l.b16 %v361
      %v788 = vunpack.c.h.b16 %v361
      %v789 = vunpack.c.l.b16 %v362
      %v790 = vunpack.c.h.b16 %v362
      %v791 = vunpack.c.l.b16 %v363
      %v792 = vunpack.c.h.b16 %v363
      %v793 = vunpack.c.l.b16 %v364
      %v794 = vunpack.c.h.b16 %v364
      %v795 = vunpack.c.l.b16 %v365
      %v796 = vunpack.c.h.b16 %v365
      %v797 = vunpack.c.l.b16 %v366
      %v798 = vunpack.c.h.b16 %v366
      %v799 = vunpack.c.l.b16 %v367
      %v800 = vunpack.c.h.b16 %v367
      %v801 = vunpack.c.l.b16 %v368
      %v802 = vunpack.c.h.b16 %v368
      %v803 = vunpack.c.l.b16 %v369
      %v804 = vunpack.c.h.b16 %v369
      %v805 = vunpack.c.l.b16 %v370
      %v806 = vunpack.c.h.b16 %v370
      %v807 = vunpack.c.l.b16 %v371
      %v808 = vunpack.c.h.b16 %v371
      %v809 = vunpack.c.l.b16 %v372
      %v810 = vunpack.c.h.b16 %v372
      %v811 = vunpack.c.l.b16 %v373
      %v812 = vunpack.c.h.b16 %v373
      %v813 = vunpack.c.l.b16 %v374
      %v814 = vunpack.c.h.b16 %v374
      %v815 = vunpack.c.l.b16 %v375
      %v816 = vunpack.c.h.b16 %v375
      %v817 = vunpack.c.l.b16 %v376
      %v818 = vunpack.c.h.b16 %v376
      %v819 = vpack.c.b16 %v759, %v755
      %v820 = vpack.c.b16 %v760, %v756
      %v821 = vpack.c.b16 %v761, %v757
      %v822 = vpack.c.b16 %v762, %v758
      %v823 = vpack.c.b16 %v767, %v763
      %v824 = vpack.c.b16 %v768, %v764
      %v825 = vpack.c.b16 %v769, %v765
      %v826 = vpack.c.b16 %v770, %v766
      %v827 = vpack.c.b16 %v775, %v771
      %v828 = vpack.c.b16 %v776, %v772
      %v829 = vpack.c.b16 %v777, %v773
      %v830 = vpack.c.b16 %v778, %v774
      %v831 = vpack.c.b16 %v783, %v779
      %v832 = vpack.c.b16 %v784, %v780
      %v833 = vpack.c.b16 %v785, %v781
      %v834 = vpack.c.b16 %v786, %v782
      %v835 = vpack.c.b16 %v791, %v787
      %v836 = vpack.c.b16 %v792, %v788
      %v837 = vpack.c.b16 %v793, %v789
      %v838 = vpack.c.b16 %v794, %v790
      %v839 = vpack.c.b16 %v799, %v795
      %v840 = vpack.c.b16 %v800, %v796
      %v841 = vpack.c.b16 %v801, %v797
      %v842 = vpack.c.b16 %v802, %v798
      %v843 = vpack.c.b16 %v807, %v803
      %v844 = vpack.c.b16 %v808, %v804
      %v845 = vpack.c.b16 %v809, %v805
      %v846 = vpack.c.b16 %v810, %v806
      %v847 = vpack.c.b16 %v815, %v811
      %v848 = vpack.c.b16 %v816, %v812
      %v849 = vpack.c.b16 %v817, %v813
      %v850 = vpack.c.b16 %v818, %v814
      %883 = vmatprep.subr.bf16.mxu0 %v820
      %884 = vmatpush1.bf16.msra.mxu0 %v819
      %885 = vmatprep.subr.bf16.mxu0 %v824
      %886 = vmatpush1.bf16.msra.mxu0 %v823
      %887 = vmatprep.subr.bf16.mxu0 %v828
      %888 = vmatpush1.bf16.msra.mxu0 %v827
      %889 = vmatprep.subr.bf16.mxu0 %v832
      %890 = vmatpush1.bf16.msra.mxu0 %v831
      %891 = vmatprep.subr.bf16.mxu0 %v836
      %892 = vmatpush1.bf16.msra.mxu0 %v835
      %893 = vmatprep.subr.bf16.mxu0 %v840
      %894 = vmatpush1.bf16.msra.mxu0 %v839
      %895 = vmatprep.subr.bf16.mxu0 %v844
      %896 = vmatpush1.bf16.msra.mxu0 %v843
      %897 = vmatprep.subr.bf16.mxu0 %v848
      %898 = vmatpush1.bf16.msra.mxu0 %v847
      %899 = vmatprep.subr.bf16.mxu0 0
      %900 = vmatpush1.bf16.msra.mxu0 0
      %901 = vmatprep.subr.bf16.mxu0 0
      %902 = vmatpush1.bf16.msra.mxu0 0
      %903 = vmatprep.subr.bf16.mxu0 0
      %904 = vmatpush1.bf16.msra.mxu0 0
      %905 = vmatprep.subr.bf16.mxu0 0
      %906 = vmatpush1.bf16.msra.mxu0 0
      %907 = vmatprep.subr.bf16.mxu0 0
      %908 = vmatpush1.bf16.msra.mxu0 0
      %909 = vmatprep.subr.bf16.mxu0 0
      %910 = vmatpush1.bf16.msra.mxu0 0
      %911 = vmatprep.subr.bf16.mxu0 0
      %912 = vmatpush1.bf16.msra.mxu0 0
      %913 = vmatprep.subr.bf16.mxu0 0
      %914 = vmatpush1.bf16.msra.mxu0 0
      %915 = vmatprep.mubr.bf16.mxu0 0
      %916 = vmatmul.mubr.bf16.gmra.mrb[0].mxu0 %v717
      %v917 = vpop.f32.mrb[0].mxu0
      %v918 = vadd.f32 %v620, %v917
      %v919 = vpop.f32.mrb[0].mxu0
      %v920 = vadd.f32 %v622, %v919
      %v921 = vpop.f32.mrb[0].mxu0
      %v922 = vadd.f32 %v624, %v921
      %v923 = vpop.f32.mrb[0].mxu0
      %v924 = vadd.f32 %v626, %v923
      %925 = vmatprep.mubr.bf16.mxu0 0
      %926 = vmatmul.mubr.bf16.gmra.mrb[0].mxu0 %v718
      %v927 = vpop.f32.mrb[0].mxu0
      %v928 = vadd.f32 %v630, %v927
      %v929 = vpop.f32.mrb[0].mxu0
      %v930 = vadd.f32 %v632, %v929
      %v931 = vpop.f32.mrb[0].mxu0
      %v932 = vadd.f32 %v634, %v931
      %v933 = vpop.f32.mrb[0].mxu0
      %v934 = vadd.f32 %v636, %v933
      %935 = vmatprep.mubr.bf16.mxu0 0
      %936 = vmatmul.mubr.bf16.gmra.mrb[0].mxu0 %v719
      %v937 = vpop.f32.mrb[0].mxu0
      %v938 = vadd.f32 %v640, %v937
      %v939 = vpop.f32.mrb[0].mxu0
      %v940 = vadd.f32 %v642, %v939
      %v941 = vpop.f32.mrb[0].mxu0
      %v942 = vpop.f32.mrb[0].mxu0
      %943 = vdwg.mxu0
      %944 = vmatprep.subr.bf16.mxu0 %v822
      %945 = vmatpush1.bf16.msra.mxu0 %v821
      %946 = vmatprep.subr.bf16.mxu0 %v826
      %947 = vmatpush1.bf16.msra.mxu0 %v825
      %948 = vmatprep.subr.bf16.mxu0 %v830
      %949 = vmatpush1.bf16.msra.mxu0 %v829
      %950 = vmatprep.subr.bf16.mxu0 %v834
      %951 = vmatpush1.bf16.msra.mxu0 %v833
      %952 = vmatprep.subr.bf16.mxu0 %v838
      %953 = vmatpush1.bf16.msra.mxu0 %v837
      %954 = vmatprep.subr.bf16.mxu0 %v842
      %955 = vmatpush1.bf16.msra.mxu0 %v841
      %956 = vmatprep.subr.bf16.mxu0 %v846
      %957 = vmatpush1.bf16.msra.mxu0 %v845
      %958 = vmatprep.subr.bf16.mxu0 %v850
      %959 = vmatpush1.bf16.msra.mxu0 %v849
      %960 = vmatprep.subr.bf16.mxu0 0
      %961 = vmatpush1.bf16.msra.mxu0 0
      %962 = vmatprep.subr.bf16.mxu0 0
      %963 = vmatpush1.bf16.msra.mxu0 0
      %964 = vmatprep.subr.bf16.mxu0 0
      %965 = vmatpush1.bf16.msra.mxu0 0
      %966 = vmatprep.subr.bf16.mxu0 0
      %967 = vmatpush1.bf16.msra.mxu0 0
      %968 = vmatprep.subr.bf16.mxu0 0
      %969 = vmatpush1.bf16.msra.mxu0 0
      %970 = vmatprep.subr.bf16.mxu0 0
      %971 = vmatpush1.bf16.msra.mxu0 0
      %972 = vmatprep.subr.bf16.mxu0 0
      %973 = vmatpush1.bf16.msra.mxu0 0
      %974 = vmatprep.subr.bf16.mxu0 0
      %975 = vmatpush1.bf16.msra.mxu0 0
      %976 = vmatprep.mubr.bf16.mxu0 0
      %977 = vmatmul.mubr.bf16.gmra.mrb[0].mxu0 %v717
      %v978 = vpop.f32.mrb[0].mxu0
      %v979 = vadd.f32 %v681, %v978
      %v980 = vpop.f32.mrb[0].mxu0
      %v981 = vadd.f32 %v683, %v980
      %v982 = vpop.f32.mrb[0].mxu0
      %v983 = vadd.f32 %v685, %v982
      %v984 = vpop.f32.mrb[0].mxu0
      %v985 = vadd.f32 %v687, %v984
      %986 = vmatprep.mubr.bf16.mxu0 0
      %987 = vmatmul.mubr.bf16.gmra.mrb[0].mxu0 %v718
      %v988 = vpop.f32.mrb[0].mxu0
      %v989 = vadd.f32 %v691, %v988
      %v990 = vpop.f32.mrb[0].mxu0
      %v991 = vadd.f32 %v693, %v990
      %v992 = vpop.f32.mrb[0].mxu0
      %v993 = vadd.f32 %v695, %v992
      %v994 = vpop.f32.mrb[0].mxu0
      %v995 = vadd.f32 %v697, %v994
      %996 = vmatprep.mubr.bf16.mxu0 0
      %997 = vmatmul.mubr.bf16.gmra.mrb[0].mxu0 %v719
      %v998 = vpop.f32.mrb[0].mxu0
      %v999 = vadd.f32 %v701, %v998
      %v1000 = vpop.f32.mrb[0].mxu0
      %v1001 = vadd.f32 %v703, %v1000
      %v1002 = vpop.f32.mrb[0].mxu0
      %v1003 = vpop.f32.mrb[0].mxu0
      %1004 = vdwg.mxu0
      %v1005 = vld [vmem:[%s3] sm:$0xf]
      %v1007 = vlaneseq
      %v1008 = vshrl.u32 %v1007, 7
      %v1009 = vsub.s32 0, %v1008
      %v1010 = vrot.slane %v1005, %v1009
      %v1011 = vlaneseq
      %v1012 = vshrl.u32 %v1011, 7
      %v1013 = vsub.s32 1, %v1012
      %v1014 = vrot.slane %v1005, %v1013
      %v1015 = vlaneseq
      %v1016 = vshrl.u32 %v1015, 7
      %v1017 = vsub.s32 2, %v1016
      %v1018 = vrot.slane %v1005, %v1017
      %v1019 = vlaneseq
      %v1020 = vshrl.u32 %v1019, 7
      %v1021 = vsub.s32 3, %v1020
      %v1022 = vrot.slane %v1005, %v1021
      %v1027 = vadd.f32 %v918, %v1010
      %v1028 = vadd.f32 %v920, %v1014
      %v1029 = vadd.f32 %v979, %v1018
      %v1030 = vadd.f32 %v981, %v1022
      %v1031 = vadd.f32 %v922, %v1010
      %v1032 = vadd.f32 %v924, %v1014
      %v1033 = vadd.f32 %v983, %v1018
      %v1034 = vadd.f32 %v985, %v1022
      %v1035 = vadd.f32 %v928, %v1010
      %v1036 = vadd.f32 %v930, %v1014
      %v1037 = vadd.f32 %v989, %v1018
      %v1038 = vadd.f32 %v991, %v1022
      %v1039 = vadd.f32 %v932, %v1010
      %v1040 = vadd.f32 %v934, %v1014
      %v1041 = vadd.f32 %v993, %v1018
      %v1042 = vadd.f32 %v995, %v1022
      %v1043 = vadd.f32 %v938, %v1010
      %v1044 = vadd.f32 %v940, %v1014
      %v1045 = vadd.f32 %v999, %v1018
      %v1046 = vadd.f32 %v1001, %v1022
      %v1047 = vld [vmem:[%s4] sm:$0xff]
      %v1048 = vld [vmem:[%s4 + $0x8] sm:$0xff]
      %v1049 = vld [vmem:[%s4 + $0x10] sm:$0xff]
      %v1050 = vld [vmem:[%s4 + $0x18] sm:$0xff]
      %v1051 = vld [vmem:[%s4 + $0x20] sm:$0xf]
      %v1052 = vmul.f32 %v1047, %v340
      %v1053 = vmul.f32 %v1048, %v341
      %v1054 = vmul.f32 %v1049, %v342
      %v1055 = vmul.f32 %v1050, %v343
      %v1056 = vmul.f32 %v1051, %v344
      %v1057 = vadd.f32 %v1027, %v1052
      %v1058 = vadd.f32 %v1031, %v1053
      %v1059 = vadd.f32 %v1035, %v1054
      %v1060 = vadd.f32 %v1039, %v1055
      %v1061 = vadd.f32 %v1043, %v1056
      %v1062 = vxor.u32 %v1057, 2147483648
      %v1063 = vxor.u32 %v1058, 2147483648
      %v1064 = vxor.u32 %v1059, 2147483648
      %v1065 = vxor.u32 %v1060, 2147483648
      %v1066 = vxor.u32 %v1061, 2147483648
      %v1067 = vmul.f32 %v1062, 1.442695
      %v1068 = vpow.pop %v1067
      %v1069 = vmul.f32 %v1063, 1.442695
      %v1070 = vpow.pop %v1069
      %v1071 = vmul.f32 %v1064, 1.442695
      %v1072 = vpow.pop %v1071
      %v1073 = vmul.f32 %v1065, 1.442695
      %v1074 = vpow.pop %v1073
      %v1075 = vmul.f32 %v1066, 1.442695
      %v1076 = vpow.pop %v1075
      %v1077 = vadd.f32 %v1068, 1.0
      %v1078 = vadd.f32 %v1070, 1.0
      %v1079 = vadd.f32 %v1072, 1.0
      %v1080 = vadd.f32 %v1074, 1.0
      %v1081 = vadd.f32 %v1076, 1.0
      %v1082 = vrcp.pop %v1077
      %v1083 = vmul.f32 1.0, %v1082
      %v1084 = vrcp.pop %v1078
      %v1085 = vmul.f32 1.0, %v1084
      %v1086 = vrcp.pop %v1079
      %v1087 = vmul.f32 1.0, %v1086
      %v1088 = vrcp.pop %v1080
      %v1089 = vmul.f32 1.0, %v1088
      %v1090 = vrcp.pop %v1081
      %v1091 = vmul.f32 1.0, %v1090
      %v1092 = vld [vmem:[%s5] sm:$0xff]
      %v1093 = vld [vmem:[%s5 + $0x8] sm:$0xff]
      %v1094 = vld [vmem:[%s5 + $0x10] sm:$0xff]
      %v1095 = vld [vmem:[%s5 + $0x18] sm:$0xff]
      %v1096 = vld [vmem:[%s5 + $0x20] sm:$0xf]
      %v1097 = vmul.f32 %v1092, %v340
      %v1098 = vmul.f32 %v1093, %v341
      %v1099 = vmul.f32 %v1094, %v342
      %v1100 = vmul.f32 %v1095, %v343
      %v1101 = vmul.f32 %v1096, %v344
      %v1102 = vadd.f32 %v1028, %v1097
      %v1103 = vadd.f32 %v1032, %v1098
      %v1104 = vadd.f32 %v1036, %v1099
      %v1105 = vadd.f32 %v1040, %v1100
      %v1106 = vadd.f32 %v1044, %v1101
      %v1107 = vxor.u32 %v1102, 2147483648
      %v1108 = vxor.u32 %v1103, 2147483648
      %v1109 = vxor.u32 %v1104, 2147483648
      %v1110 = vxor.u32 %v1105, 2147483648
      %v1111 = vxor.u32 %v1106, 2147483648
      %v1112 = vmul.f32 %v1107, 1.442695
      %v1113 = vpow.pop %v1112
      %v1114 = vmul.f32 %v1108, 1.442695
      %v1115 = vpow.pop %v1114
      %v1116 = vmul.f32 %v1109, 1.442695
      %v1117 = vpow.pop %v1116
      %v1118 = vmul.f32 %v1110, 1.442695
      %v1119 = vpow.pop %v1118
      %v1120 = vmul.f32 %v1111, 1.442695
      %v1121 = vpow.pop %v1120
      %v1122 = vadd.f32 %v1113, 1.0
      %v1123 = vadd.f32 %v1115, 1.0
      %v1124 = vadd.f32 %v1117, 1.0
      %v1125 = vadd.f32 %v1119, 1.0
      %v1126 = vadd.f32 %v1121, 1.0
      %v1127 = vrcp.pop %v1122
      %v1128 = vmul.f32 1.0, %v1127
      %v1129 = vrcp.pop %v1123
      %v1130 = vmul.f32 1.0, %v1129
      %v1131 = vrcp.pop %v1124
      %v1132 = vmul.f32 1.0, %v1131
      %v1133 = vrcp.pop %v1125
      %v1134 = vmul.f32 1.0, %v1133
      %v1135 = vrcp.pop %v1126
      %v1136 = vmul.f32 1.0, %v1135
      %v1137 = vmul.f32 %v1128, %v340
      %v1138 = vmul.f32 %v1130, %v341
      %v1139 = vmul.f32 %v1132, %v342
      %v1140 = vmul.f32 %v1134, %v343
      %v1141 = vmul.f32 %v1136, %v344
      %v1142 = vmax.f32 %v1029, 0.0
      %v1143 = vmax.f32 %v1033, 0.0
      %v1144 = vmax.f32 %v1037, 0.0
      %v1145 = vmax.f32 %v1041, 0.0
      %v1146 = vmax.f32 %v1045, 0.0
      %v1147 = vmul.f32 %v1083, %v1142
      %v1148 = vmul.f32 %v1085, %v1143
      %v1149 = vmul.f32 %v1087, %v1144
      %v1150 = vmul.f32 %v1089, %v1145
      %v1151 = vmul.f32 %v1091, %v1146
      %v1152 = vadd.f32 %v1137, %v1147
      %v1153 = vadd.f32 %v1138, %v1148
      %v1154 = vadd.f32 %v1139, %v1149
      %v1155 = vadd.f32 %v1140, %v1150
      %v1156 = vadd.f32 %v1141, %v1151
      %v1157 = vld [vmem:[%s6] sm:$0xff]
      %v1158 = vld [vmem:[%s6 + $0x8] sm:$0xff]
      %v1159 = vld [vmem:[%s6 + $0x10] sm:$0xff]
      %v1160 = vld [vmem:[%s6 + $0x18] sm:$0xff]
      %v1161 = vld [vmem:[%s6 + $0x20] sm:$0xf]
      %v1162 = vmul.f32 %v1157, %v1152
      %v1163 = vmul.f32 %v1158, %v1153
      %v1164 = vmul.f32 %v1159, %v1154
      %v1165 = vmul.f32 %v1160, %v1155
      %v1166 = vmul.f32 %v1161, %v1156
      %v1167 = vadd.f32 %v1030, %v1162
      %v1168 = vadd.f32 %v1034, %v1163
      %v1169 = vadd.f32 %v1038, %v1164
      %v1170 = vadd.f32 %v1042, %v1165
      %v1171 = vadd.f32 %v1046, %v1166
      %v1172 = vxor.u32 %v1167, 2147483648
      %v1173 = vxor.u32 %v1168, 2147483648
      %v1174 = vxor.u32 %v1169, 2147483648
      %v1175 = vxor.u32 %v1170, 2147483648
      %v1176 = vxor.u32 %v1171, 2147483648
      %v1177 = vmul.f32 %v1172, 1.442695
      %v1178 = vpow.pop %v1177
      %v1179 = vmul.f32 %v1173, 1.442695
      %v1180 = vpow.pop %v1179
      %v1181 = vmul.f32 %v1174, 1.442695
      %v1182 = vpow.pop %v1181
      %v1183 = vmul.f32 %v1175, 1.442695
      %v1184 = vpow.pop %v1183
      %v1185 = vmul.f32 %v1176, 1.442695
      %v1186 = vpow.pop %v1185
      %v1187 = vadd.f32 %v1178, 1.0
      %v1188 = vadd.f32 %v1180, 1.0
      %v1189 = vadd.f32 %v1182, 1.0
      %v1190 = vadd.f32 %v1184, 1.0
      %v1191 = vadd.f32 %v1186, 1.0
      %v1192 = vrcp.pop %v1187
      %v1193 = vmul.f32 1.0, %v1192
      %v1194 = vrcp.pop %v1188
      %v1195 = vmul.f32 1.0, %v1194
      %v1196 = vrcp.pop %v1189
      %v1197 = vmul.f32 1.0, %v1196
      %v1198 = vrcp.pop %v1190
      %v1199 = vmul.f32 1.0, %v1198
      %v1200 = vrcp.pop %v1191
      %v1201 = vmul.f32 1.0, %v1200
      %v1202 = vmax.f32 %v1152, 0.0
      %v1203 = vmax.f32 %v1153, 0.0
      %v1204 = vmax.f32 %v1154, 0.0
      %v1205 = vmax.f32 %v1155, 0.0
      %v1206 = vmax.f32 %v1156, 0.0
      %v1207 = vmul.f32 %v1193, %v1202
      %v1208 = vmul.f32 %v1195, %v1203
      %v1209 = vmul.f32 %v1197, %v1204
      %v1210 = vmul.f32 %v1199, %v1205
      %v1211 = vmul.f32 %v1201, %v1206
      %1212 = vst [vmem:[#allocation3] sm:$0xff] %v1152
      %1213 = vst [vmem:[#allocation3 + $0x8] sm:$0xff] %v1153
      %1214 = vst [vmem:[#allocation3 + $0x10] sm:$0xff] %v1154
      %1215 = vst [vmem:[#allocation3 + $0x18] sm:$0xff] %v1155
      %1216 = vst [vmem:[#allocation3 + $0x20] sm:$0xf] %v1156
      %v1217 = vpack.c.bf16 %v1208, %v1207
      %v1218 = vpack.c.bf16 %v1210, %v1209
      %v1219 = vpack.c.bf16 %v1211, %v1211
      %v1223 = vunpack.c.l.b16 %v1217
      %v1224 = vunpack.c.h.b16 %v1217
      %v1225 = vunpack.c.l.b16 %v1218
      %v1226 = vunpack.c.h.b16 %v1218
      %v1227 = vunpack.c.l.b16 %v1219
      %v1228 = vpack.c.b16 %v1223, %v1223
      %v1229 = vpack.c.b16 %v1224, %v1224
      %v1230 = vpack.c.b16 %v1225, %v1225
      %v1231 = vpack.c.b16 %v1226, %v1226
      %v1232 = vpack.c.b16 %v1227, %v1227
      %1238 = vst [vmem:[#allocation2] sm:$0xf] %v1228
      %1239 = vst [vmem:[#allocation2 + $0x4] sm:$0xf] %v1229
      %1240 = vst [vmem:[#allocation2 + $0x8] sm:$0xf] %v1230
      %1241 = vst [vmem:[#allocation2 + $0xc] sm:$0xf] %v1231
      %1242 = vst [vmem:[#allocation2 + $0x10] sm:$0x3] %v1232
      %1243 = vst [vmem:[%s314] sm:$0xf] %v1228
      %1244 = vst [vmem:[%s314 + $0x4] sm:$0xf] %v1229
      %1245 = vst [vmem:[%s314 + $0x8] sm:$0xf] %v1230
      %1246 = vst [vmem:[%s314 + $0xc] sm:$0xf] %v1231
      %1247 = vst [vmem:[%s314 + $0x10] sm:$0x3] %v1232
      %p1248 = scmp.lt.s32.totalorder %s22, 1
      %s1249 = scalar_select %p1248, %s22, 1
      %p1250 = scmp.lt.s32.totalorder %s23, 3
      %s1251 = scalar_select %p1250, %s23, 3
      %s1252 = smul.addr %s1251, 5
      %s1253 = smul.addr %s1249, 20
      %s1254 = sadd.s32 %s1252, %s1253
      %s1255 = smul.addr %s1254, 4
      %s1256 = scalar_lea.vmem %s7, %s1255
      // Predicated region
      $region53: #{conv3dlstm_forward.9} parent=47 // pred_check
        %p1257 = pneg %p204
      $region54: #{conv3dlstm_forward.9} parent=47 // pred_check_branch
        %1259 = sbr.rel (%p1257) target = $region56
      $region55: #{conv3dlstm_forward.9} parent=47 // pred_region
        _
      $region56: #{conv3dlstm_forward.9} parent=47 // pred_fallthru
        _
    $region48: #{conv3dlstm_forward.9} parent=5 // pred_fallthru
      _
    %p1260 = scmp.le.s32.totalorder 2, %s13
    // Predicated region
    $region57: #{conv3dlstm_forward.9} parent=5 // pred_check
      %p1261 = pneg %p1260
    $region58: #{conv3dlstm_forward.9} parent=5 // pred_check_branch
      %1263 = sbr.rel (%p1261) target = $region60
    $region59: #{conv3dlstm_forward.9} parent=5 // pred_region
      %s1264 = ssub.s32 %s13, 2
      // Predicated region
      $region61: #{conv3dlstm_forward.9} parent=59 // pred_check
        %p1265 = pneg %p210
      $region62: #{conv3dlstm_forward.9} parent=59 // pred_check_branch
        %1267 = sbr.rel (%p1265) target = $region64
      $region63: #{conv3dlstm_forward.9} parent=59 // pred_region
        %p1268 = scmp.lt.s32.totalorder %s24, 1
        %s1269 = scalar_select %p1268, %s24, 1
        %p1270 = scmp.lt.s32.totalorder %s25, 3
        %s1271 = scalar_select %p1270, %s25, 3
        %s1272 = smul.addr %s1271, 5
        %s1273 = smul.addr %s1269, 20
        %s1274 = sadd.s32 %s1272, %s1273
        %s1275 = smul.addr %s1274, 4
        %s1276 = scalar_lea.vmem %s7, %s1275
      $region64: #{conv3dlstm_forward.9} parent=59 // pred_fallthru
        _
    $region60: #{conv3dlstm_forward.9} parent=5 // pred_fallthru
      _
  $region6: #{conv3dlstm_forward.9} parent=0 // loop_footer
    %s17 = sadd.s32 1, %s13
  $region7: #{conv3dlstm_forward.9} parent=0 // loop_footer_branch
    %12 = sbr.rel target = $region3
  $region8: #{conv3dlstm_forward.9} parent=0 // loop_exit
    _

// kernel: conv3dlstm_forward.12
$region0: #{conv3dlstm_forward.12}
  #allocation0 [shape = 'u32[]', space=smem, size = 0x4, offset = 0x4, fixed_abs, tag = 'smem constant byte address 0x4 - core index']
  #allocation1 [shape = 'u32[144,128]{1,0:T(1,128)}', space=vmem, size = 0x12000, scoped, tag = 'internal scratch']
  %s0 = inlined_call_operand.vmem [shape: bf16[8,128], index: 0, kind: input, shape index: {}]
  %s1 = inlined_call_operand.vmem [shape: bf16[128,1152], index: 1, kind: input, shape index: {}]
  %s2 = inlined_call_operand.vmem [shape: f32[1,1152], index: 2, kind: input, shape index: {}]
  %s3 = inlined_call_operand.vmem [shape: bf16[8,1152], index: 3, kind: output, shape index: {}]
  %s4 = sld [smem:[#allocation0]]
  $region22: #{conv3dlstm_forward.12} parent=0
    _
  %s6 = ssub.s32 1, %s4
  %s7 = scalar_select 0, %s6, %s4
  // Predicated region
  $region2: #{conv3dlstm_forward.12} parent=0 // pred_check
    _
  $region3: #{conv3dlstm_forward.12} parent=0 // pred_check_branch
    %9 = sbr.rel (0) target = $region5
  $region4: #{conv3dlstm_forward.12} parent=0 // pred_region
    _
  $region5: #{conv3dlstm_forward.12} parent=0 // pred_fallthru
    _
  // Predicated region
  $region6: #{conv3dlstm_forward.12} parent=0 // pred_check
    _
  $region7: #{conv3dlstm_forward.12} parent=0 // pred_check_branch
    %11 = sbr.rel (0) target = $region9
  $region8: #{conv3dlstm_forward.12} parent=0 // pred_region
    _
  $region9: #{conv3dlstm_forward.12} parent=0 // pred_fallthru
    _
  // Predicated region
  $region10: #{conv3dlstm_forward.12} parent=0 // pred_check
    _
  $region11: #{conv3dlstm_forward.12} parent=0 // pred_check_branch
    %13 = sbr.rel (0) target = $region13
  $region12: #{conv3dlstm_forward.12} parent=0 // pred_region
    _
  $region13: #{conv3dlstm_forward.12} parent=0 // pred_fallthru
    _
  %v15 = vld [vmem:[%s0] sm:$0xf]
  %v16 = vld [vmem:[%s1] sm:$0xff]
  %v17 = vld [vmem:[%s1 + $0x8] sm:$0xff]
  %v18 = vld [vmem:[%s1 + $0x10] sm:$0xff]
  %v19 = vld [vmem:[%s1 + $0x18] sm:$0xff]
  %v20 = vld [vmem:[%s1 + $0x20] sm:$0xf]
  %v21 = vld [vmem:[%s1 + $0x24] sm:$0xff]
  %v22 = vld [vmem:[%s1 + $0x2c] sm:$0xff]
  %v23 = vld [vmem:[%s1 + $0x34] sm:$0xff]
  %v24 = vld [vmem:[%s1 + $0x3c] sm:$0xff]
  %v25 = vld [vmem:[%s1 + $0x44] sm:$0xf]
  %v26 = vld [vmem:[%s1 + $0x48] sm:$0xff]
  %v27 = vld [vmem:[%s1 + $0x50] sm:$0xff]
  %v28 = vld [vmem:[%s1 + $0x58] sm:$0xff]
  %v29 = vld [vmem:[%s1 + $0x60] sm:$0xff]
  %v30 = vld [vmem:[%s1 + $0x68] sm:$0xf]
  %v31 = vld [vmem:[%s1 + $0x6c] sm:$0xff]
  %v32 = vld [vmem:[%s1 + $0x74] sm:$0xff]
  %v33 = vld [vmem:[%s1 + $0x7c] sm:$0xff]
  %v34 = vld [vmem:[%s1 + $0x84] sm:$0xff]
  %v35 = vld [vmem:[%s1 + $0x8c] sm:$0xf]
  %v36 = vld [vmem:[%s1 + $0x90] sm:$0xff]
  %v37 = vld [vmem:[%s1 + $0x98] sm:$0xff]
  %v38 = vld [vmem:[%s1 + $0xa0] sm:$0xff]
  %v39 = vld [vmem:[%s1 + $0xa8] sm:$0xff]
  %v40 = vld [vmem:[%s1 + $0xb0] sm:$0xf]
  %v41 = vld [vmem:[%s1 + $0xb4] sm:$0xff]
  %v42 = vld [vmem:[%s1 + $0xbc] sm:$0xff]
  %v43 = vld [vmem:[%s1 + $0xc4] sm:$0xff]
  %v44 = vld [vmem:[%s1 + $0xcc] sm:$0xff]
  %v45 = vld [vmem:[%s1 + $0xd4] sm:$0xf]
  %v46 = vld [vmem:[%s1 + $0xd8] sm:$0xff]
  %v47 = vld [vmem:[%s1 + $0xe0] sm:$0xff]
  %v48 = vld [vmem:[%s1 + $0xe8] sm:$0xff]
  %v49 = vld [vmem:[%s1 + $0xf0] sm:$0xff]
  %v50 = vld [vmem:[%s1 + $0xf8] sm:$0xf]
  %v51 = vld [vmem:[%s1 + $0xfc] sm:$0xff]
  %v52 = vld [vmem:[%s1 + $0x104] sm:$0xff]
  %v53 = vld [vmem:[%s1 + $0x10c] sm:$0xff]
  %v54 = vld [vmem:[%s1 + $0x114] sm:$0xff]
  %v55 = vld [vmem:[%s1 + $0x11c] sm:$0xf]
  %v56 = vld [vmem:[%s1 + $0x120] sm:$0xff]
  %v57 = vld [vmem:[%s1 + $0x128] sm:$0xff]
  %v58 = vld [vmem:[%s1 + $0x130] sm:$0xff]
  %v59 = vld [vmem:[%s1 + $0x138] sm:$0xff]
  %v60 = vld [vmem:[%s1 + $0x140] sm:$0xf]
  %v61 = vld [vmem:[%s1 + $0x144] sm:$0xff]
  %v62 = vld [vmem:[%s1 + $0x14c] sm:$0xff]
  %v63 = vld [vmem:[%s1 + $0x154] sm:$0xff]
  %v64 = vld [vmem:[%s1 + $0x15c] sm:$0xff]
  %v65 = vld [vmem:[%s1 + $0x164] sm:$0xf]
  %v66 = vld [vmem:[%s1 + $0x168] sm:$0xff]
  %v67 = vld [vmem:[%s1 + $0x170] sm:$0xff]
  %v68 = vld [vmem:[%s1 + $0x178] sm:$0xff]
  %v69 = vld [vmem:[%s1 + $0x180] sm:$0xff]
  %v70 = vld [vmem:[%s1 + $0x188] sm:$0xf]
  %v71 = vld [vmem:[%s1 + $0x18c] sm:$0xff]
  %v72 = vld [vmem:[%s1 + $0x194] sm:$0xff]
  %v73 = vld [vmem:[%s1 + $0x19c] sm:$0xff]
  %v74 = vld [vmem:[%s1 + $0x1a4] sm:$0xff]
  %v75 = vld [vmem:[%s1 + $0x1ac] sm:$0xf]
  %v76 = vld [vmem:[%s1 + $0x1b0] sm:$0xff]
  %v77 = vld [vmem:[%s1 + $0x1b8] sm:$0xff]
  %v78 = vld [vmem:[%s1 + $0x1c0] sm:$0xff]
  %v79 = vld [vmem:[%s1 + $0x1c8] sm:$0xff]
  %v80 = vld [vmem:[%s1 + $0x1d0] sm:$0xf]
  %v81 = vld [vmem:[%s1 + $0x1d4] sm:$0xff]
  %v82 = vld [vmem:[%s1 + $0x1dc] sm:$0xff]
  %v83 = vld [vmem:[%s1 + $0x1e4] sm:$0xff]
  %v84 = vld [vmem:[%s1 + $0x1ec] sm:$0xff]
  %v85 = vld [vmem:[%s1 + $0x1f4] sm:$0xf]
  %v86 = vld [vmem:[%s1 + $0x1f8] sm:$0xff]
  %v87 = vld [vmem:[%s1 + $0x200] sm:$0xff]
  %v88 = vld [vmem:[%s1 + $0x208] sm:$0xff]
  %v89 = vld [vmem:[%s1 + $0x210] sm:$0xff]
  %v90 = vld [vmem:[%s1 + $0x218] sm:$0xf]
  %v91 = vld [vmem:[%s1 + $0x21c] sm:$0xff]
  %v92 = vld [vmem:[%s1 + $0x224] sm:$0xff]
  %v93 = vld [vmem:[%s1 + $0x22c] sm:$0xff]
  %v94 = vld [vmem:[%s1 + $0x234] sm:$0xff]
  %v95 = vld [vmem:[%s1 + $0x23c] sm:$0xf]
  %v96 = vld [vmem:[%s2] sm:$0xff]
  %v97 = vld [vmem:[%s2 + $0x8] sm:$0x1]
  %v100 = vlaneseq
  %v101 = vshrl.u32 %v100, 7
  %v102 = vsub.s32 0, %v101
  %v103 = vrot.slane %v96, %v102
  %v104 = vlaneseq
  %v105 = vshrl.u32 %v104, 7
  %v106 = vsub.s32 1, %v105
  %v107 = vrot.slane %v96, %v106
  %v108 = vlaneseq
  %v109 = vshrl.u32 %v108, 7
  %v110 = vsub.s32 2, %v109
  %v111 = vrot.slane %v96, %v110
  %v112 = vlaneseq
  %v113 = vshrl.u32 %v112, 7
  %v114 = vsub.s32 3, %v113
  %v115 = vrot.slane %v96, %v114
  %v116 = vlaneseq
  %v117 = vshrl.u32 %v116, 7
  %v118 = vsub.s32 4, %v117
  %v119 = vrot.slane %v96, %v118
  %v120 = vlaneseq
  %v121 = vshrl.u32 %v120, 7
  %v122 = vsub.s32 5, %v121
  %v123 = vrot.slane %v96, %v122
  %v124 = vlaneseq
  %v125 = vshrl.u32 %v124, 7
  %v126 = vsub.s32 6, %v125
  %v127 = vrot.slane %v96, %v126
  %v128 = vlaneseq
  %v129 = vshrl.u32 %v128, 7
  %v130 = vsub.s32 7, %v129
  %v131 = vrot.slane %v96, %v130
  %v132 = vlaneseq
  %v133 = vshrl.u32 %v132, 7
  %v134 = vsub.s32 0, %v133
  %v135 = vrot.slane %v97, %v134
  %v225 = vunpack.c.l.b16 %v16
  %v226 = vunpack.c.h.b16 %v16
  %v227 = vunpack.c.l.b16 %v17
  %v228 = vunpack.c.h.b16 %v17
  %v229 = vunpack.c.l.b16 %v18
  %v230 = vunpack.c.h.b16 %v18
  %v231 = vunpack.c.l.b16 %v19
  %v232 = vunpack.c.h.b16 %v19
  %v233 = vunpack.c.l.b16 %v20
  %v234 = vunpack.c.l.b16 %v21
  %v235 = vunpack.c.h.b16 %v21
  %v236 = vunpack.c.l.b16 %v22
  %v237 = vunpack.c.h.b16 %v22
  %v238 = vunpack.c.l.b16 %v23
  %v239 = vunpack.c.h.b16 %v23
  %v240 = vunpack.c.l.b16 %v24
  %v241 = vunpack.c.h.b16 %v24
  %v242 = vunpack.c.l.b16 %v25
  %v243 = vunpack.c.l.b16 %v26
  %v244 = vunpack.c.h.b16 %v26
  %v245 = vunpack.c.l.b16 %v27
  %v246 = vunpack.c.h.b16 %v27
  %v247 = vunpack.c.l.b16 %v28
  %v248 = vunpack.c.h.b16 %v28
  %v249 = vunpack.c.l.b16 %v29
  %v250 = vunpack.c.h.b16 %v29
  %v251 = vunpack.c.l.b16 %v30
  %v252 = vunpack.c.l.b16 %v31
  %v253 = vunpack.c.h.b16 %v31
  %v254 = vunpack.c.l.b16 %v32
  %v255 = vunpack.c.h.b16 %v32
  %v256 = vunpack.c.l.b16 %v33
  %v257 = vunpack.c.h.b16 %v33
  %v258 = vunpack.c.l.b16 %v34
  %v259 = vunpack.c.h.b16 %v34
  %v260 = vunpack.c.l.b16 %v35
  %v261 = vunpack.c.l.b16 %v36
  %v262 = vunpack.c.h.b16 %v36
  %v263 = vunpack.c.l.b16 %v37
  %v264 = vunpack.c.h.b16 %v37
  %v265 = vunpack.c.l.b16 %v38
  %v266 = vunpack.c.h.b16 %v38
  %v267 = vunpack.c.l.b16 %v39
  %v268 = vunpack.c.h.b16 %v39
  %v269 = vunpack.c.l.b16 %v40
  %v270 = vunpack.c.l.b16 %v41
  %v271 = vunpack.c.h.b16 %v41
  %v272 = vunpack.c.l.b16 %v42
  %v273 = vunpack.c.h.b16 %v42
  %v274 = vunpack.c.l.b16 %v43
  %v275 = vunpack.c.h.b16 %v43
  %v276 = vunpack.c.l.b16 %v44
  %v277 = vunpack.c.h.b16 %v44
  %v278 = vunpack.c.l.b16 %v45
  %v279 = vunpack.c.l.b16 %v46
  %v280 = vunpack.c.h.b16 %v46
  %v281 = vunpack.c.l.b16 %v47
  %v282 = vunpack.c.h.b16 %v47
  %v283 = vunpack.c.l.b16 %v48
  %v284 = vunpack.c.h.b16 %v48
  %v285 = vunpack.c.l.b16 %v49
  %v286 = vunpack.c.h.b16 %v49
  %v287 = vunpack.c.l.b16 %v50
  %v288 = vunpack.c.l.b16 %v51
  %v289 = vunpack.c.h.b16 %v51
  %v290 = vunpack.c.l.b16 %v52
  %v291 = vunpack.c.h.b16 %v52
  %v292 = vunpack.c.l.b16 %v53
  %v293 = vunpack.c.h.b16 %v53
  %v294 = vunpack.c.l.b16 %v54
  %v295 = vunpack.c.h.b16 %v54
  %v296 = vunpack.c.l.b16 %v55
  %v297 = vunpack.c.l.b16 %v56
  %v298 = vunpack.c.h.b16 %v56
  %v299 = vunpack.c.l.b16 %v57
  %v300 = vunpack.c.h.b16 %v57
  %v301 = vunpack.c.l.b16 %v58
  %v302 = vunpack.c.h.b16 %v58
  %v303 = vunpack.c.l.b16 %v59
  %v304 = vunpack.c.h.b16 %v59
  %v305 = vunpack.c.l.b16 %v60
  %v306 = vunpack.c.l.b16 %v61
  %v307 = vunpack.c.h.b16 %v61
  %v308 = vunpack.c.l.b16 %v62
  %v309 = vunpack.c.h.b16 %v62
  %v310 = vunpack.c.l.b16 %v63
  %v311 = vunpack.c.h.b16 %v63
  %v312 = vunpack.c.l.b16 %v64
  %v313 = vunpack.c.h.b16 %v64
  %v314 = vunpack.c.l.b16 %v65
  %v315 = vunpack.c.l.b16 %v66
  %v316 = vunpack.c.h.b16 %v66
  %v317 = vunpack.c.l.b16 %v67
  %v318 = vunpack.c.h.b16 %v67
  %v319 = vunpack.c.l.b16 %v68
  %v320 = vunpack.c.h.b16 %v68
  %v321 = vunpack.c.l.b16 %v69
  %v322 = vunpack.c.h.b16 %v69
  %v323 = vunpack.c.l.b16 %v70
  %v324 = vunpack.c.l.b16 %v71
  %v325 = vunpack.c.h.b16 %v71
  %v326 = vunpack.c.l.b16 %v72
  %v327 = vunpack.c.h.b16 %v72
  %v328 = vunpack.c.l.b16 %v73
  %v329 = vunpack.c.h.b16 %v73
  %v330 = vunpack.c.l.b16 %v74
  %v331 = vunpack.c.h.b16 %v74
  %v332 = vunpack.c.l.b16 %v75
  %v333 = vunpack.c.l.b16 %v76
  %v334 = vunpack.c.h.b16 %v76
  %v335 = vunpack.c.l.b16 %v77
  %v336 = vunpack.c.h.b16 %v77
  %v337 = vunpack.c.l.b16 %v78
  %v338 = vunpack.c.h.b16 %v78
  %v339 = vunpack.c.l.b16 %v79
  %v340 = vunpack.c.h.b16 %v79
  %v341 = vunpack.c.l.b16 %v80
  %v342 = vunpack.c.l.b16 %v81
  %v343 = vunpack.c.h.b16 %v81
  %v344 = vunpack.c.l.b16 %v82
  %v345 = vunpack.c.h.b16 %v82
  %v346 = vunpack.c.l.b16 %v83
  %v347 = vunpack.c.h.b16 %v83
  %v348 = vunpack.c.l.b16 %v84
  %v349 = vunpack.c.h.b16 %v84
  %v350 = vunpack.c.l.b16 %v85
  %v351 = vunpack.c.l.b16 %v86
  %v352 = vunpack.c.h.b16 %v86
  %v353 = vunpack.c.l.b16 %v87
  %v354 = vunpack.c.h.b16 %v87
  %v355 = vunpack.c.l.b16 %v88
  %v356 = vunpack.c.h.b16 %v88
  %v357 = vunpack.c.l.b16 %v89
  %v358 = vunpack.c.h.b16 %v89
  %v359 = vunpack.c.l.b16 %v90
  %v360 = vunpack.c.l.b16 %v91
  %v361 = vunpack.c.h.b16 %v91
  %v362 = vunpack.c.l.b16 %v92
  %v363 = vunpack.c.h.b16 %v92
  %v364 = vunpack.c.l.b16 %v93
  %v365 = vunpack.c.h.b16 %v93
  %v366 = vunpack.c.l.b16 %v94
  %v367 = vunpack.c.h.b16 %v94
  %v368 = vunpack.c.l.b16 %v95
  %v369 = vpack.c.b16 %v234, %v225
  %v370 = vpack.c.b16 %v235, %v226
  %v371 = vpack.c.b16 %v236, %v227
  %v372 = vpack.c.b16 %v237, %v228
  %v373 = vpack.c.b16 %v238, %v229
  %v374 = vpack.c.b16 %v239, %v230
  %v375 = vpack.c.b16 %v240, %v231
  %v376 = vpack.c.b16 %v241, %v232
  %v377 = vpack.c.b16 %v242, %v233
  %v378 = vpack.c.b16 %v252, %v243
  %v379 = vpack.c.b16 %v253, %v244
  %v380 = vpack.c.b16 %v254, %v245
  %v381 = vpack.c.b16 %v255, %v246
  %v382 = vpack.c.b16 %v256, %v247
  %v383 = vpack.c.b16 %v257, %v248
  %v384 = vpack.c.b16 %v258, %v249
  %v385 = vpack.c.b16 %v259, %v250
  %v386 = vpack.c.b16 %v260, %v251
  %v387 = vpack.c.b16 %v270, %v261
  %v388 = vpack.c.b16 %v271, %v262
  %v389 = vpack.c.b16 %v272, %v263
  %v390 = vpack.c.b16 %v273, %v264
  %v391 = vpack.c.b16 %v274, %v265
  %v392 = vpack.c.b16 %v275, %v266
  %v393 = vpack.c.b16 %v276, %v267
  %v394 = vpack.c.b16 %v277, %v268
  %v395 = vpack.c.b16 %v278, %v269
  %v396 = vpack.c.b16 %v288, %v279
  %v397 = vpack.c.b16 %v289, %v280
  %v398 = vpack.c.b16 %v290, %v281
  %v399 = vpack.c.b16 %v291, %v282
  %v400 = vpack.c.b16 %v292, %v283
  %v401 = vpack.c.b16 %v293, %v284
  %v402 = vpack.c.b16 %v294, %v285
  %v403 = vpack.c.b16 %v295, %v286
  %v404 = vpack.c.b16 %v296, %v287
  %v405 = vpack.c.b16 %v306, %v297
  %v406 = vpack.c.b16 %v307, %v298
  %v407 = vpack.c.b16 %v308, %v299
  %v408 = vpack.c.b16 %v309, %v300
  %v409 = vpack.c.b16 %v310, %v301
  %v410 = vpack.c.b16 %v311, %v302
  %v411 = vpack.c.b16 %v312, %v303
  %v412 = vpack.c.b16 %v313, %v304
  %v413 = vpack.c.b16 %v314, %v305
  %v414 = vpack.c.b16 %v324, %v315
  %v415 = vpack.c.b16 %v325, %v316
  %v416 = vpack.c.b16 %v326, %v317
  %v417 = vpack.c.b16 %v327, %v318
  %v418 = vpack.c.b16 %v328, %v319
  %v419 = vpack.c.b16 %v329, %v320
  %v420 = vpack.c.b16 %v330, %v321
  %v421 = vpack.c.b16 %v331, %v322
  %v422 = vpack.c.b16 %v332, %v323
  %v423 = vpack.c.b16 %v342, %v333
  %v424 = vpack.c.b16 %v343, %v334
  %v425 = vpack.c.b16 %v344, %v335
  %v426 = vpack.c.b16 %v345, %v336
  %v427 = vpack.c.b16 %v346, %v337
  %v428 = vpack.c.b16 %v347, %v338
  %v429 = vpack.c.b16 %v348, %v339
  %v430 = vpack.c.b16 %v349, %v340
  %v431 = vpack.c.b16 %v350, %v341
  %v432 = vpack.c.b16 %v360, %v351
  %v433 = vpack.c.b16 %v361, %v352
  %v434 = vpack.c.b16 %v362, %v353
  %v435 = vpack.c.b16 %v363, %v354
  %v436 = vpack.c.b16 %v364, %v355
  %v437 = vpack.c.b16 %v365, %v356
  %v438 = vpack.c.b16 %v366, %v357
  %v439 = vpack.c.b16 %v367, %v358
  %v440 = vpack.c.b16 %v368, %v359
  %513 = vmatprep.subr.bf16.mxu0 %v370
  %514 = vmatpush1.bf16.msra.mxu0 %v369
  %515 = vmatprep.subr.bf16.mxu0 %v379
  %516 = vmatpush1.bf16.msra.mxu0 %v378
  %517 = vmatprep.subr.bf16.mxu0 %v388
  %518 = vmatpush1.bf16.msra.mxu0 %v387
  %519 = vmatprep.subr.bf16.mxu0 %v397
  %520 = vmatpush1.bf16.msra.mxu0 %v396
  %521 = vmatprep.subr.bf16.mxu0 %v406
  %522 = vmatpush1.bf16.msra.mxu0 %v405
  %523 = vmatprep.subr.bf16.mxu0 %v415
  %524 = vmatpush1.bf16.msra.mxu0 %v414
  %525 = vmatprep.subr.bf16.mxu0 %v424
  %526 = vmatpush1.bf16.msra.mxu0 %v423
  %527 = vmatprep.subr.bf16.mxu0 %v433
  %528 = vmatpush1.bf16.msra.mxu0 %v432
  %529 = vmatprep.subr.bf16.mxu0 0
  %530 = vmatpush1.bf16.msra.mxu0 0
  %531 = vmatprep.subr.bf16.mxu0 0
  %532 = vmatpush1.bf16.msra.mxu0 0
  %533 = vmatprep.subr.bf16.mxu0 0
  %534 = vmatpush1.bf16.msra.mxu0 0
  %535 = vmatprep.subr.bf16.mxu0 0
  %536 = vmatpush1.bf16.msra.mxu0 0
  %537 = vmatprep.subr.bf16.mxu0 0
  %538 = vmatpush1.bf16.msra.mxu0 0
  %539 = vmatprep.subr.bf16.mxu0 0
  %540 = vmatpush1.bf16.msra.mxu0 0
  %541 = vmatprep.subr.bf16.mxu0 0
  %542 = vmatpush1.bf16.msra.mxu0 0
  %543 = vmatprep.subr.bf16.mxu0 0
  %544 = vmatpush1.bf16.msra.mxu0 0
  %545 = vmatprep.mubr.bf16.mxu0 0
  %546 = vmatmul.mubr.bf16.gmra.mrb[0].mxu0 %v15
  %v547 = vpop.f32.mrb[0].mxu0
  %v548 = vadd.f32 %v103, %v547
  %v549 = vpop.f32.mrb[0].mxu0
  %v550 = vadd.f32 %v107, %v549
  %v551 = vpop.f32.mrb[0].mxu0
  %v552 = vpop.f32.mrb[0].mxu0
  %553 = vdwg.mxu0
  %554 = vmatprep.subr.bf16.mxu0 %v372
  %555 = vmatpush1.bf16.msra.mxu0 %v371
  %556 = vmatprep.subr.bf16.mxu0 %v381
  %557 = vmatpush1.bf16.msra.mxu0 %v380
  %558 = vmatprep.subr.bf16.mxu0 %v390
  %559 = vmatpush1.bf16.msra.mxu0 %v389
  %560 = vmatprep.subr.bf16.mxu0 %v399
  %561 = vmatpush1.bf16.msra.mxu0 %v398
  %562 = vmatprep.subr.bf16.mxu0 %v408
  %563 = vmatpush1.bf16.msra.mxu0 %v407
  %564 = vmatprep.subr.bf16.mxu0 %v417
  %565 = vmatpush1.bf16.msra.mxu0 %v416
  %566 = vmatprep.subr.bf16.mxu0 %v426
  %567 = vmatpush1.bf16.msra.mxu0 %v425
  %568 = vmatprep.subr.bf16.mxu0 %v435
  %569 = vmatpush1.bf16.msra.mxu0 %v434
  %570 = vmatprep.subr.bf16.mxu0 0
  %571 = vmatpush1.bf16.msra.mxu0 0
  %572 = vmatprep.subr.bf16.mxu0 0
  %573 = vmatpush1.bf16.msra.mxu0 0
  %574 = vmatprep.subr.bf16.mxu0 0
  %575 = vmatpush1.bf16.msra.mxu0 0
  %576 = vmatprep.subr.bf16.mxu0 0
  %577 = vmatpush1.bf16.msra.mxu0 0
  %578 = vmatprep.subr.bf16.mxu0 0
  %579 = vmatpush1.bf16.msra.mxu0 0
  %580 = vmatprep.subr.bf16.mxu0 0
  %581 = vmatpush1.bf16.msra.mxu0 0
  %582 = vmatprep.subr.bf16.mxu0 0
  %583 = vmatpush1.bf16.msra.mxu0 0
  %584 = vmatprep.subr.bf16.mxu0 0
  %585 = vmatpush1.bf16.msra.mxu0 0
  %586 = vmatprep.mubr.bf16.mxu0 0
  %587 = vmatmul.mubr.bf16.gmra.mrb[0].mxu0 %v15
  %v588 = vpop.f32.mrb[0].mxu0
  %v589 = vadd.f32 %v111, %v588
  %v590 = vpop.f32.mrb[0].mxu0
  %v591 = vadd.f32 %v115, %v590
  %v592 = vpop.f32.mrb[0].mxu0
  %v593 = vpop.f32.mrb[0].mxu0
  %594 = vdwg.mxu0
  %595 = vmatprep.subr.bf16.mxu0 %v374
  %596 = vmatpush1.bf16.msra.mxu0 %v373
  %597 = vmatprep.subr.bf16.mxu0 %v383
  %598 = vmatpush1.bf16.msra.mxu0 %v382
  %599 = vmatprep.subr.bf16.mxu0 %v392
  %600 = vmatpush1.bf16.msra.mxu0 %v391
  %601 = vmatprep.subr.bf16.mxu0 %v401
  %602 = vmatpush1.bf16.msra.mxu0 %v400
  %603 = vmatprep.subr.bf16.mxu0 %v410
  %604 = vmatpush1.bf16.msra.mxu0 %v409
  %605 = vmatprep.subr.bf16.mxu0 %v419
  %606 = vmatpush1.bf16.msra.mxu0 %v418
  %607 = vmatprep.subr.bf16.mxu0 %v428
  %608 = vmatpush1.bf16.msra.mxu0 %v427
  %609 = vmatprep.subr.bf16.mxu0 %v437
  %610 = vmatpush1.bf16.msra.mxu0 %v436
  %611 = vmatprep.subr.bf16.mxu0 0
  %612 = vmatpush1.bf16.msra.mxu0 0
  %613 = vmatprep.subr.bf16.mxu0 0
  %614 = vmatpush1.bf16.msra.mxu0 0
  %615 = vmatprep.subr.bf16.mxu0 0
  %616 = vmatpush1.bf16.msra.mxu0 0
  %617 = vmatprep.subr.bf16.mxu0 0
  %618 = vmatpush1.bf16.msra.mxu0 0
  %619 = vmatprep.subr.bf16.mxu0 0
  %620 = vmatpush1.bf16.msra.mxu0 0
  %621 = vmatprep.subr.bf16.mxu0 0
  %622 = vmatpush1.bf16.msra.mxu0 0
  %623 = vmatprep.subr.bf16.mxu0 0
  %624 = vmatpush1.bf16.msra.mxu0 0
  %625 = vmatprep.subr.bf16.mxu0 0
  %626 = vmatpush1.bf16.msra.mxu0 0
  %627 = vmatprep.mubr.bf16.mxu0 0
  %628 = vmatmul.mubr.bf16.gmra.mrb[0].mxu0 %v15
  %v629 = vpop.f32.mrb[0].mxu0
  %v630 = vadd.f32 %v119, %v629
  %v631 = vpop.f32.mrb[0].mxu0
  %v632 = vadd.f32 %v123, %v631
  %v633 = vpop.f32.mrb[0].mxu0
  %v634 = vpop.f32.mrb[0].mxu0
  %635 = vdwg.mxu0
  %636 = vmatprep.subr.bf16.mxu0 %v376
  %637 = vmatpush1.bf16.msra.mxu0 %v375
  %638 = vmatprep.subr.bf16.mxu0 %v385
  %639 = vmatpush1.bf16.msra.mxu0 %v384
  %640 = vmatprep.subr.bf16.mxu0 %v394
  %641 = vmatpush1.bf16.msra.mxu0 %v393
  %642 = vmatprep.subr.bf16.mxu0 %v403
  %643 = vmatpush1.bf16.msra.mxu0 %v402
  %644 = vmatprep.subr.bf16.mxu0 %v412
  %645 = vmatpush1.bf16.msra.mxu0 %v411
  %646 = vmatprep.subr.bf16.mxu0 %v421
  %647 = vmatpush1.bf16.msra.mxu0 %v420
  %648 = vmatprep.subr.bf16.mxu0 %v430
  %649 = vmatpush1.bf16.msra.mxu0 %v429
  %650 = vmatprep.subr.bf16.mxu0 %v439
  %651 = vmatpush1.bf16.msra.mxu0 %v438
  %652 = vmatprep.subr.bf16.mxu0 0
  %653 = vmatpush1.bf16.msra.mxu0 0
  %654 = vmatprep.subr.bf16.mxu0 0
  %655 = vmatpush1.bf16.msra.mxu0 0
  %656 = vmatprep.subr.bf16.mxu0 0
  %657 = vmatpush1.bf16.msra.mxu0 0
  %658 = vmatprep.subr.bf16.mxu0 0
  %659 = vmatpush1.bf16.msra.mxu0 0
  %660 = vmatprep.subr.bf16.mxu0 0
  %661 = vmatpush1.bf16.msra.mxu0 0
  %662 = vmatprep.subr.bf16.mxu0 0
  %663 = vmatpush1.bf16.msra.mxu0 0
  %664 = vmatprep.subr.bf16.mxu0 0
  %665 = vmatpush1.bf16.msra.mxu0 0
  %666 = vmatprep.subr.bf16.mxu0 0
  %667 = vmatpush1.bf16.msra.mxu0 0
  %668 = vmatprep.mubr.bf16.mxu0 0
  %669 = vmatmul.mubr.bf16.gmra.mrb[0].mxu0 %v15
  %v670 = vpop.f32.mrb[0].mxu0
  %v671 = vadd.f32 %v127, %v670
  %v672 = vpop.f32.mrb[0].mxu0
  %v673 = vadd.f32 %v131, %v672
  %v674 = vpop.f32.mrb[0].mxu0
  %v675 = vpop.f32.mrb[0].mxu0
  %676 = vdwg.mxu0
  %677 = vmatprep.subr.bf16.mxu0 0
  %678 = vmatpush1.bf16.msra.mxu0 %v377
  %679 = vmatprep.subr.bf16.mxu0 0
  %680 = vmatpush1.bf16.msra.mxu0 %v386
  %681 = vmatprep.subr.bf16.mxu0 0
  %682 = vmatpush1.bf16.msra.mxu0 %v395
  %683 = vmatprep.subr.bf16.mxu0 0
  %684 = vmatpush1.bf16.msra.mxu0 %v404
  %685 = vmatprep.subr.bf16.mxu0 0
  %686 = vmatpush1.bf16.msra.mxu0 %v413
  %687 = vmatprep.subr.bf16.mxu0 0
  %688 = vmatpush1.bf16.msra.mxu0 %v422
  %689 = vmatprep.subr.bf16.mxu0 0
  %690 = vmatpush1.bf16.msra.mxu0 %v431
  %691 = vmatprep.subr.bf16.mxu0 0
  %692 = vmatpush1.bf16.msra.mxu0 %v440
  %693 = vmatprep.subr.bf16.mxu0 0
  %694 = vmatpush1.bf16.msra.mxu0 0
  %695 = vmatprep.subr.bf16.mxu0 0
  %696 = vmatpush1.bf16.msra.mxu0 0
  %697 = vmatprep.subr.bf16.mxu0 0
  %698 = vmatpush1.bf16.msra.mxu0 0
  %699 = vmatprep.subr.bf16.mxu0 0
  %700 = vmatpush1.bf16.msra.mxu0 0
  %701 = vmatprep.subr.bf16.mxu0 0
  %702 = vmatpush1.bf16.msra.mxu0 0
  %703 = vmatprep.subr.bf16.mxu0 0
  %704 = vmatpush1.bf16.msra.mxu0 0
  %705 = vmatprep.subr.bf16.mxu0 0
  %706 = vmatpush1.bf16.msra.mxu0 0
  %707 = vmatprep.subr.bf16.mxu0 0
  %708 = vmatpush1.bf16.msra.mxu0 0
  %709 = vmatprep.mubr.bf16.mxu0 0
  %710 = vmatmul.mubr.bf16.gmra.mrb[0].mxu0 %v15
  %v711 = vpop.f32.mrb[0].mxu0
  %v712 = vadd.f32 %v135, %v711
  %v713 = vpop.f32.mrb[0].mxu0
  %v714 = vpop.f32.mrb[0].mxu0
  %v715 = vpop.f32.mrb[0].mxu0
  %716 = vdwg.mxu0
  %v717 = vpack.c.bf16 %v548, %v548
  %v718 = vpack.c.bf16 %v550, %v550
  %v719 = vpack.c.bf16 %v589, %v589
  %v720 = vpack.c.bf16 %v591, %v591
  %v721 = vpack.c.bf16 %v630, %v630
  %v722 = vpack.c.bf16 %v632, %v632
  %v723 = vpack.c.bf16 %v671, %v671
  %v724 = vpack.c.bf16 %v673, %v673
  %v725 = vpack.c.bf16 %v712, %v712
  %v735 = vunpack.c.l.b16 %v717
  %v736 = vunpack.c.l.b16 %v718
  %v737 = vunpack.c.l.b16 %v719
  %v738 = vunpack.c.l.b16 %v720
  %v739 = vunpack.c.l.b16 %v721
  %v740 = vunpack.c.l.b16 %v722
  %v741 = vunpack.c.l.b16 %v723
  %v742 = vunpack.c.l.b16 %v724
  %v743 = vunpack.c.l.b16 %v725
  %v744 = vpack.c.b16 %v736, %v735
  %v745 = vpack.c.b16 %v738, %v737
  %v746 = vpack.c.b16 %v740, %v739
  %v747 = vpack.c.b16 %v742, %v741
  %v748 = vpack.c.b16 %v743, %v743
  %754 = vst [vmem:[%s3] sm:$0xff] %v744
  %755 = vst [vmem:[%s3 + $0x8] sm:$0xff] %v745
  %756 = vst [vmem:[%s3 + $0x10] sm:$0xff] %v746
  %757 = vst [vmem:[%s3 + $0x18] sm:$0xff] %v747
  %758 = vst [vmem:[%s3 + $0x20] sm:$0xf] %v748
  // Predicated region
  $region14: #{conv3dlstm_forward.12} parent=0 // pred_check
    _
  $region15: #{conv3dlstm_forward.12} parent=0 // pred_check_branch
    %760 = sbr.rel (0) target = $region17
  $region16: #{conv3dlstm_forward.12} parent=0 // pred_region
    _
  $region17: #{conv3dlstm_forward.12} parent=0 // pred_fallthru
    _
  // Predicated region
  $region18: #{conv3dlstm_forward.12} parent=0 // pred_check
    _
  $region19: #{conv3dlstm_forward.12} parent=0 // pred_check_branch
    %762 = sbr.rel (0) target = $region21
  $region20: #{conv3dlstm_forward.12} parent=0 // pred_region
    _
  $region21: #{conv3dlstm_forward.12} parent=0 // pred_fallthru
    _

// kernel: conv3dlstm_forward.14
$region0: #{conv3dlstm_forward.14}
  #allocation0 [shape = 'u32[]', space=smem, size = 0x4, offset = 0x4, fixed_abs, tag = 'smem constant byte address 0x4 - core index']
  #allocation1 [shape = 'u32[144,128]{1,0:T(1,128)}', space=vmem, size = 0x12000, scoped, tag = 'internal scratch']
  %s0 = inlined_call_operand.vmem [shape: bf16[72,128], index: 0, kind: input, shape index: {}]
  %s1 = inlined_call_operand.vmem [shape: bf16[128,512], index: 1, kind: input, shape index: {}]
  %s2 = inlined_call_operand.vmem [shape: f32[1,512], index: 2, kind: input, shape index: {}]
  %s3 = inlined_call_operand.vmem [shape: bf16[72,512], index: 3, kind: output, shape index: {}]
  %s4 = sld [smem:[#allocation0]]
  $region22: #{conv3dlstm_forward.14} parent=0
    _
  %s6 = ssub.s32 1, %s4
  %s7 = scalar_select 0, %s6, %s4
  // Predicated region
  $region2: #{conv3dlstm_forward.14} parent=0 // pred_check
    _
  $region3: #{conv3dlstm_forward.14} parent=0 // pred_check_branch
    %9 = sbr.rel (0) target = $region5
  $region4: #{conv3dlstm_forward.14} parent=0 // pred_region
    _
  $region5: #{conv3dlstm_forward.14} parent=0 // pred_fallthru
    _
  // Predicated region
  $region6: #{conv3dlstm_forward.14} parent=0 // pred_check
    _
  $region7: #{conv3dlstm_forward.14} parent=0 // pred_check_branch
    %11 = sbr.rel (0) target = $region9
  $region8: #{conv3dlstm_forward.14} parent=0 // pred_region
    _
  $region9: #{conv3dlstm_forward.14} parent=0 // pred_fallthru
    _
  // Predicated region
  $region10: #{conv3dlstm_forward.14} parent=0 // pred_check
    _
  $region11: #{conv3dlstm_forward.14} parent=0 // pred_check_branch
    %13 = sbr.rel (0) target = $region13
  $region12: #{conv3dlstm_forward.14} parent=0 // pred_region
    _
  $region13: #{conv3dlstm_forward.14} parent=0 // pred_fallthru
    _
  %v15 = vld [vmem:[%s0] sm:$0xf]
  %v16 = vld [vmem:[%s0 + $0x4] sm:$0xf]
  %v17 = vld [vmem:[%s0 + $0x8] sm:$0xf]
  %v18 = vld [vmem:[%s0 + $0xc] sm:$0xf]
  %v19 = vld [vmem:[%s0 + $0x10] sm:$0xf]
  %v20 = vld [vmem:[%s0 + $0x14] sm:$0xf]
  %v21 = vld [vmem:[%s0 + $0x18] sm:$0xf]
  %v22 = vld [vmem:[%s0 + $0x1c] sm:$0xf]
  %v23 = vld [vmem:[%s0 + $0x20] sm:$0xf]
  %v24 = vld [vmem:[%s1] sm:$0xff]
  %v25 = vld [vmem:[%s1 + $0x8] sm:$0xff]
  %v26 = vld [vmem:[%s1 + $0x10] sm:$0xff]
  %v27 = vld [vmem:[%s1 + $0x18] sm:$0xff]
  %v28 = vld [vmem:[%s1 + $0x20] sm:$0xff]
  %v29 = vld [vmem:[%s1 + $0x28] sm:$0xff]
  %v30 = vld [vmem:[%s1 + $0x30] sm:$0xff]
  %v31 = vld [vmem:[%s1 + $0x38] sm:$0xff]
  %v32 = vld [vmem:[%s1 + $0x40] sm:$0xff]
  %v33 = vld [vmem:[%s1 + $0x48] sm:$0xff]
  %v34 = vld [vmem:[%s1 + $0x50] sm:$0xff]
  %v35 = vld [vmem:[%s1 + $0x58] sm:$0xff]
  %v36 = vld [vmem:[%s1 + $0x60] sm:$0xff]
  %v37 = vld [vmem:[%s1 + $0x68] sm:$0xff]
  %v38 = vld [vmem:[%s1 + $0x70] sm:$0xff]
  %v39 = vld [vmem:[%s1 + $0x78] sm:$0xff]
  %v40 = vld [vmem:[%s1 + $0x80] sm:$0xff]
  %v41 = vld [vmem:[%s1 + $0x88] sm:$0xff]
  %v42 = vld [vmem:[%s1 + $0x90] sm:$0xff]
  %v43 = vld [vmem:[%s1 + $0x98] sm:$0xff]
  %v44 = vld [vmem:[%s1 + $0xa0] sm:$0xff]
  %v45 = vld [vmem:[%s1 + $0xa8] sm:$0xff]
  %v46 = vld [vmem:[%s1 + $0xb0] sm:$0xff]
  %v47 = vld [vmem:[%s1 + $0xb8] sm:$0xff]
  %v48 = vld [vmem:[%s1 + $0xc0] sm:$0xff]
  %v49 = vld [vmem:[%s1 + $0xc8] sm:$0xff]
  %v50 = vld [vmem:[%s1 + $0xd0] sm:$0xff]
  %v51 = vld [vmem:[%s1 + $0xd8] sm:$0xff]
  %v52 = vld [vmem:[%s1 + $0xe0] sm:$0xff]
  %v53 = vld [vmem:[%s1 + $0xe8] sm:$0xff]
  %v54 = vld [vmem:[%s1 + $0xf0] sm:$0xff]
  %v55 = vld [vmem:[%s1 + $0xf8] sm:$0xff]
  %v56 = vld [vmem:[%s2] sm:$0xf]
  %v58 = vlaneseq
  %v59 = vshrl.u32 %v58, 7
  %v60 = vsub.s32 0, %v59
  %v61 = vrot.slane %v56, %v60
  %v62 = vlaneseq
  %v63 = vshrl.u32 %v62, 7
  %v64 = vsub.s32 1, %v63
  %v65 = vrot.slane %v56, %v64
  %v66 = vlaneseq
  %v67 = vshrl.u32 %v66, 7
  %v68 = vsub.s32 2, %v67
  %v69 = vrot.slane %v56, %v68
  %v70 = vlaneseq
  %v71 = vshrl.u32 %v70, 7
  %v72 = vsub.s32 3, %v71
  %v73 = vrot.slane %v56, %v72
  %v87 = vunpack.c.l.b16 %v15
  %v88 = vunpack.c.l.b16 %v16
  %v89 = vunpack.c.l.b16 %v17
  %v90 = vunpack.c.l.b16 %v18
  %v91 = vunpack.c.l.b16 %v19
  %v92 = vunpack.c.l.b16 %v20
  %v93 = vunpack.c.l.b16 %v21
  %v94 = vunpack.c.l.b16 %v22
  %v95 = vunpack.c.l.b16 %v23
  %v96 = vpack.c.b16 %v88, %v87
  %v97 = vpack.c.b16 %v90, %v89
  %v98 = vpack.c.b16 %v92, %v91
  %v99 = vpack.c.b16 %v94, %v93
  %v100 = vpack.c.b16 %v95, %v95
  %v138 = vunpack.c.l.b16 %v24
  %v139 = vunpack.c.h.b16 %v24
  %v140 = vunpack.c.l.b16 %v25
  %v141 = vunpack.c.h.b16 %v25
  %v142 = vunpack.c.l.b16 %v26
  %v143 = vunpack.c.h.b16 %v26
  %v144 = vunpack.c.l.b16 %v27
  %v145 = vunpack.c.h.b16 %v27
  %v146 = vunpack.c.l.b16 %v28
  %v147 = vunpack.c.h.b16 %v28
  %v148 = vunpack.c.l.b16 %v29
  %v149 = vunpack.c.h.b16 %v29
  %v150 = vunpack.c.l.b16 %v30
  %v151 = vunpack.c.h.b16 %v30
  %v152 = vunpack.c.l.b16 %v31
  %v153 = vunpack.c.h.b16 %v31
  %v154 = vunpack.c.l.b16 %v32
  %v155 = vunpack.c.h.b16 %v32
  %v156 = vunpack.c.l.b16 %v33
  %v157 = vunpack.c.h.b16 %v33
  %v158 = vunpack.c.l.b16 %v34
  %v159 = vunpack.c.h.b16 %v34
  %v160 = vunpack.c.l.b16 %v35
  %v161 = vunpack.c.h.b16 %v35
  %v162 = vunpack.c.l.b16 %v36
  %v163 = vunpack.c.h.b16 %v36
  %v164 = vunpack.c.l.b16 %v37
  %v165 = vunpack.c.h.b16 %v37
  %v166 = vunpack.c.l.b16 %v38
  %v167 = vunpack.c.h.b16 %v38
  %v168 = vunpack.c.l.b16 %v39
  %v169 = vunpack.c.h.b16 %v39
  %v170 = vunpack.c.l.b16 %v40
  %v171 = vunpack.c.h.b16 %v40
  %v172 = vunpack.c.l.b16 %v41
  %v173 = vunpack.c.h.b16 %v41
  %v174 = vunpack.c.l.b16 %v42
  %v175 = vunpack.c.h.b16 %v42
  %v176 = vunpack.c.l.b16 %v43
  %v177 = vunpack.c.h.b16 %v43
  %v178 = vunpack.c.l.b16 %v44
  %v179 = vunpack.c.h.b16 %v44
  %v180 = vunpack.c.l.b16 %v45
  %v181 = vunpack.c.h.b16 %v45
  %v182 = vunpack.c.l.b16 %v46
  %v183 = vunpack.c.h.b16 %v46
  %v184 = vunpack.c.l.b16 %v47
  %v185 = vunpack.c.h.b16 %v47
  %v186 = vunpack.c.l.b16 %v48
  %v187 = vunpack.c.h.b16 %v48
  %v188 = vunpack.c.l.b16 %v49
  %v189 = vunpack.c.h.b16 %v49
  %v190 = vunpack.c.l.b16 %v50
  %v191 = vunpack.c.h.b16 %v50
  %v192 = vunpack.c.l.b16 %v51
  %v193 = vunpack.c.h.b16 %v51
  %v194 = vunpack.c.l.b16 %v52
  %v195 = vunpack.c.h.b16 %v52
  %v196 = vunpack.c.l.b16 %v53
  %v197 = vunpack.c.h.b16 %v53
  %v198 = vunpack.c.l.b16 %v54
  %v199 = vunpack.c.h.b16 %v54
  %v200 = vunpack.c.l.b16 %v55
  %v201 = vunpack.c.h.b16 %v55
  %v202 = vpack.c.b16 %v142, %v138
  %v203 = vpack.c.b16 %v143, %v139
  %v204 = vpack.c.b16 %v144, %v140
  %v205 = vpack.c.b16 %v145, %v141
  %v206 = vpack.c.b16 %v150, %v146
  %v207 = vpack.c.b16 %v151, %v147
  %v208 = vpack.c.b16 %v152, %v148
  %v209 = vpack.c.b16 %v153, %v149
  %v210 = vpack.c.b16 %v158, %v154
  %v211 = vpack.c.b16 %v159, %v155
  %v212 = vpack.c.b16 %v160, %v156
  %v213 = vpack.c.b16 %v161, %v157
  %v214 = vpack.c.b16 %v166, %v162
  %v215 = vpack.c.b16 %v167, %v163
  %v216 = vpack.c.b16 %v168, %v164
  %v217 = vpack.c.b16 %v169, %v165
  %v218 = vpack.c.b16 %v174, %v170
  %v219 = vpack.c.b16 %v175, %v171
  %v220 = vpack.c.b16 %v176, %v172
  %v221 = vpack.c.b16 %v177, %v173
  %v222 = vpack.c.b16 %v182, %v178
  %v223 = vpack.c.b16 %v183, %v179
  %v224 = vpack.c.b16 %v184, %v180
  %v225 = vpack.c.b16 %v185, %v181
  %v226 = vpack.c.b16 %v190, %v186
  %v227 = vpack.c.b16 %v191, %v187
  %v228 = vpack.c.b16 %v192, %v188
  %v229 = vpack.c.b16 %v193, %v189
  %v230 = vpack.c.b16 %v198, %v194
  %v231 = vpack.c.b16 %v199, %v195
  %v232 = vpack.c.b16 %v200, %v196
  %v233 = vpack.c.b16 %v201, %v197
  %266 = vmatprep.subr.bf16.mxu0 %v203
  %267 = vmatpush1.bf16.msra.mxu0 %v202
  %268 = vmatprep.subr.bf16.mxu0 %v207
  %269 = vmatpush1.bf16.msra.mxu0 %v206
  %270 = vmatprep.subr.bf16.mxu0 %v211
  %271 = vmatpush1.bf16.msra.mxu0 %v210
  %272 = vmatprep.subr.bf16.mxu0 %v215
  %273 = vmatpush1.bf16.msra.mxu0 %v214
  %274 = vmatprep.subr.bf16.mxu0 %v219
  %275 = vmatpush1.bf16.msra.mxu0 %v218
  %276 = vmatprep.subr.bf16.mxu0 %v223
  %277 = vmatpush1.bf16.msra.mxu0 %v222
  %278 = vmatprep.subr.bf16.mxu0 %v227
  %279 = vmatpush1.bf16.msra.mxu0 %v226
  %280 = vmatprep.subr.bf16.mxu0 %v231
  %281 = vmatpush1.bf16.msra.mxu0 %v230
  %282 = vmatprep.subr.bf16.mxu0 0
  %283 = vmatpush1.bf16.msra.mxu0 0
  %284 = vmatprep.subr.bf16.mxu0 0
  %285 = vmatpush1.bf16.msra.mxu0 0
  %286 = vmatprep.subr.bf16.mxu0 0
  %287 = vmatpush1.bf16.msra.mxu0 0
  %288 = vmatprep.subr.bf16.mxu0 0
  %289 = vmatpush1.bf16.msra.mxu0 0
  %290 = vmatprep.subr.bf16.mxu0 0
  %291 = vmatpush1.bf16.msra.mxu0 0
  %292 = vmatprep.subr.bf16.mxu0 0
  %293 = vmatpush1.bf16.msra.mxu0 0
  %294 = vmatprep.subr.bf16.mxu0 0
  %295 = vmatpush1.bf16.msra.mxu0 0
  %296 = vmatprep.subr.bf16.mxu0 0
  %297 = vmatpush1.bf16.msra.mxu0 0
  %298 = vmatprep.mubr.bf16.mxu0 0
  %299 = vmatmul.mubr.bf16.gmra.mrb[0].mxu0 %v96
  %v300 = vpop.f32.mrb[0].mxu0
  %v301 = vadd.f32 %v61, %v300
  %v302 = vpop.f32.mrb[0].mxu0
  %v303 = vadd.f32 %v65, %v302
  %v304 = vpop.f32.mrb[0].mxu0
  %v305 = vadd.f32 %v61, %v304
  %v306 = vpop.f32.mrb[0].mxu0
  %v307 = vadd.f32 %v65, %v306
  %308 = vmatprep.mubr.bf16.mxu0 0
  %309 = vmatmul.mubr.bf16.gmra.mrb[0].mxu0 %v97
  %v310 = vpop.f32.mrb[0].mxu0
  %v311 = vadd.f32 %v61, %v310
  %v312 = vpop.f32.mrb[0].mxu0
  %v313 = vadd.f32 %v65, %v312
  %v314 = vpop.f32.mrb[0].mxu0
  %v315 = vadd.f32 %v61, %v314
  %v316 = vpop.f32.mrb[0].mxu0
  %v317 = vadd.f32 %v65, %v316
  %318 = vmatprep.mubr.bf16.mxu0 0
  %319 = vmatmul.mubr.bf16.gmra.mrb[0].mxu0 %v98
  %v320 = vpop.f32.mrb[0].mxu0
  %v321 = vadd.f32 %v61, %v320
  %v322 = vpop.f32.mrb[0].mxu0
  %v323 = vadd.f32 %v65, %v322
  %v324 = vpop.f32.mrb[0].mxu0
  %v325 = vadd.f32 %v61, %v324
  %v326 = vpop.f32.mrb[0].mxu0
  %v327 = vadd.f32 %v65, %v326
  %328 = vmatprep.mubr.bf16.mxu0 0
  %329 = vmatmul.mubr.bf16.gmra.mrb[0].mxu0 %v99
  %v330 = vpop.f32.mrb[0].mxu0
  %v331 = vadd.f32 %v61, %v330
  %v332 = vpop.f32.mrb[0].mxu0
  %v333 = vadd.f32 %v65, %v332
  %v334 = vpop.f32.mrb[0].mxu0
  %v335 = vadd.f32 %v61, %v334
  %v336 = vpop.f32.mrb[0].mxu0
  %v337 = vadd.f32 %v65, %v336
  %338 = vmatprep.mubr.bf16.mxu0 0
  %339 = vmatmul.mubr.bf16.gmra.mrb[0].mxu0 %v100
  %v340 = vpop.f32.mrb[0].mxu0
  %v341 = vadd.f32 %v61, %v340
  %v342 = vpop.f32.mrb[0].mxu0
  %v343 = vadd.f32 %v65, %v342
  %v344 = vpop.f32.mrb[0].mxu0
  %v345 = vpop.f32.mrb[0].mxu0
  %346 = vdwg.mxu0
  %347 = vmatprep.subr.bf16.mxu0 %v205
  %348 = vmatpush1.bf16.msra.mxu0 %v204
  %349 = vmatprep.subr.bf16.mxu0 %v209
  %350 = vmatpush1.bf16.msra.mxu0 %v208
  %351 = vmatprep.subr.bf16.mxu0 %v213
  %352 = vmatpush1.bf16.msra.mxu0 %v212
  %353 = vmatprep.subr.bf16.mxu0 %v217
  %354 = vmatpush1.bf16.msra.mxu0 %v216
  %355 = vmatprep.subr.bf16.mxu0 %v221
  %356 = vmatpush1.bf16.msra.mxu0 %v220
  %357 = vmatprep.subr.bf16.mxu0 %v225
  %358 = vmatpush1.bf16.msra.mxu0 %v224
  %359 = vmatprep.subr.bf16.mxu0 %v229
  %360 = vmatpush1.bf16.msra.mxu0 %v228
  %361 = vmatprep.subr.bf16.mxu0 %v233
  %362 = vmatpush1.bf16.msra.mxu0 %v232
  %363 = vmatprep.subr.bf16.mxu0 0
  %364 = vmatpush1.bf16.msra.mxu0 0
  %365 = vmatprep.subr.bf16.mxu0 0
  %366 = vmatpush1.bf16.msra.mxu0 0
  %367 = vmatprep.subr.bf16.mxu0 0
  %368 = vmatpush1.bf16.msra.mxu0 0
  %369 = vmatprep.subr.bf16.mxu0 0
  %370 = vmatpush1.bf16.msra.mxu0 0
  %371 = vmatprep.subr.bf16.mxu0 0
  %372 = vmatpush1.bf16.msra.mxu0 0
  %373 = vmatprep.subr.bf16.mxu0 0
  %374 = vmatpush1.bf16.msra.mxu0 0
  %375 = vmatprep.subr.bf16.mxu0 0
  %376 = vmatpush1.bf16.msra.mxu0 0
  %377 = vmatprep.subr.bf16.mxu0 0
  %378 = vmatpush1.bf16.msra.mxu0 0
  %379 = vmatprep.mubr.bf16.mxu0 0
  %380 = vmatmul.mubr.bf16.gmra.mrb[0].mxu0 %v96
  %v381 = vpop.f32.mrb[0].mxu0
  %v382 = vadd.f32 %v69, %v381
  %v383 = vpop.f32.mrb[0].mxu0
  %v384 = vadd.f32 %v73, %v383
  %v385 = vpop.f32.mrb[0].mxu0
  %v386 = vadd.f32 %v69, %v385
  %v387 = vpop.f32.mrb[0].mxu0
  %v388 = vadd.f32 %v73, %v387
  %389 = vmatprep.mubr.bf16.mxu0 0
  %390 = vmatmul.mubr.bf16.gmra.mrb[0].mxu0 %v97
  %v391 = vpop.f32.mrb[0].mxu0
  %v392 = vadd.f32 %v69, %v391
  %v393 = vpop.f32.mrb[0].mxu0
  %v394 = vadd.f32 %v73, %v393
  %v395 = vpop.f32.mrb[0].mxu0
  %v396 = vadd.f32 %v69, %v395
  %v397 = vpop.f32.mrb[0].mxu0
  %v398 = vadd.f32 %v73, %v397
  %399 = vmatprep.mubr.bf16.mxu0 0
  %400 = vmatmul.mubr.bf16.gmra.mrb[0].mxu0 %v98
  %v401 = vpop.f32.mrb[0].mxu0
  %v402 = vadd.f32 %v69, %v401
  %v403 = vpop.f32.mrb[0].mxu0
  %v404 = vadd.f32 %v73, %v403
  %v405 = vpop.f32.mrb[0].mxu0
  %v406 = vadd.f32 %v69, %v405
  %v407 = vpop.f32.mrb[0].mxu0
  %v408 = vadd.f32 %v73, %v407
  %409 = vmatprep.mubr.bf16.mxu0 0
  %410 = vmatmul.mubr.bf16.gmra.mrb[0].mxu0 %v99
  %v411 = vpop.f32.mrb[0].mxu0
  %v412 = vadd.f32 %v69, %v411
  %v413 = vpop.f32.mrb[0].mxu0
  %v414 = vadd.f32 %v73, %v413
  %v415 = vpop.f32.mrb[0].mxu0
  %v416 = vadd.f32 %v69, %v415
  %v417 = vpop.f32.mrb[0].mxu0
  %v418 = vadd.f32 %v73, %v417
  %419 = vmatprep.mubr.bf16.mxu0 0
  %420 = vmatmul.mubr.bf16.gmra.mrb[0].mxu0 %v100
  %v421 = vpop.f32.mrb[0].mxu0
  %v422 = vadd.f32 %v69, %v421
  %v423 = vpop.f32.mrb[0].mxu0
  %v424 = vadd.f32 %v73, %v423
  %v425 = vpop.f32.mrb[0].mxu0
  %v426 = vpop.f32.mrb[0].mxu0
  %427 = vdwg.mxu0
  %v428 = vpack.c.bf16 %v305, %v301
  %v429 = vpack.c.bf16 %v307, %v303
  %v430 = vpack.c.bf16 %v386, %v382
  %v431 = vpack.c.bf16 %v388, %v384
  %v432 = vpack.c.bf16 %v315, %v311
  %v433 = vpack.c.bf16 %v317, %v313
  %v434 = vpack.c.bf16 %v396, %v392
  %v435 = vpack.c.bf16 %v398, %v394
  %v436 = vpack.c.bf16 %v325, %v321
  %v437 = vpack.c.bf16 %v327, %v323
  %v438 = vpack.c.bf16 %v406, %v402
  %v439 = vpack.c.bf16 %v408, %v404
  %v440 = vpack.c.bf16 %v335, %v331
  %v441 = vpack.c.bf16 %v337, %v333
  %v442 = vpack.c.bf16 %v416, %v412
  %v443 = vpack.c.bf16 %v418, %v414
  %v444 = vpack.c.bf16 %v341, %v341
  %v445 = vpack.c.bf16 %v343, %v343
  %v446 = vpack.c.bf16 %v422, %v422
  %v447 = vpack.c.bf16 %v424, %v424
  %v468 = vunpack.c.l.b16 %v428
  %v469 = vunpack.c.l.b16 %v429
  %v470 = vunpack.c.l.b16 %v430
  %v471 = vunpack.c.l.b16 %v431
  %v472 = vunpack.c.h.b16 %v428
  %v473 = vunpack.c.h.b16 %v429
  %v474 = vunpack.c.h.b16 %v430
  %v475 = vunpack.c.h.b16 %v431
  %v476 = vunpack.c.l.b16 %v432
  %v477 = vunpack.c.l.b16 %v433
  %v478 = vunpack.c.l.b16 %v434
  %v479 = vunpack.c.l.b16 %v435
  %v480 = vunpack.c.h.b16 %v432
  %v481 = vunpack.c.h.b16 %v433
  %v482 = vunpack.c.h.b16 %v434
  %v483 = vunpack.c.h.b16 %v435
  %v484 = vunpack.c.l.b16 %v436
  %v485 = vunpack.c.l.b16 %v437
  %v486 = vunpack.c.l.b16 %v438
  %v487 = vunpack.c.l.b16 %v439
  %v488 = vunpack.c.h.b16 %v436
  %v489 = vunpack.c.h.b16 %v437
  %v490 = vunpack.c.h.b16 %v438
  %v491 = vunpack.c.h.b16 %v439
  %v492 = vunpack.c.l.b16 %v440
  %v493 = vunpack.c.l.b16 %v441
  %v494 = vunpack.c.l.b16 %v442
  %v495 = vunpack.c.l.b16 %v443
  %v496 = vunpack.c.h.b16 %v440
  %v497 = vunpack.c.h.b16 %v441
  %v498 = vunpack.c.h.b16 %v442
  %v499 = vunpack.c.h.b16 %v443
  %v500 = vunpack.c.l.b16 %v444
  %v501 = vunpack.c.l.b16 %v445
  %v502 = vunpack.c.l.b16 %v446
  %v503 = vunpack.c.l.b16 %v447
  %v504 = vpack.c.b16 %v469, %v468
  %v505 = vpack.c.b16 %v471, %v470
  %v506 = vpack.c.b16 %v473, %v472
  %v507 = vpack.c.b16 %v475, %v474
  %v508 = vpack.c.b16 %v477, %v476
  %v509 = vpack.c.b16 %v479, %v478
  %v510 = vpack.c.b16 %v481, %v480
  %v511 = vpack.c.b16 %v483, %v482
  %v512 = vpack.c.b16 %v485, %v484
  %v513 = vpack.c.b16 %v487, %v486
  %v514 = vpack.c.b16 %v489, %v488
  %v515 = vpack.c.b16 %v491, %v490
  %v516 = vpack.c.b16 %v493, %v492
  %v517 = vpack.c.b16 %v495, %v494
  %v518 = vpack.c.b16 %v497, %v496
  %v519 = vpack.c.b16 %v499, %v498
  %v520 = vpack.c.b16 %v501, %v500
  %v521 = vpack.c.b16 %v503, %v502
  %540 = vst [vmem:[%s3] sm:$0xff] %v504
  %541 = vst [vmem:[%s3 + $0x8] sm:$0xff] %v505
  %542 = vst [vmem:[%s3 + $0x10] sm:$0xff] %v506
  %543 = vst [vmem:[%s3 + $0x18] sm:$0xff] %v507
  %544 = vst [vmem:[%s3 + $0x20] sm:$0xff] %v508
  %545 = vst [vmem:[%s3 + $0x28] sm:$0xff] %v509
  %546 = vst [vmem:[%s3 + $0x30] sm:$0xff] %v510
  %547 = vst [vmem:[%s3 + $0x38] sm:$0xff] %v511
  %548 = vst [vmem:[%s3 + $0x40] sm:$0xff] %v512
  %549 = vst [vmem:[%s3 + $0x48] sm:$0xff] %v513
  %550 = vst [vmem:[%s3 + $0x50] sm:$0xff] %v514
  %551 = vst [vmem:[%s3 + $0x58] sm:$0xff] %v515
  %552 = vst [vmem:[%s3 + $0x60] sm:$0xff] %v516
  %553 = vst [vmem:[%s3 + $0x68] sm:$0xff] %v517
  %554 = vst [vmem:[%s3 + $0x70] sm:$0xff] %v518
  %555 = vst [vmem:[%s3 + $0x78] sm:$0xff] %v519
  %556 = vst [vmem:[%s3 + $0x80] sm:$0xff] %v520
  %557 = vst [vmem:[%s3 + $0x88] sm:$0xff] %v521
  // Predicated region
  $region14: #{conv3dlstm_forward.14} parent=0 // pred_check
    _
  $region15: #{conv3dlstm_forward.14} parent=0 // pred_check_branch
    %559 = sbr.rel (0) target = $region17
  $region16: #{conv3dlstm_forward.14} parent=0 // pred_region
    _
  $region17: #{conv3dlstm_forward.14} parent=0 // pred_fallthru
    _
  // Predicated region
  $region18: #{conv3dlstm_forward.14} parent=0 // pred_check
    _
  $region19: #{conv3dlstm_forward.14} parent=0 // pred_check_branch
    %561 = sbr.rel (0) target = $region21
  $region20: #{conv3dlstm_forward.14} parent=0 // pred_region
    _
  $region21: #{conv3dlstm_forward.14} parent=0 // pred_fallthru
    _

// kernel: conv3dlstm_forward.16
$region0: #{conv3dlstm_forward.16}
  #allocation0 [shape = 'u32[]', space=smem, size = 0x4, offset = 0x4, fixed_abs, tag = 'smem constant byte address 0x4 - core index']
  #allocation1 [shape = 'u32[144,128]{1,0:T(1,128)}', space=vmem, size = 0x12000, scoped, tag = 'internal scratch']
  %s0 = inlined_call_operand.vmem [shape: bf16[288,128], index: 0, kind: input, shape index: {}]
  %s1 = inlined_call_operand.vmem [shape: bf16[128,512], index: 1, kind: input, shape index: {}]
  %s2 = inlined_call_operand.vmem [shape: f32[1,512], index: 2, kind: input, shape index: {}]
  %s3 = inlined_call_operand.vmem [shape: bf16[288,512], index: 3, kind: output, shape index: {}]
  %s4 = sld [smem:[#allocation0]]
  $region22: #{conv3dlstm_forward.16} parent=0
    _
  %s6 = ssub.s32 1, %s4
  %s7 = scalar_select 0, %s6, %s4
  // Predicated region
  $region2: #{conv3dlstm_forward.16} parent=0 // pred_check
    _
  $region3: #{conv3dlstm_forward.16} parent=0 // pred_check_branch
    %9 = sbr.rel (0) target = $region5
  $region4: #{conv3dlstm_forward.16} parent=0 // pred_region
    _
  $region5: #{conv3dlstm_forward.16} parent=0 // pred_fallthru
    _
  // Predicated region
  $region6: #{conv3dlstm_forward.16} parent=0 // pred_check
    _
  $region7: #{conv3dlstm_forward.16} parent=0 // pred_check_branch
    %11 = sbr.rel (0) target = $region9
  $region8: #{conv3dlstm_forward.16} parent=0 // pred_region
    _
  $region9: #{conv3dlstm_forward.16} parent=0 // pred_fallthru
    _
  // Predicated region
  $region10: #{conv3dlstm_forward.16} parent=0 // pred_check
    _
  $region11: #{conv3dlstm_forward.16} parent=0 // pred_check_branch
    %13 = sbr.rel (0) target = $region13
  $region12: #{conv3dlstm_forward.16} parent=0 // pred_region
    _
  $region13: #{conv3dlstm_forward.16} parent=0 // pred_fallthru
    _
  %v15 = vld [vmem:[%s0] sm:$0xf]
  %v16 = vld [vmem:[%s0 + $0x4] sm:$0xf]
  %v17 = vld [vmem:[%s0 + $0x8] sm:$0xf]
  %v18 = vld [vmem:[%s0 + $0xc] sm:$0xf]
  %v19 = vld [vmem:[%s0 + $0x10] sm:$0xf]
  %v20 = vld [vmem:[%s0 + $0x14] sm:$0xf]
  %v21 = vld [vmem:[%s0 + $0x18] sm:$0xf]
  %v22 = vld [vmem:[%s0 + $0x1c] sm:$0xf]
  %v23 = vld [vmem:[%s0 + $0x20] sm:$0xf]
  %v24 = vld [vmem:[%s0 + $0x24] sm:$0xf]
  %v25 = vld [vmem:[%s0 + $0x28] sm:$0xf]
  %v26 = vld [vmem:[%s0 + $0x2c] sm:$0xf]
  %v27 = vld [vmem:[%s0 + $0x30] sm:$0xf]
  %v28 = vld [vmem:[%s0 + $0x34] sm:$0xf]
  %v29 = vld [vmem:[%s0 + $0x38] sm:$0xf]
  %v30 = vld [vmem:[%s0 + $0x3c] sm:$0xf]
  %v31 = vld [vmem:[%s0 + $0x40] sm:$0xf]
  %v32 = vld [vmem:[%s0 + $0x44] sm:$0xf]
  %v33 = vld [vmem:[%s0 + $0x48] sm:$0xf]
  %v34 = vld [vmem:[%s0 + $0x4c] sm:$0xf]
  %v35 = vld [vmem:[%s0 + $0x50] sm:$0xf]
  %v36 = vld [vmem:[%s0 + $0x54] sm:$0xf]
  %v37 = vld [vmem:[%s0 + $0x58] sm:$0xf]
  %v38 = vld [vmem:[%s0 + $0x5c] sm:$0xf]
  %v39 = vld [vmem:[%s0 + $0x60] sm:$0xf]
  %v40 = vld [vmem:[%s0 + $0x64] sm:$0xf]
  %v41 = vld [vmem:[%s0 + $0x68] sm:$0xf]
  %v42 = vld [vmem:[%s0 + $0x6c] sm:$0xf]
  %v43 = vld [vmem:[%s0 + $0x70] sm:$0xf]
  %v44 = vld [vmem:[%s0 + $0x74] sm:$0xf]
  %v45 = vld [vmem:[%s0 + $0x78] sm:$0xf]
  %v46 = vld [vmem:[%s0 + $0x7c] sm:$0xf]
  %v47 = vld [vmem:[%s0 + $0x80] sm:$0xf]
  %v48 = vld [vmem:[%s0 + $0x84] sm:$0xf]
  %v49 = vld [vmem:[%s0 + $0x88] sm:$0xf]
  %v50 = vld [vmem:[%s0 + $0x8c] sm:$0xf]
  %v51 = vld [vmem:[%s1] sm:$0xff]
  %v52 = vld [vmem:[%s1 + $0x8] sm:$0xff]
  %v53 = vld [vmem:[%s1 + $0x10] sm:$0xff]
  %v54 = vld [vmem:[%s1 + $0x18] sm:$0xff]
  %v55 = vld [vmem:[%s1 + $0x20] sm:$0xff]
  %v56 = vld [vmem:[%s1 + $0x28] sm:$0xff]
  %v57 = vld [vmem:[%s1 + $0x30] sm:$0xff]
  %v58 = vld [vmem:[%s1 + $0x38] sm:$0xff]
  %v59 = vld [vmem:[%s1 + $0x40] sm:$0xff]
  %v60 = vld [vmem:[%s1 + $0x48] sm:$0xff]
  %v61 = vld [vmem:[%s1 + $0x50] sm:$0xff]
  %v62 = vld [vmem:[%s1 + $0x58] sm:$0xff]
  %v63 = vld [vmem:[%s1 + $0x60] sm:$0xff]
  %v64 = vld [vmem:[%s1 + $0x68] sm:$0xff]
  %v65 = vld [vmem:[%s1 + $0x70] sm:$0xff]
  %v66 = vld [vmem:[%s1 + $0x78] sm:$0xff]
  %v67 = vld [vmem:[%s1 + $0x80] sm:$0xff]
  %v68 = vld [vmem:[%s1 + $0x88] sm:$0xff]
  %v69 = vld [vmem:[%s1 + $0x90] sm:$0xff]
  %v70 = vld [vmem:[%s1 + $0x98] sm:$0xff]
  %v71 = vld [vmem:[%s1 + $0xa0] sm:$0xff]
  %v72 = vld [vmem:[%s1 + $0xa8] sm:$0xff]
  %v73 = vld [vmem:[%s1 + $0xb0] sm:$0xff]
  %v74 = vld [vmem:[%s1 + $0xb8] sm:$0xff]
  %v75 = vld [vmem:[%s1 + $0xc0] sm:$0xff]
  %v76 = vld [vmem:[%s1 + $0xc8] sm:$0xff]
  %v77 = vld [vmem:[%s1 + $0xd0] sm:$0xff]
  %v78 = vld [vmem:[%s1 + $0xd8] sm:$0xff]
  %v79 = vld [vmem:[%s1 + $0xe0] sm:$0xff]
  %v80 = vld [vmem:[%s1 + $0xe8] sm:$0xff]
  %v81 = vld [vmem:[%s1 + $0xf0] sm:$0xff]
  %v82 = vld [vmem:[%s1 + $0xf8] sm:$0xff]
  %v83 = vld [vmem:[%s2] sm:$0xf]
  %v85 = vlaneseq
  %v86 = vshrl.u32 %v85, 7
  %v87 = vsub.s32 0, %v86
  %v88 = vrot.slane %v83, %v87
  %v89 = vlaneseq
  %v90 = vshrl.u32 %v89, 7
  %v91 = vsub.s32 1, %v90
  %v92 = vrot.slane %v83, %v91
  %v93 = vlaneseq
  %v94 = vshrl.u32 %v93, 7
  %v95 = vsub.s32 2, %v94
  %v96 = vrot.slane %v83, %v95
  %v97 = vlaneseq
  %v98 = vshrl.u32 %v97, 7
  %v99 = vsub.s32 3, %v98
  %v100 = vrot.slane %v83, %v99
  %v141 = vunpack.c.l.b16 %v15
  %v142 = vunpack.c.l.b16 %v16
  %v143 = vunpack.c.l.b16 %v17
  %v144 = vunpack.c.l.b16 %v18
  %v145 = vunpack.c.l.b16 %v19
  %v146 = vunpack.c.l.b16 %v20
  %v147 = vunpack.c.l.b16 %v21
  %v148 = vunpack.c.l.b16 %v22
  %v149 = vunpack.c.l.b16 %v23
  %v150 = vunpack.c.l.b16 %v24
  %v151 = vunpack.c.l.b16 %v25
  %v152 = vunpack.c.l.b16 %v26
  %v153 = vunpack.c.l.b16 %v27
  %v154 = vunpack.c.l.b16 %v28
  %v155 = vunpack.c.l.b16 %v29
  %v156 = vunpack.c.l.b16 %v30
  %v157 = vunpack.c.l.b16 %v31
  %v158 = vunpack.c.l.b16 %v32
  %v159 = vunpack.c.l.b16 %v33
  %v160 = vunpack.c.l.b16 %v34
  %v161 = vunpack.c.l.b16 %v35
  %v162 = vunpack.c.l.b16 %v36
  %v163 = vunpack.c.l.b16 %v37
  %v164 = vunpack.c.l.b16 %v38
  %v165 = vunpack.c.l.b16 %v39
  %v166 = vunpack.c.l.b16 %v40
  %v167 = vunpack.c.l.b16 %v41
  %v168 = vunpack.c.l.b16 %v42
  %v169 = vunpack.c.l.b16 %v43
  %v170 = vunpack.c.l.b16 %v44
  %v171 = vunpack.c.l.b16 %v45
  %v172 = vunpack.c.l.b16 %v46
  %v173 = vunpack.c.l.b16 %v47
  %v174 = vunpack.c.l.b16 %v48
  %v175 = vunpack.c.l.b16 %v49
  %v176 = vunpack.c.l.b16 %v50
  %v177 = vpack.c.b16 %v142, %v141
  %v178 = vpack.c.b16 %v144, %v143
  %v179 = vpack.c.b16 %v146, %v145
  %v180 = vpack.c.b16 %v148, %v147
  %v181 = vpack.c.b16 %v150, %v149
  %v182 = vpack.c.b16 %v152, %v151
  %v183 = vpack.c.b16 %v154, %v153
  %v184 = vpack.c.b16 %v156, %v155
  %v185 = vpack.c.b16 %v158, %v157
  %v186 = vpack.c.b16 %v160, %v159
  %v187 = vpack.c.b16 %v162, %v161
  %v188 = vpack.c.b16 %v164, %v163
  %v189 = vpack.c.b16 %v166, %v165
  %v190 = vpack.c.b16 %v168, %v167
  %v191 = vpack.c.b16 %v170, %v169
  %v192 = vpack.c.b16 %v172, %v171
  %v193 = vpack.c.b16 %v174, %v173
  %v194 = vpack.c.b16 %v176, %v175
  %v245 = vunpack.c.l.b16 %v51
  %v246 = vunpack.c.h.b16 %v51
  %v247 = vunpack.c.l.b16 %v52
  %v248 = vunpack.c.h.b16 %v52
  %v249 = vunpack.c.l.b16 %v53
  %v250 = vunpack.c.h.b16 %v53
  %v251 = vunpack.c.l.b16 %v54
  %v252 = vunpack.c.h.b16 %v54
  %v253 = vunpack.c.l.b16 %v55
  %v254 = vunpack.c.h.b16 %v55
  %v255 = vunpack.c.l.b16 %v56
  %v256 = vunpack.c.h.b16 %v56
  %v257 = vunpack.c.l.b16 %v57
  %v258 = vunpack.c.h.b16 %v57
  %v259 = vunpack.c.l.b16 %v58
  %v260 = vunpack.c.h.b16 %v58
  %v261 = vunpack.c.l.b16 %v59
  %v262 = vunpack.c.h.b16 %v59
  %v263 = vunpack.c.l.b16 %v60
  %v264 = vunpack.c.h.b16 %v60
  %v265 = vunpack.c.l.b16 %v61
  %v266 = vunpack.c.h.b16 %v61
  %v267 = vunpack.c.l.b16 %v62
  %v268 = vunpack.c.h.b16 %v62
  %v269 = vunpack.c.l.b16 %v63
  %v270 = vunpack.c.h.b16 %v63
  %v271 = vunpack.c.l.b16 %v64
  %v272 = vunpack.c.h.b16 %v64
  %v273 = vunpack.c.l.b16 %v65
  %v274 = vunpack.c.h.b16 %v65
  %v275 = vunpack.c.l.b16 %v66
  %v276 = vunpack.c.h.b16 %v66
  %v277 = vunpack.c.l.b16 %v67
  %v278 = vunpack.c.h.b16 %v67
  %v279 = vunpack.c.l.b16 %v68
  %v280 = vunpack.c.h.b16 %v68
  %v281 = vunpack.c.l.b16 %v69
  %v282 = vunpack.c.h.b16 %v69
  %v283 = vunpack.c.l.b16 %v70
  %v284 = vunpack.c.h.b16 %v70
  %v285 = vunpack.c.l.b16 %v71
  %v286 = vunpack.c.h.b16 %v71
  %v287 = vunpack.c.l.b16 %v72
  %v288 = vunpack.c.h.b16 %v72
  %v289 = vunpack.c.l.b16 %v73
  %v290 = vunpack.c.h.b16 %v73
  %v291 = vunpack.c.l.b16 %v74
  %v292 = vunpack.c.h.b16 %v74
  %v293 = vunpack.c.l.b16 %v75
  %v294 = vunpack.c.h.b16 %v75
  %v295 = vunpack.c.l.b16 %v76
  %v296 = vunpack.c.h.b16 %v76
  %v297 = vunpack.c.l.b16 %v77
  %v298 = vunpack.c.h.b16 %v77
  %v299 = vunpack.c.l.b16 %v78
  %v300 = vunpack.c.h.b16 %v78
  %v301 = vunpack.c.l.b16 %v79
  %v302 = vunpack.c.h.b16 %v79
  %v303 = vunpack.c.l.b16 %v80
  %v304 = vunpack.c.h.b16 %v80
  %v305 = vunpack.c.l.b16 %v81
  %v306 = vunpack.c.h.b16 %v81
  %v307 = vunpack.c.l.b16 %v82
  %v308 = vunpack.c.h.b16 %v82
  %v309 = vpack.c.b16 %v249, %v245
  %v310 = vpack.c.b16 %v250, %v246
  %v311 = vpack.c.b16 %v251, %v247
  %v312 = vpack.c.b16 %v252, %v248
  %v313 = vpack.c.b16 %v257, %v253
  %v314 = vpack.c.b16 %v258, %v254
  %v315 = vpack.c.b16 %v259, %v255
  %v316 = vpack.c.b16 %v260, %v256
  %v317 = vpack.c.b16 %v265, %v261
  %v318 = vpack.c.b16 %v266, %v262
  %v319 = vpack.c.b16 %v267, %v263
  %v320 = vpack.c.b16 %v268, %v264
  %v321 = vpack.c.b16 %v273, %v269
  %v322 = vpack.c.b16 %v274, %v270
  %v323 = vpack.c.b16 %v275, %v271
  %v324 = vpack.c.b16 %v276, %v272
  %v325 = vpack.c.b16 %v281, %v277
  %v326 = vpack.c.b16 %v282, %v278
  %v327 = vpack.c.b16 %v283, %v279
  %v328 = vpack.c.b16 %v284, %v280
  %v329 = vpack.c.b16 %v289, %v285
  %v330 = vpack.c.b16 %v290, %v286
  %v331 = vpack.c.b16 %v291, %v287
  %v332 = vpack.c.b16 %v292, %v288
  %v333 = vpack.c.b16 %v297, %v293
  %v334 = vpack.c.b16 %v298, %v294
  %v335 = vpack.c.b16 %v299, %v295
  %v336 = vpack.c.b16 %v300, %v296
  %v337 = vpack.c.b16 %v305, %v301
  %v338 = vpack.c.b16 %v306, %v302
  %v339 = vpack.c.b16 %v307, %v303
  %v340 = vpack.c.b16 %v308, %v304
  %373 = vmatprep.subr.bf16.mxu0 %v310
  %374 = vmatpush1.bf16.msra.mxu0 %v309
  %375 = vmatprep.subr.bf16.mxu0 %v314
  %376 = vmatpush1.bf16.msra.mxu0 %v313
  %377 = vmatprep.subr.bf16.mxu0 %v318
  %378 = vmatpush1.bf16.msra.mxu0 %v317
  %379 = vmatprep.subr.bf16.mxu0 %v322
  %380 = vmatpush1.bf16.msra.mxu0 %v321
  %381 = vmatprep.subr.bf16.mxu0 %v326
  %382 = vmatpush1.bf16.msra.mxu0 %v325
  %383 = vmatprep.subr.bf16.mxu0 %v330
  %384 = vmatpush1.bf16.msra.mxu0 %v329
  %385 = vmatprep.subr.bf16.mxu0 %v334
  %386 = vmatpush1.bf16.msra.mxu0 %v333
  %387 = vmatprep.subr.bf16.mxu0 %v338
  %388 = vmatpush1.bf16.msra.mxu0 %v337
  %389 = vmatprep.subr.bf16.mxu0 0
  %390 = vmatpush1.bf16.msra.mxu0 0
  %391 = vmatprep.subr.bf16.mxu0 0
  %392 = vmatpush1.bf16.msra.mxu0 0
  %393 = vmatprep.subr.bf16.mxu0 0
  %394 = vmatpush1.bf16.msra.mxu0 0
  %395 = vmatprep.subr.bf16.mxu0 0
  %396 = vmatpush1.bf16.msra.mxu0 0
  %397 = vmatprep.subr.bf16.mxu0 0
  %398 = vmatpush1.bf16.msra.mxu0 0
  %399 = vmatprep.subr.bf16.mxu0 0
  %400 = vmatpush1.bf16.msra.mxu0 0
  %401 = vmatprep.subr.bf16.mxu0 0
  %402 = vmatpush1.bf16.msra.mxu0 0
  %403 = vmatprep.subr.bf16.mxu0 0
  %404 = vmatpush1.bf16.msra.mxu0 0
  %405 = vmatprep.mubr.bf16.mxu0 0
  %406 = vmatmul.mubr.bf16.gmra.mrb[0].mxu0 %v177
  %v407 = vpop.f32.mrb[0].mxu0
  %v408 = vadd.f32 %v88, %v407
  %v409 = vpop.f32.mrb[0].mxu0
  %v410 = vadd.f32 %v92, %v409
  %v411 = vpop.f32.mrb[0].mxu0
  %v412 = vadd.f32 %v88, %v411
  %v413 = vpop.f32.mrb[0].mxu0
  %v414 = vadd.f32 %v92, %v413
  %415 = vmatprep.mubr.bf16.mxu0 0
  %416 = vmatmul.mubr.bf16.gmra.mrb[0].mxu0 %v178
  %v417 = vpop.f32.mrb[0].mxu0
  %v418 = vadd.f32 %v88, %v417
  %v419 = vpop.f32.mrb[0].mxu0
  %v420 = vadd.f32 %v92, %v419
  %v421 = vpop.f32.mrb[0].mxu0
  %v422 = vadd.f32 %v88, %v421
  %v423 = vpop.f32.mrb[0].mxu0
  %v424 = vadd.f32 %v92, %v423
  %425 = vmatprep.mubr.bf16.mxu0 0
  %426 = vmatmul.mubr.bf16.gmra.mrb[0].mxu0 %v179
  %v427 = vpop.f32.mrb[0].mxu0
  %v428 = vadd.f32 %v88, %v427
  %v429 = vpop.f32.mrb[0].mxu0
  %v430 = vadd.f32 %v92, %v429
  %v431 = vpop.f32.mrb[0].mxu0
  %v432 = vadd.f32 %v88, %v431
  %v433 = vpop.f32.mrb[0].mxu0
  %v434 = vadd.f32 %v92, %v433
  %435 = vmatprep.mubr.bf16.mxu0 0
  %436 = vmatmul.mubr.bf16.gmra.mrb[0].mxu0 %v180
  %v437 = vpop.f32.mrb[0].mxu0
  %v438 = vadd.f32 %v88, %v437
  %v439 = vpop.f32.mrb[0].mxu0
  %v440 = vadd.f32 %v92, %v439
  %v441 = vpop.f32.mrb[0].mxu0
  %v442 = vadd.f32 %v88, %v441
  %v443 = vpop.f32.mrb[0].mxu0
  %v444 = vadd.f32 %v92, %v443
  %445 = vmatprep.mubr.bf16.mxu0 0
  %446 = vmatmul.mubr.bf16.gmra.mrb[0].mxu0 %v181
  %v447 = vpop.f32.mrb[0].mxu0
  %v448 = vadd.f32 %v88, %v447
  %v449 = vpop.f32.mrb[0].mxu0
  %v450 = vadd.f32 %v92, %v449
  %v451 = vpop.f32.mrb[0].mxu0
  %v452 = vadd.f32 %v88, %v451
  %v453 = vpop.f32.mrb[0].mxu0
  %v454 = vadd.f32 %v92, %v453
  %455 = vmatprep.mubr.bf16.mxu0 0
  %456 = vmatmul.mubr.bf16.gmra.mrb[0].mxu0 %v182
  %v457 = vpop.f32.mrb[0].mxu0
  %v458 = vadd.f32 %v88, %v457
  %v459 = vpop.f32.mrb[0].mxu0
  %v460 = vadd.f32 %v92, %v459
  %v461 = vpop.f32.mrb[0].mxu0
  %v462 = vadd.f32 %v88, %v461
  %v463 = vpop.f32.mrb[0].mxu0
  %v464 = vadd.f32 %v92, %v463
  %465 = vmatprep.mubr.bf16.mxu0 0
  %466 = vmatmul.mubr.bf16.gmra.mrb[0].mxu0 %v183
  %v467 = vpop.f32.mrb[0].mxu0
  %v468 = vadd.f32 %v88, %v467
  %v469 = vpop.f32.mrb[0].mxu0
  %v470 = vadd.f32 %v92, %v469
  %v471 = vpop.f32.mrb[0].mxu0
  %v472 = vadd.f32 %v88, %v471
  %v473 = vpop.f32.mrb[0].mxu0
  %v474 = vadd.f32 %v92, %v473
  %475 = vmatprep.mubr.bf16.mxu0 0
  %476 = vmatmul.mubr.bf16.gmra.mrb[0].mxu0 %v184
  %v477 = vpop.f32.mrb[0].mxu0
  %v478 = vadd.f32 %v88, %v477
  %v479 = vpop.f32.mrb[0].mxu0
  %v480 = vadd.f32 %v92, %v479
  %v481 = vpop.f32.mrb[0].mxu0
  %v482 = vadd.f32 %v88, %v481
  %v483 = vpop.f32.mrb[0].mxu0
  %v484 = vadd.f32 %v92, %v483
  %485 = vmatprep.mubr.bf16.mxu0 0
  %486 = vmatmul.mubr.bf16.gmra.mrb[0].mxu0 %v185
  %v487 = vpop.f32.mrb[0].mxu0
  %v488 = vadd.f32 %v88, %v487
  %v489 = vpop.f32.mrb[0].mxu0
  %v490 = vadd.f32 %v92, %v489
  %v491 = vpop.f32.mrb[0].mxu0
  %v492 = vadd.f32 %v88, %v491
  %v493 = vpop.f32.mrb[0].mxu0
  %v494 = vadd.f32 %v92, %v493
  %495 = vmatprep.mubr.bf16.mxu0 0
  %496 = vmatmul.mubr.bf16.gmra.mrb[0].mxu0 %v186
  %v497 = vpop.f32.mrb[0].mxu0
  %v498 = vadd.f32 %v88, %v497
  %v499 = vpop.f32.mrb[0].mxu0
  %v500 = vadd.f32 %v92, %v499
  %v501 = vpop.f32.mrb[0].mxu0
  %v502 = vadd.f32 %v88, %v501
  %v503 = vpop.f32.mrb[0].mxu0
  %v504 = vadd.f32 %v92, %v503
  %505 = vmatprep.mubr.bf16.mxu0 0
  %506 = vmatmul.mubr.bf16.gmra.mrb[0].mxu0 %v187
  %v507 = vpop.f32.mrb[0].mxu0
  %v508 = vadd.f32 %v88, %v507
  %v509 = vpop.f32.mrb[0].mxu0
  %v510 = vadd.f32 %v92, %v509
  %v511 = vpop.f32.mrb[0].mxu0
  %v512 = vadd.f32 %v88, %v511
  %v513 = vpop.f32.mrb[0].mxu0
  %v514 = vadd.f32 %v92, %v513
  %515 = vmatprep.mubr.bf16.mxu0 0
  %516 = vmatmul.mubr.bf16.gmra.mrb[0].mxu0 %v188
  %v517 = vpop.f32.mrb[0].mxu0
  %v518 = vadd.f32 %v88, %v517
  %v519 = vpop.f32.mrb[0].mxu0
  %v520 = vadd.f32 %v92, %v519
  %v521 = vpop.f32.mrb[0].mxu0
  %v522 = vadd.f32 %v88, %v521
  %v523 = vpop.f32.mrb[0].mxu0
  %v524 = vadd.f32 %v92, %v523
  %525 = vmatprep.mubr.bf16.mxu0 0
  %526 = vmatmul.mubr.bf16.gmra.mrb[0].mxu0 %v189
  %v527 = vpop.f32.mrb[0].mxu0
  %v528 = vadd.f32 %v88, %v527
  %v529 = vpop.f32.mrb[0].mxu0
  %v530 = vadd.f32 %v92, %v529
  %v531 = vpop.f32.mrb[0].mxu0
  %v532 = vadd.f32 %v88, %v531
  %v533 = vpop.f32.mrb[0].mxu0
  %v534 = vadd.f32 %v92, %v533
  %535 = vmatprep.mubr.bf16.mxu0 0
  %536 = vmatmul.mubr.bf16.gmra.mrb[0].mxu0 %v190
  %v537 = vpop.f32.mrb[0].mxu0
  %v538 = vadd.f32 %v88, %v537
  %v539 = vpop.f32.mrb[0].mxu0
  %v540 = vadd.f32 %v92, %v539
  %v541 = vpop.f32.mrb[0].mxu0
  %v542 = vadd.f32 %v88, %v541
  %v543 = vpop.f32.mrb[0].mxu0
  %v544 = vadd.f32 %v92, %v543
  %545 = vmatprep.mubr.bf16.mxu0 0
  %546 = vmatmul.mubr.bf16.gmra.mrb[0].mxu0 %v191
  %v547 = vpop.f32.mrb[0].mxu0
  %v548 = vadd.f32 %v88, %v547
  %v549 = vpop.f32.mrb[0].mxu0
  %v550 = vadd.f32 %v92, %v549
  %v551 = vpop.f32.mrb[0].mxu0
  %v552 = vadd.f32 %v88, %v551
  %v553 = vpop.f32.mrb[0].mxu0
  %v554 = vadd.f32 %v92, %v553
  %555 = vmatprep.mubr.bf16.mxu0 0
  %556 = vmatmul.mubr.bf16.gmra.mrb[0].mxu0 %v192
  %v557 = vpop.f32.mrb[0].mxu0
  %v558 = vadd.f32 %v88, %v557
  %v559 = vpop.f32.mrb[0].mxu0
  %v560 = vadd.f32 %v92, %v559
  %v561 = vpop.f32.mrb[0].mxu0
  %v562 = vadd.f32 %v88, %v561
  %v563 = vpop.f32.mrb[0].mxu0
  %v564 = vadd.f32 %v92, %v563
  %565 = vmatprep.mubr.bf16.mxu0 0
  %566 = vmatmul.mubr.bf16.gmra.mrb[0].mxu0 %v193
  %v567 = vpop.f32.mrb[0].mxu0
  %v568 = vadd.f32 %v88, %v567
  %v569 = vpop.f32.mrb[0].mxu0
  %v570 = vadd.f32 %v92, %v569
  %v571 = vpop.f32.mrb[0].mxu0
  %v572 = vadd.f32 %v88, %v571
  %v573 = vpop.f32.mrb[0].mxu0
  %v574 = vadd.f32 %v92, %v573
  %575 = vmatprep.mubr.bf16.mxu0 0
  %576 = vmatmul.mubr.bf16.gmra.mrb[0].mxu0 %v194
  %v577 = vpop.f32.mrb[0].mxu0
  %v578 = vadd.f32 %v88, %v577
  %v579 = vpop.f32.mrb[0].mxu0
  %v580 = vadd.f32 %v92, %v579
  %v581 = vpop.f32.mrb[0].mxu0
  %v582 = vadd.f32 %v88, %v581
  %v583 = vpop.f32.mrb[0].mxu0
  %v584 = vadd.f32 %v92, %v583
  %585 = vdwg.mxu0
  %586 = vmatprep.subr.bf16.mxu0 %v312
  %587 = vmatpush1.bf16.msra.mxu0 %v311
  %588 = vmatprep.subr.bf16.mxu0 %v316
  %589 = vmatpush1.bf16.msra.mxu0 %v315
  %590 = vmatprep.subr.bf16.mxu0 %v320
  %591 = vmatpush1.bf16.msra.mxu0 %v319
  %592 = vmatprep.subr.bf16.mxu0 %v324
  %593 = vmatpush1.bf16.msra.mxu0 %v323
  %594 = vmatprep.subr.bf16.mxu0 %v328
  %595 = vmatpush1.bf16.msra.mxu0 %v327
  %596 = vmatprep.subr.bf16.mxu0 %v332
  %597 = vmatpush1.bf16.msra.mxu0 %v331
  %598 = vmatprep.subr.bf16.mxu0 %v336
  %599 = vmatpush1.bf16.msra.mxu0 %v335
  %600 = vmatprep.subr.bf16.mxu0 %v340
  %601 = vmatpush1.bf16.msra.mxu0 %v339
  %602 = vmatprep.subr.bf16.mxu0 0
  %603 = vmatpush1.bf16.msra.mxu0 0
  %604 = vmatprep.subr.bf16.mxu0 0
  %605 = vmatpush1.bf16.msra.mxu0 0
  %606 = vmatprep.subr.bf16.mxu0 0
  %607 = vmatpush1.bf16.msra.mxu0 0
  %608 = vmatprep.subr.bf16.mxu0 0
  %609 = vmatpush1.bf16.msra.mxu0 0
  %610 = vmatprep.subr.bf16.mxu0 0
  %611 = vmatpush1.bf16.msra.mxu0 0
  %612 = vmatprep.subr.bf16.mxu0 0
  %613 = vmatpush1.bf16.msra.mxu0 0
  %614 = vmatprep.subr.bf16.mxu0 0
  %615 = vmatpush1.bf16.msra.mxu0 0
  %616 = vmatprep.subr.bf16.mxu0 0
  %617 = vmatpush1.bf16.msra.mxu0 0
  %618 = vmatprep.mubr.bf16.mxu0 0
  %619 = vmatmul.mubr.bf16.gmra.mrb[0].mxu0 %v177
  %v620 = vpop.f32.mrb[0].mxu0
  %v621 = vadd.f32 %v96, %v620
  %v622 = vpop.f32.mrb[0].mxu0
  %v623 = vadd.f32 %v100, %v622
  %v624 = vpop.f32.mrb[0].mxu0
  %v625 = vadd.f32 %v96, %v624
  %v626 = vpop.f32.mrb[0].mxu0
  %v627 = vadd.f32 %v100, %v626
  %628 = vmatprep.mubr.bf16.mxu0 0
  %629 = vmatmul.mubr.bf16.gmra.mrb[0].mxu0 %v178
  %v630 = vpop.f32.mrb[0].mxu0
  %v631 = vadd.f32 %v96, %v630
  %v632 = vpop.f32.mrb[0].mxu0
  %v633 = vadd.f32 %v100, %v632
  %v634 = vpop.f32.mrb[0].mxu0
  %v635 = vadd.f32 %v96, %v634
  %v636 = vpop.f32.mrb[0].mxu0
  %v637 = vadd.f32 %v100, %v636
  %638 = vmatprep.mubr.bf16.mxu0 0
  %639 = vmatmul.mubr.bf16.gmra.mrb[0].mxu0 %v179
  %v640 = vpop.f32.mrb[0].mxu0
  %v641 = vadd.f32 %v96, %v640
  %v642 = vpop.f32.mrb[0].mxu0
  %v643 = vadd.f32 %v100, %v642
  %v644 = vpop.f32.mrb[0].mxu0
  %v645 = vadd.f32 %v96, %v644
  %v646 = vpop.f32.mrb[0].mxu0
  %v647 = vadd.f32 %v100, %v646
  %648 = vmatprep.mubr.bf16.mxu0 0
  %649 = vmatmul.mubr.bf16.gmra.mrb[0].mxu0 %v180
  %v650 = vpop.f32.mrb[0].mxu0
  %v651 = vadd.f32 %v96, %v650
  %v652 = vpop.f32.mrb[0].mxu0
  %v653 = vadd.f32 %v100, %v652
  %v654 = vpop.f32.mrb[0].mxu0
  %v655 = vadd.f32 %v96, %v654
  %v656 = vpop.f32.mrb[0].mxu0
  %v657 = vadd.f32 %v100, %v656
  %658 = vmatprep.mubr.bf16.mxu0 0
  %659 = vmatmul.mubr.bf16.gmra.mrb[0].mxu0 %v181
  %v660 = vpop.f32.mrb[0].mxu0
  %v661 = vadd.f32 %v96, %v660
  %v662 = vpop.f32.mrb[0].mxu0
  %v663 = vadd.f32 %v100, %v662
  %v664 = vpop.f32.mrb[0].mxu0
  %v665 = vadd.f32 %v96, %v664
  %v666 = vpop.f32.mrb[0].mxu0
  %v667 = vadd.f32 %v100, %v666
  %668 = vmatprep.mubr.bf16.mxu0 0
  %669 = vmatmul.mubr.bf16.gmra.mrb[0].mxu0 %v182
  %v670 = vpop.f32.mrb[0].mxu0
  %v671 = vadd.f32 %v96, %v670
  %v672 = vpop.f32.mrb[0].mxu0
  %v673 = vadd.f32 %v100, %v672
  %v674 = vpop.f32.mrb[0].mxu0
  %v675 = vadd.f32 %v96, %v674
  %v676 = vpop.f32.mrb[0].mxu0
  %v677 = vadd.f32 %v100, %v676
  %678 = vmatprep.mubr.bf16.mxu0 0
  %679 = vmatmul.mubr.bf16.gmra.mrb[0].mxu0 %v183
  %v680 = vpop.f32.mrb[0].mxu0
  %v681 = vadd.f32 %v96, %v680
  %v682 = vpop.f32.mrb[0].mxu0
  %v683 = vadd.f32 %v100, %v682
  %v684 = vpop.f32.mrb[0].mxu0
  %v685 = vadd.f32 %v96, %v684
  %v686 = vpop.f32.mrb[0].mxu0
  %v687 = vadd.f32 %v100, %v686
  %688 = vmatprep.mubr.bf16.mxu0 0
  %689 = vmatmul.mubr.bf16.gmra.mrb[0].mxu0 %v184
  %v690 = vpop.f32.mrb[0].mxu0
  %v691 = vadd.f32 %v96, %v690
  %v692 = vpop.f32.mrb[0].mxu0
  %v693 = vadd.f32 %v100, %v692
  %v694 = vpop.f32.mrb[0].mxu0
  %v695 = vadd.f32 %v96, %v694
  %v696 = vpop.f32.mrb[0].mxu0
  %v697 = vadd.f32 %v100, %v696
  %698 = vmatprep.mubr.bf16.mxu0 0
  %699 = vmatmul.mubr.bf16.gmra.mrb[0].mxu0 %v185
  %v700 = vpop.f32.mrb[0].mxu0
  %v701 = vadd.f32 %v96, %v700
  %v702 = vpop.f32.mrb[0].mxu0
  %v703 = vadd.f32 %v100, %v702
  %v704 = vpop.f32.mrb[0].mxu0
  %v705 = vadd.f32 %v96, %v704
  %v706 = vpop.f32.mrb[0].mxu0
  %v707 = vadd.f32 %v100, %v706
  %708 = vmatprep.mubr.bf16.mxu0 0
  %709 = vmatmul.mubr.bf16.gmra.mrb[0].mxu0 %v186
  %v710 = vpop.f32.mrb[0].mxu0
  %v711 = vadd.f32 %v96, %v710
  %v712 = vpop.f32.mrb[0].mxu0
  %v713 = vadd.f32 %v100, %v712
  %v714 = vpop.f32.mrb[0].mxu0
  %v715 = vadd.f32 %v96, %v714
  %v716 = vpop.f32.mrb[0].mxu0
  %v717 = vadd.f32 %v100, %v716
  %718 = vmatprep.mubr.bf16.mxu0 0
  %719 = vmatmul.mubr.bf16.gmra.mrb[0].mxu0 %v187
  %v720 = vpop.f32.mrb[0].mxu0
  %v721 = vadd.f32 %v96, %v720
  %v722 = vpop.f32.mrb[0].mxu0
  %v723 = vadd.f32 %v100, %v722
  %v724 = vpop.f32.mrb[0].mxu0
  %v725 = vadd.f32 %v96, %v724
  %v726 = vpop.f32.mrb[0].mxu0
  %v727 = vadd.f32 %v100, %v726
  %728 = vmatprep.mubr.bf16.mxu0 0
  %729 = vmatmul.mubr.bf16.gmra.mrb[0].mxu0 %v188
  %v730 = vpop.f32.mrb[0].mxu0
  %v731 = vadd.f32 %v96, %v730
  %v732 = vpop.f32.mrb[0].mxu0
  %v733 = vadd.f32 %v100, %v732
  %v734 = vpop.f32.mrb[0].mxu0
  %v735 = vadd.f32 %v96, %v734
  %v736 = vpop.f32.mrb[0].mxu0
  %v737 = vadd.f32 %v100, %v736
  %738 = vmatprep.mubr.bf16.mxu0 0
  %739 = vmatmul.mubr.bf16.gmra.mrb[0].mxu0 %v189
  %v740 = vpop.f32.mrb[0].mxu0
  %v741 = vadd.f32 %v96, %v740
  %v742 = vpop.f32.mrb[0].mxu0
  %v743 = vadd.f32 %v100, %v742
  %v744 = vpop.f32.mrb[0].mxu0
  %v745 = vadd.f32 %v96, %v744
  %v746 = vpop.f32.mrb[0].mxu0
  %v747 = vadd.f32 %v100, %v746
  %748 = vmatprep.mubr.bf16.mxu0 0
  %749 = vmatmul.mubr.bf16.gmra.mrb[0].mxu0 %v190
  %v750 = vpop.f32.mrb[0].mxu0
  %v751 = vadd.f32 %v96, %v750
  %v752 = vpop.f32.mrb[0].mxu0
  %v753 = vadd.f32 %v100, %v752
  %v754 = vpop.f32.mrb[0].mxu0
  %v755 = vadd.f32 %v96, %v754
  %v756 = vpop.f32.mrb[0].mxu0
  %v757 = vadd.f32 %v100, %v756
  %758 = vmatprep.mubr.bf16.mxu0 0
  %759 = vmatmul.mubr.bf16.gmra.mrb[0].mxu0 %v191
  %v760 = vpop.f32.mrb[0].mxu0
  %v761 = vadd.f32 %v96, %v760
  %v762 = vpop.f32.mrb[0].mxu0
  %v763 = vadd.f32 %v100, %v762
  %v764 = vpop.f32.mrb[0].mxu0
  %v765 = vadd.f32 %v96, %v764
  %v766 = vpop.f32.mrb[0].mxu0
  %v767 = vadd.f32 %v100, %v766
  %768 = vmatprep.mubr.bf16.mxu0 0
  %769 = vmatmul.mubr.bf16.gmra.mrb[0].mxu0 %v192
  %v770 = vpop.f32.mrb[0].mxu0
  %v771 = vadd.f32 %v96, %v770
  %v772 = vpop.f32.mrb[0].mxu0
  %v773 = vadd.f32 %v100, %v772
  %v774 = vpop.f32.mrb[0].mxu0
  %v775 = vadd.f32 %v96, %v774
  %v776 = vpop.f32.mrb[0].mxu0
  %v777 = vadd.f32 %v100, %v776
  %778 = vmatprep.mubr.bf16.mxu0 0
  %779 = vmatmul.mubr.bf16.gmra.mrb[0].mxu0 %v193
  %v780 = vpop.f32.mrb[0].mxu0
  %v781 = vadd.f32 %v96, %v780
  %v782 = vpop.f32.mrb[0].mxu0
  %v783 = vadd.f32 %v100, %v782
  %v784 = vpop.f32.mrb[0].mxu0
  %v785 = vadd.f32 %v96, %v784
  %v786 = vpop.f32.mrb[0].mxu0
  %v787 = vadd.f32 %v100, %v786
  %788 = vmatprep.mubr.bf16.mxu0 0
  %789 = vmatmul.mubr.bf16.gmra.mrb[0].mxu0 %v194
  %v790 = vpop.f32.mrb[0].mxu0
  %v791 = vadd.f32 %v96, %v790
  %v792 = vpop.f32.mrb[0].mxu0
  %v793 = vadd.f32 %v100, %v792
  %v794 = vpop.f32.mrb[0].mxu0
  %v795 = vadd.f32 %v96, %v794
  %v796 = vpop.f32.mrb[0].mxu0
  %v797 = vadd.f32 %v100, %v796
  %798 = vdwg.mxu0
  %v799 = vpack.c.bf16 %v412, %v408
  %v800 = vpack.c.bf16 %v414, %v410
  %v801 = vpack.c.bf16 %v625, %v621
  %v802 = vpack.c.bf16 %v627, %v623
  %v803 = vpack.c.bf16 %v422, %v418
  %v804 = vpack.c.bf16 %v424, %v420
  %v805 = vpack.c.bf16 %v635, %v631
  %v806 = vpack.c.bf16 %v637, %v633
  %v807 = vpack.c.bf16 %v432, %v428
  %v808 = vpack.c.bf16 %v434, %v430
  %v809 = vpack.c.bf16 %v645, %v641
  %v810 = vpack.c.bf16 %v647, %v643
  %v811 = vpack.c.bf16 %v442, %v438
  %v812 = vpack.c.bf16 %v444, %v440
  %v813 = vpack.c.bf16 %v655, %v651
  %v814 = vpack.c.bf16 %v657, %v653
  %v815 = vpack.c.bf16 %v452, %v448
  %v816 = vpack.c.bf16 %v454, %v450
  %v817 = vpack.c.bf16 %v665, %v661
  %v818 = vpack.c.bf16 %v667, %v663
  %v819 = vpack.c.bf16 %v462, %v458
  %v820 = vpack.c.bf16 %v464, %v460
  %v821 = vpack.c.bf16 %v675, %v671
  %v822 = vpack.c.bf16 %v677, %v673
  %v823 = vpack.c.bf16 %v472, %v468
  %v824 = vpack.c.bf16 %v474, %v470
  %v825 = vpack.c.bf16 %v685, %v681
  %v826 = vpack.c.bf16 %v687, %v683
  %v827 = vpack.c.bf16 %v482, %v478
  %v828 = vpack.c.bf16 %v484, %v480
  %v829 = vpack.c.bf16 %v695, %v691
  %v830 = vpack.c.bf16 %v697, %v693
  %v831 = vpack.c.bf16 %v492, %v488
  %v832 = vpack.c.bf16 %v494, %v490
  %v833 = vpack.c.bf16 %v705, %v701
  %v834 = vpack.c.bf16 %v707, %v703
  %v835 = vpack.c.bf16 %v502, %v498
  %v836 = vpack.c.bf16 %v504, %v500
  %v837 = vpack.c.bf16 %v715, %v711
  %v838 = vpack.c.bf16 %v717, %v713
  %v839 = vpack.c.bf16 %v512, %v508
  %v840 = vpack.c.bf16 %v514, %v510
  %v841 = vpack.c.bf16 %v725, %v721
  %v842 = vpack.c.bf16 %v727, %v723
  %v843 = vpack.c.bf16 %v522, %v518
  %v844 = vpack.c.bf16 %v524, %v520
  %v845 = vpack.c.bf16 %v735, %v731
  %v846 = vpack.c.bf16 %v737, %v733
  %v847 = vpack.c.bf16 %v532, %v528
  %v848 = vpack.c.bf16 %v534, %v530
  %v849 = vpack.c.bf16 %v745, %v741
  %v850 = vpack.c.bf16 %v747, %v743
  %v851 = vpack.c.bf16 %v542, %v538
  %v852 = vpack.c.bf16 %v544, %v540
  %v853 = vpack.c.bf16 %v755, %v751
  %v854 = vpack.c.bf16 %v757, %v753
  %v855 = vpack.c.bf16 %v552, %v548
  %v856 = vpack.c.bf16 %v554, %v550
  %v857 = vpack.c.bf16 %v765, %v761
  %v858 = vpack.c.bf16 %v767, %v763
  %v859 = vpack.c.bf16 %v562, %v558
  %v860 = vpack.c.bf16 %v564, %v560
  %v861 = vpack.c.bf16 %v775, %v771
  %v862 = vpack.c.bf16 %v777, %v773
  %v863 = vpack.c.bf16 %v572, %v568
  %v864 = vpack.c.bf16 %v574, %v570
  %v865 = vpack.c.bf16 %v785, %v781
  %v866 = vpack.c.bf16 %v787, %v783
  %v867 = vpack.c.bf16 %v582, %v578
  %v868 = vpack.c.bf16 %v584, %v580
  %v869 = vpack.c.bf16 %v795, %v791
  %v870 = vpack.c.bf16 %v797, %v793
  %v943 = vunpack.c.l.b16 %v799
  %v944 = vunpack.c.l.b16 %v800
  %v945 = vunpack.c.l.b16 %v801
  %v946 = vunpack.c.l.b16 %v802
  %v947 = vunpack.c.h.b16 %v799
  %v948 = vunpack.c.h.b16 %v800
  %v949 = vunpack.c.h.b16 %v801
  %v950 = vunpack.c.h.b16 %v802
  %v951 = vunpack.c.l.b16 %v803
  %v952 = vunpack.c.l.b16 %v804
  %v953 = vunpack.c.l.b16 %v805
  %v954 = vunpack.c.l.b16 %v806
  %v955 = vunpack.c.h.b16 %v803
  %v956 = vunpack.c.h.b16 %v804
  %v957 = vunpack.c.h.b16 %v805
  %v958 = vunpack.c.h.b16 %v806
  %v959 = vunpack.c.l.b16 %v807
  %v960 = vunpack.c.l.b16 %v808
  %v961 = vunpack.c.l.b16 %v809
  %v962 = vunpack.c.l.b16 %v810
  %v963 = vunpack.c.h.b16 %v807
  %v964 = vunpack.c.h.b16 %v808
  %v965 = vunpack.c.h.b16 %v809
  %v966 = vunpack.c.h.b16 %v810
  %v967 = vunpack.c.l.b16 %v811
  %v968 = vunpack.c.l.b16 %v812
  %v969 = vunpack.c.l.b16 %v813
  %v970 = vunpack.c.l.b16 %v814
  %v971 = vunpack.c.h.b16 %v811
  %v972 = vunpack.c.h.b16 %v812
  %v973 = vunpack.c.h.b16 %v813
  %v974 = vunpack.c.h.b16 %v814
  %v975 = vunpack.c.l.b16 %v815
  %v976 = vunpack.c.l.b16 %v816
  %v977 = vunpack.c.l.b16 %v817
  %v978 = vunpack.c.l.b16 %v818
  %v979 = vunpack.c.h.b16 %v815
  %v980 = vunpack.c.h.b16 %v816
  %v981 = vunpack.c.h.b16 %v817
  %v982 = vunpack.c.h.b16 %v818
  %v983 = vunpack.c.l.b16 %v819
  %v984 = vunpack.c.l.b16 %v820
  %v985 = vunpack.c.l.b16 %v821
  %v986 = vunpack.c.l.b16 %v822
  %v987 = vunpack.c.h.b16 %v819
  %v988 = vunpack.c.h.b16 %v820
  %v989 = vunpack.c.h.b16 %v821
  %v990 = vunpack.c.h.b16 %v822
  %v991 = vunpack.c.l.b16 %v823
  %v992 = vunpack.c.l.b16 %v824
  %v993 = vunpack.c.l.b16 %v825
  %v994 = vunpack.c.l.b16 %v826
  %v995 = vunpack.c.h.b16 %v823
  %v996 = vunpack.c.h.b16 %v824
  %v997 = vunpack.c.h.b16 %v825
  %v998 = vunpack.c.h.b16 %v826
  %v999 = vunpack.c.l.b16 %v827
  %v1000 = vunpack.c.l.b16 %v828
  %v1001 = vunpack.c.l.b16 %v829
  %v1002 = vunpack.c.l.b16 %v830
  %v1003 = vunpack.c.h.b16 %v827
  %v1004 = vunpack.c.h.b16 %v828
  %v1005 = vunpack.c.h.b16 %v829
  %v1006 = vunpack.c.h.b16 %v830
  %v1007 = vunpack.c.l.b16 %v831
  %v1008 = vunpack.c.l.b16 %v832
  %v1009 = vunpack.c.l.b16 %v833
  %v1010 = vunpack.c.l.b16 %v834
  %v1011 = vunpack.c.h.b16 %v831
  %v1012 = vunpack.c.h.b16 %v832
  %v1013 = vunpack.c.h.b16 %v833
  %v1014 = vunpack.c.h.b16 %v834
  %v1015 = vunpack.c.l.b16 %v835
  %v1016 = vunpack.c.l.b16 %v836
  %v1017 = vunpack.c.l.b16 %v837
  %v1018 = vunpack.c.l.b16 %v838
  %v1019 = vunpack.c.h.b16 %v835
  %v1020 = vunpack.c.h.b16 %v836
  %v1021 = vunpack.c.h.b16 %v837
  %v1022 = vunpack.c.h.b16 %v838
  %v1023 = vunpack.c.l.b16 %v839
  %v1024 = vunpack.c.l.b16 %v840
  %v1025 = vunpack.c.l.b16 %v841
  %v1026 = vunpack.c.l.b16 %v842
  %v1027 = vunpack.c.h.b16 %v839
  %v1028 = vunpack.c.h.b16 %v840
  %v1029 = vunpack.c.h.b16 %v841
  %v1030 = vunpack.c.h.b16 %v842
  %v1031 = vunpack.c.l.b16 %v843
  %v1032 = vunpack.c.l.b16 %v844
  %v1033 = vunpack.c.l.b16 %v845
  %v1034 = vunpack.c.l.b16 %v846
  %v1035 = vunpack.c.h.b16 %v843
  %v1036 = vunpack.c.h.b16 %v844
  %v1037 = vunpack.c.h.b16 %v845
  %v1038 = vunpack.c.h.b16 %v846
  %v1039 = vunpack.c.l.b16 %v847
  %v1040 = vunpack.c.l.b16 %v848
  %v1041 = vunpack.c.l.b16 %v849
  %v1042 = vunpack.c.l.b16 %v850
  %v1043 = vunpack.c.h.b16 %v847
  %v1044 = vunpack.c.h.b16 %v848
  %v1045 = vunpack.c.h.b16 %v849
  %v1046 = vunpack.c.h.b16 %v850
  %v1047 = vunpack.c.l.b16 %v851
  %v1048 = vunpack.c.l.b16 %v852
  %v1049 = vunpack.c.l.b16 %v853
  %v1050 = vunpack.c.l.b16 %v854
  %v1051 = vunpack.c.h.b16 %v851
  %v1052 = vunpack.c.h.b16 %v852
  %v1053 = vunpack.c.h.b16 %v853
  %v1054 = vunpack.c.h.b16 %v854
  %v1055 = vunpack.c.l.b16 %v855
  %v1056 = vunpack.c.l.b16 %v856
  %v1057 = vunpack.c.l.b16 %v857
  %v1058 = vunpack.c.l.b16 %v858
  %v1059 = vunpack.c.h.b16 %v855
  %v1060 = vunpack.c.h.b16 %v856
  %v1061 = vunpack.c.h.b16 %v857
  %v1062 = vunpack.c.h.b16 %v858
  %v1063 = vunpack.c.l.b16 %v859
  %v1064 = vunpack.c.l.b16 %v860
  %v1065 = vunpack.c.l.b16 %v861
  %v1066 = vunpack.c.l.b16 %v862
  %v1067 = vunpack.c.h.b16 %v859
  %v1068 = vunpack.c.h.b16 %v860
  %v1069 = vunpack.c.h.b16 %v861
  %v1070 = vunpack.c.h.b16 %v862
  %v1071 = vunpack.c.l.b16 %v863
  %v1072 = vunpack.c.l.b16 %v864
  %v1073 = vunpack.c.l.b16 %v865
  %v1074 = vunpack.c.l.b16 %v866
  %v1075 = vunpack.c.h.b16 %v863
  %v1076 = vunpack.c.h.b16 %v864
  %v1077 = vunpack.c.h.b16 %v865
  %v1078 = vunpack.c.h.b16 %v866
  %v1079 = vunpack.c.l.b16 %v867
  %v1080 = vunpack.c.l.b16 %v868
  %v1081 = vunpack.c.l.b16 %v869
  %v1082 = vunpack.c.l.b16 %v870
  %v1083 = vunpack.c.h.b16 %v867
  %v1084 = vunpack.c.h.b16 %v868
  %v1085 = vunpack.c.h.b16 %v869
  %v1086 = vunpack.c.h.b16 %v870
  %v1087 = vpack.c.b16 %v944, %v943
  %v1088 = vpack.c.b16 %v946, %v945
  %v1089 = vpack.c.b16 %v948, %v947
  %v1090 = vpack.c.b16 %v950, %v949
  %v1091 = vpack.c.b16 %v952, %v951
  %v1092 = vpack.c.b16 %v954, %v953
  %v1093 = vpack.c.b16 %v956, %v955
  %v1094 = vpack.c.b16 %v958, %v957
  %v1095 = vpack.c.b16 %v960, %v959
  %v1096 = vpack.c.b16 %v962, %v961
  %v1097 = vpack.c.b16 %v964, %v963
  %v1098 = vpack.c.b16 %v966, %v965
  %v1099 = vpack.c.b16 %v968, %v967
  %v1100 = vpack.c.b16 %v970, %v969
  %v1101 = vpack.c.b16 %v972, %v971
  %v1102 = vpack.c.b16 %v974, %v973
  %v1103 = vpack.c.b16 %v976, %v975
  %v1104 = vpack.c.b16 %v978, %v977
  %v1105 = vpack.c.b16 %v980, %v979
  %v1106 = vpack.c.b16 %v982, %v981
  %v1107 = vpack.c.b16 %v984, %v983
  %v1108 = vpack.c.b16 %v986, %v985
  %v1109 = vpack.c.b16 %v988, %v987
  %v1110 = vpack.c.b16 %v990, %v989
  %v1111 = vpack.c.b16 %v992, %v991
  %v1112 = vpack.c.b16 %v994, %v993
  %v1113 = vpack.c.b16 %v996, %v995
  %v1114 = vpack.c.b16 %v998, %v997
  %v1115 = vpack.c.b16 %v1000, %v999
  %v1116 = vpack.c.b16 %v1002, %v1001
  %v1117 = vpack.c.b16 %v1004, %v1003
  %v1118 = vpack.c.b16 %v1006, %v1005
  %v1119 = vpack.c.b16 %v1008, %v1007
  %v1120 = vpack.c.b16 %v1010, %v1009
  %v1121 = vpack.c.b16 %v1012, %v1011
  %v1122 = vpack.c.b16 %v1014, %v1013
  %v1123 = vpack.c.b16 %v1016, %v1015
  %v1124 = vpack.c.b16 %v1018, %v1017
  %v1125 = vpack.c.b16 %v1020, %v1019
  %v1126 = vpack.c.b16 %v1022, %v1021
  %v1127 = vpack.c.b16 %v1024, %v1023
  %v1128 = vpack.c.b16 %v1026, %v1025
  %v1129 = vpack.c.b16 %v1028, %v1027
  %v1130 = vpack.c.b16 %v1030, %v1029
  %v1131 = vpack.c.b16 %v1032, %v1031
  %v1132 = vpack.c.b16 %v1034, %v1033
  %v1133 = vpack.c.b16 %v1036, %v1035
  %v1134 = vpack.c.b16 %v1038, %v1037
  %v1135 = vpack.c.b16 %v1040, %v1039
  %v1136 = vpack.c.b16 %v1042, %v1041
  %v1137 = vpack.c.b16 %v1044, %v1043
  %v1138 = vpack.c.b16 %v1046, %v1045
  %v1139 = vpack.c.b16 %v1048, %v1047
  %v1140 = vpack.c.b16 %v1050, %v1049
  %v1141 = vpack.c.b16 %v1052, %v1051
  %v1142 = vpack.c.b16 %v1054, %v1053
  %v1143 = vpack.c.b16 %v1056, %v1055
  %v1144 = vpack.c.b16 %v1058, %v1057
  %v1145 = vpack.c.b16 %v1060, %v1059
  %v1146 = vpack.c.b16 %v1062, %v1061
  %v1147 = vpack.c.b16 %v1064, %v1063
  %v1148 = vpack.c.b16 %v1066, %v1065
  %v1149 = vpack.c.b16 %v1068, %v1067
  %v1150 = vpack.c.b16 %v1070, %v1069
  %v1151 = vpack.c.b16 %v1072, %v1071
  %v1152 = vpack.c.b16 %v1074, %v1073
  %v1153 = vpack.c.b16 %v1076, %v1075
  %v1154 = vpack.c.b16 %v1078, %v1077
  %v1155 = vpack.c.b16 %v1080, %v1079
  %v1156 = vpack.c.b16 %v1082, %v1081
  %v1157 = vpack.c.b16 %v1084, %v1083
  %v1158 = vpack.c.b16 %v1086, %v1085
  %1231 = vst [vmem:[%s3] sm:$0xff] %v1087
  %1232 = vst [vmem:[%s3 + $0x8] sm:$0xff] %v1088
  %1233 = vst [vmem:[%s3 + $0x10] sm:$0xff] %v1089
  %1234 = vst [vmem:[%s3 + $0x18] sm:$0xff] %v1090
  %1235 = vst [vmem:[%s3 + $0x20] sm:$0xff] %v1091
  %1236 = vst [vmem:[%s3 + $0x28] sm:$0xff] %v1092
  %1237 = vst [vmem:[%s3 + $0x30] sm:$0xff] %v1093
  %1238 = vst [vmem:[%s3 + $0x38] sm:$0xff] %v1094
  %1239 = vst [vmem:[%s3 + $0x40] sm:$0xff] %v1095
  %1240 = vst [vmem:[%s3 + $0x48] sm:$0xff] %v1096
  %1241 = vst [vmem:[%s3 + $0x50] sm:$0xff] %v1097
  %1242 = vst [vmem:[%s3 + $0x58] sm:$0xff] %v1098
  %1243 = vst [vmem:[%s3 + $0x60] sm:$0xff] %v1099
  %1244 = vst [vmem:[%s3 + $0x68] sm:$0xff] %v1100
  %1245 = vst [vmem:[%s3 + $0x70] sm:$0xff] %v1101
  %1246 = vst [vmem:[%s3 + $0x78] sm:$0xff] %v1102
  %1247 = vst [vmem:[%s3 + $0x80] sm:$0xff] %v1103
  %1248 = vst [vmem:[%s3 + $0x88] sm:$0xff] %v1104
  %1249 = vst [vmem:[%s3 + $0x90] sm:$0xff] %v1105
  %1250 = vst [vmem:[%s3 + $0x98] sm:$0xff] %v1106
  %1251 = vst [vmem:[%s3 + $0xa0] sm:$0xff] %v1107
  %1252 = vst [vmem:[%s3 + $0xa8] sm:$0xff] %v1108
  %1253 = vst [vmem:[%s3 + $0xb0] sm:$0xff] %v1109
  %1254 = vst [vmem:[%s3 + $0xb8] sm:$0xff] %v1110
  %1255 = vst [vmem:[%s3 + $0xc0] sm:$0xff] %v1111
  %1256 = vst [vmem:[%s3 + $0xc8] sm:$0xff] %v1112
  %1257 = vst [vmem:[%s3 + $0xd0] sm:$0xff] %v1113
  %1258 = vst [vmem:[%s3 + $0xd8] sm:$0xff] %v1114
  %1259 = vst [vmem:[%s3 + $0xe0] sm:$0xff] %v1115
  %1260 = vst [vmem:[%s3 + $0xe8] sm:$0xff] %v1116
  %1261 = vst [vmem:[%s3 + $0xf0] sm:$0xff] %v1117
  %1262 = vst [vmem:[%s3 + $0xf8] sm:$0xff] %v1118
  %1263 = vst [vmem:[%s3 + $0x100] sm:$0xff] %v1119
  %1264 = vst [vmem:[%s3 + $0x108] sm:$0xff] %v1120
  %1265 = vst [vmem:[%s3 + $0x110] sm:$0xff] %v1121
  %1266 = vst [vmem:[%s3 + $0x118] sm:$0xff] %v1122
  %1267 = vst [vmem:[%s3 + $0x120] sm:$0xff] %v1123
  %1268 = vst [vmem:[%s3 + $0x128] sm:$0xff] %v1124
  %1269 = vst [vmem:[%s3 + $0x130] sm:$0xff] %v1125
  %1270 = vst [vmem:[%s3 + $0x138] sm:$0xff] %v1126
  %1271 = vst [vmem:[%s3 + $0x140] sm:$0xff] %v1127
  %1272 = vst [vmem:[%s3 + $0x148] sm:$0xff] %v1128
  %1273 = vst [vmem:[%s3 + $0x150] sm:$0xff] %v1129
  %1274 = vst [vmem:[%s3 + $0x158] sm:$0xff] %v1130
  %1275 = vst [vmem:[%s3 + $0x160] sm:$0xff] %v1131
  %1276 = vst [vmem:[%s3 + $0x168] sm:$0xff] %v1132
  %1277 = vst [vmem:[%s3 + $0x170] sm:$0xff] %v1133
  %1278 = vst [vmem:[%s3 + $0x178] sm:$0xff] %v1134
  %1279 = vst [vmem:[%s3 + $0x180] sm:$0xff] %v1135
  %1280 = vst [vmem:[%s3 + $0x188] sm:$0xff] %v1136
  %1281 = vst [vmem:[%s3 + $0x190] sm:$0xff] %v1137
  %1282 = vst [vmem:[%s3 + $0x198] sm:$0xff] %v1138
  %1283 = vst [vmem:[%s3 + $0x1a0] sm:$0xff] %v1139
  %1284 = vst [vmem:[%s3 + $0x1a8] sm:$0xff] %v1140
  %1285 = vst [vmem:[%s3 + $0x1b0] sm:$0xff] %v1141
  %1286 = vst [vmem:[%s3 + $0x1b8] sm:$0xff] %v1142
  %1287 = vst [vmem:[%s3 + $0x1c0] sm:$0xff] %v1143
  %1288 = vst [vmem:[%s3 + $0x1c8] sm:$0xff] %v1144
  %1289 = vst [vmem:[%s3 + $0x1d0] sm:$0xff] %v1145
  %1290 = vst [vmem:[%s3 + $0x1d8] sm:$0xff] %v1146
  %1291 = vst [vmem:[%s3 + $0x1e0] sm:$0xff] %v1147
  %1292 = vst [vmem:[%s3 + $0x1e8] sm:$0xff] %v1148
  %1293 = vst [vmem:[%s3 + $0x1f0] sm:$0xff] %v1149
  %1294 = vst [vmem:[%s3 + $0x1f8] sm:$0xff] %v1150
  %1295 = vst [vmem:[%s3 + $0x200] sm:$0xff] %v1151
  %1296 = vst [vmem:[%s3 + $0x208] sm:$0xff] %v1152
  %1297 = vst [vmem:[%s3 + $0x210] sm:$0xff] %v1153
  %1298 = vst [vmem:[%s3 + $0x218] sm:$0xff] %v1154
  %1299 = vst [vmem:[%s3 + $0x220] sm:$0xff] %v1155
  %1300 = vst [vmem:[%s3 + $0x228] sm:$0xff] %v1156
  %1301 = vst [vmem:[%s3 + $0x230] sm:$0xff] %v1157
  %1302 = vst [vmem:[%s3 + $0x238] sm:$0xff] %v1158
  // Predicated region
  $region14: #{conv3dlstm_forward.16} parent=0 // pred_check
    _
  $region15: #{conv3dlstm_forward.16} parent=0 // pred_check_branch
    %1304 = sbr.rel (0) target = $region17
  $region16: #{conv3dlstm_forward.16} parent=0 // pred_region
    _
  $region17: #{conv3dlstm_forward.16} parent=0 // pred_fallthru
    _
  // Predicated region
  $region18: #{conv3dlstm_forward.16} parent=0 // pred_check
    _
  $region19: #{conv3dlstm_forward.16} parent=0 // pred_check_branch
    %1306 = sbr.rel (0) target = $region21
  $region20: #{conv3dlstm_forward.16} parent=0 // pred_region
    _
  $region21: #{conv3dlstm_forward.16} parent=0 // pred_fallthru
    _

// kernel: conv3dlstm_forward.17
$region0: #{conv3dlstm_forward.17}
  #allocation0 [shape = 'u32[]', space=smem, size = 0x4, offset = 0x4, fixed_abs, tag = 'smem constant byte address 0x4 - core index']
  #allocation1 [shape = 'u32[144,128]{1,0:T(1,128)}', space=vmem, size = 0x12000, scoped, tag = 'internal scratch']
  #allocation2 [shape = 'bf16[144,128]{1,0:T(16,128)(2,1)}', space=vmem, size = 0x9000, scoped, tag = 'scratch operand']
  #allocation3 [shape = 'f32[144,128]{1,0:T(8,128)}', space=vmem, size = 0x12000, scoped, tag = 'scratch operand']
  %s0 = inlined_call_operand.vmem [shape: bf16[2,4,144,128], index: 0, kind: input, shape index: {}]
  %s1 = inlined_call_operand.vmem [shape: bf16[128,512], index: 1, kind: input, shape index: {}]
  %s2 = inlined_call_operand.vmem [shape: bf16[128,512], index: 2, kind: input, shape index: {}]
  %s3 = inlined_call_operand.vmem [shape: f32[1,512], index: 3, kind: input, shape index: {}]
  %s4 = inlined_call_operand.vmem [shape: f32[144,128], index: 4, kind: input, shape index: {}]
  %s5 = inlined_call_operand.vmem [shape: f32[144,128], index: 5, kind: input, shape index: {}]
  %s6 = inlined_call_operand.vmem [shape: f32[144,128], index: 6, kind: input, shape index: {}]
  %s7 = inlined_call_operand.vmem [shape: bf16[128,128], index: 7, kind: input, shape index: {}]
  %s8 = inlined_call_operand.vmem [shape: f32[1,128], index: 8, kind: input, shape index: {}]
  %s9 = inlined_call_operand.vmem [shape: f32[2,4,144,128], index: 9, kind: output, shape index: {}]
  %s10 = sld [smem:[#allocation0]]
  $region73: #{conv3dlstm_forward.17} parent=0
    _
  %s12 = ssub.s32 1, %s10
  %s13 = scalar_select 0, %s12, %s10
  loop: start=0, step=1, limit=10
  $region2: #{conv3dlstm_forward.17} parent=0 // loop_pre_header
    _
  $region3: #{conv3dlstm_forward.17} parent=0 // loop_header
    %s15 = sphi 0, %s19
    %p16 = scmp.ge.s32.totalorder %s15, 10
    %s22 = sphi 0, %s34
    %s23 = sphi 0, %s30
    %s24 = sphi 0, %s22
    %s25 = sphi 0, %s23
    %s26 = sphi 0, %s24
    %s27 = sphi 0, %s25
    %s39 = sphi 0, %s41
    %s42 = sphi 0, %s39
    %s43 = sphi 0, %s42
    %s59 = sphi 0, %s43
    %s63 = sphi 0, %s63
    %s65 = sphi 0, %s63
    %s66 = sphi 0, %s65
    %s80 = sphi 0, %s66
    %s84 = sphi 0, %s84
    %s86 = sphi 0, %s84
    %s87 = sphi 0, %s86
    %s101 = sphi 0, %s87
    %s105 = sphi 0, %s105
    %s107 = sphi 0, %s105
    %s108 = sphi 0, %s107
    %s122 = sphi 0, %s108
    %s126 = sphi 0, %s126
    %s128 = sphi 0, %s126
    %s129 = sphi 0, %s128
    %s143 = sphi 0, %s129
    %s147 = sphi 0, %s147
    %s149 = sphi 0, %s147
    %s150 = sphi 0, %s149
    %s164 = sphi 0, %s150
    %s168 = sphi 0, %s168
    %s170 = sphi 0, %s168
    %s171 = sphi 0, %s170
    %s185 = sphi 0, %s171
    %s189 = sphi 0, %s189
    %s191 = sphi 0, %s189
    %s192 = sphi 0, %s191
    %s206 = sphi 0, %s192
    %s210 = sphi 0, %s210
    %s212 = sphi 0, %s210
    %s213 = sphi 0, %s212
    %s227 = sphi 0, %s213
    %s235 = sphi 0, %s237
    %s238 = sphi 0, %s235
    %s239 = sphi 0, %s238
    %s255 = sphi 0, %s239
  $region4: #{conv3dlstm_forward.17} parent=0 // loop_header_branch
    %18 = sbr.rel (%p16) target = $region8
  $region5: #{conv3dlstm_forward.17} parent=0 // loop_body
    %s20 = ssub.s32 %s15, 1
    %s21 = ssub.s32 %s15, 2
    %s28 = sadd.s32 1, %s23
    %p29 = scmp.ge.s32.totalorder %s28, 4
    %s30 = scalar_select %p29, 0, %s28
    %s31 = sadd.s32 1, %s22
    %s32 = scalar_select %p29, %s31, %s22
    %p33 = scmp.ge.s32.totalorder %s32, 2
    %s34 = scalar_select %p33, 0, %s32
    %s35 = ssub.s32 %s22, %s34
    %s36 = ssub.s32 %s23, %s30
    %s37 = sor.u32 %s35, %s36
    %p38 = scmp.eq.s32.totalorder %s37, 0
    %s40 = sadd.s32 %s39, 1
    %s41 = scalar_select %p38, %s39, %s40
    %p44 = pneg %p38
    %p45 = scmp.eq.s32.totalorder %s15, 7
    %p46 = por %p44, %p45
    %p47 = scmp.ne.s32.totalorder %s39, %s42
    %p48 = scmp.eq.s32.totalorder %s15, 0
    %p49 = por %p47, %p48
    %p50 = scmp.ne.s32.totalorder %s39, %s42
    %p51 = scmp.eq.s32.totalorder %s20, 7
    %p52 = por %p50, %p51
    %p53 = scmp.ne.s32.totalorder %s42, %s43
    %p54 = scmp.eq.s32.totalorder %s20, 0
    %p55 = por %p53, %p54
    %p56 = scmp.ne.s32.totalorder %s42, %s43
    %p57 = scmp.eq.s32.totalorder %s21, 7
    %p58 = por %p56, %p57
    %p60 = scmp.ne.s32.totalorder %s43, %s59
    %p61 = scmp.eq.s32.totalorder %s21, 0
    %p62 = por %p60, %p61
    %s64 = sadd.s32 %s63, 1
    %p67 = scmp.eq.s32.totalorder %s15, 7
    %p68 = scmp.ne.s32.totalorder %s63, %s65
    %p69 = scmp.eq.s32.totalorder %s15, 0
    %p70 = por %p68, %p69
    %p71 = scmp.ne.s32.totalorder %s63, %s65
    %p72 = scmp.eq.s32.totalorder %s20, 7
    %p73 = por %p71, %p72
    %p74 = scmp.ne.s32.totalorder %s65, %s66
    %p75 = scmp.eq.s32.totalorder %s20, 0
    %p76 = por %p74, %p75
    %p77 = scmp.ne.s32.totalorder %s65, %s66
    %p78 = scmp.eq.s32.totalorder %s21, 7
    %p79 = por %p77, %p78
    %p81 = scmp.ne.s32.totalorder %s66, %s80
    %p82 = scmp.eq.s32.totalorder %s21, 0
    %p83 = por %p81, %p82
    %s85 = sadd.s32 %s84, 1
    %p88 = scmp.eq.s32.totalorder %s15, 7
    %p89 = scmp.ne.s32.totalorder %s84, %s86
    %p90 = scmp.eq.s32.totalorder %s15, 0
    %p91 = por %p89, %p90
    %p92 = scmp.ne.s32.totalorder %s84, %s86
    %p93 = scmp.eq.s32.totalorder %s20, 7
    %p94 = por %p92, %p93
    %p95 = scmp.ne.s32.totalorder %s86, %s87
    %p96 = scmp.eq.s32.totalorder %s20, 0
    %p97 = por %p95, %p96
    %p98 = scmp.ne.s32.totalorder %s86, %s87
    %p99 = scmp.eq.s32.totalorder %s21, 7
    %p100 = por %p98, %p99
    %p102 = scmp.ne.s32.totalorder %s87, %s101
    %p103 = scmp.eq.s32.totalorder %s21, 0
    %p104 = por %p102, %p103
    %s106 = sadd.s32 %s105, 1
    %p109 = scmp.eq.s32.totalorder %s15, 7
    %p110 = scmp.ne.s32.totalorder %s105, %s107
    %p111 = scmp.eq.s32.totalorder %s15, 0
    %p112 = por %p110, %p111
    %p113 = scmp.ne.s32.totalorder %s105, %s107
    %p114 = scmp.eq.s32.totalorder %s20, 7
    %p115 = por %p113, %p114
    %p116 = scmp.ne.s32.totalorder %s107, %s108
    %p117 = scmp.eq.s32.totalorder %s20, 0
    %p118 = por %p116, %p117
    %p119 = scmp.ne.s32.totalorder %s107, %s108
    %p120 = scmp.eq.s32.totalorder %s21, 7
    %p121 = por %p119, %p120
    %p123 = scmp.ne.s32.totalorder %s108, %s122
    %p124 = scmp.eq.s32.totalorder %s21, 0
    %p125 = por %p123, %p124
    %s127 = sadd.s32 %s126, 1
    %p130 = scmp.eq.s32.totalorder %s15, 7
    %p131 = scmp.ne.s32.totalorder %s126, %s128
    %p132 = scmp.eq.s32.totalorder %s15, 0
    %p133 = por %p131, %p132
    %p134 = scmp.ne.s32.totalorder %s126, %s128
    %p135 = scmp.eq.s32.totalorder %s20, 7
    %p136 = por %p134, %p135
    %p137 = scmp.ne.s32.totalorder %s128, %s129
    %p138 = scmp.eq.s32.totalorder %s20, 0
    %p139 = por %p137, %p138
    %p140 = scmp.ne.s32.totalorder %s128, %s129
    %p141 = scmp.eq.s32.totalorder %s21, 7
    %p142 = por %p140, %p141
    %p144 = scmp.ne.s32.totalorder %s129, %s143
    %p145 = scmp.eq.s32.totalorder %s21, 0
    %p146 = por %p144, %p145
    %s148 = sadd.s32 %s147, 1
    %p151 = scmp.eq.s32.totalorder %s15, 7
    %p152 = scmp.ne.s32.totalorder %s147, %s149
    %p153 = scmp.eq.s32.totalorder %s15, 0
    %p154 = por %p152, %p153
    %p155 = scmp.ne.s32.totalorder %s147, %s149
    %p156 = scmp.eq.s32.totalorder %s20, 7
    %p157 = por %p155, %p156
    %p158 = scmp.ne.s32.totalorder %s149, %s150
    %p159 = scmp.eq.s32.totalorder %s20, 0
    %p160 = por %p158, %p159
    %p161 = scmp.ne.s32.totalorder %s149, %s150
    %p162 = scmp.eq.s32.totalorder %s21, 7
    %p163 = por %p161, %p162
    %p165 = scmp.ne.s32.totalorder %s150, %s164
    %p166 = scmp.eq.s32.totalorder %s21, 0
    %p167 = por %p165, %p166
    %s169 = sadd.s32 %s168, 1
    %p172 = scmp.eq.s32.totalorder %s15, 7
    %p173 = scmp.ne.s32.totalorder %s168, %s170
    %p174 = scmp.eq.s32.totalorder %s15, 0
    %p175 = por %p173, %p174
    %p176 = scmp.ne.s32.totalorder %s168, %s170
    %p177 = scmp.eq.s32.totalorder %s20, 7
    %p178 = por %p176, %p177
    %p179 = scmp.ne.s32.totalorder %s170, %s171
    %p180 = scmp.eq.s32.totalorder %s20, 0
    %p181 = por %p179, %p180
    %p182 = scmp.ne.s32.totalorder %s170, %s171
    %p183 = scmp.eq.s32.totalorder %s21, 7
    %p184 = por %p182, %p183
    %p186 = scmp.ne.s32.totalorder %s171, %s185
    %p187 = scmp.eq.s32.totalorder %s21, 0
    %p188 = por %p186, %p187
    %s190 = sadd.s32 %s189, 1
    %p193 = scmp.eq.s32.totalorder %s15, 7
    %p194 = scmp.ne.s32.totalorder %s189, %s191
    %p195 = scmp.eq.s32.totalorder %s15, 0
    %p196 = por %p194, %p195
    %p197 = scmp.ne.s32.totalorder %s189, %s191
    %p198 = scmp.eq.s32.totalorder %s20, 7
    %p199 = por %p197, %p198
    %p200 = scmp.ne.s32.totalorder %s191, %s192
    %p201 = scmp.eq.s32.totalorder %s20, 0
    %p202 = por %p200, %p201
    %p203 = scmp.ne.s32.totalorder %s191, %s192
    %p204 = scmp.eq.s32.totalorder %s21, 7
    %p205 = por %p203, %p204
    %p207 = scmp.ne.s32.totalorder %s192, %s206
    %p208 = scmp.eq.s32.totalorder %s21, 0
    %p209 = por %p207, %p208
    %s211 = sadd.s32 %s210, 1
    %p214 = scmp.eq.s32.totalorder %s15, 7
    %p215 = scmp.ne.s32.totalorder %s210, %s212
    %p216 = scmp.eq.s32.totalorder %s15, 0
    %p217 = por %p215, %p216
    %p218 = scmp.ne.s32.totalorder %s210, %s212
    %p219 = scmp.eq.s32.totalorder %s20, 7
    %p220 = por %p218, %p219
    %p221 = scmp.ne.s32.totalorder %s212, %s213
    %p222 = scmp.eq.s32.totalorder %s20, 0
    %p223 = por %p221, %p222
    %p224 = scmp.ne.s32.totalorder %s212, %s213
    %p225 = scmp.eq.s32.totalorder %s21, 7
    %p226 = por %p224, %p225
    %p228 = scmp.ne.s32.totalorder %s213, %s227
    %p229 = scmp.eq.s32.totalorder %s21, 0
    %p230 = por %p228, %p229
    %s231 = ssub.s32 %s22, %s34
    %s232 = ssub.s32 %s23, %s30
    %s233 = sor.u32 %s231, %s232
    %p234 = scmp.eq.s32.totalorder %s233, 0
    %s236 = sadd.s32 %s235, 1
    %s237 = scalar_select %p234, %s235, %s236
    %p240 = pneg %p234
    %p241 = scmp.eq.s32.totalorder %s15, 7
    %p242 = por %p240, %p241
    %p243 = scmp.ne.s32.totalorder %s235, %s238
    %p244 = scmp.eq.s32.totalorder %s15, 0
    %p245 = por %p243, %p244
    %p246 = scmp.ne.s32.totalorder %s235, %s238
    %p247 = scmp.eq.s32.totalorder %s20, 7
    %p248 = por %p246, %p247
    %p249 = scmp.ne.s32.totalorder %s238, %s239
    %p250 = scmp.eq.s32.totalorder %s20, 0
    %p251 = por %p249, %p250
    %p252 = scmp.ne.s32.totalorder %s238, %s239
    %p253 = scmp.eq.s32.totalorder %s21, 7
    %p254 = por %p252, %p253
    %p256 = scmp.ne.s32.totalorder %s239, %s255
    %p257 = scmp.eq.s32.totalorder %s21, 0
    %p258 = por %p256, %p257
    %p259 = scmp.le.s32.totalorder 1, %s15
    %p260 = scmp.lt.s32.totalorder %s15, 9
    %p261 = pnand %p259, %p260
    %p262 = pneg %p261
    // Predicated region
    $region9: #{conv3dlstm_forward.17} parent=5 // pred_check
      _
    $region10: #{conv3dlstm_forward.17} parent=5 // pred_check_branch
      %264 = sbr.rel (%p261) target = $region12
    $region11: #{conv3dlstm_forward.17} parent=5 // pred_region
      %s265 = ssub.s32 %s15, 1
      // Predicated region
      $region13: #{conv3dlstm_forward.17} parent=11 // pred_check
        %p266 = pneg %p76
      $region14: #{conv3dlstm_forward.17} parent=11 // pred_check_branch
        %268 = sbr.rel (%p266) target = $region16
      $region15: #{conv3dlstm_forward.17} parent=11 // pred_region
        _
      $region16: #{conv3dlstm_forward.17} parent=11 // pred_fallthru
        _
      // Predicated region
      $region17: #{conv3dlstm_forward.17} parent=11 // pred_check
        %p269 = pneg %p97
      $region18: #{conv3dlstm_forward.17} parent=11 // pred_check_branch
        %271 = sbr.rel (%p269) target = $region20
      $region19: #{conv3dlstm_forward.17} parent=11 // pred_region
        _
      $region20: #{conv3dlstm_forward.17} parent=11 // pred_fallthru
        _
      // Predicated region
      $region21: #{conv3dlstm_forward.17} parent=11 // pred_check
        %p272 = pneg %p118
      $region22: #{conv3dlstm_forward.17} parent=11 // pred_check_branch
        %274 = sbr.rel (%p272) target = $region24
      $region23: #{conv3dlstm_forward.17} parent=11 // pred_region
        _
      $region24: #{conv3dlstm_forward.17} parent=11 // pred_fallthru
        _
      // Predicated region
      $region25: #{conv3dlstm_forward.17} parent=11 // pred_check
        %p275 = pneg %p139
      $region26: #{conv3dlstm_forward.17} parent=11 // pred_check_branch
        %277 = sbr.rel (%p275) target = $region28
      $region27: #{conv3dlstm_forward.17} parent=11 // pred_region
        _
      $region28: #{conv3dlstm_forward.17} parent=11 // pred_fallthru
        _
      // Predicated region
      $region29: #{conv3dlstm_forward.17} parent=11 // pred_check
        %p278 = pneg %p160
      $region30: #{conv3dlstm_forward.17} parent=11 // pred_check_branch
        %280 = sbr.rel (%p278) target = $region32
      $region31: #{conv3dlstm_forward.17} parent=11 // pred_region
        _
      $region32: #{conv3dlstm_forward.17} parent=11 // pred_fallthru
        _
      // Predicated region
      $region33: #{conv3dlstm_forward.17} parent=11 // pred_check
        %p281 = pneg %p181
      $region34: #{conv3dlstm_forward.17} parent=11 // pred_check_branch
        %283 = sbr.rel (%p281) target = $region36
      $region35: #{conv3dlstm_forward.17} parent=11 // pred_region
        _
      $region36: #{conv3dlstm_forward.17} parent=11 // pred_fallthru
        _
      // Predicated region
      $region37: #{conv3dlstm_forward.17} parent=11 // pred_check
        %p284 = pneg %p202
      $region38: #{conv3dlstm_forward.17} parent=11 // pred_check_branch
        %286 = sbr.rel (%p284) target = $region40
      $region39: #{conv3dlstm_forward.17} parent=11 // pred_region
        _
      $region40: #{conv3dlstm_forward.17} parent=11 // pred_fallthru
        _
      // Predicated region
      $region41: #{conv3dlstm_forward.17} parent=11 // pred_check
        %p287 = pneg %p223
      $region42: #{conv3dlstm_forward.17} parent=11 // pred_check_branch
        %289 = sbr.rel (%p287) target = $region44
      $region43: #{conv3dlstm_forward.17} parent=11 // pred_region
        _
      $region44: #{conv3dlstm_forward.17} parent=11 // pred_fallthru
        _
    $region12: #{conv3dlstm_forward.17} parent=5 // pred_fallthru
      _
    %p290 = scmp.lt.s32.totalorder %s15, 8
    // Predicated region
    $region45: #{conv3dlstm_forward.17} parent=5 // pred_check
      %p291 = pneg %p290
    $region46: #{conv3dlstm_forward.17} parent=5 // pred_check_branch
      %293 = sbr.rel (%p291) target = $region48
    $region47: #{conv3dlstm_forward.17} parent=5 // pred_region
      // Predicated region
      $region49: #{conv3dlstm_forward.17} parent=47 // pred_check
        %p294 = pneg %p49
      $region50: #{conv3dlstm_forward.17} parent=47 // pred_check_branch
        %296 = sbr.rel (%p294) target = $region52
      $region51: #{conv3dlstm_forward.17} parent=47 // pred_region
        %p297 = scmp.lt.s32.totalorder %s22, 1
        %s298 = scalar_select %p297, %s22, 1
        %p299 = scmp.lt.s32.totalorder %s23, 3
        %s300 = scalar_select %p299, %s23, 3
        %s301 = smul.addr %s300, 18
        %s302 = smul.addr %s298, 72
        %s303 = sadd.s32 %s301, %s302
        %s304 = smul.addr %s303, 4
        %s305 = scalar_lea.vmem %s0, %s304
      $region52: #{conv3dlstm_forward.17} parent=47 // pred_fallthru
        _
    $region48: #{conv3dlstm_forward.17} parent=5 // pred_fallthru
      _
    %p306 = scmp.le.s32.totalorder 1, %s15
    %p307 = scmp.lt.s32.totalorder %s15, 9
    %p308 = pnand %p306, %p307
    %p309 = pneg %p308
    // Predicated region
    $region53: #{conv3dlstm_forward.17} parent=5 // pred_check
      _
    $region54: #{conv3dlstm_forward.17} parent=5 // pred_check_branch
      %311 = sbr.rel (%p308) target = $region56
    $region55: #{conv3dlstm_forward.17} parent=5 // pred_region
      %s312 = ssub.s32 %s15, 1
      %p313 = scmp.lt.s32.totalorder %s24, 1
      %s314 = scalar_select %p313, %s24, 1
      %p315 = scmp.lt.s32.totalorder %s25, 3
      %s316 = scalar_select %p315, %s25, 3
      %s317 = smul.addr %s316, 18
      %s318 = smul.addr %s314, 72
      %s319 = sadd.s32 %s317, %s318
      %s320 = smul.addr %s319, 4
      %s321 = scalar_lea.vmem %s0, %s320
      %p322 = pneg %p55
      %p323 = pneg %p52
      %p324 = pneg %p76
      %p325 = pneg %p73
      %p326 = pneg %p97
      %p327 = pneg %p94
      %p328 = pneg %p118
      %p329 = pneg %p115
      %p330 = pneg %p139
      %p331 = pneg %p136
      %p332 = pneg %p160
      %p333 = pneg %p157
      %p334 = pneg %p181
      %p335 = pneg %p178
      %p336 = pneg %p202
      %p337 = pneg %p199
      %p338 = pneg %p223
      %p339 = pneg %p220
      %p340 = pneg %p251
      %p341 = pneg %p248
      %p342 = scmp.lt.s32.totalorder %s24, 1
      %s343 = scalar_select %p342, %s24, 1
      %p344 = scmp.lt.s32.totalorder %s25, 3
      %s345 = scalar_select %p344, %s25, 3
      %s346 = smul.addr %s345, 18
      %s347 = smul.addr %s343, 72
      %s348 = sadd.s32 %s346, %s347
      %s349 = smul.addr %s348, 8
      %s350 = scalar_lea.vmem %s9, %s349
      %p351 = scmp.lt.s32.totalorder %s24, 1
      %s352 = scalar_select %p351, %s24, 1
      %p353 = scmp.lt.s32.totalorder %s25, 3
      %s354 = scalar_select %p353, %s25, 3
      %s355 = smul.addr %s354, 18
      %s356 = smul.addr %s352, 72
      %s357 = sadd.s32 %s355, %s356
      %s358 = smul.addr %s357, 4
      %s359 = scalar_lea.vmem %s0, %s358
      %p360 = scmp.lt.s32.totalorder %s24, 1
      %s361 = scalar_select %p360, %s24, 1
      %p362 = scmp.lt.s32.totalorder %s25, 3
      %s363 = scalar_select %p362, %s25, 3
      %s364 = smul.addr %s363, 18
      %s365 = smul.addr %s361, 72
      %s366 = sadd.s32 %s364, %s365
      %s367 = smul.addr %s366, 8
      %s368 = scalar_lea.vmem %s9, %s367
      %p370 = scmp.eq.s32.totalorder %s25, 0
      // Predicated region
      $region57: #{conv3dlstm_forward.17} parent=55 // pred_check
        %p371 = pneg %p370
      $region58: #{conv3dlstm_forward.17} parent=55 // pred_check_branch
        %373 = sbr.rel (%p371) target = $region60
      $region59: #{conv3dlstm_forward.17} parent=55 // pred_region
        %374 = vst [vmem:[#allocation2] sm:$0xff] 0
        %375 = vst [vmem:[#allocation2 + $0x8] sm:$0xff] 0
        %376 = vst [vmem:[#allocation2 + $0x10] sm:$0xff] 0
        %377 = vst [vmem:[#allocation2 + $0x18] sm:$0xff] 0
        %378 = vst [vmem:[#allocation2 + $0x20] sm:$0xff] 0
        %379 = vst [vmem:[#allocation2 + $0x28] sm:$0xff] 0
        %380 = vst [vmem:[#allocation2 + $0x30] sm:$0xff] 0
        %381 = vst [vmem:[#allocation2 + $0x38] sm:$0xff] 0
        %382 = vst [vmem:[#allocation2 + $0x40] sm:$0xff] 0
        %383 = vst [vmem:[#allocation3] sm:$0xff] 0.0
        %384 = vst [vmem:[#allocation3 + $0x8] sm:$0xff] 0.0
        %385 = vst [vmem:[#allocation3 + $0x10] sm:$0xff] 0.0
        %386 = vst [vmem:[#allocation3 + $0x18] sm:$0xff] 0.0
        %387 = vst [vmem:[#allocation3 + $0x20] sm:$0xff] 0.0
        %388 = vst [vmem:[#allocation3 + $0x28] sm:$0xff] 0.0
        %389 = vst [vmem:[#allocation3 + $0x30] sm:$0xff] 0.0
        %390 = vst [vmem:[#allocation3 + $0x38] sm:$0xff] 0.0
        %391 = vst [vmem:[#allocation3 + $0x40] sm:$0xff] 0.0
        %392 = vst [vmem:[#allocation3 + $0x48] sm:$0xff] 0.0
        %393 = vst [vmem:[#allocation3 + $0x50] sm:$0xff] 0.0
        %394 = vst [vmem:[#allocation3 + $0x58] sm:$0xff] 0.0
        %395 = vst [vmem:[#allocation3 + $0x60] sm:$0xff] 0.0
        %396 = vst [vmem:[#allocation3 + $0x68] sm:$0xff] 0.0
        %397 = vst [vmem:[#allocation3 + $0x70] sm:$0xff] 0.0
        %398 = vst [vmem:[#allocation3 + $0x78] sm:$0xff] 0.0
        %399 = vst [vmem:[#allocation3 + $0x80] sm:$0xff] 0.0
        %400 = vst [vmem:[#allocation3 + $0x88] sm:$0xff] 0.0
      $region60: #{conv3dlstm_forward.17} parent=55 // pred_fallthru
        _
      %v401 = vld [vmem:[%s359] sm:$0xf]
      %v402 = vld [vmem:[%s359 + $0x4] sm:$0xf]
      %v403 = vld [vmem:[%s359 + $0x8] sm:$0xf]
      %v404 = vld [vmem:[%s359 + $0xc] sm:$0xf]
      %v405 = vld [vmem:[%s359 + $0x10] sm:$0xf]
      %v406 = vld [vmem:[%s359 + $0x14] sm:$0xf]
      %v407 = vld [vmem:[%s359 + $0x18] sm:$0xf]
      %v408 = vld [vmem:[%s359 + $0x1c] sm:$0xf]
      %v409 = vld [vmem:[%s359 + $0x20] sm:$0xf]
      %v410 = vld [vmem:[%s359 + $0x24] sm:$0xf]
      %v411 = vld [vmem:[%s359 + $0x28] sm:$0xf]
      %v412 = vld [vmem:[%s359 + $0x2c] sm:$0xf]
      %v413 = vld [vmem:[%s359 + $0x30] sm:$0xf]
      %v414 = vld [vmem:[%s359 + $0x34] sm:$0xf]
      %v415 = vld [vmem:[%s359 + $0x38] sm:$0xf]
      %v416 = vld [vmem:[%s359 + $0x3c] sm:$0xf]
      %v417 = vld [vmem:[%s359 + $0x40] sm:$0xf]
      %v418 = vld [vmem:[%s359 + $0x44] sm:$0xf]
      %v419 = vld [vmem:[#allocation2] sm:$0xff]
      %v420 = vld [vmem:[#allocation2 + $0x8] sm:$0xff]
      %v421 = vld [vmem:[#allocation2 + $0x10] sm:$0xff]
      %v422 = vld [vmem:[#allocation2 + $0x18] sm:$0xff]
      %v423 = vld [vmem:[#allocation2 + $0x20] sm:$0xff]
      %v424 = vld [vmem:[#allocation2 + $0x28] sm:$0xff]
      %v425 = vld [vmem:[#allocation2 + $0x30] sm:$0xff]
      %v426 = vld [vmem:[#allocation2 + $0x38] sm:$0xff]
      %v427 = vld [vmem:[#allocation2 + $0x40] sm:$0xff]
      %v428 = vld [vmem:[#allocation3] sm:$0xff]
      %v429 = vld [vmem:[#allocation3 + $0x8] sm:$0xff]
      %v430 = vld [vmem:[#allocation3 + $0x10] sm:$0xff]
      %v431 = vld [vmem:[#allocation3 + $0x18] sm:$0xff]
      %v432 = vld [vmem:[#allocation3 + $0x20] sm:$0xff]
      %v433 = vld [vmem:[#allocation3 + $0x28] sm:$0xff]
      %v434 = vld [vmem:[#allocation3 + $0x30] sm:$0xff]
      %v435 = vld [vmem:[#allocation3 + $0x38] sm:$0xff]
      %v436 = vld [vmem:[#allocation3 + $0x40] sm:$0xff]
      %v437 = vld [vmem:[#allocation3 + $0x48] sm:$0xff]
      %v438 = vld [vmem:[#allocation3 + $0x50] sm:$0xff]
      %v439 = vld [vmem:[#allocation3 + $0x58] sm:$0xff]
      %v440 = vld [vmem:[#allocation3 + $0x60] sm:$0xff]
      %v441 = vld [vmem:[#allocation3 + $0x68] sm:$0xff]
      %v442 = vld [vmem:[#allocation3 + $0x70] sm:$0xff]
      %v443 = vld [vmem:[#allocation3 + $0x78] sm:$0xff]
      %v444 = vld [vmem:[#allocation3 + $0x80] sm:$0xff]
      %v445 = vld [vmem:[#allocation3 + $0x88] sm:$0xff]
      %v446 = vld [vmem:[%s1] sm:$0xff]
      %v447 = vld [vmem:[%s1 + $0x8] sm:$0xff]
      %v448 = vld [vmem:[%s1 + $0x10] sm:$0xff]
      %v449 = vld [vmem:[%s1 + $0x18] sm:$0xff]
      %v450 = vld [vmem:[%s1 + $0x20] sm:$0xff]
      %v451 = vld [vmem:[%s1 + $0x28] sm:$0xff]
      %v452 = vld [vmem:[%s1 + $0x30] sm:$0xff]
      %v453 = vld [vmem:[%s1 + $0x38] sm:$0xff]
      %v454 = vld [vmem:[%s1 + $0x40] sm:$0xff]
      %v455 = vld [vmem:[%s1 + $0x48] sm:$0xff]
      %v456 = vld [vmem:[%s1 + $0x50] sm:$0xff]
      %v457 = vld [vmem:[%s1 + $0x58] sm:$0xff]
      %v458 = vld [vmem:[%s1 + $0x60] sm:$0xff]
      %v459 = vld [vmem:[%s1 + $0x68] sm:$0xff]
      %v460 = vld [vmem:[%s1 + $0x70] sm:$0xff]
      %v461 = vld [vmem:[%s1 + $0x78] sm:$0xff]
      %v462 = vld [vmem:[%s1 + $0x80] sm:$0xff]
      %v463 = vld [vmem:[%s1 + $0x88] sm:$0xff]
      %v464 = vld [vmem:[%s1 + $0x90] sm:$0xff]
      %v465 = vld [vmem:[%s1 + $0x98] sm:$0xff]
      %v466 = vld [vmem:[%s1 + $0xa0] sm:$0xff]
      %v467 = vld [vmem:[%s1 + $0xa8] sm:$0xff]
      %v468 = vld [vmem:[%s1 + $0xb0] sm:$0xff]
      %v469 = vld [vmem:[%s1 + $0xb8] sm:$0xff]
      %v470 = vld [vmem:[%s1 + $0xc0] sm:$0xff]
      %v471 = vld [vmem:[%s1 + $0xc8] sm:$0xff]
      %v472 = vld [vmem:[%s1 + $0xd0] sm:$0xff]
      %v473 = vld [vmem:[%s1 + $0xd8] sm:$0xff]
      %v474 = vld [vmem:[%s1 + $0xe0] sm:$0xff]
      %v475 = vld [vmem:[%s1 + $0xe8] sm:$0xff]
      %v476 = vld [vmem:[%s1 + $0xf0] sm:$0xff]
      %v477 = vld [vmem:[%s1 + $0xf8] sm:$0xff]
      %v478 = vld [vmem:[%s2] sm:$0xff]
      %v479 = vld [vmem:[%s2 + $0x8] sm:$0xff]
      %v480 = vld [vmem:[%s2 + $0x10] sm:$0xff]
      %v481 = vld [vmem:[%s2 + $0x18] sm:$0xff]
      %v482 = vld [vmem:[%s2 + $0x20] sm:$0xff]
      %v483 = vld [vmem:[%s2 + $0x28] sm:$0xff]
      %v484 = vld [vmem:[%s2 + $0x30] sm:$0xff]
      %v485 = vld [vmem:[%s2 + $0x38] sm:$0xff]
      %v486 = vld [vmem:[%s2 + $0x40] sm:$0xff]
      %v487 = vld [vmem:[%s2 + $0x48] sm:$0xff]
      %v488 = vld [vmem:[%s2 + $0x50] sm:$0xff]
      %v489 = vld [vmem:[%s2 + $0x58] sm:$0xff]
      %v490 = vld [vmem:[%s2 + $0x60] sm:$0xff]
      %v491 = vld [vmem:[%s2 + $0x68] sm:$0xff]
      %v492 = vld [vmem:[%s2 + $0x70] sm:$0xff]
      %v493 = vld [vmem:[%s2 + $0x78] sm:$0xff]
      %v494 = vld [vmem:[%s2 + $0x80] sm:$0xff]
      %v495 = vld [vmem:[%s2 + $0x88] sm:$0xff]
      %v496 = vld [vmem:[%s2 + $0x90] sm:$0xff]
      %v497 = vld [vmem:[%s2 + $0x98] sm:$0xff]
      %v498 = vld [vmem:[%s2 + $0xa0] sm:$0xff]
      %v499 = vld [vmem:[%s2 + $0xa8] sm:$0xff]
      %v500 = vld [vmem:[%s2 + $0xb0] sm:$0xff]
      %v501 = vld [vmem:[%s2 + $0xb8] sm:$0xff]
      %v502 = vld [vmem:[%s2 + $0xc0] sm:$0xff]
      %v503 = vld [vmem:[%s2 + $0xc8] sm:$0xff]
      %v504 = vld [vmem:[%s2 + $0xd0] sm:$0xff]
      %v505 = vld [vmem:[%s2 + $0xd8] sm:$0xff]
      %v506 = vld [vmem:[%s2 + $0xe0] sm:$0xff]
      %v507 = vld [vmem:[%s2 + $0xe8] sm:$0xff]
      %v508 = vld [vmem:[%s2 + $0xf0] sm:$0xff]
      %v509 = vld [vmem:[%s2 + $0xf8] sm:$0xff]
      %v542 = vunpack.c.l.b16 %v478
      %v543 = vunpack.c.h.b16 %v478
      %v544 = vunpack.c.l.b16 %v479
      %v545 = vunpack.c.h.b16 %v479
      %v546 = vunpack.c.l.b16 %v480
      %v547 = vunpack.c.h.b16 %v480
      %v548 = vunpack.c.l.b16 %v481
      %v549 = vunpack.c.h.b16 %v481
      %v550 = vunpack.c.l.b16 %v482
      %v551 = vunpack.c.h.b16 %v482
      %v552 = vunpack.c.l.b16 %v483
      %v553 = vunpack.c.h.b16 %v483
      %v554 = vunpack.c.l.b16 %v484
      %v555 = vunpack.c.h.b16 %v484
      %v556 = vunpack.c.l.b16 %v485
      %v557 = vunpack.c.h.b16 %v485
      %v558 = vunpack.c.l.b16 %v486
      %v559 = vunpack.c.h.b16 %v486
      %v560 = vunpack.c.l.b16 %v487
      %v561 = vunpack.c.h.b16 %v487
      %v562 = vunpack.c.l.b16 %v488
      %v563 = vunpack.c.h.b16 %v488
      %v564 = vunpack.c.l.b16 %v489
      %v565 = vunpack.c.h.b16 %v489
      %v566 = vunpack.c.l.b16 %v490
      %v567 = vunpack.c.h.b16 %v490
      %v568 = vunpack.c.l.b16 %v491
      %v569 = vunpack.c.h.b16 %v491
      %v570 = vunpack.c.l.b16 %v492
      %v571 = vunpack.c.h.b16 %v492
      %v572 = vunpack.c.l.b16 %v493
      %v573 = vunpack.c.h.b16 %v493
      %v574 = vunpack.c.l.b16 %v494
      %v575 = vunpack.c.h.b16 %v494
      %v576 = vunpack.c.l.b16 %v495
      %v577 = vunpack.c.h.b16 %v495
      %v578 = vunpack.c.l.b16 %v496
      %v579 = vunpack.c.h.b16 %v496
      %v580 = vunpack.c.l.b16 %v497
      %v581 = vunpack.c.h.b16 %v497
      %v582 = vunpack.c.l.b16 %v498
      %v583 = vunpack.c.h.b16 %v498
      %v584 = vunpack.c.l.b16 %v499
      %v585 = vunpack.c.h.b16 %v499
      %v586 = vunpack.c.l.b16 %v500
      %v587 = vunpack.c.h.b16 %v500
      %v588 = vunpack.c.l.b16 %v501
      %v589 = vunpack.c.h.b16 %v501
      %v590 = vunpack.c.l.b16 %v502
      %v591 = vunpack.c.h.b16 %v502
      %v592 = vunpack.c.l.b16 %v503
      %v593 = vunpack.c.h.b16 %v503
      %v594 = vunpack.c.l.b16 %v504
      %v595 = vunpack.c.h.b16 %v504
      %v596 = vunpack.c.l.b16 %v505
      %v597 = vunpack.c.h.b16 %v505
      %v598 = vunpack.c.l.b16 %v506
      %v599 = vunpack.c.h.b16 %v506
      %v600 = vunpack.c.l.b16 %v507
      %v601 = vunpack.c.h.b16 %v507
      %v602 = vunpack.c.l.b16 %v508
      %v603 = vunpack.c.h.b16 %v508
      %v604 = vunpack.c.l.b16 %v509
      %v605 = vunpack.c.h.b16 %v509
      %v606 = vpack.c.b16 %v546, %v542
      %v607 = vpack.c.b16 %v547, %v543
      %v608 = vpack.c.b16 %v548, %v544
      %v609 = vpack.c.b16 %v549, %v545
      %v610 = vpack.c.b16 %v554, %v550
      %v611 = vpack.c.b16 %v555, %v551
      %v612 = vpack.c.b16 %v556, %v552
      %v613 = vpack.c.b16 %v557, %v553
      %v614 = vpack.c.b16 %v562, %v558
      %v615 = vpack.c.b16 %v563, %v559
      %v616 = vpack.c.b16 %v564, %v560
      %v617 = vpack.c.b16 %v565, %v561
      %v618 = vpack.c.b16 %v570, %v566
      %v619 = vpack.c.b16 %v571, %v567
      %v620 = vpack.c.b16 %v572, %v568
      %v621 = vpack.c.b16 %v573, %v569
      %v622 = vpack.c.b16 %v578, %v574
      %v623 = vpack.c.b16 %v579, %v575
      %v624 = vpack.c.b16 %v580, %v576
      %v625 = vpack.c.b16 %v581, %v577
      %v626 = vpack.c.b16 %v586, %v582
      %v627 = vpack.c.b16 %v587, %v583
      %v628 = vpack.c.b16 %v588, %v584
      %v629 = vpack.c.b16 %v589, %v585
      %v630 = vpack.c.b16 %v594, %v590
      %v631 = vpack.c.b16 %v595, %v591
      %v632 = vpack.c.b16 %v596, %v592
      %v633 = vpack.c.b16 %v597, %v593
      %v634 = vpack.c.b16 %v602, %v598
      %v635 = vpack.c.b16 %v603, %v599
      %v636 = vpack.c.b16 %v604, %v600
      %v637 = vpack.c.b16 %v605, %v601
      %670 = vmatprep.subr.bf16.mxu0 %v607
      %671 = vmatpush1.bf16.msra.mxu0 %v606
      %672 = vmatprep.subr.bf16.mxu0 %v611
      %673 = vmatpush1.bf16.msra.mxu0 %v610
      %674 = vmatprep.subr.bf16.mxu0 %v615
      %675 = vmatpush1.bf16.msra.mxu0 %v614
      %676 = vmatprep.subr.bf16.mxu0 %v619
      %677 = vmatpush1.bf16.msra.mxu0 %v618
      %678 = vmatprep.subr.bf16.mxu0 %v623
      %679 = vmatpush1.bf16.msra.mxu0 %v622
      %680 = vmatprep.subr.bf16.mxu0 %v627
      %681 = vmatpush1.bf16.msra.mxu0 %v626
      %682 = vmatprep.subr.bf16.mxu0 %v631
      %683 = vmatpush1.bf16.msra.mxu0 %v630
      %684 = vmatprep.subr.bf16.mxu0 %v635
      %685 = vmatpush1.bf16.msra.mxu0 %v634
      %686 = vmatprep.subr.bf16.mxu0 0
      %687 = vmatpush1.bf16.msra.mxu0 0
      %688 = vmatprep.subr.bf16.mxu0 0
      %689 = vmatpush1.bf16.msra.mxu0 0
      %690 = vmatprep.subr.bf16.mxu0 0
      %691 = vmatpush1.bf16.msra.mxu0 0
      %692 = vmatprep.subr.bf16.mxu0 0
      %693 = vmatpush1.bf16.msra.mxu0 0
      %694 = vmatprep.subr.bf16.mxu0 0
      %695 = vmatpush1.bf16.msra.mxu0 0
      %696 = vmatprep.subr.bf16.mxu0 0
      %697 = vmatpush1.bf16.msra.mxu0 0
      %698 = vmatprep.subr.bf16.mxu0 0
      %699 = vmatpush1.bf16.msra.mxu0 0
      %700 = vmatprep.subr.bf16.mxu0 0
      %701 = vmatpush1.bf16.msra.mxu0 0
      %702 = vmatprep.mubr.bf16.mxu0 0
      %703 = vmatmul.mubr.bf16.gmra.mrb[0].mxu0 %v419
      %v704 = vpop.f32.mrb[0].mxu0
      %v705 = vadd.f32 0.0, %v704
      %v706 = vpop.f32.mrb[0].mxu0
      %v707 = vadd.f32 0.0, %v706
      %v708 = vpop.f32.mrb[0].mxu0
      %v709 = vadd.f32 0.0, %v708
      %v710 = vpop.f32.mrb[0].mxu0
      %v711 = vadd.f32 0.0, %v710
      %712 = vmatprep.mubr.bf16.mxu0 0
      %713 = vmatmul.mubr.bf16.gmra.mrb[0].mxu0 %v420
      %v714 = vpop.f32.mrb[0].mxu0
      %v715 = vadd.f32 0.0, %v714
      %v716 = vpop.f32.mrb[0].mxu0
      %v717 = vadd.f32 0.0, %v716
      %v718 = vpop.f32.mrb[0].mxu0
      %v719 = vadd.f32 0.0, %v718
      %v720 = vpop.f32.mrb[0].mxu0
      %v721 = vadd.f32 0.0, %v720
      %722 = vmatprep.mubr.bf16.mxu0 0
      %723 = vmatmul.mubr.bf16.gmra.mrb[0].mxu0 %v421
      %v724 = vpop.f32.mrb[0].mxu0
      %v725 = vadd.f32 0.0, %v724
      %v726 = vpop.f32.mrb[0].mxu0
      %v727 = vadd.f32 0.0, %v726
      %v728 = vpop.f32.mrb[0].mxu0
      %v729 = vadd.f32 0.0, %v728
      %v730 = vpop.f32.mrb[0].mxu0
      %v731 = vadd.f32 0.0, %v730
      %732 = vmatprep.mubr.bf16.mxu0 0
      %733 = vmatmul.mubr.bf16.gmra.mrb[0].mxu0 %v422
      %v734 = vpop.f32.mrb[0].mxu0
      %v735 = vadd.f32 0.0, %v734
      %v736 = vpop.f32.mrb[0].mxu0
      %v737 = vadd.f32 0.0, %v736
      %v738 = vpop.f32.mrb[0].mxu0
      %v739 = vadd.f32 0.0, %v738
      %v740 = vpop.f32.mrb[0].mxu0
      %v741 = vadd.f32 0.0, %v740
      %742 = vmatprep.mubr.bf16.mxu0 0
      %743 = vmatmul.mubr.bf16.gmra.mrb[0].mxu0 %v423
      %v744 = vpop.f32.mrb[0].mxu0
      %v745 = vadd.f32 0.0, %v744
      %v746 = vpop.f32.mrb[0].mxu0
      %v747 = vadd.f32 0.0, %v746
      %v748 = vpop.f32.mrb[0].mxu0
      %v749 = vadd.f32 0.0, %v748
      %v750 = vpop.f32.mrb[0].mxu0
      %v751 = vadd.f32 0.0, %v750
      %752 = vmatprep.mubr.bf16.mxu0 0
      %753 = vmatmul.mubr.bf16.gmra.mrb[0].mxu0 %v424
      %v754 = vpop.f32.mrb[0].mxu0
      %v755 = vadd.f32 0.0, %v754
      %v756 = vpop.f32.mrb[0].mxu0
      %v757 = vadd.f32 0.0, %v756
      %v758 = vpop.f32.mrb[0].mxu0
      %v759 = vadd.f32 0.0, %v758
      %v760 = vpop.f32.mrb[0].mxu0
      %v761 = vadd.f32 0.0, %v760
      %762 = vmatprep.mubr.bf16.mxu0 0
      %763 = vmatmul.mubr.bf16.gmra.mrb[0].mxu0 %v425
      %v764 = vpop.f32.mrb[0].mxu0
      %v765 = vadd.f32 0.0, %v764
      %v766 = vpop.f32.mrb[0].mxu0
      %v767 = vadd.f32 0.0, %v766
      %v768 = vpop.f32.mrb[0].mxu0
      %v769 = vadd.f32 0.0, %v768
      %v770 = vpop.f32.mrb[0].mxu0
      %v771 = vadd.f32 0.0, %v770
      %772 = vmatprep.mubr.bf16.mxu0 0
      %773 = vmatmul.mubr.bf16.gmra.mrb[0].mxu0 %v426
      %v774 = vpop.f32.mrb[0].mxu0
      %v775 = vadd.f32 0.0, %v774
      %v776 = vpop.f32.mrb[0].mxu0
      %v777 = vadd.f32 0.0, %v776
      %v778 = vpop.f32.mrb[0].mxu0
      %v779 = vadd.f32 0.0, %v778
      %v780 = vpop.f32.mrb[0].mxu0
      %v781 = vadd.f32 0.0, %v780
      %782 = vmatprep.mubr.bf16.mxu0 0
      %783 = vmatmul.mubr.bf16.gmra.mrb[0].mxu0 %v427
      %v784 = vpop.f32.mrb[0].mxu0
      %v785 = vadd.f32 0.0, %v784
      %v786 = vpop.f32.mrb[0].mxu0
      %v787 = vadd.f32 0.0, %v786
      %v788 = vpop.f32.mrb[0].mxu0
      %v789 = vadd.f32 0.0, %v788
      %v790 = vpop.f32.mrb[0].mxu0
      %v791 = vadd.f32 0.0, %v790
      %792 = vdwg.mxu0
      %793 = vmatprep.subr.bf16.mxu0 %v609
      %794 = vmatpush1.bf16.msra.mxu0 %v608
      %795 = vmatprep.subr.bf16.mxu0 %v613
      %796 = vmatpush1.bf16.msra.mxu0 %v612
      %797 = vmatprep.subr.bf16.mxu0 %v617
      %798 = vmatpush1.bf16.msra.mxu0 %v616
      %799 = vmatprep.subr.bf16.mxu0 %v621
      %800 = vmatpush1.bf16.msra.mxu0 %v620
      %801 = vmatprep.subr.bf16.mxu0 %v625
      %802 = vmatpush1.bf16.msra.mxu0 %v624
      %803 = vmatprep.subr.bf16.mxu0 %v629
      %804 = vmatpush1.bf16.msra.mxu0 %v628
      %805 = vmatprep.subr.bf16.mxu0 %v633
      %806 = vmatpush1.bf16.msra.mxu0 %v632
      %807 = vmatprep.subr.bf16.mxu0 %v637
      %808 = vmatpush1.bf16.msra.mxu0 %v636
      %809 = vmatprep.subr.bf16.mxu0 0
      %810 = vmatpush1.bf16.msra.mxu0 0
      %811 = vmatprep.subr.bf16.mxu0 0
      %812 = vmatpush1.bf16.msra.mxu0 0
      %813 = vmatprep.subr.bf16.mxu0 0
      %814 = vmatpush1.bf16.msra.mxu0 0
      %815 = vmatprep.subr.bf16.mxu0 0
      %816 = vmatpush1.bf16.msra.mxu0 0
      %817 = vmatprep.subr.bf16.mxu0 0
      %818 = vmatpush1.bf16.msra.mxu0 0
      %819 = vmatprep.subr.bf16.mxu0 0
      %820 = vmatpush1.bf16.msra.mxu0 0
      %821 = vmatprep.subr.bf16.mxu0 0
      %822 = vmatpush1.bf16.msra.mxu0 0
      %823 = vmatprep.subr.bf16.mxu0 0
      %824 = vmatpush1.bf16.msra.mxu0 0
      %825 = vmatprep.mubr.bf16.mxu0 0
      %826 = vmatmul.mubr.bf16.gmra.mrb[0].mxu0 %v419
      %v827 = vpop.f32.mrb[0].mxu0
      %v828 = vadd.f32 0.0, %v827
      %v829 = vpop.f32.mrb[0].mxu0
      %v830 = vadd.f32 0.0, %v829
      %v831 = vpop.f32.mrb[0].mxu0
      %v832 = vadd.f32 0.0, %v831
      %v833 = vpop.f32.mrb[0].mxu0
      %v834 = vadd.f32 0.0, %v833
      %835 = vmatprep.mubr.bf16.mxu0 0
      %836 = vmatmul.mubr.bf16.gmra.mrb[0].mxu0 %v420
      %v837 = vpop.f32.mrb[0].mxu0
      %v838 = vadd.f32 0.0, %v837
      %v839 = vpop.f32.mrb[0].mxu0
      %v840 = vadd.f32 0.0, %v839
      %v841 = vpop.f32.mrb[0].mxu0
      %v842 = vadd.f32 0.0, %v841
      %v843 = vpop.f32.mrb[0].mxu0
      %v844 = vadd.f32 0.0, %v843
      %845 = vmatprep.mubr.bf16.mxu0 0
      %846 = vmatmul.mubr.bf16.gmra.mrb[0].mxu0 %v421
      %v847 = vpop.f32.mrb[0].mxu0
      %v848 = vadd.f32 0.0, %v847
      %v849 = vpop.f32.mrb[0].mxu0
      %v850 = vadd.f32 0.0, %v849
      %v851 = vpop.f32.mrb[0].mxu0
      %v852 = vadd.f32 0.0, %v851
      %v853 = vpop.f32.mrb[0].mxu0
      %v854 = vadd.f32 0.0, %v853
      %855 = vmatprep.mubr.bf16.mxu0 0
      %856 = vmatmul.mubr.bf16.gmra.mrb[0].mxu0 %v422
      %v857 = vpop.f32.mrb[0].mxu0
      %v858 = vadd.f32 0.0, %v857
      %v859 = vpop.f32.mrb[0].mxu0
      %v860 = vadd.f32 0.0, %v859
      %v861 = vpop.f32.mrb[0].mxu0
      %v862 = vadd.f32 0.0, %v861
      %v863 = vpop.f32.mrb[0].mxu0
      %v864 = vadd.f32 0.0, %v863
      %865 = vmatprep.mubr.bf16.mxu0 0
      %866 = vmatmul.mubr.bf16.gmra.mrb[0].mxu0 %v423
      %v867 = vpop.f32.mrb[0].mxu0
      %v868 = vadd.f32 0.0, %v867
      %v869 = vpop.f32.mrb[0].mxu0
      %v870 = vadd.f32 0.0, %v869
      %v871 = vpop.f32.mrb[0].mxu0
      %v872 = vadd.f32 0.0, %v871
      %v873 = vpop.f32.mrb[0].mxu0
      %v874 = vadd.f32 0.0, %v873
      %875 = vmatprep.mubr.bf16.mxu0 0
      %876 = vmatmul.mubr.bf16.gmra.mrb[0].mxu0 %v424
      %v877 = vpop.f32.mrb[0].mxu0
      %v878 = vadd.f32 0.0, %v877
      %v879 = vpop.f32.mrb[0].mxu0
      %v880 = vadd.f32 0.0, %v879
      %v881 = vpop.f32.mrb[0].mxu0
      %v882 = vadd.f32 0.0, %v881
      %v883 = vpop.f32.mrb[0].mxu0
      %v884 = vadd.f32 0.0, %v883
      %885 = vmatprep.mubr.bf16.mxu0 0
      %886 = vmatmul.mubr.bf16.gmra.mrb[0].mxu0 %v425
      %v887 = vpop.f32.mrb[0].mxu0
      %v888 = vadd.f32 0.0, %v887
      %v889 = vpop.f32.mrb[0].mxu0
      %v890 = vadd.f32 0.0, %v889
      %v891 = vpop.f32.mrb[0].mxu0
      %v892 = vadd.f32 0.0, %v891
      %v893 = vpop.f32.mrb[0].mxu0
      %v894 = vadd.f32 0.0, %v893
      %895 = vmatprep.mubr.bf16.mxu0 0
      %896 = vmatmul.mubr.bf16.gmra.mrb[0].mxu0 %v426
      %v897 = vpop.f32.mrb[0].mxu0
      %v898 = vadd.f32 0.0, %v897
      %v899 = vpop.f32.mrb[0].mxu0
      %v900 = vadd.f32 0.0, %v899
      %v901 = vpop.f32.mrb[0].mxu0
      %v902 = vadd.f32 0.0, %v901
      %v903 = vpop.f32.mrb[0].mxu0
      %v904 = vadd.f32 0.0, %v903
      %905 = vmatprep.mubr.bf16.mxu0 0
      %906 = vmatmul.mubr.bf16.gmra.mrb[0].mxu0 %v427
      %v907 = vpop.f32.mrb[0].mxu0
      %v908 = vadd.f32 0.0, %v907
      %v909 = vpop.f32.mrb[0].mxu0
      %v910 = vadd.f32 0.0, %v909
      %v911 = vpop.f32.mrb[0].mxu0
      %v912 = vadd.f32 0.0, %v911
      %v913 = vpop.f32.mrb[0].mxu0
      %v914 = vadd.f32 0.0, %v913
      %915 = vdwg.mxu0
      %v934 = vunpack.c.l.b16 %v401
      %v935 = vunpack.c.l.b16 %v402
      %v936 = vunpack.c.l.b16 %v403
      %v937 = vunpack.c.l.b16 %v404
      %v938 = vunpack.c.l.b16 %v405
      %v939 = vunpack.c.l.b16 %v406
      %v940 = vunpack.c.l.b16 %v407
      %v941 = vunpack.c.l.b16 %v408
      %v942 = vunpack.c.l.b16 %v409
      %v943 = vunpack.c.l.b16 %v410
      %v944 = vunpack.c.l.b16 %v411
      %v945 = vunpack.c.l.b16 %v412
      %v946 = vunpack.c.l.b16 %v413
      %v947 = vunpack.c.l.b16 %v414
      %v948 = vunpack.c.l.b16 %v415
      %v949 = vunpack.c.l.b16 %v416
      %v950 = vunpack.c.l.b16 %v417
      %v951 = vunpack.c.l.b16 %v418
      %v952 = vpack.c.b16 %v935, %v934
      %v953 = vpack.c.b16 %v937, %v936
      %v954 = vpack.c.b16 %v939, %v938
      %v955 = vpack.c.b16 %v941, %v940
      %v956 = vpack.c.b16 %v943, %v942
      %v957 = vpack.c.b16 %v945, %v944
      %v958 = vpack.c.b16 %v947, %v946
      %v959 = vpack.c.b16 %v949, %v948
      %v960 = vpack.c.b16 %v951, %v950
      %v1002 = vunpack.c.l.b16 %v446
      %v1003 = vunpack.c.h.b16 %v446
      %v1004 = vunpack.c.l.b16 %v447
      %v1005 = vunpack.c.h.b16 %v447
      %v1006 = vunpack.c.l.b16 %v448
      %v1007 = vunpack.c.h.b16 %v448
      %v1008 = vunpack.c.l.b16 %v449
      %v1009 = vunpack.c.h.b16 %v449
      %v1010 = vunpack.c.l.b16 %v450
      %v1011 = vunpack.c.h.b16 %v450
      %v1012 = vunpack.c.l.b16 %v451
      %v1013 = vunpack.c.h.b16 %v451
      %v1014 = vunpack.c.l.b16 %v452
      %v1015 = vunpack.c.h.b16 %v452
      %v1016 = vunpack.c.l.b16 %v453
      %v1017 = vunpack.c.h.b16 %v453
      %v1018 = vunpack.c.l.b16 %v454
      %v1019 = vunpack.c.h.b16 %v454
      %v1020 = vunpack.c.l.b16 %v455
      %v1021 = vunpack.c.h.b16 %v455
      %v1022 = vunpack.c.l.b16 %v456
      %v1023 = vunpack.c.h.b16 %v456
      %v1024 = vunpack.c.l.b16 %v457
      %v1025 = vunpack.c.h.b16 %v457
      %v1026 = vunpack.c.l.b16 %v458
      %v1027 = vunpack.c.h.b16 %v458
      %v1028 = vunpack.c.l.b16 %v459
      %v1029 = vunpack.c.h.b16 %v459
      %v1030 = vunpack.c.l.b16 %v460
      %v1031 = vunpack.c.h.b16 %v460
      %v1032 = vunpack.c.l.b16 %v461
      %v1033 = vunpack.c.h.b16 %v461
      %v1034 = vunpack.c.l.b16 %v462
      %v1035 = vunpack.c.h.b16 %v462
      %v1036 = vunpack.c.l.b16 %v463
      %v1037 = vunpack.c.h.b16 %v463
      %v1038 = vunpack.c.l.b16 %v464
      %v1039 = vunpack.c.h.b16 %v464
      %v1040 = vunpack.c.l.b16 %v465
      %v1041 = vunpack.c.h.b16 %v465
      %v1042 = vunpack.c.l.b16 %v466
      %v1043 = vunpack.c.h.b16 %v466
      %v1044 = vunpack.c.l.b16 %v467
      %v1045 = vunpack.c.h.b16 %v467
      %v1046 = vunpack.c.l.b16 %v468
      %v1047 = vunpack.c.h.b16 %v468
      %v1048 = vunpack.c.l.b16 %v469
      %v1049 = vunpack.c.h.b16 %v469
      %v1050 = vunpack.c.l.b16 %v470
      %v1051 = vunpack.c.h.b16 %v470
      %v1052 = vunpack.c.l.b16 %v471
      %v1053 = vunpack.c.h.b16 %v471
      %v1054 = vunpack.c.l.b16 %v472
      %v1055 = vunpack.c.h.b16 %v472
      %v1056 = vunpack.c.l.b16 %v473
      %v1057 = vunpack.c.h.b16 %v473
      %v1058 = vunpack.c.l.b16 %v474
      %v1059 = vunpack.c.h.b16 %v474
      %v1060 = vunpack.c.l.b16 %v475
      %v1061 = vunpack.c.h.b16 %v475
      %v1062 = vunpack.c.l.b16 %v476
      %v1063 = vunpack.c.h.b16 %v476
      %v1064 = vunpack.c.l.b16 %v477
      %v1065 = vunpack.c.h.b16 %v477
      %v1066 = vpack.c.b16 %v1006, %v1002
      %v1067 = vpack.c.b16 %v1007, %v1003
      %v1068 = vpack.c.b16 %v1008, %v1004
      %v1069 = vpack.c.b16 %v1009, %v1005
      %v1070 = vpack.c.b16 %v1014, %v1010
      %v1071 = vpack.c.b16 %v1015, %v1011
      %v1072 = vpack.c.b16 %v1016, %v1012
      %v1073 = vpack.c.b16 %v1017, %v1013
      %v1074 = vpack.c.b16 %v1022, %v1018
      %v1075 = vpack.c.b16 %v1023, %v1019
      %v1076 = vpack.c.b16 %v1024, %v1020
      %v1077 = vpack.c.b16 %v1025, %v1021
      %v1078 = vpack.c.b16 %v1030, %v1026
      %v1079 = vpack.c.b16 %v1031, %v1027
      %v1080 = vpack.c.b16 %v1032, %v1028
      %v1081 = vpack.c.b16 %v1033, %v1029
      %v1082 = vpack.c.b16 %v1038, %v1034
      %v1083 = vpack.c.b16 %v1039, %v1035
      %v1084 = vpack.c.b16 %v1040, %v1036
      %v1085 = vpack.c.b16 %v1041, %v1037
      %v1086 = vpack.c.b16 %v1046, %v1042
      %v1087 = vpack.c.b16 %v1047, %v1043
      %v1088 = vpack.c.b16 %v1048, %v1044
      %v1089 = vpack.c.b16 %v1049, %v1045
      %v1090 = vpack.c.b16 %v1054, %v1050
      %v1091 = vpack.c.b16 %v1055, %v1051
      %v1092 = vpack.c.b16 %v1056, %v1052
      %v1093 = vpack.c.b16 %v1057, %v1053
      %v1094 = vpack.c.b16 %v1062, %v1058
      %v1095 = vpack.c.b16 %v1063, %v1059
      %v1096 = vpack.c.b16 %v1064, %v1060
      %v1097 = vpack.c.b16 %v1065, %v1061
      %1130 = vmatprep.subr.bf16.mxu0 %v1067
      %1131 = vmatpush1.bf16.msra.mxu0 %v1066
      %1132 = vmatprep.subr.bf16.mxu0 %v1071
      %1133 = vmatpush1.bf16.msra.mxu0 %v1070
      %1134 = vmatprep.subr.bf16.mxu0 %v1075
      %1135 = vmatpush1.bf16.msra.mxu0 %v1074
      %1136 = vmatprep.subr.bf16.mxu0 %v1079
      %1137 = vmatpush1.bf16.msra.mxu0 %v1078
      %1138 = vmatprep.subr.bf16.mxu0 %v1083
      %1139 = vmatpush1.bf16.msra.mxu0 %v1082
      %1140 = vmatprep.subr.bf16.mxu0 %v1087
      %1141 = vmatpush1.bf16.msra.mxu0 %v1086
      %1142 = vmatprep.subr.bf16.mxu0 %v1091
      %1143 = vmatpush1.bf16.msra.mxu0 %v1090
      %1144 = vmatprep.subr.bf16.mxu0 %v1095
      %1145 = vmatpush1.bf16.msra.mxu0 %v1094
      %1146 = vmatprep.subr.bf16.mxu0 0
      %1147 = vmatpush1.bf16.msra.mxu0 0
      %1148 = vmatprep.subr.bf16.mxu0 0
      %1149 = vmatpush1.bf16.msra.mxu0 0
      %1150 = vmatprep.subr.bf16.mxu0 0
      %1151 = vmatpush1.bf16.msra.mxu0 0
      %1152 = vmatprep.subr.bf16.mxu0 0
      %1153 = vmatpush1.bf16.msra.mxu0 0
      %1154 = vmatprep.subr.bf16.mxu0 0
      %1155 = vmatpush1.bf16.msra.mxu0 0
      %1156 = vmatprep.subr.bf16.mxu0 0
      %1157 = vmatpush1.bf16.msra.mxu0 0
      %1158 = vmatprep.subr.bf16.mxu0 0
      %1159 = vmatpush1.bf16.msra.mxu0 0
      %1160 = vmatprep.subr.bf16.mxu0 0
      %1161 = vmatpush1.bf16.msra.mxu0 0
      %1162 = vmatprep.mubr.bf16.mxu0 0
      %1163 = vmatmul.mubr.bf16.gmra.mrb[0].mxu0 %v952
      %v1164 = vpop.f32.mrb[0].mxu0
      %v1165 = vadd.f32 %v705, %v1164
      %v1166 = vpop.f32.mrb[0].mxu0
      %v1167 = vadd.f32 %v707, %v1166
      %v1168 = vpop.f32.mrb[0].mxu0
      %v1169 = vadd.f32 %v709, %v1168
      %v1170 = vpop.f32.mrb[0].mxu0
      %v1171 = vadd.f32 %v711, %v1170
      %1172 = vmatprep.mubr.bf16.mxu0 0
      %1173 = vmatmul.mubr.bf16.gmra.mrb[0].mxu0 %v953
      %v1174 = vpop.f32.mrb[0].mxu0
      %v1175 = vadd.f32 %v715, %v1174
      %v1176 = vpop.f32.mrb[0].mxu0
      %v1177 = vadd.f32 %v717, %v1176
      %v1178 = vpop.f32.mrb[0].mxu0
      %v1179 = vadd.f32 %v719, %v1178
      %v1180 = vpop.f32.mrb[0].mxu0
      %v1181 = vadd.f32 %v721, %v1180
      %1182 = vmatprep.mubr.bf16.mxu0 0
      %1183 = vmatmul.mubr.bf16.gmra.mrb[0].mxu0 %v954
      %v1184 = vpop.f32.mrb[0].mxu0
      %v1185 = vadd.f32 %v725, %v1184
      %v1186 = vpop.f32.mrb[0].mxu0
      %v1187 = vadd.f32 %v727, %v1186
      %v1188 = vpop.f32.mrb[0].mxu0
      %v1189 = vadd.f32 %v729, %v1188
      %v1190 = vpop.f32.mrb[0].mxu0
      %v1191 = vadd.f32 %v731, %v1190
      %1192 = vmatprep.mubr.bf16.mxu0 0
      %1193 = vmatmul.mubr.bf16.gmra.mrb[0].mxu0 %v955
      %v1194 = vpop.f32.mrb[0].mxu0
      %v1195 = vadd.f32 %v735, %v1194
      %v1196 = vpop.f32.mrb[0].mxu0
      %v1197 = vadd.f32 %v737, %v1196
      %v1198 = vpop.f32.mrb[0].mxu0
      %v1199 = vadd.f32 %v739, %v1198
      %v1200 = vpop.f32.mrb[0].mxu0
      %v1201 = vadd.f32 %v741, %v1200
      %1202 = vmatprep.mubr.bf16.mxu0 0
      %1203 = vmatmul.mubr.bf16.gmra.mrb[0].mxu0 %v956
      %v1204 = vpop.f32.mrb[0].mxu0
      %v1205 = vadd.f32 %v745, %v1204
      %v1206 = vpop.f32.mrb[0].mxu0
      %v1207 = vadd.f32 %v747, %v1206
      %v1208 = vpop.f32.mrb[0].mxu0
      %v1209 = vadd.f32 %v749, %v1208
      %v1210 = vpop.f32.mrb[0].mxu0
      %v1211 = vadd.f32 %v751, %v1210
      %1212 = vmatprep.mubr.bf16.mxu0 0
      %1213 = vmatmul.mubr.bf16.gmra.mrb[0].mxu0 %v957
      %v1214 = vpop.f32.mrb[0].mxu0
      %v1215 = vadd.f32 %v755, %v1214
      %v1216 = vpop.f32.mrb[0].mxu0
      %v1217 = vadd.f32 %v757, %v1216
      %v1218 = vpop.f32.mrb[0].mxu0
      %v1219 = vadd.f32 %v759, %v1218
      %v1220 = vpop.f32.mrb[0].mxu0
      %v1221 = vadd.f32 %v761, %v1220
      %1222 = vmatprep.mubr.bf16.mxu0 0
      %1223 = vmatmul.mubr.bf16.gmra.mrb[0].mxu0 %v958
      %v1224 = vpop.f32.mrb[0].mxu0
      %v1225 = vadd.f32 %v765, %v1224
      %v1226 = vpop.f32.mrb[0].mxu0
      %v1227 = vadd.f32 %v767, %v1226
      %v1228 = vpop.f32.mrb[0].mxu0
      %v1229 = vadd.f32 %v769, %v1228
      %v1230 = vpop.f32.mrb[0].mxu0
      %v1231 = vadd.f32 %v771, %v1230
      %1232 = vmatprep.mubr.bf16.mxu0 0
      %1233 = vmatmul.mubr.bf16.gmra.mrb[0].mxu0 %v959
      %v1234 = vpop.f32.mrb[0].mxu0
      %v1235 = vadd.f32 %v775, %v1234
      %v1236 = vpop.f32.mrb[0].mxu0
      %v1237 = vadd.f32 %v777, %v1236
      %v1238 = vpop.f32.mrb[0].mxu0
      %v1239 = vadd.f32 %v779, %v1238
      %v1240 = vpop.f32.mrb[0].mxu0
      %v1241 = vadd.f32 %v781, %v1240
      %1242 = vmatprep.mubr.bf16.mxu0 0
      %1243 = vmatmul.mubr.bf16.gmra.mrb[0].mxu0 %v960
      %v1244 = vpop.f32.mrb[0].mxu0
      %v1245 = vadd.f32 %v785, %v1244
      %v1246 = vpop.f32.mrb[0].mxu0
      %v1247 = vadd.f32 %v787, %v1246
      %v1248 = vpop.f32.mrb[0].mxu0
      %v1249 = vadd.f32 %v789, %v1248
      %v1250 = vpop.f32.mrb[0].mxu0
      %v1251 = vadd.f32 %v791, %v1250
      %1252 = vdwg.mxu0
      %1253 = vmatprep.subr.bf16.mxu0 %v1069
      %1254 = vmatpush1.bf16.msra.mxu0 %v1068
      %1255 = vmatprep.subr.bf16.mxu0 %v1073
      %1256 = vmatpush1.bf16.msra.mxu0 %v1072
      %1257 = vmatprep.subr.bf16.mxu0 %v1077
      %1258 = vmatpush1.bf16.msra.mxu0 %v1076
      %1259 = vmatprep.subr.bf16.mxu0 %v1081
      %1260 = vmatpush1.bf16.msra.mxu0 %v1080
      %1261 = vmatprep.subr.bf16.mxu0 %v1085
      %1262 = vmatpush1.bf16.msra.mxu0 %v1084
      %1263 = vmatprep.subr.bf16.mxu0 %v1089
      %1264 = vmatpush1.bf16.msra.mxu0 %v1088
      %1265 = vmatprep.subr.bf16.mxu0 %v1093
      %1266 = vmatpush1.bf16.msra.mxu0 %v1092
      %1267 = vmatprep.subr.bf16.mxu0 %v1097
      %1268 = vmatpush1.bf16.msra.mxu0 %v1096
      %1269 = vmatprep.subr.bf16.mxu0 0
      %1270 = vmatpush1.bf16.msra.mxu0 0
      %1271 = vmatprep.subr.bf16.mxu0 0
      %1272 = vmatpush1.bf16.msra.mxu0 0
      %1273 = vmatprep.subr.bf16.mxu0 0
      %1274 = vmatpush1.bf16.msra.mxu0 0
      %1275 = vmatprep.subr.bf16.mxu0 0
      %1276 = vmatpush1.bf16.msra.mxu0 0
      %1277 = vmatprep.subr.bf16.mxu0 0
      %1278 = vmatpush1.bf16.msra.mxu0 0
      %1279 = vmatprep.subr.bf16.mxu0 0
      %1280 = vmatpush1.bf16.msra.mxu0 0
      %1281 = vmatprep.subr.bf16.mxu0 0
      %1282 = vmatpush1.bf16.msra.mxu0 0
      %1283 = vmatprep.subr.bf16.mxu0 0
      %1284 = vmatpush1.bf16.msra.mxu0 0
      %1285 = vmatprep.mubr.bf16.mxu0 0
      %1286 = vmatmul.mubr.bf16.gmra.mrb[0].mxu0 %v952
      %v1287 = vpop.f32.mrb[0].mxu0
      %v1288 = vadd.f32 %v828, %v1287
      %v1289 = vpop.f32.mrb[0].mxu0
      %v1290 = vadd.f32 %v830, %v1289
      %v1291 = vpop.f32.mrb[0].mxu0
      %v1292 = vadd.f32 %v832, %v1291
      %v1293 = vpop.f32.mrb[0].mxu0
      %v1294 = vadd.f32 %v834, %v1293
      %1295 = vmatprep.mubr.bf16.mxu0 0
      %1296 = vmatmul.mubr.bf16.gmra.mrb[0].mxu0 %v953
      %v1297 = vpop.f32.mrb[0].mxu0
      %v1298 = vadd.f32 %v838, %v1297
      %v1299 = vpop.f32.mrb[0].mxu0
      %v1300 = vadd.f32 %v840, %v1299
      %v1301 = vpop.f32.mrb[0].mxu0
      %v1302 = vadd.f32 %v842, %v1301
      %v1303 = vpop.f32.mrb[0].mxu0
      %v1304 = vadd.f32 %v844, %v1303
      %1305 = vmatprep.mubr.bf16.mxu0 0
      %1306 = vmatmul.mubr.bf16.gmra.mrb[0].mxu0 %v954
      %v1307 = vpop.f32.mrb[0].mxu0
      %v1308 = vadd.f32 %v848, %v1307
      %v1309 = vpop.f32.mrb[0].mxu0
      %v1310 = vadd.f32 %v850, %v1309
      %v1311 = vpop.f32.mrb[0].mxu0
      %v1312 = vadd.f32 %v852, %v1311
      %v1313 = vpop.f32.mrb[0].mxu0
      %v1314 = vadd.f32 %v854, %v1313
      %1315 = vmatprep.mubr.bf16.mxu0 0
      %1316 = vmatmul.mubr.bf16.gmra.mrb[0].mxu0 %v955
      %v1317 = vpop.f32.mrb[0].mxu0
      %v1318 = vadd.f32 %v858, %v1317
      %v1319 = vpop.f32.mrb[0].mxu0
      %v1320 = vadd.f32 %v860, %v1319
      %v1321 = vpop.f32.mrb[0].mxu0
      %v1322 = vadd.f32 %v862, %v1321
      %v1323 = vpop.f32.mrb[0].mxu0
      %v1324 = vadd.f32 %v864, %v1323
      %1325 = vmatprep.mubr.bf16.mxu0 0
      %1326 = vmatmul.mubr.bf16.gmra.mrb[0].mxu0 %v956
      %v1327 = vpop.f32.mrb[0].mxu0
      %v1328 = vadd.f32 %v868, %v1327
      %v1329 = vpop.f32.mrb[0].mxu0
      %v1330 = vadd.f32 %v870, %v1329
      %v1331 = vpop.f32.mrb[0].mxu0
      %v1332 = vadd.f32 %v872, %v1331
      %v1333 = vpop.f32.mrb[0].mxu0
      %v1334 = vadd.f32 %v874, %v1333
      %1335 = vmatprep.mubr.bf16.mxu0 0
      %1336 = vmatmul.mubr.bf16.gmra.mrb[0].mxu0 %v957
      %v1337 = vpop.f32.mrb[0].mxu0
      %v1338 = vadd.f32 %v878, %v1337
      %v1339 = vpop.f32.mrb[0].mxu0
      %v1340 = vadd.f32 %v880, %v1339
      %v1341 = vpop.f32.mrb[0].mxu0
      %v1342 = vadd.f32 %v882, %v1341
      %v1343 = vpop.f32.mrb[0].mxu0
      %v1344 = vadd.f32 %v884, %v1343
      %1345 = vmatprep.mubr.bf16.mxu0 0
      %1346 = vmatmul.mubr.bf16.gmra.mrb[0].mxu0 %v958
      %v1347 = vpop.f32.mrb[0].mxu0
      %v1348 = vadd.f32 %v888, %v1347
      %v1349 = vpop.f32.mrb[0].mxu0
      %v1350 = vadd.f32 %v890, %v1349
      %v1351 = vpop.f32.mrb[0].mxu0
      %v1352 = vadd.f32 %v892, %v1351
      %v1353 = vpop.f32.mrb[0].mxu0
      %v1354 = vadd.f32 %v894, %v1353
      %1355 = vmatprep.mubr.bf16.mxu0 0
      %1356 = vmatmul.mubr.bf16.gmra.mrb[0].mxu0 %v959
      %v1357 = vpop.f32.mrb[0].mxu0
      %v1358 = vadd.f32 %v898, %v1357
      %v1359 = vpop.f32.mrb[0].mxu0
      %v1360 = vadd.f32 %v900, %v1359
      %v1361 = vpop.f32.mrb[0].mxu0
      %v1362 = vadd.f32 %v902, %v1361
      %v1363 = vpop.f32.mrb[0].mxu0
      %v1364 = vadd.f32 %v904, %v1363
      %1365 = vmatprep.mubr.bf16.mxu0 0
      %1366 = vmatmul.mubr.bf16.gmra.mrb[0].mxu0 %v960
      %v1367 = vpop.f32.mrb[0].mxu0
      %v1368 = vadd.f32 %v908, %v1367
      %v1369 = vpop.f32.mrb[0].mxu0
      %v1370 = vadd.f32 %v910, %v1369
      %v1371 = vpop.f32.mrb[0].mxu0
      %v1372 = vadd.f32 %v912, %v1371
      %v1373 = vpop.f32.mrb[0].mxu0
      %v1374 = vadd.f32 %v914, %v1373
      %1375 = vdwg.mxu0
      %v1376 = vld [vmem:[%s3] sm:$0xf]
      %v1378 = vlaneseq
      %v1379 = vshrl.u32 %v1378, 7
      %v1380 = vsub.s32 0, %v1379
      %v1381 = vrot.slane %v1376, %v1380
      %v1382 = vlaneseq
      %v1383 = vshrl.u32 %v1382, 7
      %v1384 = vsub.s32 1, %v1383
      %v1385 = vrot.slane %v1376, %v1384
      %v1386 = vlaneseq
      %v1387 = vshrl.u32 %v1386, 7
      %v1388 = vsub.s32 2, %v1387
      %v1389 = vrot.slane %v1376, %v1388
      %v1390 = vlaneseq
      %v1391 = vshrl.u32 %v1390, 7
      %v1392 = vsub.s32 3, %v1391
      %v1393 = vrot.slane %v1376, %v1392
      %v1398 = vadd.f32 %v1165, %v1381
      %v1399 = vadd.f32 %v1167, %v1385
      %v1400 = vadd.f32 %v1288, %v1389
      %v1401 = vadd.f32 %v1290, %v1393
      %v1402 = vadd.f32 %v1169, %v1381
      %v1403 = vadd.f32 %v1171, %v1385
      %v1404 = vadd.f32 %v1292, %v1389
      %v1405 = vadd.f32 %v1294, %v1393
      %v1406 = vadd.f32 %v1175, %v1381
      %v1407 = vadd.f32 %v1177, %v1385
      %v1408 = vadd.f32 %v1298, %v1389
      %v1409 = vadd.f32 %v1300, %v1393
      %v1410 = vadd.f32 %v1179, %v1381
      %v1411 = vadd.f32 %v1181, %v1385
      %v1412 = vadd.f32 %v1302, %v1389
      %v1413 = vadd.f32 %v1304, %v1393
      %v1414 = vadd.f32 %v1185, %v1381
      %v1415 = vadd.f32 %v1187, %v1385
      %v1416 = vadd.f32 %v1308, %v1389
      %v1417 = vadd.f32 %v1310, %v1393
      %v1418 = vadd.f32 %v1189, %v1381
      %v1419 = vadd.f32 %v1191, %v1385
      %v1420 = vadd.f32 %v1312, %v1389
      %v1421 = vadd.f32 %v1314, %v1393
      %v1422 = vadd.f32 %v1195, %v1381
      %v1423 = vadd.f32 %v1197, %v1385
      %v1424 = vadd.f32 %v1318, %v1389
      %v1425 = vadd.f32 %v1320, %v1393
      %v1426 = vadd.f32 %v1199, %v1381
      %v1427 = vadd.f32 %v1201, %v1385
      %v1428 = vadd.f32 %v1322, %v1389
      %v1429 = vadd.f32 %v1324, %v1393
      %v1430 = vadd.f32 %v1205, %v1381
      %v1431 = vadd.f32 %v1207, %v1385
      %v1432 = vadd.f32 %v1328, %v1389
      %v1433 = vadd.f32 %v1330, %v1393
      %v1434 = vadd.f32 %v1209, %v1381
      %v1435 = vadd.f32 %v1211, %v1385
      %v1436 = vadd.f32 %v1332, %v1389
      %v1437 = vadd.f32 %v1334, %v1393
      %v1438 = vadd.f32 %v1215, %v1381
      %v1439 = vadd.f32 %v1217, %v1385
      %v1440 = vadd.f32 %v1338, %v1389
      %v1441 = vadd.f32 %v1340, %v1393
      %v1442 = vadd.f32 %v1219, %v1381
      %v1443 = vadd.f32 %v1221, %v1385
      %v1444 = vadd.f32 %v1342, %v1389
      %v1445 = vadd.f32 %v1344, %v1393
      %v1446 = vadd.f32 %v1225, %v1381
      %v1447 = vadd.f32 %v1227, %v1385
      %v1448 = vadd.f32 %v1348, %v1389
      %v1449 = vadd.f32 %v1350, %v1393
      %v1450 = vadd.f32 %v1229, %v1381
      %v1451 = vadd.f32 %v1231, %v1385
      %v1452 = vadd.f32 %v1352, %v1389
      %v1453 = vadd.f32 %v1354, %v1393
      %v1454 = vadd.f32 %v1235, %v1381
      %v1455 = vadd.f32 %v1237, %v1385
      %v1456 = vadd.f32 %v1358, %v1389
      %v1457 = vadd.f32 %v1360, %v1393
      %v1458 = vadd.f32 %v1239, %v1381
      %v1459 = vadd.f32 %v1241, %v1385
      %v1460 = vadd.f32 %v1362, %v1389
      %v1461 = vadd.f32 %v1364, %v1393
      %v1462 = vadd.f32 %v1245, %v1381
      %v1463 = vadd.f32 %v1247, %v1385
      %v1464 = vadd.f32 %v1368, %v1389
      %v1465 = vadd.f32 %v1370, %v1393
      %v1466 = vadd.f32 %v1249, %v1381
      %v1467 = vadd.f32 %v1251, %v1385
      %v1468 = vadd.f32 %v1372, %v1389
      %v1469 = vadd.f32 %v1374, %v1393
      %v1470 = vld [vmem:[%s4] sm:$0xff]
      %v1471 = vld [vmem:[%s4 + $0x8] sm:$0xff]
      %v1472 = vld [vmem:[%s4 + $0x10] sm:$0xff]
      %v1473 = vld [vmem:[%s4 + $0x18] sm:$0xff]
      %v1474 = vld [vmem:[%s4 + $0x20] sm:$0xff]
      %v1475 = vld [vmem:[%s4 + $0x28] sm:$0xff]
      %v1476 = vld [vmem:[%s4 + $0x30] sm:$0xff]
      %v1477 = vld [vmem:[%s4 + $0x38] sm:$0xff]
      %v1478 = vld [vmem:[%s4 + $0x40] sm:$0xff]
      %v1479 = vld [vmem:[%s4 + $0x48] sm:$0xff]
      %v1480 = vld [vmem:[%s4 + $0x50] sm:$0xff]
      %v1481 = vld [vmem:[%s4 + $0x58] sm:$0xff]
      %v1482 = vld [vmem:[%s4 + $0x60] sm:$0xff]
      %v1483 = vld [vmem:[%s4 + $0x68] sm:$0xff]
      %v1484 = vld [vmem:[%s4 + $0x70] sm:$0xff]
      %v1485 = vld [vmem:[%s4 + $0x78] sm:$0xff]
      %v1486 = vld [vmem:[%s4 + $0x80] sm:$0xff]
      %v1487 = vld [vmem:[%s4 + $0x88] sm:$0xff]
      %v1488 = vmul.f32 %v1470, %v428
      %v1489 = vmul.f32 %v1471, %v429
      %v1490 = vmul.f32 %v1472, %v430
      %v1491 = vmul.f32 %v1473, %v431
      %v1492 = vmul.f32 %v1474, %v432
      %v1493 = vmul.f32 %v1475, %v433
      %v1494 = vmul.f32 %v1476, %v434
      %v1495 = vmul.f32 %v1477, %v435
      %v1496 = vmul.f32 %v1478, %v436
      %v1497 = vmul.f32 %v1479, %v437
      %v1498 = vmul.f32 %v1480, %v438
      %v1499 = vmul.f32 %v1481, %v439
      %v1500 = vmul.f32 %v1482, %v440
      %v1501 = vmul.f32 %v1483, %v441
      %v1502 = vmul.f32 %v1484, %v442
      %v1503 = vmul.f32 %v1485, %v443
      %v1504 = vmul.f32 %v1486, %v444
      %v1505 = vmul.f32 %v1487, %v445
      %v1506 = vadd.f32 %v1398, %v1488
      %v1507 = vadd.f32 %v1402, %v1489
      %v1508 = vadd.f32 %v1406, %v1490
      %v1509 = vadd.f32 %v1410, %v1491
      %v1510 = vadd.f32 %v1414, %v1492
      %v1511 = vadd.f32 %v1418, %v1493
      %v1512 = vadd.f32 %v1422, %v1494
      %v1513 = vadd.f32 %v1426, %v1495
      %v1514 = vadd.f32 %v1430, %v1496
      %v1515 = vadd.f32 %v1434, %v1497
      %v1516 = vadd.f32 %v1438, %v1498
      %v1517 = vadd.f32 %v1442, %v1499
      %v1518 = vadd.f32 %v1446, %v1500
      %v1519 = vadd.f32 %v1450, %v1501
      %v1520 = vadd.f32 %v1454, %v1502
      %v1521 = vadd.f32 %v1458, %v1503
      %v1522 = vadd.f32 %v1462, %v1504
      %v1523 = vadd.f32 %v1466, %v1505
      %v1524 = vxor.u32 %v1506, 2147483648
      %v1525 = vxor.u32 %v1507, 2147483648
      %v1526 = vxor.u32 %v1508, 2147483648
      %v1527 = vxor.u32 %v1509, 2147483648
      %v1528 = vxor.u32 %v1510, 2147483648
      %v1529 = vxor.u32 %v1511, 2147483648
      %v1530 = vxor.u32 %v1512, 2147483648
      %v1531 = vxor.u32 %v1513, 2147483648
      %v1532 = vxor.u32 %v1514, 2147483648
      %v1533 = vxor.u32 %v1515, 2147483648
      %v1534 = vxor.u32 %v1516, 2147483648
      %v1535 = vxor.u32 %v1517, 2147483648
      %v1536 = vxor.u32 %v1518, 2147483648
      %v1537 = vxor.u32 %v1519, 2147483648
      %v1538 = vxor.u32 %v1520, 2147483648
      %v1539 = vxor.u32 %v1521, 2147483648
      %v1540 = vxor.u32 %v1522, 2147483648
      %v1541 = vxor.u32 %v1523, 2147483648
      %v1542 = vmul.f32 %v1524, 1.442695
      %v1543 = vpow.pop %v1542
      %v1544 = vmul.f32 %v1525, 1.442695
      %v1545 = vpow.pop %v1544
      %v1546 = vmul.f32 %v1526, 1.442695
      %v1547 = vpow.pop %v1546
      %v1548 = vmul.f32 %v1527, 1.442695
      %v1549 = vpow.pop %v1548
      %v1550 = vmul.f32 %v1528, 1.442695
      %v1551 = vpow.pop %v1550
      %v1552 = vmul.f32 %v1529, 1.442695
      %v1553 = vpow.pop %v1552
      %v1554 = vmul.f32 %v1530, 1.442695
      %v1555 = vpow.pop %v1554
      %v1556 = vmul.f32 %v1531, 1.442695
      %v1557 = vpow.pop %v1556
      %v1558 = vmul.f32 %v1532, 1.442695
      %v1559 = vpow.pop %v1558
      %v1560 = vmul.f32 %v1533, 1.442695
      %v1561 = vpow.pop %v1560
      %v1562 = vmul.f32 %v1534, 1.442695
      %v1563 = vpow.pop %v1562
      %v1564 = vmul.f32 %v1535, 1.442695
      %v1565 = vpow.pop %v1564
      %v1566 = vmul.f32 %v1536, 1.442695
      %v1567 = vpow.pop %v1566
      %v1568 = vmul.f32 %v1537, 1.442695
      %v1569 = vpow.pop %v1568
      %v1570 = vmul.f32 %v1538, 1.442695
      %v1571 = vpow.pop %v1570
      %v1572 = vmul.f32 %v1539, 1.442695
      %v1573 = vpow.pop %v1572
      %v1574 = vmul.f32 %v1540, 1.442695
      %v1575 = vpow.pop %v1574
      %v1576 = vmul.f32 %v1541, 1.442695
      %v1577 = vpow.pop %v1576
      %v1578 = vadd.f32 %v1543, 1.0
      %v1579 = vadd.f32 %v1545, 1.0
      %v1580 = vadd.f32 %v1547, 1.0
      %v1581 = vadd.f32 %v1549, 1.0
      %v1582 = vadd.f32 %v1551, 1.0
      %v1583 = vadd.f32 %v1553, 1.0
      %v1584 = vadd.f32 %v1555, 1.0
      %v1585 = vadd.f32 %v1557, 1.0
      %v1586 = vadd.f32 %v1559, 1.0
      %v1587 = vadd.f32 %v1561, 1.0
      %v1588 = vadd.f32 %v1563, 1.0
      %v1589 = vadd.f32 %v1565, 1.0
      %v1590 = vadd.f32 %v1567, 1.0
      %v1591 = vadd.f32 %v1569, 1.0
      %v1592 = vadd.f32 %v1571, 1.0
      %v1593 = vadd.f32 %v1573, 1.0
      %v1594 = vadd.f32 %v1575, 1.0
      %v1595 = vadd.f32 %v1577, 1.0
      %v1596 = vrcp.pop %v1578
      %v1597 = vmul.f32 1.0, %v1596
      %v1598 = vrcp.pop %v1579
      %v1599 = vmul.f32 1.0, %v1598
      %v1600 = vrcp.pop %v1580
      %v1601 = vmul.f32 1.0, %v1600
      %v1602 = vrcp.pop %v1581
      %v1603 = vmul.f32 1.0, %v1602
      %v1604 = vrcp.pop %v1582
      %v1605 = vmul.f32 1.0, %v1604
      %v1606 = vrcp.pop %v1583
      %v1607 = vmul.f32 1.0, %v1606
      %v1608 = vrcp.pop %v1584
      %v1609 = vmul.f32 1.0, %v1608
      %v1610 = vrcp.pop %v1585
      %v1611 = vmul.f32 1.0, %v1610
      %v1612 = vrcp.pop %v1586
      %v1613 = vmul.f32 1.0, %v1612
      %v1614 = vrcp.pop %v1587
      %v1615 = vmul.f32 1.0, %v1614
      %v1616 = vrcp.pop %v1588
      %v1617 = vmul.f32 1.0, %v1616
      %v1618 = vrcp.pop %v1589
      %v1619 = vmul.f32 1.0, %v1618
      %v1620 = vrcp.pop %v1590
      %v1621 = vmul.f32 1.0, %v1620
      %v1622 = vrcp.pop %v1591
      %v1623 = vmul.f32 1.0, %v1622
      %v1624 = vrcp.pop %v1592
      %v1625 = vmul.f32 1.0, %v1624
      %v1626 = vrcp.pop %v1593
      %v1627 = vmul.f32 1.0, %v1626
      %v1628 = vrcp.pop %v1594
      %v1629 = vmul.f32 1.0, %v1628
      %v1630 = vrcp.pop %v1595
      %v1631 = vmul.f32 1.0, %v1630
      %v1632 = vld [vmem:[%s5] sm:$0xff]
      %v1633 = vld [vmem:[%s5 + $0x8] sm:$0xff]
      %v1634 = vld [vmem:[%s5 + $0x10] sm:$0xff]
      %v1635 = vld [vmem:[%s5 + $0x18] sm:$0xff]
      %v1636 = vld [vmem:[%s5 + $0x20] sm:$0xff]
      %v1637 = vld [vmem:[%s5 + $0x28] sm:$0xff]
      %v1638 = vld [vmem:[%s5 + $0x30] sm:$0xff]
      %v1639 = vld [vmem:[%s5 + $0x38] sm:$0xff]
      %v1640 = vld [vmem:[%s5 + $0x40] sm:$0xff]
      %v1641 = vld [vmem:[%s5 + $0x48] sm:$0xff]
      %v1642 = vld [vmem:[%s5 + $0x50] sm:$0xff]
      %v1643 = vld [vmem:[%s5 + $0x58] sm:$0xff]
      %v1644 = vld [vmem:[%s5 + $0x60] sm:$0xff]
      %v1645 = vld [vmem:[%s5 + $0x68] sm:$0xff]
      %v1646 = vld [vmem:[%s5 + $0x70] sm:$0xff]
      %v1647 = vld [vmem:[%s5 + $0x78] sm:$0xff]
      %v1648 = vld [vmem:[%s5 + $0x80] sm:$0xff]
      %v1649 = vld [vmem:[%s5 + $0x88] sm:$0xff]
      %v1650 = vmul.f32 %v1632, %v428
      %v1651 = vmul.f32 %v1633, %v429
      %v1652 = vmul.f32 %v1634, %v430
      %v1653 = vmul.f32 %v1635, %v431
      %v1654 = vmul.f32 %v1636, %v432
      %v1655 = vmul.f32 %v1637, %v433
      %v1656 = vmul.f32 %v1638, %v434
      %v1657 = vmul.f32 %v1639, %v435
      %v1658 = vmul.f32 %v1640, %v436
      %v1659 = vmul.f32 %v1641, %v437
      %v1660 = vmul.f32 %v1642, %v438
      %v1661 = vmul.f32 %v1643, %v439
      %v1662 = vmul.f32 %v1644, %v440
      %v1663 = vmul.f32 %v1645, %v441
      %v1664 = vmul.f32 %v1646, %v442
      %v1665 = vmul.f32 %v1647, %v443
      %v1666 = vmul.f32 %v1648, %v444
      %v1667 = vmul.f32 %v1649, %v445
      %v1668 = vadd.f32 %v1399, %v1650
      %v1669 = vadd.f32 %v1403, %v1651
      %v1670 = vadd.f32 %v1407, %v1652
      %v1671 = vadd.f32 %v1411, %v1653
      %v1672 = vadd.f32 %v1415, %v1654
      %v1673 = vadd.f32 %v1419, %v1655
      %v1674 = vadd.f32 %v1423, %v1656
      %v1675 = vadd.f32 %v1427, %v1657
      %v1676 = vadd.f32 %v1431, %v1658
      %v1677 = vadd.f32 %v1435, %v1659
      %v1678 = vadd.f32 %v1439, %v1660
      %v1679 = vadd.f32 %v1443, %v1661
      %v1680 = vadd.f32 %v1447, %v1662
      %v1681 = vadd.f32 %v1451, %v1663
      %v1682 = vadd.f32 %v1455, %v1664
      %v1683 = vadd.f32 %v1459, %v1665
      %v1684 = vadd.f32 %v1463, %v1666
      %v1685 = vadd.f32 %v1467, %v1667
      %v1686 = vxor.u32 %v1668, 2147483648
      %v1687 = vxor.u32 %v1669, 2147483648
      %v1688 = vxor.u32 %v1670, 2147483648
      %v1689 = vxor.u32 %v1671, 2147483648
      %v1690 = vxor.u32 %v1672, 2147483648
      %v1691 = vxor.u32 %v1673, 2147483648
      %v1692 = vxor.u32 %v1674, 2147483648
      %v1693 = vxor.u32 %v1675, 2147483648
      %v1694 = vxor.u32 %v1676, 2147483648
      %v1695 = vxor.u32 %v1677, 2147483648
      %v1696 = vxor.u32 %v1678, 2147483648
      %v1697 = vxor.u32 %v1679, 2147483648
      %v1698 = vxor.u32 %v1680, 2147483648
      %v1699 = vxor.u32 %v1681, 2147483648
      %v1700 = vxor.u32 %v1682, 2147483648
      %v1701 = vxor.u32 %v1683, 2147483648
      %v1702 = vxor.u32 %v1684, 2147483648
      %v1703 = vxor.u32 %v1685, 2147483648
      %v1704 = vmul.f32 %v1686, 1.442695
      %v1705 = vpow.pop %v1704
      %v1706 = vmul.f32 %v1687, 1.442695
      %v1707 = vpow.pop %v1706
      %v1708 = vmul.f32 %v1688, 1.442695
      %v1709 = vpow.pop %v1708
      %v1710 = vmul.f32 %v1689, 1.442695
      %v1711 = vpow.pop %v1710
      %v1712 = vmul.f32 %v1690, 1.442695
      %v1713 = vpow.pop %v1712
      %v1714 = vmul.f32 %v1691, 1.442695
      %v1715 = vpow.pop %v1714
      %v1716 = vmul.f32 %v1692, 1.442695
      %v1717 = vpow.pop %v1716
      %v1718 = vmul.f32 %v1693, 1.442695
      %v1719 = vpow.pop %v1718
      %v1720 = vmul.f32 %v1694, 1.442695
      %v1721 = vpow.pop %v1720
      %v1722 = vmul.f32 %v1695, 1.442695
      %v1723 = vpow.pop %v1722
      %v1724 = vmul.f32 %v1696, 1.442695
      %v1725 = vpow.pop %v1724
      %v1726 = vmul.f32 %v1697, 1.442695
      %v1727 = vpow.pop %v1726
      %v1728 = vmul.f32 %v1698, 1.442695
      %v1729 = vpow.pop %v1728
      %v1730 = vmul.f32 %v1699, 1.442695
      %v1731 = vpow.pop %v1730
      %v1732 = vmul.f32 %v1700, 1.442695
      %v1733 = vpow.pop %v1732
      %v1734 = vmul.f32 %v1701, 1.442695
      %v1735 = vpow.pop %v1734
      %v1736 = vmul.f32 %v1702, 1.442695
      %v1737 = vpow.pop %v1736
      %v1738 = vmul.f32 %v1703, 1.442695
      %v1739 = vpow.pop %v1738
      %v1740 = vadd.f32 %v1705, 1.0
      %v1741 = vadd.f32 %v1707, 1.0
      %v1742 = vadd.f32 %v1709, 1.0
      %v1743 = vadd.f32 %v1711, 1.0
      %v1744 = vadd.f32 %v1713, 1.0
      %v1745 = vadd.f32 %v1715, 1.0
      %v1746 = vadd.f32 %v1717, 1.0
      %v1747 = vadd.f32 %v1719, 1.0
      %v1748 = vadd.f32 %v1721, 1.0
      %v1749 = vadd.f32 %v1723, 1.0
      %v1750 = vadd.f32 %v1725, 1.0
      %v1751 = vadd.f32 %v1727, 1.0
      %v1752 = vadd.f32 %v1729, 1.0
      %v1753 = vadd.f32 %v1731, 1.0
      %v1754 = vadd.f32 %v1733, 1.0
      %v1755 = vadd.f32 %v1735, 1.0
      %v1756 = vadd.f32 %v1737, 1.0
      %v1757 = vadd.f32 %v1739, 1.0
      %v1758 = vrcp.pop %v1740
      %v1759 = vmul.f32 1.0, %v1758
      %v1760 = vrcp.pop %v1741
      %v1761 = vmul.f32 1.0, %v1760
      %v1762 = vrcp.pop %v1742
      %v1763 = vmul.f32 1.0, %v1762
      %v1764 = vrcp.pop %v1743
      %v1765 = vmul.f32 1.0, %v1764
      %v1766 = vrcp.pop %v1744
      %v1767 = vmul.f32 1.0, %v1766
      %v1768 = vrcp.pop %v1745
      %v1769 = vmul.f32 1.0, %v1768
      %v1770 = vrcp.pop %v1746
      %v1771 = vmul.f32 1.0, %v1770
      %v1772 = vrcp.pop %v1747
      %v1773 = vmul.f32 1.0, %v1772
      %v1774 = vrcp.pop %v1748
      %v1775 = vmul.f32 1.0, %v1774
      %v1776 = vrcp.pop %v1749
      %v1777 = vmul.f32 1.0, %v1776
      %v1778 = vrcp.pop %v1750
      %v1779 = vmul.f32 1.0, %v1778
      %v1780 = vrcp.pop %v1751
      %v1781 = vmul.f32 1.0, %v1780
      %v1782 = vrcp.pop %v1752
      %v1783 = vmul.f32 1.0, %v1782
      %v1784 = vrcp.pop %v1753
      %v1785 = vmul.f32 1.0, %v1784
      %v1786 = vrcp.pop %v1754
      %v1787 = vmul.f32 1.0, %v1786
      %v1788 = vrcp.pop %v1755
      %v1789 = vmul.f32 1.0, %v1788
      %v1790 = vrcp.pop %v1756
      %v1791 = vmul.f32 1.0, %v1790
      %v1792 = vrcp.pop %v1757
      %v1793 = vmul.f32 1.0, %v1792
      %v1794 = vmul.f32 %v1759, %v428
      %v1795 = vmul.f32 %v1761, %v429
      %v1796 = vmul.f32 %v1763, %v430
      %v1797 = vmul.f32 %v1765, %v431
      %v1798 = vmul.f32 %v1767, %v432
      %v1799 = vmul.f32 %v1769, %v433
      %v1800 = vmul.f32 %v1771, %v434
      %v1801 = vmul.f32 %v1773, %v435
      %v1802 = vmul.f32 %v1775, %v436
      %v1803 = vmul.f32 %v1777, %v437
      %v1804 = vmul.f32 %v1779, %v438
      %v1805 = vmul.f32 %v1781, %v439
      %v1806 = vmul.f32 %v1783, %v440
      %v1807 = vmul.f32 %v1785, %v441
      %v1808 = vmul.f32 %v1787, %v442
      %v1809 = vmul.f32 %v1789, %v443
      %v1810 = vmul.f32 %v1791, %v444
      %v1811 = vmul.f32 %v1793, %v445
      %v1812 = vmax.f32 %v1400, 0.0
      %v1813 = vmax.f32 %v1404, 0.0
      %v1814 = vmax.f32 %v1408, 0.0
      %v1815 = vmax.f32 %v1412, 0.0
      %v1816 = vmax.f32 %v1416, 0.0
      %v1817 = vmax.f32 %v1420, 0.0
      %v1818 = vmax.f32 %v1424, 0.0
      %v1819 = vmax.f32 %v1428, 0.0
      %v1820 = vmax.f32 %v1432, 0.0
      %v1821 = vmax.f32 %v1436, 0.0
      %v1822 = vmax.f32 %v1440, 0.0
      %v1823 = vmax.f32 %v1444, 0.0
      %v1824 = vmax.f32 %v1448, 0.0
      %v1825 = vmax.f32 %v1452, 0.0
      %v1826 = vmax.f32 %v1456, 0.0
      %v1827 = vmax.f32 %v1460, 0.0
      %v1828 = vmax.f32 %v1464, 0.0
      %v1829 = vmax.f32 %v1468, 0.0
      %v1830 = vmul.f32 %v1597, %v1812
      %v1831 = vmul.f32 %v1599, %v1813
      %v1832 = vmul.f32 %v1601, %v1814
      %v1833 = vmul.f32 %v1603, %v1815
      %v1834 = vmul.f32 %v1605, %v1816
      %v1835 = vmul.f32 %v1607, %v1817
      %v1836 = vmul.f32 %v1609, %v1818
      %v1837 = vmul.f32 %v1611, %v1819
      %v1838 = vmul.f32 %v1613, %v1820
      %v1839 = vmul.f32 %v1615, %v1821
      %v1840 = vmul.f32 %v1617, %v1822
      %v1841 = vmul.f32 %v1619, %v1823
      %v1842 = vmul.f32 %v1621, %v1824
      %v1843 = vmul.f32 %v1623, %v1825
      %v1844 = vmul.f32 %v1625, %v1826
      %v1845 = vmul.f32 %v1627, %v1827
      %v1846 = vmul.f32 %v1629, %v1828
      %v1847 = vmul.f32 %v1631, %v1829
      %v1848 = vadd.f32 %v1794, %v1830
      %v1849 = vadd.f32 %v1795, %v1831
      %v1850 = vadd.f32 %v1796, %v1832
      %v1851 = vadd.f32 %v1797, %v1833
      %v1852 = vadd.f32 %v1798, %v1834
      %v1853 = vadd.f32 %v1799, %v1835
      %v1854 = vadd.f32 %v1800, %v1836
      %v1855 = vadd.f32 %v1801, %v1837
      %v1856 = vadd.f32 %v1802, %v1838
      %v1857 = vadd.f32 %v1803, %v1839
      %v1858 = vadd.f32 %v1804, %v1840
      %v1859 = vadd.f32 %v1805, %v1841
      %v1860 = vadd.f32 %v1806, %v1842
      %v1861 = vadd.f32 %v1807, %v1843
      %v1862 = vadd.f32 %v1808, %v1844
      %v1863 = vadd.f32 %v1809, %v1845
      %v1864 = vadd.f32 %v1810, %v1846
      %v1865 = vadd.f32 %v1811, %v1847
      %v1866 = vld [vmem:[%s6] sm:$0xff]
      %v1867 = vld [vmem:[%s6 + $0x8] sm:$0xff]
      %v1868 = vld [vmem:[%s6 + $0x10] sm:$0xff]
      %v1869 = vld [vmem:[%s6 + $0x18] sm:$0xff]
      %v1870 = vld [vmem:[%s6 + $0x20] sm:$0xff]
      %v1871 = vld [vmem:[%s6 + $0x28] sm:$0xff]
      %v1872 = vld [vmem:[%s6 + $0x30] sm:$0xff]
      %v1873 = vld [vmem:[%s6 + $0x38] sm:$0xff]
      %v1874 = vld [vmem:[%s6 + $0x40] sm:$0xff]
      %v1875 = vld [vmem:[%s6 + $0x48] sm:$0xff]
      %v1876 = vld [vmem:[%s6 + $0x50] sm:$0xff]
      %v1877 = vld [vmem:[%s6 + $0x58] sm:$0xff]
      %v1878 = vld [vmem:[%s6 + $0x60] sm:$0xff]
      %v1879 = vld [vmem:[%s6 + $0x68] sm:$0xff]
      %v1880 = vld [vmem:[%s6 + $0x70] sm:$0xff]
      %v1881 = vld [vmem:[%s6 + $0x78] sm:$0xff]
      %v1882 = vld [vmem:[%s6 + $0x80] sm:$0xff]
      %v1883 = vld [vmem:[%s6 + $0x88] sm:$0xff]
      %v1884 = vmul.f32 %v1866, %v1848
      %v1885 = vmul.f32 %v1867, %v1849
      %v1886 = vmul.f32 %v1868, %v1850
      %v1887 = vmul.f32 %v1869, %v1851
      %v1888 = vmul.f32 %v1870, %v1852
      %v1889 = vmul.f32 %v1871, %v1853
      %v1890 = vmul.f32 %v1872, %v1854
      %v1891 = vmul.f32 %v1873, %v1855
      %v1892 = vmul.f32 %v1874, %v1856
      %v1893 = vmul.f32 %v1875, %v1857
      %v1894 = vmul.f32 %v1876, %v1858
      %v1895 = vmul.f32 %v1877, %v1859
      %v1896 = vmul.f32 %v1878, %v1860
      %v1897 = vmul.f32 %v1879, %v1861
      %v1898 = vmul.f32 %v1880, %v1862
      %v1899 = vmul.f32 %v1881, %v1863
      %v1900 = vmul.f32 %v1882, %v1864
      %v1901 = vmul.f32 %v1883, %v1865
      %v1902 = vadd.f32 %v1401, %v1884
      %v1903 = vadd.f32 %v1405, %v1885
      %v1904 = vadd.f32 %v1409, %v1886
      %v1905 = vadd.f32 %v1413, %v1887
      %v1906 = vadd.f32 %v1417, %v1888
      %v1907 = vadd.f32 %v1421, %v1889
      %v1908 = vadd.f32 %v1425, %v1890
      %v1909 = vadd.f32 %v1429, %v1891
      %v1910 = vadd.f32 %v1433, %v1892
      %v1911 = vadd.f32 %v1437, %v1893
      %v1912 = vadd.f32 %v1441, %v1894
      %v1913 = vadd.f32 %v1445, %v1895
      %v1914 = vadd.f32 %v1449, %v1896
      %v1915 = vadd.f32 %v1453, %v1897
      %v1916 = vadd.f32 %v1457, %v1898
      %v1917 = vadd.f32 %v1461, %v1899
      %v1918 = vadd.f32 %v1465, %v1900
      %v1919 = vadd.f32 %v1469, %v1901
      %v1920 = vxor.u32 %v1902, 2147483648
      %v1921 = vxor.u32 %v1903, 2147483648
      %v1922 = vxor.u32 %v1904, 2147483648
      %v1923 = vxor.u32 %v1905, 2147483648
      %v1924 = vxor.u32 %v1906, 2147483648
      %v1925 = vxor.u32 %v1907, 2147483648
      %v1926 = vxor.u32 %v1908, 2147483648
      %v1927 = vxor.u32 %v1909, 2147483648
      %v1928 = vxor.u32 %v1910, 2147483648
      %v1929 = vxor.u32 %v1911, 2147483648
      %v1930 = vxor.u32 %v1912, 2147483648
      %v1931 = vxor.u32 %v1913, 2147483648
      %v1932 = vxor.u32 %v1914, 2147483648
      %v1933 = vxor.u32 %v1915, 2147483648
      %v1934 = vxor.u32 %v1916, 2147483648
      %v1935 = vxor.u32 %v1917, 2147483648
      %v1936 = vxor.u32 %v1918, 2147483648
      %v1937 = vxor.u32 %v1919, 2147483648
      %v1938 = vmul.f32 %v1920, 1.442695
      %v1939 = vpow.pop %v1938
      %v1940 = vmul.f32 %v1921, 1.442695
      %v1941 = vpow.pop %v1940
      %v1942 = vmul.f32 %v1922, 1.442695
      %v1943 = vpow.pop %v1942
      %v1944 = vmul.f32 %v1923, 1.442695
      %v1945 = vpow.pop %v1944
      %v1946 = vmul.f32 %v1924, 1.442695
      %v1947 = vpow.pop %v1946
      %v1948 = vmul.f32 %v1925, 1.442695
      %v1949 = vpow.pop %v1948
      %v1950 = vmul.f32 %v1926, 1.442695
      %v1951 = vpow.pop %v1950
      %v1952 = vmul.f32 %v1927, 1.442695
      %v1953 = vpow.pop %v1952
      %v1954 = vmul.f32 %v1928, 1.442695
      %v1955 = vpow.pop %v1954
      %v1956 = vmul.f32 %v1929, 1.442695
      %v1957 = vpow.pop %v1956
      %v1958 = vmul.f32 %v1930, 1.442695
      %v1959 = vpow.pop %v1958
      %v1960 = vmul.f32 %v1931, 1.442695
      %v1961 = vpow.pop %v1960
      %v1962 = vmul.f32 %v1932, 1.442695
      %v1963 = vpow.pop %v1962
      %v1964 = vmul.f32 %v1933, 1.442695
      %v1965 = vpow.pop %v1964
      %v1966 = vmul.f32 %v1934, 1.442695
      %v1967 = vpow.pop %v1966
      %v1968 = vmul.f32 %v1935, 1.442695
      %v1969 = vpow.pop %v1968
      %v1970 = vmul.f32 %v1936, 1.442695
      %v1971 = vpow.pop %v1970
      %v1972 = vmul.f32 %v1937, 1.442695
      %v1973 = vpow.pop %v1972
      %v1974 = vadd.f32 %v1939, 1.0
      %v1975 = vadd.f32 %v1941, 1.0
      %v1976 = vadd.f32 %v1943, 1.0
      %v1977 = vadd.f32 %v1945, 1.0
      %v1978 = vadd.f32 %v1947, 1.0
      %v1979 = vadd.f32 %v1949, 1.0
      %v1980 = vadd.f32 %v1951, 1.0
      %v1981 = vadd.f32 %v1953, 1.0
      %v1982 = vadd.f32 %v1955, 1.0
      %v1983 = vadd.f32 %v1957, 1.0
      %v1984 = vadd.f32 %v1959, 1.0
      %v1985 = vadd.f32 %v1961, 1.0
      %v1986 = vadd.f32 %v1963, 1.0
      %v1987 = vadd.f32 %v1965, 1.0
      %v1988 = vadd.f32 %v1967, 1.0
      %v1989 = vadd.f32 %v1969, 1.0
      %v1990 = vadd.f32 %v1971, 1.0
      %v1991 = vadd.f32 %v1973, 1.0
      %v1992 = vrcp.pop %v1974
      %v1993 = vmul.f32 1.0, %v1992
      %v1994 = vrcp.pop %v1975
      %v1995 = vmul.f32 1.0, %v1994
      %v1996 = vrcp.pop %v1976
      %v1997 = vmul.f32 1.0, %v1996
      %v1998 = vrcp.pop %v1977
      %v1999 = vmul.f32 1.0, %v1998
      %v2000 = vrcp.pop %v1978
      %v2001 = vmul.f32 1.0, %v2000
      %v2002 = vrcp.pop %v1979
      %v2003 = vmul.f32 1.0, %v2002
      %v2004 = vrcp.pop %v1980
      %v2005 = vmul.f32 1.0, %v2004
      %v2006 = vrcp.pop %v1981
      %v2007 = vmul.f32 1.0, %v2006
      %v2008 = vrcp.pop %v1982
      %v2009 = vmul.f32 1.0, %v2008
      %v2010 = vrcp.pop %v1983
      %v2011 = vmul.f32 1.0, %v2010
      %v2012 = vrcp.pop %v1984
      %v2013 = vmul.f32 1.0, %v2012
      %v2014 = vrcp.pop %v1985
      %v2015 = vmul.f32 1.0, %v2014
      %v2016 = vrcp.pop %v1986
      %v2017 = vmul.f32 1.0, %v2016
      %v2018 = vrcp.pop %v1987
      %v2019 = vmul.f32 1.0, %v2018
      %v2020 = vrcp.pop %v1988
      %v2021 = vmul.f32 1.0, %v2020
      %v2022 = vrcp.pop %v1989
      %v2023 = vmul.f32 1.0, %v2022
      %v2024 = vrcp.pop %v1990
      %v2025 = vmul.f32 1.0, %v2024
      %v2026 = vrcp.pop %v1991
      %v2027 = vmul.f32 1.0, %v2026
      %v2028 = vmax.f32 %v1848, 0.0
      %v2029 = vmax.f32 %v1849, 0.0
      %v2030 = vmax.f32 %v1850, 0.0
      %v2031 = vmax.f32 %v1851, 0.0
      %v2032 = vmax.f32 %v1852, 0.0
      %v2033 = vmax.f32 %v1853, 0.0
      %v2034 = vmax.f32 %v1854, 0.0
      %v2035 = vmax.f32 %v1855, 0.0
      %v2036 = vmax.f32 %v1856, 0.0
      %v2037 = vmax.f32 %v1857, 0.0
      %v2038 = vmax.f32 %v1858, 0.0
      %v2039 = vmax.f32 %v1859, 0.0
      %v2040 = vmax.f32 %v1860, 0.0
      %v2041 = vmax.f32 %v1861, 0.0
      %v2042 = vmax.f32 %v1862, 0.0
      %v2043 = vmax.f32 %v1863, 0.0
      %v2044 = vmax.f32 %v1864, 0.0
      %v2045 = vmax.f32 %v1865, 0.0
      %v2046 = vmul.f32 %v1993, %v2028
      %v2047 = vmul.f32 %v1995, %v2029
      %v2048 = vmul.f32 %v1997, %v2030
      %v2049 = vmul.f32 %v1999, %v2031
      %v2050 = vmul.f32 %v2001, %v2032
      %v2051 = vmul.f32 %v2003, %v2033
      %v2052 = vmul.f32 %v2005, %v2034
      %v2053 = vmul.f32 %v2007, %v2035
      %v2054 = vmul.f32 %v2009, %v2036
      %v2055 = vmul.f32 %v2011, %v2037
      %v2056 = vmul.f32 %v2013, %v2038
      %v2057 = vmul.f32 %v2015, %v2039
      %v2058 = vmul.f32 %v2017, %v2040
      %v2059 = vmul.f32 %v2019, %v2041
      %v2060 = vmul.f32 %v2021, %v2042
      %v2061 = vmul.f32 %v2023, %v2043
      %v2062 = vmul.f32 %v2025, %v2044
      %v2063 = vmul.f32 %v2027, %v2045
      %2064 = vst [vmem:[#allocation3] sm:$0xff] %v1848
      %2065 = vst [vmem:[#allocation3 + $0x8] sm:$0xff] %v1849
      %2066 = vst [vmem:[#allocation3 + $0x10] sm:$0xff] %v1850
      %2067 = vst [vmem:[#allocation3 + $0x18] sm:$0xff] %v1851
      %2068 = vst [vmem:[#allocation3 + $0x20] sm:$0xff] %v1852
      %2069 = vst [vmem:[#allocation3 + $0x28] sm:$0xff] %v1853
      %2070 = vst [vmem:[#allocation3 + $0x30] sm:$0xff] %v1854
      %2071 = vst [vmem:[#allocation3 + $0x38] sm:$0xff] %v1855
      %2072 = vst [vmem:[#allocation3 + $0x40] sm:$0xff] %v1856
      %2073 = vst [vmem:[#allocation3 + $0x48] sm:$0xff] %v1857
      %2074 = vst [vmem:[#allocation3 + $0x50] sm:$0xff] %v1858
      %2075 = vst [vmem:[#allocation3 + $0x58] sm:$0xff] %v1859
      %2076 = vst [vmem:[#allocation3 + $0x60] sm:$0xff] %v1860
      %2077 = vst [vmem:[#allocation3 + $0x68] sm:$0xff] %v1861
      %2078 = vst [vmem:[#allocation3 + $0x70] sm:$0xff] %v1862
      %2079 = vst [vmem:[#allocation3 + $0x78] sm:$0xff] %v1863
      %2080 = vst [vmem:[#allocation3 + $0x80] sm:$0xff] %v1864
      %2081 = vst [vmem:[#allocation3 + $0x88] sm:$0xff] %v1865
      %v2082 = vpack.c.bf16 %v2047, %v2046
      %v2083 = vpack.c.bf16 %v2049, %v2048
      %v2084 = vpack.c.bf16 %v2051, %v2050
      %v2085 = vpack.c.bf16 %v2053, %v2052
      %v2086 = vpack.c.bf16 %v2055, %v2054
      %v2087 = vpack.c.bf16 %v2057, %v2056
      %v2088 = vpack.c.bf16 %v2059, %v2058
      %v2089 = vpack.c.bf16 %v2061, %v2060
      %v2090 = vpack.c.bf16 %v2063, %v2062
      %2091 = vst [vmem:[#allocation2] sm:$0xff] %v2082
      %2092 = vst [vmem:[#allocation2 + $0x8] sm:$0xff] %v2083
      %2093 = vst [vmem:[#allocation2 + $0x10] sm:$0xff] %v2084
      %2094 = vst [vmem:[#allocation2 + $0x18] sm:$0xff] %v2085
      %2095 = vst [vmem:[#allocation2 + $0x20] sm:$0xff] %v2086
      %2096 = vst [vmem:[#allocation2 + $0x28] sm:$0xff] %v2087
      %2097 = vst [vmem:[#allocation2 + $0x30] sm:$0xff] %v2088
      %2098 = vst [vmem:[#allocation2 + $0x38] sm:$0xff] %v2089
      %2099 = vst [vmem:[#allocation2 + $0x40] sm:$0xff] %v2090
      %v2100 = vld [vmem:[%s7] sm:$0xf]
      %v2101 = vld [vmem:[%s7 + $0x4] sm:$0xf]
      %v2102 = vld [vmem:[%s7 + $0x8] sm:$0xf]
      %v2103 = vld [vmem:[%s7 + $0xc] sm:$0xf]
      %v2104 = vld [vmem:[%s7 + $0x10] sm:$0xf]
      %v2105 = vld [vmem:[%s7 + $0x14] sm:$0xf]
      %v2106 = vld [vmem:[%s7 + $0x18] sm:$0xf]
      %v2107 = vld [vmem:[%s7 + $0x1c] sm:$0xf]
      %v2108 = vld [vmem:[%s7 + $0x20] sm:$0xf]
      %v2109 = vld [vmem:[%s7 + $0x24] sm:$0xf]
      %v2110 = vld [vmem:[%s7 + $0x28] sm:$0xf]
      %v2111 = vld [vmem:[%s7 + $0x2c] sm:$0xf]
      %v2112 = vld [vmem:[%s7 + $0x30] sm:$0xf]
      %v2113 = vld [vmem:[%s7 + $0x34] sm:$0xf]
      %v2114 = vld [vmem:[%s7 + $0x38] sm:$0xf]
      %v2115 = vld [vmem:[%s7 + $0x3c] sm:$0xf]
      %v2116 = vld [vmem:[%s8] sm:$0x1]
      %v2118 = vlaneseq
      %v2119 = vshrl.u32 %v2118, 7
      %v2120 = vsub.s32 0, %v2119
      %v2121 = vrot.slane %v2116, %v2120
      %v2139 = vunpack.c.l.b16 %v2100
      %v2140 = vunpack.c.l.b16 %v2101
      %v2141 = vunpack.c.l.b16 %v2102
      %v2142 = vunpack.c.l.b16 %v2103
      %v2143 = vunpack.c.l.b16 %v2104
      %v2144 = vunpack.c.l.b16 %v2105
      %v2145 = vunpack.c.l.b16 %v2106
      %v2146 = vunpack.c.l.b16 %v2107
      %v2147 = vunpack.c.l.b16 %v2108
      %v2148 = vunpack.c.l.b16 %v2109
      %v2149 = vunpack.c.l.b16 %v2110
      %v2150 = vunpack.c.l.b16 %v2111
      %v2151 = vunpack.c.l.b16 %v2112
      %v2152 = vunpack.c.l.b16 %v2113
      %v2153 = vunpack.c.l.b16 %v2114
      %v2154 = vunpack.c.l.b16 %v2115
      %v2155 = vpack.c.b16 %v2140, %v2139
      %v2156 = vpack.c.b16 %v2142, %v2141
      %v2157 = vpack.c.b16 %v2144, %v2143
      %v2158 = vpack.c.b16 %v2146, %v2145
      %v2159 = vpack.c.b16 %v2148, %v2147
      %v2160 = vpack.c.b16 %v2150, %v2149
      %v2161 = vpack.c.b16 %v2152, %v2151
      %v2162 = vpack.c.b16 %v2154, %v2153
      %2171 = vmatprep.subr.bf16.mxu0 0
      %2172 = vmatpush1.bf16.msra.mxu0 %v2155
      %2173 = vmatprep.subr.bf16.mxu0 0
      %2174 = vmatpush1.bf16.msra.mxu0 %v2156
      %2175 = vmatprep.subr.bf16.mxu0 0
      %2176 = vmatpush1.bf16.msra.mxu0 %v2157
      %2177 = vmatprep.subr.bf16.mxu0 0
      %2178 = vmatpush1.bf16.msra.mxu0 %v2158
      %2179 = vmatprep.subr.bf16.mxu0 0
      %2180 = vmatpush1.bf16.msra.mxu0 %v2159
      %2181 = vmatprep.subr.bf16.mxu0 0
      %2182 = vmatpush1.bf16.msra.mxu0 %v2160
      %2183 = vmatprep.subr.bf16.mxu0 0
      %2184 = vmatpush1.bf16.msra.mxu0 %v2161
      %2185 = vmatprep.subr.bf16.mxu0 0
      %2186 = vmatpush1.bf16.msra.mxu0 %v2162
      %2187 = vmatprep.subr.bf16.mxu0 0
      %2188 = vmatpush1.bf16.msra.mxu0 0
      %2189 = vmatprep.subr.bf16.mxu0 0
      %2190 = vmatpush1.bf16.msra.mxu0 0
      %2191 = vmatprep.subr.bf16.mxu0 0
      %2192 = vmatpush1.bf16.msra.mxu0 0
      %2193 = vmatprep.subr.bf16.mxu0 0
      %2194 = vmatpush1.bf16.msra.mxu0 0
      %2195 = vmatprep.subr.bf16.mxu0 0
      %2196 = vmatpush1.bf16.msra.mxu0 0
      %2197 = vmatprep.subr.bf16.mxu0 0
      %2198 = vmatpush1.bf16.msra.mxu0 0
      %2199 = vmatprep.subr.bf16.mxu0 0
      %2200 = vmatpush1.bf16.msra.mxu0 0
      %2201 = vmatprep.subr.bf16.mxu0 0
      %2202 = vmatpush1.bf16.msra.mxu0 0
      %2203 = vmatprep.mubr.bf16.mxu0 0
      %2204 = vmatmul.mubr.bf16.gmra.mrb[0].mxu0 %v2082
      %v2205 = vpop.f32.mrb[0].mxu0
      %v2206 = vadd.f32 %v2121, %v2205
      %v2207 = vpop.f32.mrb[0].mxu0
      %v2208 = vpop.f32.mrb[0].mxu0
      %v2209 = vadd.f32 %v2121, %v2208
      %v2210 = vpop.f32.mrb[0].mxu0
      %2211 = vmatprep.mubr.bf16.mxu0 0
      %2212 = vmatmul.mubr.bf16.gmra.mrb[0].mxu0 %v2083
      %v2213 = vpop.f32.mrb[0].mxu0
      %v2214 = vadd.f32 %v2121, %v2213
      %v2215 = vpop.f32.mrb[0].mxu0
      %v2216 = vpop.f32.mrb[0].mxu0
      %v2217 = vadd.f32 %v2121, %v2216
      %v2218 = vpop.f32.mrb[0].mxu0
      %2219 = vmatprep.mubr.bf16.mxu0 0
      %2220 = vmatmul.mubr.bf16.gmra.mrb[0].mxu0 %v2084
      %v2221 = vpop.f32.mrb[0].mxu0
      %v2222 = vadd.f32 %v2121, %v2221
      %v2223 = vpop.f32.mrb[0].mxu0
      %v2224 = vpop.f32.mrb[0].mxu0
      %v2225 = vadd.f32 %v2121, %v2224
      %v2226 = vpop.f32.mrb[0].mxu0
      %2227 = vmatprep.mubr.bf16.mxu0 0
      %2228 = vmatmul.mubr.bf16.gmra.mrb[0].mxu0 %v2085
      %v2229 = vpop.f32.mrb[0].mxu0
      %v2230 = vadd.f32 %v2121, %v2229
      %v2231 = vpop.f32.mrb[0].mxu0
      %v2232 = vpop.f32.mrb[0].mxu0
      %v2233 = vadd.f32 %v2121, %v2232
      %v2234 = vpop.f32.mrb[0].mxu0
      %2235 = vmatprep.mubr.bf16.mxu0 0
      %2236 = vmatmul.mubr.bf16.gmra.mrb[0].mxu0 %v2086
      %v2237 = vpop.f32.mrb[0].mxu0
      %v2238 = vadd.f32 %v2121, %v2237
      %v2239 = vpop.f32.mrb[0].mxu0
      %v2240 = vpop.f32.mrb[0].mxu0
      %v2241 = vadd.f32 %v2121, %v2240
      %v2242 = vpop.f32.mrb[0].mxu0
      %2243 = vmatprep.mubr.bf16.mxu0 0
      %2244 = vmatmul.mubr.bf16.gmra.mrb[0].mxu0 %v2087
      %v2245 = vpop.f32.mrb[0].mxu0
      %v2246 = vadd.f32 %v2121, %v2245
      %v2247 = vpop.f32.mrb[0].mxu0
      %v2248 = vpop.f32.mrb[0].mxu0
      %v2249 = vadd.f32 %v2121, %v2248
      %v2250 = vpop.f32.mrb[0].mxu0
      %2251 = vmatprep.mubr.bf16.mxu0 0
      %2252 = vmatmul.mubr.bf16.gmra.mrb[0].mxu0 %v2088
      %v2253 = vpop.f32.mrb[0].mxu0
      %v2254 = vadd.f32 %v2121, %v2253
      %v2255 = vpop.f32.mrb[0].mxu0
      %v2256 = vpop.f32.mrb[0].mxu0
      %v2257 = vadd.f32 %v2121, %v2256
      %v2258 = vpop.f32.mrb[0].mxu0
      %2259 = vmatprep.mubr.bf16.mxu0 0
      %2260 = vmatmul.mubr.bf16.gmra.mrb[0].mxu0 %v2089
      %v2261 = vpop.f32.mrb[0].mxu0
      %v2262 = vadd.f32 %v2121, %v2261
      %v2263 = vpop.f32.mrb[0].mxu0
      %v2264 = vpop.f32.mrb[0].mxu0
      %v2265 = vadd.f32 %v2121, %v2264
      %v2266 = vpop.f32.mrb[0].mxu0
      %2267 = vmatprep.mubr.bf16.mxu0 0
      %2268 = vmatmul.mubr.bf16.gmra.mrb[0].mxu0 %v2090
      %v2269 = vpop.f32.mrb[0].mxu0
      %v2270 = vadd.f32 %v2121, %v2269
      %v2271 = vpop.f32.mrb[0].mxu0
      %v2272 = vpop.f32.mrb[0].mxu0
      %v2273 = vadd.f32 %v2121, %v2272
      %v2274 = vpop.f32.mrb[0].mxu0
      %2275 = vdwg.mxu0
      %v2276 = vxor.u32 %v2206, 2147483648
      %v2277 = vxor.u32 %v2209, 2147483648
      %v2278 = vxor.u32 %v2214, 2147483648
      %v2279 = vxor.u32 %v2217, 2147483648
      %v2280 = vxor.u32 %v2222, 2147483648
      %v2281 = vxor.u32 %v2225, 2147483648
      %v2282 = vxor.u32 %v2230, 2147483648
      %v2283 = vxor.u32 %v2233, 2147483648
      %v2284 = vxor.u32 %v2238, 2147483648
      %v2285 = vxor.u32 %v2241, 2147483648
      %v2286 = vxor.u32 %v2246, 2147483648
      %v2287 = vxor.u32 %v2249, 2147483648
      %v2288 = vxor.u32 %v2254, 2147483648
      %v2289 = vxor.u32 %v2257, 2147483648
      %v2290 = vxor.u32 %v2262, 2147483648
      %v2291 = vxor.u32 %v2265, 2147483648
      %v2292 = vxor.u32 %v2270, 2147483648
      %v2293 = vxor.u32 %v2273, 2147483648
      %v2294 = vmul.f32 %v2276, 1.442695
      %v2295 = vpow.pop %v2294
      %v2296 = vmul.f32 %v2277, 1.442695
      %v2297 = vpow.pop %v2296
      %v2298 = vmul.f32 %v2278, 1.442695
      %v2299 = vpow.pop %v2298
      %v2300 = vmul.f32 %v2279, 1.442695
      %v2301 = vpow.pop %v2300
      %v2302 = vmul.f32 %v2280, 1.442695
      %v2303 = vpow.pop %v2302
      %v2304 = vmul.f32 %v2281, 1.442695
      %v2305 = vpow.pop %v2304
      %v2306 = vmul.f32 %v2282, 1.442695
      %v2307 = vpow.pop %v2306
      %v2308 = vmul.f32 %v2283, 1.442695
      %v2309 = vpow.pop %v2308
      %v2310 = vmul.f32 %v2284, 1.442695
      %v2311 = vpow.pop %v2310
      %v2312 = vmul.f32 %v2285, 1.442695
      %v2313 = vpow.pop %v2312
      %v2314 = vmul.f32 %v2286, 1.442695
      %v2315 = vpow.pop %v2314
      %v2316 = vmul.f32 %v2287, 1.442695
      %v2317 = vpow.pop %v2316
      %v2318 = vmul.f32 %v2288, 1.442695
      %v2319 = vpow.pop %v2318
      %v2320 = vmul.f32 %v2289, 1.442695
      %v2321 = vpow.pop %v2320
      %v2322 = vmul.f32 %v2290, 1.442695
      %v2323 = vpow.pop %v2322
      %v2324 = vmul.f32 %v2291, 1.442695
      %v2325 = vpow.pop %v2324
      %v2326 = vmul.f32 %v2292, 1.442695
      %v2327 = vpow.pop %v2326
      %v2328 = vmul.f32 %v2293, 1.442695
      %v2329 = vpow.pop %v2328
      %v2330 = vadd.f32 %v2295, 1.0
      %v2331 = vadd.f32 %v2297, 1.0
      %v2332 = vadd.f32 %v2299, 1.0
      %v2333 = vadd.f32 %v2301, 1.0
      %v2334 = vadd.f32 %v2303, 1.0
      %v2335 = vadd.f32 %v2305, 1.0
      %v2336 = vadd.f32 %v2307, 1.0
      %v2337 = vadd.f32 %v2309, 1.0
      %v2338 = vadd.f32 %v2311, 1.0
      %v2339 = vadd.f32 %v2313, 1.0
      %v2340 = vadd.f32 %v2315, 1.0
      %v2341 = vadd.f32 %v2317, 1.0
      %v2342 = vadd.f32 %v2319, 1.0
      %v2343 = vadd.f32 %v2321, 1.0
      %v2344 = vadd.f32 %v2323, 1.0
      %v2345 = vadd.f32 %v2325, 1.0
      %v2346 = vadd.f32 %v2327, 1.0
      %v2347 = vadd.f32 %v2329, 1.0
      %v2348 = vrcp.pop %v2330
      %v2349 = vmul.f32 1.0, %v2348
      %v2350 = vrcp.pop %v2331
      %v2351 = vmul.f32 1.0, %v2350
      %v2352 = vrcp.pop %v2332
      %v2353 = vmul.f32 1.0, %v2352
      %v2354 = vrcp.pop %v2333
      %v2355 = vmul.f32 1.0, %v2354
      %v2356 = vrcp.pop %v2334
      %v2357 = vmul.f32 1.0, %v2356
      %v2358 = vrcp.pop %v2335
      %v2359 = vmul.f32 1.0, %v2358
      %v2360 = vrcp.pop %v2336
      %v2361 = vmul.f32 1.0, %v2360
      %v2362 = vrcp.pop %v2337
      %v2363 = vmul.f32 1.0, %v2362
      %v2364 = vrcp.pop %v2338
      %v2365 = vmul.f32 1.0, %v2364
      %v2366 = vrcp.pop %v2339
      %v2367 = vmul.f32 1.0, %v2366
      %v2368 = vrcp.pop %v2340
      %v2369 = vmul.f32 1.0, %v2368
      %v2370 = vrcp.pop %v2341
      %v2371 = vmul.f32 1.0, %v2370
      %v2372 = vrcp.pop %v2342
      %v2373 = vmul.f32 1.0, %v2372
      %v2374 = vrcp.pop %v2343
      %v2375 = vmul.f32 1.0, %v2374
      %v2376 = vrcp.pop %v2344
      %v2377 = vmul.f32 1.0, %v2376
      %v2378 = vrcp.pop %v2345
      %v2379 = vmul.f32 1.0, %v2378
      %v2380 = vrcp.pop %v2346
      %v2381 = vmul.f32 1.0, %v2380
      %v2382 = vrcp.pop %v2347
      %v2383 = vmul.f32 1.0, %v2382
      %2384 = vst [vmem:[%s368] sm:$0xff] %v2349
      %2385 = vst [vmem:[%s368 + $0x8] sm:$0xff] %v2351
      %2386 = vst [vmem:[%s368 + $0x10] sm:$0xff] %v2353
      %2387 = vst [vmem:[%s368 + $0x18] sm:$0xff] %v2355
      %2388 = vst [vmem:[%s368 + $0x20] sm:$0xff] %v2357
      %2389 = vst [vmem:[%s368 + $0x28] sm:$0xff] %v2359
      %2390 = vst [vmem:[%s368 + $0x30] sm:$0xff] %v2361
      %2391 = vst [vmem:[%s368 + $0x38] sm:$0xff] %v2363
      %2392 = vst [vmem:[%s368 + $0x40] sm:$0xff] %v2365
      %2393 = vst [vmem:[%s368 + $0x48] sm:$0xff] %v2367
      %2394 = vst [vmem:[%s368 + $0x50] sm:$0xff] %v2369
      %2395 = vst [vmem:[%s368 + $0x58] sm:$0xff] %v2371
      %2396 = vst [vmem:[%s368 + $0x60] sm:$0xff] %v2373
      %2397 = vst [vmem:[%s368 + $0x68] sm:$0xff] %v2375
      %2398 = vst [vmem:[%s368 + $0x70] sm:$0xff] %v2377
      %2399 = vst [vmem:[%s368 + $0x78] sm:$0xff] %v2379
      %2400 = vst [vmem:[%s368 + $0x80] sm:$0xff] %v2381
      %2401 = vst [vmem:[%s368 + $0x88] sm:$0xff] %v2383
      %p2402 = scmp.lt.s32.totalorder %s24, 1
      %s2403 = scalar_select %p2402, %s24, 1
      %p2404 = scmp.lt.s32.totalorder %s25, 3
      %s2405 = scalar_select %p2404, %s25, 3
      %s2406 = smul.addr %s2405, 18
      %s2407 = smul.addr %s2403, 72
      %s2408 = sadd.s32 %s2406, %s2407
      %s2409 = smul.addr %s2408, 8
      %s2410 = scalar_lea.vmem %s9, %s2409
      // Predicated region
      $region61: #{conv3dlstm_forward.17} parent=55 // pred_check
        %p2411 = pneg %p248
      $region62: #{conv3dlstm_forward.17} parent=55 // pred_check_branch
        %2413 = sbr.rel (%p2411) target = $region64
      $region63: #{conv3dlstm_forward.17} parent=55 // pred_region
        _
      $region64: #{conv3dlstm_forward.17} parent=55 // pred_fallthru
        _
    $region56: #{conv3dlstm_forward.17} parent=5 // pred_fallthru
      _
    %p2414 = scmp.le.s32.totalorder 2, %s15
    // Predicated region
    $region65: #{conv3dlstm_forward.17} parent=5 // pred_check
      %p2415 = pneg %p2414
    $region66: #{conv3dlstm_forward.17} parent=5 // pred_check_branch
      %2417 = sbr.rel (%p2415) target = $region68
    $region67: #{conv3dlstm_forward.17} parent=5 // pred_region
      %s2418 = ssub.s32 %s15, 2
      // Predicated region
      $region69: #{conv3dlstm_forward.17} parent=67 // pred_check
        %p2419 = pneg %p254
      $region70: #{conv3dlstm_forward.17} parent=67 // pred_check_branch
        %2421 = sbr.rel (%p2419) target = $region72
      $region71: #{conv3dlstm_forward.17} parent=67 // pred_region
        %p2422 = scmp.lt.s32.totalorder %s26, 1
        %s2423 = scalar_select %p2422, %s26, 1
        %p2424 = scmp.lt.s32.totalorder %s27, 3
        %s2425 = scalar_select %p2424, %s27, 3
        %s2426 = smul.addr %s2425, 18
        %s2427 = smul.addr %s2423, 72
        %s2428 = sadd.s32 %s2426, %s2427
        %s2429 = smul.addr %s2428, 8
        %s2430 = scalar_lea.vmem %s9, %s2429
      $region72: #{conv3dlstm_forward.17} parent=67 // pred_fallthru
        _
    $region68: #{conv3dlstm_forward.17} parent=5 // pred_fallthru
      _
  $region6: #{conv3dlstm_forward.17} parent=0 // loop_footer
    %s19 = sadd.s32 1, %s15
  $region7: #{conv3dlstm_forward.17} parent=0 // loop_footer_branch
    %14 = sbr.rel target = $region3
  $region8: #{conv3dlstm_forward.17} parent=0 // loop_exit
    _

</llo_original>
